<compile_context>
chip_gen: v7x
topology: tpu7x:2x2x1
jax: 0.10.0
libtpu: 0.0.40
codegen_flags: <defaults>
</compile_context>

<pallas_src>
import functools
import math

import jax
import jax.numpy as jnp
from jax import lax
from jax.experimental import pallas as pl
from jax.experimental.pallas import tpu as pltpu


def _round_up(v, m):
    return ((v + m - 1) // m) * m


def _prelu(x, alpha):
    return jnp.where(x >= 0.0, x, alpha * x)


# ----------------------------------------------------------------------------
# Fused kernel: one grid step == one batch sample.
#   lhs0_ref : (R, 4*W*C)   phase-expanded sub-pixel GEMM lhs (ConvTranspose3d)
#   w0_ref   : (4*W*C, L)   packed ConvTranspose3d weight (output lanes padded)
#   w1/w2/w3 : (9*L, ·)     block-banded 3x3x3 conv weights (taps along K)
#   mask_ref : (R, L)       interior (non-border) mask -> realizes zero padding
#   alpha_ref: (4,) SMEM    PReLU slopes
#   a_ref    : (2G+R, L)    VMEM activation scratch with G zero guard rows
#   stage_ref: (R, 9*L)     VMEM staging buffer: 9 shifted copies side by side
# ----------------------------------------------------------------------------
def _decoder_block_kernel(lhs0_ref, w0_ref, b0_ref,
                          w1_ref, b1_ref, w2_ref, b2_ref,
                          w3_ref, b3_ref,
                          mask_ref, alpha_ref,
                          out_ref, a_ref, stage_ref,
                          *, R, Hg, G, L, apply_prelu4):
    f32 = jnp.float32

    # Zero only the guard rows; interior rows are always overwritten below.
    a_ref[0:G, :] = jnp.zeros((G, L), a_ref.dtype)
    a_ref[G + R:2 * G + R, :] = jnp.zeros((G, L), a_ref.dtype)

    # ---- layer 0: ConvTranspose3d(k=2, s=2, p=1) as one sub-pixel GEMM -----
    f = jnp.dot(lhs0_ref[...], w0_ref[...], preferred_element_type=f32)
    a0 = _prelu(f + b0_ref[...], alpha_ref[0]) * mask_ref[...]
    a_ref[G:G + R, :] = a0.astype(a_ref.dtype)

    # ---- 3x3x3 conv (pad=1): stage 9 shifted slices, one big GEMM ----------
    def conv3x3(w_ref, b_ref):
        for kd in range(3):
            for kh in range(3):
                t = kd * 3 + kh
                s = (kd - 1) * Hg + (kh - 1)
                stage_ref[:, t * L:(t + 1) * L] = a_ref[G + s:G + s + R, :]
        return jnp.dot(stage_ref[...], w_ref[...],
                       preferred_element_type=f32) + b_ref[...]

    # conv_inblock1 + PReLU
    a1 = _prelu(conv3x3(w1_ref, b1_ref), alpha_ref[1]) * mask_ref[...]
    a_ref[G:G + R, :] = a1.astype(a_ref.dtype)

    # conv_inblock2 + PReLU
    a2 = _prelu(conv3x3(w2_ref, b2_ref), alpha_ref[2]) * mask_ref[...]
    a_ref[G:G + R, :] = a2.astype(a_ref.dtype)

    # conv_output (+ PReLU unless output_feature == 1)
    o3 = conv3x3(w3_ref, b3_ref)
    if apply_prelu4:
        o3 = _prelu(o3, alpha_ref[3])
    out_ref[...] = o3.astype(out_ref.dtype)


# ----------------------------------------------------------------------------
# Wrapper-side packing (pure JAX, tiny one-shot ops)
# ----------------------------------------------------------------------------
def _pack_unpool_inputs(x):
    """x: (N, C, D, H, W) -> (N*Dg*Hg, 4*W*C) phase-expanded sub-pixel lhs."""
    N, C, D, H, W = x.shape
    Dg, Hg = 2 * D, 2 * H
    x_cl = jnp.transpose(x, (0, 2, 3, 4, 1))                      # (N, D, H, W, C)
    x_up = jnp.repeat(jnp.repeat(x_cl, 2, axis=1), 2, axis=2)     # (N, Dg, Hg, W, C)
    base = x_up.reshape(N, Dg, Hg, W * C)
    phase = (jnp.arange(Dg)[:, None] % 2) * 2 + (jnp.arange(Hg)[None, :] % 2)
    onehot = jax.nn.one_hot(phase, 4, dtype=base.dtype)           # (Dg, Hg, 4)
    lhs = base[:, :, :, None, :] * onehot[None, :, :, :, None]
    return lhs.reshape(N * Dg * Hg, 4 * W * C)


def _pack_unpool_weight(wt, W):
    """wt: ConvTranspose3d weight (Cin, Cout, 2, 2, 2) -> (4*W*Cin, Wg*Cout)."""
    Cin, Cout = wt.shape[0], wt.shape[1]
    Wg = 2 * W
    gw = jnp.arange(Wg)
    sel = (gw[:, None] // 2 == jnp.arange(W)[None, :]).astype(wt.dtype)   # (Wg, W)
    wt_perm = jnp.transpose(wt, (2, 3, 4, 0, 1))                  # (2,2,2,Cin,Cout)
    w_gw = wt_perm[:, :, gw % 2, :, :]                            # (2,2,Wg,Cin,Cout)
    res = jnp.einsum('gw,abgio->abwigo', sel, w_gw)               # (2,2,W,Cin,Wg,Cout)
    return res.reshape(4 * W * Cin, Wg * Cout)


def _pack_conv_weight(wc, Wg):
    """wc: Conv3d weight (Cout, Cin, 3, 3, 3) -> (9, Wg*Cin, Wg*Cout) banded."""
    Cout, Cin = wc.shape[0], wc.shape[1]
    w_in = jnp.arange(Wg)[:, None]
    wg = jnp.arange(Wg)[None, :]
    delta = w_in - wg                                             # (Wg, Wg)
    valid = (jnp.abs(delta) <= 1).astype(wc.dtype)
    kw_idx = jnp.clip(delta + 1, 0, 2)
    wc_perm = jnp.transpose(wc, (2, 3, 4, 1, 0))                  # (3,3,3,Cin,Cout)
    w_sel = wc_perm[:, :, kw_idx, :, :]                           # (3,3,Wg,Wg,Cin,Cout)
    w_sel = w_sel * valid[None, None, :, :, None, None]
    w_sel = jnp.transpose(w_sel, (0, 1, 2, 4, 3, 5))              # (3,3,w_in,ci,wg,co)
    return w_sel.reshape(9, Wg * Cin, Wg * Cout)


def _tile_bias(b, Wg):
    return jnp.tile(b, Wg).reshape(1, Wg * b.shape[0])


def _border_mask(Dg, Hg, Wg, C):
    dg = jnp.arange(Dg)
    hg = jnp.arange(Hg)
    wg = jnp.arange(Wg)
    row_ok = ((dg[:, None] >= 1) & (dg[:, None] <= Dg - 2) &
              (hg[None, :] >= 1) & (hg[None, :] <= Hg - 2))
    lane_ok = (wg >= 1) & (wg <= Wg - 2)
    mask = row_ok.reshape(Dg * Hg, 1) & jnp.repeat(lane_ok, C).reshape(1, Wg * C)
    return mask.astype(jnp.float32)


def _pad_conv_w(w, cout_p, cin_p):
    Co, Ci = w.shape[0], w.shape[1]
    return jnp.pad(w, ((0, cout_p - Co), (0, cin_p - Ci),
                       (0, 0), (0, 0), (0, 0)))


# ----------------------------------------------------------------------------
# decoder_block parameters + forward
# ----------------------------------------------------------------------------
def init_decoder_block(key, input_feature, output_feature, pooling_filter):
    ks = jax.random.split(key, 8)
    k3 = 3
    kp = pooling_filter

    def u(k, shape, fan_in):
        bound = 1.0 / jnp.sqrt(jnp.asarray(fan_in, jnp.float32))
        return jax.random.uniform(k, shape, jnp.float32, -bound, bound)

    params = {
        # ConvTranspose3d weight layout: (Cin, Cout, kd, kh, kw)
        "w_unpool": u(ks[0], (input_feature, input_feature, kp, kp, kp),
                      input_feature * kp ** 3),
        "b_unpool": u(ks[1], (input_feature,), input_feature * kp ** 3),
        # Conv3d weight layout: (Cout, Cin, kd, kh, kw)
        "w_in1": u(ks[2], (input_feature, input_feature, k3, k3, k3),
                   input_feature * k3 ** 3),
        "b_in1": u(ks[3], (input_feature,), input_feature * k3 ** 3),
        "w_in2": u(ks[4], (input_feature, input_feature, k3, k3, k3),
                   input_feature * k3 ** 3),
        "b_in2": u(ks[5], (input_feature,), input_feature * k3 ** 3),
        "w_out": u(ks[6], (output_feature, input_feature, k3, k3, k3),
                   input_feature * k3 ** 3),
        "b_out": u(ks[7], (output_feature,), input_feature * k3 ** 3),
        # PReLU default init (single shared parameter each)
        "alpha1": jnp.float32(0.25),
        "alpha2": jnp.float32(0.25),
        "alpha3": jnp.float32(0.25),
        "alpha4": jnp.float32(0.25),
    }
    return params


def decoder_block_forward(params, x, *, output_feature, pooling_filter,
                          use_dropout=False, use_bf16=True):
    # TODO(synk): train-mode nn.Dropout(0.2) not implemented; eval semantics only.
    del use_dropout
    assert pooling_filter == 2, "fused kernel assumes ConvTranspose3d(k=2, s=2, p=1)"

    N, C, D, H, W = x.shape
    Dg, Hg, Wg = 2 * D, 2 * H, 2 * W          # padded grid extents (= conv padded input)
    R = Dg * Hg                               # rows per sample
    Cf = output_feature

    # Pad channels so activation / output lanes are multiples of 128 (lane-dense).
    q = 128 // math.gcd(Wg, 128)
    Cp = _round_up(C, q)
    Cfp = _round_up(Cf, q)
    L = Wg * Cp                               # activation lanes (multiple of 128)
    Lout = Wg * Cfp                           # output lanes (multiple of 128)
    G = _round_up(Hg + 1, 8)                  # zero guard rows (>= one D-shift)
    assert R % 8 == 0

    cdt = jnp.bfloat16 if use_bf16 else jnp.float32
    f32 = jnp.float32

    # ---- pack operands (channel-padded where needed) -----------------------
    lhs0 = _pack_unpool_inputs(x).astype(cdt)                         # (N*R, 4*W*C)
    w_unpool_p = jnp.pad(params["w_unpool"],
                         ((0, 0), (0, Cp - C), (0, 0), (0, 0), (0, 0)))
    w0 = _pack_unpool_weight(w_unpool_p, W).astype(cdt)               # (4*W*C, L)
    w1 = _pack_conv_weight(_pad_conv_w(params["w_in1"], Cp, Cp),
                           Wg).reshape(9 * L, L).astype(cdt)
    w2 = _pack_conv_weight(_pad_conv_w(params["w_in2"], Cp, Cp),
                           Wg).reshape(9 * L, L).astype(cdt)
    w3 = _pack_conv_weight(_pad_conv_w(params["w_out"], Cfp, Cp),
                           Wg).reshape(9 * L, Lout).astype(cdt)
    b0 = _tile_bias(jnp.pad(params["b_unpool"], (0, Cp - C)), Wg).astype(f32)
    b1 = _tile_bias(jnp.pad(params["b_in1"], (0, Cp - C)), Wg).astype(f32)
    b2 = _tile_bias(jnp.pad(params["b_in2"], (0, Cp - C)), Wg).astype(f32)
    b3 = _tile_bias(jnp.pad(params["b_out"], (0, Cfp - Cf)), Wg).astype(f32)
    mask = _border_mask(Dg, Hg, Wg, Cp)                               # (R, L) f32
    alphas = jnp.stack([params["alpha1"], params["alpha2"],
                        params["alpha3"], params["alpha4"]]).astype(f32)

    K0 = lhs0.shape[1]
    kern = functools.partial(_decoder_block_kernel,
                             R=R, Hg=Hg, G=G, L=L,
                             apply_prelu4=(output_feature != 1))

    out_flat = pl.pallas_call(
        kern,
        out_shape=jax.ShapeDtypeStruct((N * R, Lout), jnp.float32),
        grid=(N,),
        in_specs=[
            pl.BlockSpec((R, K0), lambda n: (n, 0)),                  # lhs0 (per sample)
            pl.BlockSpec((K0, L), lambda n: (0, 0)),                  # w0
            pl.BlockSpec((1, L), lambda n: (0, 0)),                   # b0
            pl.BlockSpec((9 * L, L), lambda n: (0, 0)),               # w1 (K-concat taps)
            pl.BlockSpec((1, L), lambda n: (0, 0)),                   # b1
            pl.BlockSpec((9 * L, L), lambda n: (0, 0)),               # w2
            pl.BlockSpec((1, L), lambda n: (0, 0)),                   # b2
            pl.BlockSpec((9 * L, Lout), lambda n: (0, 0)),            # w3
            pl.BlockSpec((1, Lout), lambda n: (0, 0)),                # b3
            pl.BlockSpec((R, L), lambda n: (0, 0)),                   # border mask
            pl.BlockSpec(memory_space=pltpu.MemorySpace.SMEM),        # PReLU alphas
        ],
        out_specs=pl.BlockSpec((R, Lout), lambda n: (n, 0)),
        scratch_shapes=[pltpu.VMEM((2 * G + R, L), cdt),              # guarded activation
                        pltpu.VMEM((R, 9 * L), cdt)],                 # tap-staging buffer
        compiler_params=pltpu.CompilerParams(
            dimension_semantics=("parallel",)),
    )(lhs0, w0, b0, w1, b1, w2, b2, w3, b3, mask, alphas)

    y = out_flat.reshape(N, Dg, Hg, Wg, Cfp)[:, 1:Dg - 1, 1:Hg - 1, 1:Wg - 1, :Cf]
    return jnp.transpose(y, (0, 4, 1, 2, 3))                          # NCDHW


# ----------------------------------------------------------------------------
# Pure-JAX reference of the PyTorch module (for correctness check)
# ----------------------------------------------------------------------------
def _reference_forward(params, x, *, output_feature):
    dn = ('NCDHW', 'OIDHW', 'NCDHW')
    hp = lax.Precision.HIGHEST

    def prelu(v, a):
        return jnp.where(v >= 0, v, a * v)

    wt = params["w_unpool"]
    k = wt.shape[2]
    w_eq = jnp.transpose(jnp.flip(wt, (2, 3, 4)), (1, 0, 2, 3, 4))
    o = lax.conv_general_dilated(x, w_eq, window_strides=(1, 1, 1),
                                 padding=[(k - 2, k - 2)] * 3,
                                 lhs_dilation=(2, 2, 2),
                                 dimension_numbers=dn, precision=hp)
    o = prelu(o + params["b_unpool"][None, :, None, None, None], params["alpha1"])

    def conv(o, w, b, a, act=True):
        y = lax.conv_general_dilated(o, w, window_strides=(1, 1, 1),
                                     padding=[(1, 1)] * 3,
                                     dimension_numbers=dn, precision=hp)
        y = y + b[None, :, None, None, None]
        return prelu(y, a) if act else y

    o = conv(o, params["w_in1"], params["b_in1"], params["alpha2"])
    o = conv(o, params["w_in2"], params["b_in2"], params["alpha3"])
    o = conv(o, params["w_out"], params["b_out"], params["alpha4"],
             act=(output_feature != 1))
    return o


if __name__ == "__main__":
    input_feature = 4
    output_feature = 2
    pooling_filter = 2     # ConvTranspose3d(kernel=2, stride=2, padding=1)
    N, D, H, W = 2, 8, 8, 8

    key = jax.random.PRNGKey(0)
    pkey, xkey = jax.random.split(key)
    params = init_decoder_block(pkey, input_feature, output_feature,
                                pooling_filter)
    x = jax.random.normal(xkey, (N, input_feature, D, H, W), jnp.float32)

    ref = _reference_forward(params, x, output_feature=output_feature)
    # ConvTranspose3d(k=2, s=2, p=1): Dout = (D-1)*2 - 2 + 2 = 14
    expected = (N, output_feature, 2 * D - 2, 2 * H - 2, 2 * W - 2)

    # --- default path: bf16 operands, f32 accumulation ----------------------
    fwd_bf16 = jax.jit(functools.partial(
        decoder_block_forward,
        output_feature=output_feature,
        pooling_filter=pooling_filter,
        use_dropout=False, use_bf16=True))
    out_bf16 = fwd_bf16(params, x)
    jax.block_until_ready(out_bf16)
    assert out_bf16.shape == expected, (out_bf16.shape, expected)
    assert bool(jnp.all(jnp.isfinite(out_bf16)))
    err_bf16 = float(jnp.max(jnp.abs(out_bf16 - ref)))
    assert err_bf16 < 3e-2, f"bf16 path max abs error vs reference: {err_bf16}"

    # --- f32 path (exact parity check) ---------------------------------------
    fwd_f32 = jax.jit(functools.partial(
        decoder_block_forward,
        output_feature=output_feature,
        pooling_filter=pooling_filter,
        use_dropout=False, use_bf16=False))
    out_f32 = fwd_f32(params, x)
    jax.block_until_ready(out_f32)
    assert out_f32.shape == expected, (out_f32.shape, expected)
    err_f32 = float(jnp.max(jnp.abs(out_f32 - ref)))
    assert err_f32 < 2e-3, f"f32 path max abs error vs reference: {err_f32}"

    print("KERNEL_OK")
</pallas_src>

<mosaic_0001>
module attributes {stable_mosaic.version = 11 : i64} {
  func.func @_decoder_block_kernel(%arg0: i32, %arg1: memref<256x128xbf16, #tpu.memory_space<vmem>>, %arg2: memref<128x128xbf16, #tpu.memory_space<vmem>>, %arg3: memref<1x128xf32, #tpu.memory_space<vmem>>, %arg4: memref<1152x128xbf16, #tpu.memory_space<vmem>>, %arg5: memref<1x128xf32, #tpu.memory_space<vmem>>, %arg6: memref<1152x128xbf16, #tpu.memory_space<vmem>>, %arg7: memref<1x128xf32, #tpu.memory_space<vmem>>, %arg8: memref<1152x128xbf16, #tpu.memory_space<vmem>>, %arg9: memref<1x128xf32, #tpu.memory_space<vmem>>, %arg10: memref<256x128xf32, #tpu.memory_space<vmem>>, %arg11: memref<4xf32, #tpu.memory_space<smem>>, %arg12: memref<256x128xf32, #tpu.memory_space<vmem>>, %arg13: memref<304x128xbf16, #tpu.memory_space<vmem>>, %arg14: memref<256x1152xbf16, #tpu.memory_space<vmem>>) attributes {dimension_semantics = [#tpu.dimension_semantics<parallel>], iteration_bounds = array<i64: 2>, scalar_prefetch = 0 : i64, scratch_operands = 2 : i64, tpu.core_type = #tpu.core_type<tc>, window_params = [{transform_indices = @transform_0, window_bounds = array<i64: 256, 128>}, {pipeline_mode = #tpu.pipeline_mode<synchronous>, transform_indices = @transform_1, window_bounds = array<i64: 128, 128>}, {pipeline_mode = #tpu.pipeline_mode<synchronous>, transform_indices = @transform_2, window_bounds = array<i64: 1, 128>}, {pipeline_mode = #tpu.pipeline_mode<synchronous>, transform_indices = @transform_3, window_bounds = array<i64: 1152, 128>}, {pipeline_mode = #tpu.pipeline_mode<synchronous>, transform_indices = @transform_4, window_bounds = array<i64: 1, 128>}, {pipeline_mode = #tpu.pipeline_mode<synchronous>, transform_indices = @transform_5, window_bounds = array<i64: 1152, 128>}, {pipeline_mode = #tpu.pipeline_mode<synchronous>, transform_indices = @transform_6, window_bounds = array<i64: 1, 128>}, {pipeline_mode = #tpu.pipeline_mode<synchronous>, transform_indices = @transform_7, window_bounds = array<i64: 1152, 128>}, {pipeline_mode = #tpu.pipeline_mode<synchronous>, transform_indices = @transform_8, window_bounds = array<i64: 1, 128>}, {pipeline_mode = #tpu.pipeline_mode<synchronous>, transform_indices = @transform_9, window_bounds = array<i64: 256, 128>}, {transform_indices = @transform_10, window_bounds = array<i64: 4>}, {transform_indices = @transform_11, window_bounds = array<i64: 256, 128>}]} {
    %cst = arith.constant 0.000000e+00 : bf16
    %0 = vector.broadcast %cst : bf16 to vector<24x128xbf16>
    %c0 = arith.constant 0 : index
    %c0_0 = arith.constant 0 : index
    %1 = vector.load %arg13[%c0, %c0_0] : memref<304x128xbf16, #tpu.memory_space<vmem>>, vector<24x128xbf16>
    tpu.vector_store %arg13[%c0, %c0_0], %0 {strides = array<i32>} : memref<304x128xbf16, #tpu.memory_space<vmem>>, vector<24x128xbf16>,
    %cst_1 = arith.constant 0.000000e+00 : bf16
    %2 = vector.broadcast %cst_1 : bf16 to vector<24x128xbf16>
    %c280 = arith.constant 280 : index
    %c0_2 = arith.constant 0 : index
    %3 = vector.load %arg13[%c280, %c0_2] : memref<304x128xbf16, #tpu.memory_space<vmem>>, vector<24x128xbf16>
    tpu.vector_store %arg13[%c280, %c0_2], %2 {strides = array<i32>} : memref<304x128xbf16, #tpu.memory_space<vmem>>, vector<24x128xbf16>,
    %c0_3 = arith.constant 0 : index
    %c0_4 = arith.constant 0 : index
    %4 = vector.load %arg1[%c0_3, %c0_4] : memref<256x128xbf16, #tpu.memory_space<vmem>>, vector<256x128xbf16>
    %c0_5 = arith.constant 0 : index
    %c0_6 = arith.constant 0 : index
    %5 = vector.load %arg2[%c0_5, %c0_6] : memref<128x128xbf16, #tpu.memory_space<vmem>>, vector<128x128xbf16>
    %cst_7 = arith.constant dense<0.000000e+00> : vector<256x128xf32>
    %6 = tpu.matmul %4, %5, %cst_7 {dimension_numbers = #tpu.dot_dimension_numbers<[1], [0], [0], [1], [0, 0, 1, 1], [], []>} : vector<256x128xbf16>, vector<128x128xbf16>, vector<256x128xf32> -> vector<256x128xf32>
    %c0_8 = arith.constant 0 : index
    %c0_9 = arith.constant 0 : index
    %7 = vector.load %arg3[%c0_8, %c0_9] : memref<1x128xf32, #tpu.memory_space<vmem>>, vector<1x128xf32>
    %8 = vector.broadcast %7 : vector<1x128xf32> to vector<256x128xf32>
    %9 = arith.addf %6, %8 : vector<256x128xf32>
    %c0_10 = arith.constant 0 : index
    %10 = memref.load %arg11[%c0_10] : memref<4xf32, #tpu.memory_space<smem>>
    %cst_11 = arith.constant 0.000000e+00 : f32
    %11 = vector.broadcast %cst_11 : f32 to vector<256x128xf32>
    %12 = arith.cmpf oge, %9, %11 : vector<256x128xf32>
    %13 = vector.broadcast %10 : f32 to vector<256x128xf32>
    %14 = arith.mulf %13, %9 : vector<256x128xf32>
    %15 = arith.select %12, %9, %14 : vector<256x128xi1>, vector<256x128xf32>
    %c0_12 = arith.constant 0 : index
    %c0_13 = arith.constant 0 : index
    %16 = vector.load %arg10[%c0_12, %c0_13] : memref<256x128xf32, #tpu.memory_space<vmem>>, vector<256x128xf32>
    %17 = arith.mulf %15, %16 : vector<256x128xf32>
    %18 = arith.truncf %17 : vector<256x128xf32> to vector<256x128xbf16>
    %c24 = arith.constant 24 : index
    %c0_14 = arith.constant 0 : index
    %19 = vector.load %arg13[%c24, %c0_14] : memref<304x128xbf16, #tpu.memory_space<vmem>>, vector<256x128xbf16>
    tpu.vector_store %arg13[%c24, %c0_14], %18 {strides = array<i32>} : memref<304x128xbf16, #tpu.memory_space<vmem>>, vector<256x128xbf16>,
    %c7 = arith.constant 7 : index
    %c0_15 = arith.constant 0 : index
    %20 = vector.load %arg13[%c7, %c0_15] : memref<304x128xbf16, #tpu.memory_space<vmem>>, vector<256x128xbf16>
    %c0_16 = arith.constant 0 : index
    %c0_17 = arith.constant 0 : index
    %21 = vector.load %arg14[%c0_16, %c0_17] : memref<256x1152xbf16, #tpu.memory_space<vmem>>, vector<256x128xbf16>
    tpu.vector_store %arg14[%c0_16, %c0_17], %20 {strides = array<i32>} : memref<256x1152xbf16, #tpu.memory_space<vmem>>, vector<256x128xbf16>,
    %c8 = arith.constant 8 : index
    %c0_18 = arith.constant 0 : index
    %22 = vector.load %arg13[%c8, %c0_18] : memref<304x128xbf16, #tpu.memory_space<vmem>>, vector<256x128xbf16>
    %c0_19 = arith.constant 0 : index
    %c128 = arith.constant 128 : index
    %23 = vector.load %arg14[%c0_19, %c128] : memref<256x1152xbf16, #tpu.memory_space<vmem>>, vector<256x128xbf16>
    tpu.vector_store %arg14[%c0_19, %c128], %22 {strides = array<i32>} : memref<256x1152xbf16, #tpu.memory_space<vmem>>, vector<256x128xbf16>,
    %c9 = arith.constant 9 : index
    %c0_20 = arith.constant 0 : index
    %24 = vector.load %arg13[%c9, %c0_20] : memref<304x128xbf16, #tpu.memory_space<vmem>>, vector<256x128xbf16>
    %c0_21 = arith.constant 0 : index
    %c256 = arith.constant 256 : index
    %25 = vector.load %arg14[%c0_21, %c256] : memref<256x1152xbf16, #tpu.memory_space<vmem>>, vector<256x128xbf16>
    tpu.vector_store %arg14[%c0_21, %c256], %24 {strides = array<i32>} : memref<256x1152xbf16, #tpu.memory_space<vmem>>, vector<256x128xbf16>,
    %c23 = arith.constant 23 : index
    %c0_22 = arith.constant 0 : index
    %26 = vector.load %arg13[%c23, %c0_22] : memref<304x128xbf16, #tpu.memory_space<vmem>>, vector<256x128xbf16>
    %c0_23 = arith.constant 0 : index
    %c384 = arith.constant 384 : index
    %27 = vector.load %arg14[%c0_23, %c384] : memref<256x1152xbf16, #tpu.memory_space<vmem>>, vector<256x128xbf16>
    tpu.vector_store %arg14[%c0_23, %c384], %26 {strides = array<i32>} : memref<256x1152xbf16, #tpu.memory_space<vmem>>, vector<256x128xbf16>,
    %c24_24 = arith.constant 24 : index
    %c0_25 = arith.constant 0 : index
    %28 = vector.load %arg13[%c24_24, %c0_25] : memref<304x128xbf16, #tpu.memory_space<vmem>>, vector<256x128xbf16>
    %c0_26 = arith.constant 0 : index
    %c512 = arith.constant 512 : index
    %29 = vector.load %arg14[%c0_26, %c512] : memref<256x1152xbf16, #tpu.memory_space<vmem>>, vector<256x128xbf16>
    tpu.vector_store %arg14[%c0_26, %c512], %28 {strides = array<i32>} : memref<256x1152xbf16, #tpu.memory_space<vmem>>, vector<256x128xbf16>,
    %c25 = arith.constant 25 : index
    %c0_27 = arith.constant 0 : index
    %30 = vector.load %arg13[%c25, %c0_27] : memref<304x128xbf16, #tpu.memory_space<vmem>>, vector<256x128xbf16>
    %c0_28 = arith.constant 0 : index
    %c640 = arith.constant 640 : index
    %31 = vector.load %arg14[%c0_28, %c640] : memref<256x1152xbf16, #tpu.memory_space<vmem>>, vector<256x128xbf16>
    tpu.vector_store %arg14[%c0_28, %c640], %30 {strides = array<i32>} : memref<256x1152xbf16, #tpu.memory_space<vmem>>, vector<256x128xbf16>,
    %c39 = arith.constant 39 : index
    %c0_29 = arith.constant 0 : index
    %32 = vector.load %arg13[%c39, %c0_29] : memref<304x128xbf16, #tpu.memory_space<vmem>>, vector<256x128xbf16>
    %c0_30 = arith.constant 0 : index
    %c768 = arith.constant 768 : index
    %33 = vector.load %arg14[%c0_30, %c768] : memref<256x1152xbf16, #tpu.memory_space<vmem>>, vector<256x128xbf16>
    tpu.vector_store %arg14[%c0_30, %c768], %32 {strides = array<i32>} : memref<256x1152xbf16, #tpu.memory_space<vmem>>, vector<256x128xbf16>,
    %c40 = arith.constant 40 : index
    %c0_31 = arith.constant 0 : index
    %34 = vector.load %arg13[%c40, %c0_31] : memref<304x128xbf16, #tpu.memory_space<vmem>>, vector<256x128xbf16>
    %c0_32 = arith.constant 0 : index
    %c896 = arith.constant 896 : index
    %35 = vector.load %arg14[%c0_32, %c896] : memref<256x1152xbf16, #tpu.memory_space<vmem>>, vector<256x128xbf16>
    tpu.vector_store %arg14[%c0_32, %c896], %34 {strides = array<i32>} : memref<256x1152xbf16, #tpu.memory_space<vmem>>, vector<256x128xbf16>,
    %c41 = arith.constant 41 : index
    %c0_33 = arith.constant 0 : index
    %36 = vector.load %arg13[%c41, %c0_33] : memref<304x128xbf16, #tpu.memory_space<vmem>>, vector<256x128xbf16>
    %c0_34 = arith.constant 0 : index
    %c1024 = arith.constant 1024 : index
    %37 = vector.load %arg14[%c0_34, %c1024] : memref<256x1152xbf16, #tpu.memory_space<vmem>>, vector<256x128xbf16>
    tpu.vector_store %arg14[%c0_34, %c1024], %36 {strides = array<i32>} : memref<256x1152xbf16, #tpu.memory_space<vmem>>, vector<256x128xbf16>,
    %c0_35 = arith.constant 0 : index
    %c0_36 = arith.constant 0 : index
    %38 = vector.load %arg14[%c0_35, %c0_36] : memref<256x1152xbf16, #tpu.memory_space<vmem>>, vector<256x1152xbf16>
    %c0_37 = arith.constant 0 : index
    %c0_38 = arith.constant 0 : index
    %39 = vector.load %arg4[%c0_37, %c0_38] : memref<1152x128xbf16, #tpu.memory_space<vmem>>, vector<1152x128xbf16>
    %cst_39 = arith.constant dense<0.000000e+00> : vector<256x128xf32>
    %40 = tpu.matmul %38, %39, %cst_39 {dimension_numbers = #tpu.dot_dimension_numbers<[1], [0], [0], [1], [0, 0, 1, 1], [], []>} : vector<256x1152xbf16>, vector<1152x128xbf16>, vector<256x128xf32> -> vector<256x128xf32>
    %c0_40 = arith.constant 0 : index
    %c0_41 = arith.constant 0 : index
    %41 = vector.load %arg5[%c0_40, %c0_41] : memref<1x128xf32, #tpu.memory_space<vmem>>, vector<1x128xf32>
    %42 = vector.broadcast %41 : vector<1x128xf32> to vector<256x128xf32>
    %43 = arith.addf %40, %42 : vector<256x128xf32>
    %c1 = arith.constant 1 : index
    %44 = memref.load %arg11[%c1] : memref<4xf32, #tpu.memory_space<smem>>
    %cst_42 = arith.constant 0.000000e+00 : f32
    %45 = vector.broadcast %cst_42 : f32 to vector<256x128xf32>
    %46 = arith.cmpf oge, %43, %45 : vector<256x128xf32>
    %47 = vector.broadcast %44 : f32 to vector<256x128xf32>
    %48 = arith.mulf %47, %43 : vector<256x128xf32>
    %49 = arith.select %46, %43, %48 : vector<256x128xi1>, vector<256x128xf32>
    %c0_43 = arith.constant 0 : index
    %c0_44 = arith.constant 0 : index
    %50 = vector.load %arg10[%c0_43, %c0_44] : memref<256x128xf32, #tpu.memory_space<vmem>>, vector<256x128xf32>
    %51 = arith.mulf %49, %50 : vector<256x128xf32>
    %52 = arith.truncf %51 : vector<256x128xf32> to vector<256x128xbf16>
    %c24_45 = arith.constant 24 : index
    %c0_46 = arith.constant 0 : index
    %53 = vector.load %arg13[%c24_45, %c0_46] : memref<304x128xbf16, #tpu.memory_space<vmem>>, vector<256x128xbf16>
    tpu.vector_store %arg13[%c24_45, %c0_46], %52 {strides = array<i32>} : memref<304x128xbf16, #tpu.memory_space<vmem>>, vector<256x128xbf16>,
    %c7_47 = arith.constant 7 : index
    %c0_48 = arith.constant 0 : index
    %54 = vector.load %arg13[%c7_47, %c0_48] : memref<304x128xbf16, #tpu.memory_space<vmem>>, vector<256x128xbf16>
    %c0_49 = arith.constant 0 : index
    %c0_50 = arith.constant 0 : index
    %55 = vector.load %arg14[%c0_49, %c0_50] : memref<256x1152xbf16, #tpu.memory_space<vmem>>, vector<256x128xbf16>
    tpu.vector_store %arg14[%c0_49, %c0_50], %54 {strides = array<i32>} : memref<256x1152xbf16, #tpu.memory_space<vmem>>, vector<256x128xbf16>,
    %c8_51 = arith.constant 8 : index
    %c0_52 = arith.constant 0 : index
    %56 = vector.load %arg13[%c8_51, %c0_52] : memref<304x128xbf16, #tpu.memory_space<vmem>>, vector<256x128xbf16>
    %c0_53 = arith.constant 0 : index
    %c128_54 = arith.constant 128 : index
    %57 = vector.load %arg14[%c0_53, %c128_54] : memref<256x1152xbf16, #tpu.memory_space<vmem>>, vector<256x128xbf16>
    tpu.vector_store %arg14[%c0_53, %c128_54], %56 {strides = array<i32>} : memref<256x1152xbf16, #tpu.memory_space<vmem>>, vector<256x128xbf16>,
    %c9_55 = arith.constant 9 : index
    %c0_56 = arith.constant 0 : index
    %58 = vector.load %arg13[%c9_55, %c0_56] : memref<304x128xbf16, #tpu.memory_space<vmem>>, vector<256x128xbf16>
    %c0_57 = arith.constant 0 : index
    %c256_58 = arith.constant 256 : index
    %59 = vector.load %arg14[%c0_57, %c256_58] : memref<256x1152xbf16, #tpu.memory_space<vmem>>, vector<256x128xbf16>
    tpu.vector_store %arg14[%c0_57, %c256_58], %58 {strides = array<i32>} : memref<256x1152xbf16, #tpu.memory_space<vmem>>, vector<256x128xbf16>,
    %c23_59 = arith.constant 23 : index
    %c0_60 = arith.constant 0 : index
    %60 = vector.load %arg13[%c23_59, %c0_60] : memref<304x128xbf16, #tpu.memory_space<vmem>>, vector<256x128xbf16>
    %c0_61 = arith.constant 0 : index
    %c384_62 = arith.constant 384 : index
    %61 = vector.load %arg14[%c0_61, %c384_62] : memref<256x1152xbf16, #tpu.memory_space<vmem>>, vector<256x128xbf16>
    tpu.vector_store %arg14[%c0_61, %c384_62], %60 {strides = array<i32>} : memref<256x1152xbf16, #tpu.memory_space<vmem>>, vector<256x128xbf16>,
    %c24_63 = arith.constant 24 : index
    %c0_64 = arith.constant 0 : index
    %62 = vector.load %arg13[%c24_63, %c0_64] : memref<304x128xbf16, #tpu.memory_space<vmem>>, vector<256x128xbf16>
    %c0_65 = arith.constant 0 : index
    %c512_66 = arith.constant 512 : index
    %63 = vector.load %arg14[%c0_65, %c512_66] : memref<256x1152xbf16, #tpu.memory_space<vmem>>, vector<256x128xbf16>
    tpu.vector_store %arg14[%c0_65, %c512_66], %62 {strides = array<i32>} : memref<256x1152xbf16, #tpu.memory_space<vmem>>, vector<256x128xbf16>,
    %c25_67 = arith.constant 25 : index
    %c0_68 = arith.constant 0 : index
    %64 = vector.load %arg13[%c25_67, %c0_68] : memref<304x128xbf16, #tpu.memory_space<vmem>>, vector<256x128xbf16>
    %c0_69 = arith.constant 0 : index
    %c640_70 = arith.constant 640 : index
    %65 = vector.load %arg14[%c0_69, %c640_70] : memref<256x1152xbf16, #tpu.memory_space<vmem>>, vector<256x128xbf16>
    tpu.vector_store %arg14[%c0_69, %c640_70], %64 {strides = array<i32>} : memref<256x1152xbf16, #tpu.memory_space<vmem>>, vector<256x128xbf16>,
    %c39_71 = arith.constant 39 : index
    %c0_72 = arith.constant 0 : index
    %66 = vector.load %arg13[%c39_71, %c0_72] : memref<304x128xbf16, #tpu.memory_space<vmem>>, vector<256x128xbf16>
    %c0_73 = arith.constant 0 : index
    %c768_74 = arith.constant 768 : index
    %67 = vector.load %arg14[%c0_73, %c768_74] : memref<256x1152xbf16, #tpu.memory_space<vmem>>, vector<256x128xbf16>
    tpu.vector_store %arg14[%c0_73, %c768_74], %66 {strides = array<i32>} : memref<256x1152xbf16, #tpu.memory_space<vmem>>, vector<256x128xbf16>,
    %c40_75 = arith.constant 40 : index
    %c0_76 = arith.constant 0 : index
    %68 = vector.load %arg13[%c40_75, %c0_76] : memref<304x128xbf16, #tpu.memory_space<vmem>>, vector<256x128xbf16>
    %c0_77 = arith.constant 0 : index
    %c896_78 = arith.constant 896 : index
    %69 = vector.load %arg14[%c0_77, %c896_78] : memref<256x1152xbf16, #tpu.memory_space<vmem>>, vector<256x128xbf16>
    tpu.vector_store %arg14[%c0_77, %c896_78], %68 {strides = array<i32>} : memref<256x1152xbf16, #tpu.memory_space<vmem>>, vector<256x128xbf16>,
    %c41_79 = arith.constant 41 : index
    %c0_80 = arith.constant 0 : index
    %70 = vector.load %arg13[%c41_79, %c0_80] : memref<304x128xbf16, #tpu.memory_space<vmem>>, vector<256x128xbf16>
    %c0_81 = arith.constant 0 : index
    %c1024_82 = arith.constant 1024 : index
    %71 = vector.load %arg14[%c0_81, %c1024_82] : memref<256x1152xbf16, #tpu.memory_space<vmem>>, vector<256x128xbf16>
    tpu.vector_store %arg14[%c0_81, %c1024_82], %70 {strides = array<i32>} : memref<256x1152xbf16, #tpu.memory_space<vmem>>, vector<256x128xbf16>,
    %c0_83 = arith.constant 0 : index
    %c0_84 = arith.constant 0 : index
    %72 = vector.load %arg14[%c0_83, %c0_84] : memref<256x1152xbf16, #tpu.memory_space<vmem>>, vector<256x1152xbf16>
    %c0_85 = arith.constant 0 : index
    %c0_86 = arith.constant 0 : index
    %73 = vector.load %arg6[%c0_85, %c0_86] : memref<1152x128xbf16, #tpu.memory_space<vmem>>, vector<1152x128xbf16>
    %cst_87 = arith.constant dense<0.000000e+00> : vector<256x128xf32>
    %74 = tpu.matmul %72, %73, %cst_87 {dimension_numbers = #tpu.dot_dimension_numbers<[1], [0], [0], [1], [0, 0, 1, 1], [], []>} : vector<256x1152xbf16>, vector<1152x128xbf16>, vector<256x128xf32> -> vector<256x128xf32>
    %c0_88 = arith.constant 0 : index
    %c0_89 = arith.constant 0 : index
    %75 = vector.load %arg7[%c0_88, %c0_89] : memref<1x128xf32, #tpu.memory_space<vmem>>, vector<1x128xf32>
    %76 = vector.broadcast %75 : vector<1x128xf32> to vector<256x128xf32>
    %77 = arith.addf %74, %76 : vector<256x128xf32>
    %c2 = arith.constant 2 : index
    %78 = memref.load %arg11[%c2] : memref<4xf32, #tpu.memory_space<smem>>
    %cst_90 = arith.constant 0.000000e+00 : f32
    %79 = vector.broadcast %cst_90 : f32 to vector<256x128xf32>
    %80 = arith.cmpf oge, %77, %79 : vector<256x128xf32>
    %81 = vector.broadcast %78 : f32 to vector<256x128xf32>
    %82 = arith.mulf %81, %77 : vector<256x128xf32>
    %83 = arith.select %80, %77, %82 : vector<256x128xi1>, vector<256x128xf32>
    %c0_91 = arith.constant 0 : index
    %c0_92 = arith.constant 0 : index
    %84 = vector.load %arg10[%c0_91, %c0_92] : memref<256x128xf32, #tpu.memory_space<vmem>>, vector<256x128xf32>
    %85 = arith.mulf %83, %84 : vector<256x128xf32>
    %86 = arith.truncf %85 : vector<256x128xf32> to vector<256x128xbf16>
    %c24_93 = arith.constant 24 : index
    %c0_94 = arith.constant 0 : index
    %87 = vector.load %arg13[%c24_93, %c0_94] : memref<304x128xbf16, #tpu.memory_space<vmem>>, vector<256x128xbf16>
    tpu.vector_store %arg13[%c24_93, %c0_94], %86 {strides = array<i32>} : memref<304x128xbf16, #tpu.memory_space<vmem>>, vector<256x128xbf16>,
    %c7_95 = arith.constant 7 : index
    %c0_96 = arith.constant 0 : index
    %88 = vector.load %arg13[%c7_95, %c0_96] : memref<304x128xbf16, #tpu.memory_space<vmem>>, vector<256x128xbf16>
    %c0_97 = arith.constant 0 : index
    %c0_98 = arith.constant 0 : index
    %89 = vector.load %arg14[%c0_97, %c0_98] : memref<256x1152xbf16, #tpu.memory_space<vmem>>, vector<256x128xbf16>
    tpu.vector_store %arg14[%c0_97, %c0_98], %88 {strides = array<i32>} : memref<256x1152xbf16, #tpu.memory_space<vmem>>, vector<256x128xbf16>,
    %c8_99 = arith.constant 8 : index
    %c0_100 = arith.constant 0 : index
    %90 = vector.load %arg13[%c8_99, %c0_100] : memref<304x128xbf16, #tpu.memory_space<vmem>>, vector<256x128xbf16>
    %c0_101 = arith.constant 0 : index
    %c128_102 = arith.constant 128 : index
    %91 = vector.load %arg14[%c0_101, %c128_102] : memref<256x1152xbf16, #tpu.memory_space<vmem>>, vector<256x128xbf16>
    tpu.vector_store %arg14[%c0_101, %c128_102], %90 {strides = array<i32>} : memref<256x1152xbf16, #tpu.memory_space<vmem>>, vector<256x128xbf16>,
    %c9_103 = arith.constant 9 : index
    %c0_104 = arith.constant 0 : index
    %92 = vector.load %arg13[%c9_103, %c0_104] : memref<304x128xbf16, #tpu.memory_space<vmem>>, vector<256x128xbf16>
    %c0_105 = arith.constant 0 : index
    %c256_106 = arith.constant 256 : index
    %93 = vector.load %arg14[%c0_105, %c256_106] : memref<256x1152xbf16, #tpu.memory_space<vmem>>, vector<256x128xbf16>
    tpu.vector_store %arg14[%c0_105, %c256_106], %92 {strides = array<i32>} : memref<256x1152xbf16, #tpu.memory_space<vmem>>, vector<256x128xbf16>,
    %c23_107 = arith.constant 23 : index
    %c0_108 = arith.constant 0 : index
    %94 = vector.load %arg13[%c23_107, %c0_108] : memref<304x128xbf16, #tpu.memory_space<vmem>>, vector<256x128xbf16>
    %c0_109 = arith.constant 0 : index
    %c384_110 = arith.constant 384 : index
    %95 = vector.load %arg14[%c0_109, %c384_110] : memref<256x1152xbf16, #tpu.memory_space<vmem>>, vector<256x128xbf16>
    tpu.vector_store %arg14[%c0_109, %c384_110], %94 {strides = array<i32>} : memref<256x1152xbf16, #tpu.memory_space<vmem>>, vector<256x128xbf16>,
    %c24_111 = arith.constant 24 : index
    %c0_112 = arith.constant 0 : index
    %96 = vector.load %arg13[%c24_111, %c0_112] : memref<304x128xbf16, #tpu.memory_space<vmem>>, vector<256x128xbf16>
    %c0_113 = arith.constant 0 : index
    %c512_114 = arith.constant 512 : index
    %97 = vector.load %arg14[%c0_113, %c512_114] : memref<256x1152xbf16, #tpu.memory_space<vmem>>, vector<256x128xbf16>
    tpu.vector_store %arg14[%c0_113, %c512_114], %96 {strides = array<i32>} : memref<256x1152xbf16, #tpu.memory_space<vmem>>, vector<256x128xbf16>,
    %c25_115 = arith.constant 25 : index
    %c0_116 = arith.constant 0 : index
    %98 = vector.load %arg13[%c25_115, %c0_116] : memref<304x128xbf16, #tpu.memory_space<vmem>>, vector<256x128xbf16>
    %c0_117 = arith.constant 0 : index
    %c640_118 = arith.constant 640 : index
    %99 = vector.load %arg14[%c0_117, %c640_118] : memref<256x1152xbf16, #tpu.memory_space<vmem>>, vector<256x128xbf16>
    tpu.vector_store %arg14[%c0_117, %c640_118], %98 {strides = array<i32>} : memref<256x1152xbf16, #tpu.memory_space<vmem>>, vector<256x128xbf16>,
    %c39_119 = arith.constant 39 : index
    %c0_120 = arith.constant 0 : index
    %100 = vector.load %arg13[%c39_119, %c0_120] : memref<304x128xbf16, #tpu.memory_space<vmem>>, vector<256x128xbf16>
    %c0_121 = arith.constant 0 : index
    %c768_122 = arith.constant 768 : index
    %101 = vector.load %arg14[%c0_121, %c768_122] : memref<256x1152xbf16, #tpu.memory_space<vmem>>, vector<256x128xbf16>
    tpu.vector_store %arg14[%c0_121, %c768_122], %100 {strides = array<i32>} : memref<256x1152xbf16, #tpu.memory_space<vmem>>, vector<256x128xbf16>,
    %c40_123 = arith.constant 40 : index
    %c0_124 = arith.constant 0 : index
    %102 = vector.load %arg13[%c40_123, %c0_124] : memref<304x128xbf16, #tpu.memory_space<vmem>>, vector<256x128xbf16>
    %c0_125 = arith.constant 0 : index
    %c896_126 = arith.constant 896 : index
    %103 = vector.load %arg14[%c0_125, %c896_126] : memref<256x1152xbf16, #tpu.memory_space<vmem>>, vector<256x128xbf16>
    tpu.vector_store %arg14[%c0_125, %c896_126], %102 {strides = array<i32>} : memref<256x1152xbf16, #tpu.memory_space<vmem>>, vector<256x128xbf16>,
    %c41_127 = arith.constant 41 : index
    %c0_128 = arith.constant 0 : index
    %104 = vector.load %arg13[%c41_127, %c0_128] : memref<304x128xbf16, #tpu.memory_space<vmem>>, vector<256x128xbf16>
    %c0_129 = arith.constant 0 : index
    %c1024_130 = arith.constant 1024 : index
    %105 = vector.load %arg14[%c0_129, %c1024_130] : memref<256x1152xbf16, #tpu.memory_space<vmem>>, vector<256x128xbf16>
    tpu.vector_store %arg14[%c0_129, %c1024_130], %104 {strides = array<i32>} : memref<256x1152xbf16, #tpu.memory_space<vmem>>, vector<256x128xbf16>,
    %c0_131 = arith.constant 0 : index
    %c0_132 = arith.constant 0 : index
    %106 = vector.load %arg14[%c0_131, %c0_132] : memref<256x1152xbf16, #tpu.memory_space<vmem>>, vector<256x1152xbf16>
    %c0_133 = arith.constant 0 : index
    %c0_134 = arith.constant 0 : index
    %107 = vector.load %arg8[%c0_133, %c0_134] : memref<1152x128xbf16, #tpu.memory_space<vmem>>, vector<1152x128xbf16>
    %cst_135 = arith.constant dense<0.000000e+00> : vector<256x128xf32>
    %108 = tpu.matmul %106, %107, %cst_135 {dimension_numbers = #tpu.dot_dimension_numbers<[1], [0], [0], [1], [0, 0, 1, 1], [], []>} : vector<256x1152xbf16>, vector<1152x128xbf16>, vector<256x128xf32> -> vector<256x128xf32>
    %c0_136 = arith.constant 0 : index
    %c0_137 = arith.constant 0 : index
    %109 = vector.load %arg9[%c0_136, %c0_137] : memref<1x128xf32, #tpu.memory_space<vmem>>, vector<1x128xf32>
    %110 = vector.broadcast %109 : vector<1x128xf32> to vector<256x128xf32>
    %111 = arith.addf %108, %110 : vector<256x128xf32>
    %c3 = arith.constant 3 : index
    %112 = memref.load %arg11[%c3] : memref<4xf32, #tpu.memory_space<smem>>
    %cst_138 = arith.constant 0.000000e+00 : f32
    %113 = vector.broadcast %cst_138 : f32 to vector<256x128xf32>
    %114 = arith.cmpf oge, %111, %113 : vector<256x128xf32>
    %115 = vector.broadcast %112 : f32 to vector<256x128xf32>
    %116 = arith.mulf %115, %111 : vector<256x128xf32>
    %117 = arith.select %114, %111, %116 : vector<256x128xi1>, vector<256x128xf32>
    %c0_139 = arith.constant 0 : index
    %c0_140 = arith.constant 0 : index
    %118 = vector.load %arg12[%c0_139, %c0_140] : memref<256x128xf32, #tpu.memory_space<vmem>>, vector<256x128xf32>
    tpu.vector_store %arg12[%c0_139, %c0_140], %117 {strides = array<i32>} : memref<256x128xf32, #tpu.memory_space<vmem>>, vector<256x128xf32>,
    return
  }
  func.func @transform_0(%arg0: i32) -> (i32, i32) {
    %c0_i32 = arith.constant 0 : i32
    %c0_i32_0 = arith.constant 0 : i32
    return %arg0, %c0_i32 : i32, i32
  }
  func.func @transform_1(%arg0: i32) -> (i32, i32) {
    %c0_i32 = arith.constant 0 : i32
    %c0_i32_0 = arith.constant 0 : i32
    %c0_i32_1 = arith.constant 0 : i32
    return %c0_i32, %c0_i32_0 : i32, i32
  }
  func.func @transform_2(%arg0: i32) -> (i32, i32) {
    %c0_i32 = arith.constant 0 : i32
    %c0_i32_0 = arith.constant 0 : i32
    %c0_i32_1 = arith.constant 0 : i32
    return %c0_i32, %c0_i32_0 : i32, i32
  }
  func.func @transform_3(%arg0: i32) -> (i32, i32) {
    %c0_i32 = arith.constant 0 : i32
    %c0_i32_0 = arith.constant 0 : i32
    %c0_i32_1 = arith.constant 0 : i32
    return %c0_i32, %c0_i32_0 : i32, i32
  }
  func.func @transform_4(%arg0: i32) -> (i32, i32) {
    %c0_i32 = arith.constant 0 : i32
    %c0_i32_0 = arith.constant 0 : i32
    %c0_i32_1 = arith.constant 0 : i32
    return %c0_i32, %c0_i32_0 : i32, i32
  }
  func.func @transform_5(%arg0: i32) -> (i32, i32) {
    %c0_i32 = arith.constant 0 : i32
    %c0_i32_0 = arith.constant 0 : i32
    %c0_i32_1 = arith.constant 0 : i32
    return %c0_i32, %c0_i32_0 : i32, i32
  }
  func.func @transform_6(%arg0: i32) -> (i32, i32) {
    %c0_i32 = arith.constant 0 : i32
    %c0_i32_0 = arith.constant 0 : i32
    %c0_i32_1 = arith.constant 0 : i32
    return %c0_i32, %c0_i32_0 : i32, i32
  }
  func.func @transform_7(%arg0: i32) -> (i32, i32) {
    %c0_i32 = arith.constant 0 : i32
    %c0_i32_0 = arith.constant 0 : i32
    %c0_i32_1 = arith.constant 0 : i32
    return %c0_i32, %c0_i32_0 : i32, i32
  }
  func.func @transform_8(%arg0: i32) -> (i32, i32) {
    %c0_i32 = arith.constant 0 : i32
    %c0_i32_0 = arith.constant 0 : i32
    %c0_i32_1 = arith.constant 0 : i32
    return %c0_i32, %c0_i32_0 : i32, i32
  }
  func.func @transform_9(%arg0: i32) -> (i32, i32) {
    %c0_i32 = arith.constant 0 : i32
    %c0_i32_0 = arith.constant 0 : i32
    %c0_i32_1 = arith.constant 0 : i32
    return %c0_i32, %c0_i32_0 : i32, i32
  }
  func.func @transform_10(%arg0: i32) -> i32 {
    %c0_i32 = arith.constant 0 : i32
    %c0_i32_0 = arith.constant 0 : i32
    return %c0_i32 : i32
  }
  func.func @transform_11(%arg0: i32) -> (i32, i32) {
    %c0_i32 = arith.constant 0 : i32
    %c0_i32_0 = arith.constant 0 : i32
    return %arg0, %c0_i32 : i32, i32
  }
}

</mosaic_0001>

<llo_original>
// kernel: tile.23
$region0: #{tile.23}
  #allocation0 [shape = 's32[1]{0}', space=sflag, size = 0x4, scoped, tag = 'scoped memory for tile.23']
  %s0 = inlined_call_operand.vmem [shape: f32[8], index: 0, kind: input, shape index: {}]
  %s1 = inlined_call_operand.vmem [shape: f32[16,8], index: 1, kind: output, shape index: {}]
  // Predicated region
  $region2: #{tile.23} parent=0 // pred_check
    _
  $region3: #{tile.23} parent=0 // pred_check_branch
    %3 = sbr.rel (0) target = $region5
  $region4: #{tile.23} parent=0 // pred_region
    _
  $region5: #{tile.23} parent=0 // pred_fallthru
    _
  %v4 = vld [vmem:[%s0] ss:$0 sm:$0xff]
  %5 = vst [vmem:[%s1] sm:$0xff] %v4
  %s6 = scalar_lea.vmem %s1, 8
  %7 = vst [vmem:[%s6] sm:$0xff] %v4

// kernel: tile.24
$region0: #{tile.24}
  %s0 = inlined_call_operand.vmem [shape: f32[16,8], index: 0, kind: input, shape index: {}]
  %s1 = inlined_call_operand.vmem [shape: f32[1,128], index: 1, kind: output, shape index: {}]
  $region1: #{tile.24} parent=0
    #allocation0 [shape = 'u8[4096]{0}', space=vmem, size = 0x1000, scoped, tag = 'scoped mem for output reshape']
    %v2 = vld [vmem:[%s0] sm:$0x1]
    %vm3 = vcmask 64512
    %4 = vst.msk [vmem:[#allocation0] sm:$0x1] %vm3, %v2
    %s5 = scalar_lea.vmem %s0, 15
    %v6 = vld [vmem:[%s5] sm:$0x1]
    %7 = vrot.lane.b32.xlu0 %v6, 120
    %v8 = vpop.permute.xlu0 %7
    %vm9 = vcmask 1048512
    %10 = vst.msk [vmem:[#allocation0] sm:$0x1] %vm9, %v8
    %s11 = scalar_lea.vmem %s0, 14
    %v12 = vld [vmem:[%s11] sm:$0x1]
    %13 = vrot.lane.b32.xlu0 %v12, 112
    %v14 = vpop.permute.xlu0 %13
    %vm15 = vcmask 982912
    %16 = vst.msk [vmem:[#allocation0] sm:$0x1] %vm15, %v14
    %s17 = scalar_lea.vmem %s0, 13
    %v18 = vld [vmem:[%s17] sm:$0x1]
    %19 = vrot.lane.b32.xlu0 %v18, 104
    %v20 = vpop.permute.xlu0 %19
    %vm21 = vcmask 917312
    %22 = vst.msk [vmem:[#allocation0] sm:$0x1] %vm21, %v20
    %s23 = scalar_lea.vmem %s0, 12
    %v24 = vld [vmem:[%s23] sm:$0x1]
    %25 = vrot.lane.b32.xlu0 %v24, 96
    %v26 = vpop.permute.xlu0 %25
    %vm27 = vcmask 851712
    %28 = vst.msk [vmem:[#allocation0] sm:$0x1] %vm27, %v26
    %s29 = scalar_lea.vmem %s0, 11
    %v30 = vld [vmem:[%s29] sm:$0x1]
    %31 = vrot.lane.b32.xlu0 %v30, 88
    %v32 = vpop.permute.xlu0 %31
    %vm33 = vcmask 786112
    %34 = vst.msk [vmem:[#allocation0] sm:$0x1] %vm33, %v32
    %s35 = scalar_lea.vmem %s0, 10
    %v36 = vld [vmem:[%s35] sm:$0x1]
    %37 = vrot.lane.b32.xlu0 %v36, 80
    %v38 = vpop.permute.xlu0 %37
    %vm39 = vcmask 720512
    %40 = vst.msk [vmem:[#allocation0] sm:$0x1] %vm39, %v38
    %s41 = scalar_lea.vmem %s0, 9
    %v42 = vld [vmem:[%s41] sm:$0x1]
    %43 = vrot.lane.b32.xlu0 %v42, 72
    %v44 = vpop.permute.xlu0 %43
    %vm45 = vcmask 654912
    %46 = vst.msk [vmem:[#allocation0] sm:$0x1] %vm45, %v44
    %s47 = scalar_lea.vmem %s0, 8
    %v48 = vld [vmem:[%s47] sm:$0x1]
    %49 = vrot.lane.b32.xlu0 %v48, 64
    %v50 = vpop.permute.xlu0 %49
    %vm51 = vcmask 589312
    %52 = vst.msk [vmem:[#allocation0] sm:$0x1] %vm51, %v50
    %s53 = scalar_lea.vmem %s0, 7
    %v54 = vld [vmem:[%s53] sm:$0x1]
    %55 = vrot.lane.b32.xlu0 %v54, 56
    %v56 = vpop.permute.xlu0 %55
    %vm57 = vcmask 523712
    %58 = vst.msk [vmem:[#allocation0] sm:$0x1] %vm57, %v56
    %s59 = scalar_lea.vmem %s0, 6
    %v60 = vld [vmem:[%s59] sm:$0x1]
    %61 = vrot.lane.b32.xlu0 %v60, 48
    %v62 = vpop.permute.xlu0 %61
    %vm63 = vcmask 458112
    %64 = vst.msk [vmem:[#allocation0] sm:$0x1] %vm63, %v62
    %s65 = scalar_lea.vmem %s0, 5
    %v66 = vld [vmem:[%s65] sm:$0x1]
    %67 = vrot.lane.b32.xlu0 %v66, 40
    %v68 = vpop.permute.xlu0 %67
    %vm69 = vcmask 392512
    %70 = vst.msk [vmem:[#allocation0] sm:$0x1] %vm69, %v68
    %s71 = scalar_lea.vmem %s0, 4
    %v72 = vld [vmem:[%s71] sm:$0x1]
    %73 = vrot.lane.b32.xlu0 %v72, 32
    %v74 = vpop.permute.xlu0 %73
    %vm75 = vcmask 326912
    %76 = vst.msk [vmem:[#allocation0] sm:$0x1] %vm75, %v74
    %s77 = scalar_lea.vmem %s0, 3
    %v78 = vld [vmem:[%s77] sm:$0x1]
    %79 = vrot.lane.b32.xlu0 %v78, 24
    %v80 = vpop.permute.xlu0 %79
    %vm81 = vcmask 261312
    %82 = vst.msk [vmem:[#allocation0] sm:$0x1] %vm81, %v80
    %s83 = scalar_lea.vmem %s0, 2
    %v84 = vld [vmem:[%s83] sm:$0x1]
    %85 = vrot.lane.b32.xlu0 %v84, 16
    %v86 = vpop.permute.xlu0 %85
    %vm87 = vcmask 195712
    %88 = vst.msk [vmem:[#allocation0] sm:$0x1] %vm87, %v86
    %s89 = scalar_lea.vmem %s0, 1
    %v90 = vld [vmem:[%s89] sm:$0x1]
    %91 = vrot.lane.b32.xlu0 %v90, 8
    %v92 = vpop.permute.xlu0 %91
    %vm93 = vcmask 130112
    %94 = vst.msk [vmem:[#allocation0] sm:$0x1] %vm93, %v92
    %s96 = sshllo.u32 0, 1
    %v98 = vld [vmem:[#allocation0] sm:%s96]
    %s99 = sshllo.u32 0, 1
    %100 = vst [vmem:[%s1] sm:%s99] %v98

// kernel: decoder_block_forward.1
$region0: #{decoder_block_forward.1}
  #allocation0 [shape = 'u32[]', space=smem, size = 0x4, offset = 0x4, fixed_abs, tag = 'smem constant byte address 0x4 - core index']
  #allocation1 [shape = 'u32[144,128]{1,0:T(1,128)}', space=vmem, size = 0x12000, scoped, tag = 'internal scratch']
  #allocation2 [shape = 'bf16[304,128]{1,0:T(16,128)(2,1)}', space=vmem, size = 0x13000, scoped, tag = 'scratch operand']
  #allocation3 [shape = 'bf16[256,1152]{1,0:T(16,128)(2,1)}', space=vmem, size = 0x90000, scoped, tag = 'scratch operand']
  %s0 = inlined_call_operand.vmem [shape: bf16[512,128], index: 0, kind: input, shape index: {}]
  %s1 = inlined_call_operand.vmem [shape: bf16[128,128], index: 1, kind: input, shape index: {}]
  %s2 = inlined_call_operand.vmem [shape: f32[1,128], index: 2, kind: input, shape index: {}]
  %s3 = inlined_call_operand.vmem [shape: bf16[1152,128], index: 3, kind: input, shape index: {}]
  %s4 = inlined_call_operand.vmem [shape: f32[1,128], index: 4, kind: input, shape index: {}]
  %s5 = inlined_call_operand.vmem [shape: bf16[1152,128], index: 5, kind: input, shape index: {}]
  %s6 = inlined_call_operand.vmem [shape: f32[1,128], index: 6, kind: input, shape index: {}]
  %s7 = inlined_call_operand.vmem [shape: bf16[1152,128], index: 7, kind: input, shape index: {}]
  %s8 = inlined_call_operand.vmem [shape: f32[1,128], index: 8, kind: input, shape index: {}]
  %s9 = inlined_call_operand.vmem [shape: f32[256,128], index: 9, kind: input, shape index: {}]
  %s10 = inlined_call_operand.vmem [shape: f32[4], index: 10, kind: input, shape index: {}]
  %s11 = inlined_call_operand.vmem [shape: f32[512,128], index: 11, kind: output, shape index: {}]
  %s12 = sld [smem:[#allocation0]]
  $region81: #{decoder_block_forward.1} parent=0
    _
  %s14 = ssub.s32 1, %s12
  %s15 = scalar_select 0, %s14, %s12
  $region1: #{decoder_block_forward.1} parent=0
    #allocation4 [shape = 'u8[512]{0}', space=smem, size = 0x200, scoped, tag = 'input window, operand 10, single buffered']
    #allocation5 [shape = 's32[2]{0}', space=sflag, size = 0x8, scoped, tag = 'scoped memory for decoder_block_forward.1']
    %16 = vsyncpa [#allocation5], 0
    loop: start=0, step=1, limit=4
    $region2: #{decoder_block_forward.1} parent=1 // loop_pre_header
      _
    $region3: #{decoder_block_forward.1} parent=1 // loop_header
      %s18 = sphi 0, %s22
      %p19 = scmp.ge.s32.totalorder %s18, 4
      %s28 = sphi 0, %s30
      %s31 = sphi 0, %s28
      %s32 = sphi 0, %s31
      %s48 = sphi 0, %s32
      %s52 = sphi 0, %s52
      %s54 = sphi 0, %s52
      %s55 = sphi 0, %s54
      %s69 = sphi 0, %s55
      %s73 = sphi 0, %s73
      %s75 = sphi 0, %s73
      %s76 = sphi 0, %s75
      %s90 = sphi 0, %s76
      %s94 = sphi 0, %s94
      %s96 = sphi 0, %s94
      %s97 = sphi 0, %s96
      %s111 = sphi 0, %s97
      %s115 = sphi 0, %s115
      %s117 = sphi 0, %s115
      %s118 = sphi 0, %s117
      %s132 = sphi 0, %s118
      %s136 = sphi 0, %s136
      %s138 = sphi 0, %s136
      %s139 = sphi 0, %s138
      %s153 = sphi 0, %s139
      %s157 = sphi 0, %s157
      %s159 = sphi 0, %s157
      %s160 = sphi 0, %s159
      %s174 = sphi 0, %s160
      %s178 = sphi 0, %s178
      %s180 = sphi 0, %s178
      %s181 = sphi 0, %s180
      %s195 = sphi 0, %s181
      %s199 = sphi 0, %s199
      %s201 = sphi 0, %s199
      %s202 = sphi 0, %s201
      %s216 = sphi 0, %s202
      %s220 = sphi 0, %s220
      %s222 = sphi 0, %s220
      %s223 = sphi 0, %s222
      %s237 = sphi 0, %s223
      %s241 = sphi 0, %s241
      %s243 = sphi 0, %s241
      %s244 = sphi 0, %s243
      %s258 = sphi 0, %s244
      %s264 = sphi 0, %s266
      %s267 = sphi 0, %s264
      %s268 = sphi 0, %s267
      %s284 = sphi 0, %s268
    $region4: #{decoder_block_forward.1} parent=1 // loop_header_branch
      %21 = sbr.rel (%p19) target = $region8
    $region5: #{decoder_block_forward.1} parent=1 // loop_body
      %s23 = ssub.s32 %s18, 1
      %s24 = ssub.s32 %s18, 2
      %s25 = sadd.s32 %s18, 1
      %s26 = ssub.s32 %s18, %s25
      %p27 = scmp.eq.s32.totalorder %s26, 0
      %s29 = sadd.s32 %s28, 1
      %s30 = scalar_select %p27, %s28, %s29
      %p33 = pneg %p27
      %p34 = scmp.eq.s32.totalorder %s18, 1
      %p35 = por %p33, %p34
      %p36 = scmp.ne.s32.totalorder %s28, %s31
      %p37 = scmp.eq.s32.totalorder %s18, 0
      %p38 = por %p36, %p37
      %p39 = scmp.ne.s32.totalorder %s28, %s31
      %p40 = scmp.eq.s32.totalorder %s23, 1
      %p41 = por %p39, %p40
      %p42 = scmp.ne.s32.totalorder %s31, %s32
      %p43 = scmp.eq.s32.totalorder %s23, 0
      %p44 = por %p42, %p43
      %p45 = scmp.ne.s32.totalorder %s31, %s32
      %p46 = scmp.eq.s32.totalorder %s24, 1
      %p47 = por %p45, %p46
      %p49 = scmp.ne.s32.totalorder %s32, %s48
      %p50 = scmp.eq.s32.totalorder %s24, 0
      %p51 = por %p49, %p50
      %s53 = sadd.s32 %s52, 1
      %p56 = scmp.eq.s32.totalorder %s18, 1
      %p57 = scmp.ne.s32.totalorder %s52, %s54
      %p58 = scmp.eq.s32.totalorder %s18, 0
      %p59 = por %p57, %p58
      %p60 = scmp.ne.s32.totalorder %s52, %s54
      %p61 = scmp.eq.s32.totalorder %s23, 1
      %p62 = por %p60, %p61
      %p63 = scmp.ne.s32.totalorder %s54, %s55
      %p64 = scmp.eq.s32.totalorder %s23, 0
      %p65 = por %p63, %p64
      %p66 = scmp.ne.s32.totalorder %s54, %s55
      %p67 = scmp.eq.s32.totalorder %s24, 1
      %p68 = por %p66, %p67
      %p70 = scmp.ne.s32.totalorder %s55, %s69
      %p71 = scmp.eq.s32.totalorder %s24, 0
      %p72 = por %p70, %p71
      %s74 = sadd.s32 %s73, 1
      %p77 = scmp.eq.s32.totalorder %s18, 1
      %p78 = scmp.ne.s32.totalorder %s73, %s75
      %p79 = scmp.eq.s32.totalorder %s18, 0
      %p80 = por %p78, %p79
      %p81 = scmp.ne.s32.totalorder %s73, %s75
      %p82 = scmp.eq.s32.totalorder %s23, 1
      %p83 = por %p81, %p82
      %p84 = scmp.ne.s32.totalorder %s75, %s76
      %p85 = scmp.eq.s32.totalorder %s23, 0
      %p86 = por %p84, %p85
      %p87 = scmp.ne.s32.totalorder %s75, %s76
      %p88 = scmp.eq.s32.totalorder %s24, 1
      %p89 = por %p87, %p88
      %p91 = scmp.ne.s32.totalorder %s76, %s90
      %p92 = scmp.eq.s32.totalorder %s24, 0
      %p93 = por %p91, %p92
      %s95 = sadd.s32 %s94, 1
      %p98 = scmp.eq.s32.totalorder %s18, 1
      %p99 = scmp.ne.s32.totalorder %s94, %s96
      %p100 = scmp.eq.s32.totalorder %s18, 0
      %p101 = por %p99, %p100
      %p102 = scmp.ne.s32.totalorder %s94, %s96
      %p103 = scmp.eq.s32.totalorder %s23, 1
      %p104 = por %p102, %p103
      %p105 = scmp.ne.s32.totalorder %s96, %s97
      %p106 = scmp.eq.s32.totalorder %s23, 0
      %p107 = por %p105, %p106
      %p108 = scmp.ne.s32.totalorder %s96, %s97
      %p109 = scmp.eq.s32.totalorder %s24, 1
      %p110 = por %p108, %p109
      %p112 = scmp.ne.s32.totalorder %s97, %s111
      %p113 = scmp.eq.s32.totalorder %s24, 0
      %p114 = por %p112, %p113
      %s116 = sadd.s32 %s115, 1
      %p119 = scmp.eq.s32.totalorder %s18, 1
      %p120 = scmp.ne.s32.totalorder %s115, %s117
      %p121 = scmp.eq.s32.totalorder %s18, 0
      %p122 = por %p120, %p121
      %p123 = scmp.ne.s32.totalorder %s115, %s117
      %p124 = scmp.eq.s32.totalorder %s23, 1
      %p125 = por %p123, %p124
      %p126 = scmp.ne.s32.totalorder %s117, %s118
      %p127 = scmp.eq.s32.totalorder %s23, 0
      %p128 = por %p126, %p127
      %p129 = scmp.ne.s32.totalorder %s117, %s118
      %p130 = scmp.eq.s32.totalorder %s24, 1
      %p131 = por %p129, %p130
      %p133 = scmp.ne.s32.totalorder %s118, %s132
      %p134 = scmp.eq.s32.totalorder %s24, 0
      %p135 = por %p133, %p134
      %s137 = sadd.s32 %s136, 1
      %p140 = scmp.eq.s32.totalorder %s18, 1
      %p141 = scmp.ne.s32.totalorder %s136, %s138
      %p142 = scmp.eq.s32.totalorder %s18, 0
      %p143 = por %p141, %p142
      %p144 = scmp.ne.s32.totalorder %s136, %s138
      %p145 = scmp.eq.s32.totalorder %s23, 1
      %p146 = por %p144, %p145
      %p147 = scmp.ne.s32.totalorder %s138, %s139
      %p148 = scmp.eq.s32.totalorder %s23, 0
      %p149 = por %p147, %p148
      %p150 = scmp.ne.s32.totalorder %s138, %s139
      %p151 = scmp.eq.s32.totalorder %s24, 1
      %p152 = por %p150, %p151
      %p154 = scmp.ne.s32.totalorder %s139, %s153
      %p155 = scmp.eq.s32.totalorder %s24, 0
      %p156 = por %p154, %p155
      %s158 = sadd.s32 %s157, 1
      %p161 = scmp.eq.s32.totalorder %s18, 1
      %p162 = scmp.ne.s32.totalorder %s157, %s159
      %p163 = scmp.eq.s32.totalorder %s18, 0
      %p164 = por %p162, %p163
      %p165 = scmp.ne.s32.totalorder %s157, %s159
      %p166 = scmp.eq.s32.totalorder %s23, 1
      %p167 = por %p165, %p166
      %p168 = scmp.ne.s32.totalorder %s159, %s160
      %p169 = scmp.eq.s32.totalorder %s23, 0
      %p170 = por %p168, %p169
      %p171 = scmp.ne.s32.totalorder %s159, %s160
      %p172 = scmp.eq.s32.totalorder %s24, 1
      %p173 = por %p171, %p172
      %p175 = scmp.ne.s32.totalorder %s160, %s174
      %p176 = scmp.eq.s32.totalorder %s24, 0
      %p177 = por %p175, %p176
      %s179 = sadd.s32 %s178, 1
      %p182 = scmp.eq.s32.totalorder %s18, 1
      %p183 = scmp.ne.s32.totalorder %s178, %s180
      %p184 = scmp.eq.s32.totalorder %s18, 0
      %p185 = por %p183, %p184
      %p186 = scmp.ne.s32.totalorder %s178, %s180
      %p187 = scmp.eq.s32.totalorder %s23, 1
      %p188 = por %p186, %p187
      %p189 = scmp.ne.s32.totalorder %s180, %s181
      %p190 = scmp.eq.s32.totalorder %s23, 0
      %p191 = por %p189, %p190
      %p192 = scmp.ne.s32.totalorder %s180, %s181
      %p193 = scmp.eq.s32.totalorder %s24, 1
      %p194 = por %p192, %p193
      %p196 = scmp.ne.s32.totalorder %s181, %s195
      %p197 = scmp.eq.s32.totalorder %s24, 0
      %p198 = por %p196, %p197
      %s200 = sadd.s32 %s199, 1
      %p203 = scmp.eq.s32.totalorder %s18, 1
      %p204 = scmp.ne.s32.totalorder %s199, %s201
      %p205 = scmp.eq.s32.totalorder %s18, 0
      %p206 = por %p204, %p205
      %p207 = scmp.ne.s32.totalorder %s199, %s201
      %p208 = scmp.eq.s32.totalorder %s23, 1
      %p209 = por %p207, %p208
      %p210 = scmp.ne.s32.totalorder %s201, %s202
      %p211 = scmp.eq.s32.totalorder %s23, 0
      %p212 = por %p210, %p211
      %p213 = scmp.ne.s32.totalorder %s201, %s202
      %p214 = scmp.eq.s32.totalorder %s24, 1
      %p215 = por %p213, %p214
      %p217 = scmp.ne.s32.totalorder %s202, %s216
      %p218 = scmp.eq.s32.totalorder %s24, 0
      %p219 = por %p217, %p218
      %s221 = sadd.s32 %s220, 1
      %p224 = scmp.eq.s32.totalorder %s18, 1
      %p225 = scmp.ne.s32.totalorder %s220, %s222
      %p226 = scmp.eq.s32.totalorder %s18, 0
      %p227 = por %p225, %p226
      %p228 = scmp.ne.s32.totalorder %s220, %s222
      %p229 = scmp.eq.s32.totalorder %s23, 1
      %p230 = por %p228, %p229
      %p231 = scmp.ne.s32.totalorder %s222, %s223
      %p232 = scmp.eq.s32.totalorder %s23, 0
      %p233 = por %p231, %p232
      %p234 = scmp.ne.s32.totalorder %s222, %s223
      %p235 = scmp.eq.s32.totalorder %s24, 1
      %p236 = por %p234, %p235
      %p238 = scmp.ne.s32.totalorder %s223, %s237
      %p239 = scmp.eq.s32.totalorder %s24, 0
      %p240 = por %p238, %p239
      %s242 = sadd.s32 %s241, 1
      %p245 = scmp.eq.s32.totalorder %s18, 1
      %p246 = scmp.ne.s32.totalorder %s241, %s243
      %p247 = scmp.eq.s32.totalorder %s18, 0
      %p248 = por %p246, %p247
      %p249 = scmp.ne.s32.totalorder %s241, %s243
      %p250 = scmp.eq.s32.totalorder %s23, 1
      %p251 = por %p249, %p250
      %p252 = scmp.ne.s32.totalorder %s243, %s244
      %p253 = scmp.eq.s32.totalorder %s23, 0
      %p254 = por %p252, %p253
      %p255 = scmp.ne.s32.totalorder %s243, %s244
      %p256 = scmp.eq.s32.totalorder %s24, 1
      %p257 = por %p255, %p256
      %p259 = scmp.ne.s32.totalorder %s244, %s258
      %p260 = scmp.eq.s32.totalorder %s24, 0
      %p261 = por %p259, %p260
      %s262 = ssub.s32 %s18, %s25
      %p263 = scmp.eq.s32.totalorder %s262, 0
      %s265 = sadd.s32 %s264, 1
      %s266 = scalar_select %p263, %s264, %s265
      %p269 = pneg %p263
      %p270 = scmp.eq.s32.totalorder %s18, 1
      %p271 = por %p269, %p270
      %p272 = scmp.ne.s32.totalorder %s264, %s267
      %p273 = scmp.eq.s32.totalorder %s18, 0
      %p274 = por %p272, %p273
      %p275 = scmp.ne.s32.totalorder %s264, %s267
      %p276 = scmp.eq.s32.totalorder %s23, 1
      %p277 = por %p275, %p276
      %p278 = scmp.ne.s32.totalorder %s267, %s268
      %p279 = scmp.eq.s32.totalorder %s23, 0
      %p280 = por %p278, %p279
      %p281 = scmp.ne.s32.totalorder %s267, %s268
      %p282 = scmp.eq.s32.totalorder %s24, 1
      %p283 = por %p281, %p282
      %p285 = scmp.ne.s32.totalorder %s268, %s284
      %p286 = scmp.eq.s32.totalorder %s24, 0
      %p287 = por %p285, %p286
      %p288 = scmp.le.s32.totalorder 1, %s18
      %p289 = scmp.lt.s32.totalorder %s18, 3
      %p290 = pnand %p288, %p289
      %p291 = pneg %p290
      // Predicated region
      $region9: #{decoder_block_forward.1} parent=5 // pred_check
        _
      $region10: #{decoder_block_forward.1} parent=5 // pred_check_branch
        %293 = sbr.rel (%p290) target = $region12
      $region11: #{decoder_block_forward.1} parent=5 // pred_region
        %s294 = ssub.s32 %s18, 1
        // Predicated region
        $region13: #{decoder_block_forward.1} parent=11 // pred_check
          %p295 = pneg %p65
        $region14: #{decoder_block_forward.1} parent=11 // pred_check_branch
          %297 = sbr.rel (%p295) target = $region16
        $region15: #{decoder_block_forward.1} parent=11 // pred_region
          _
        $region16: #{decoder_block_forward.1} parent=11 // pred_fallthru
          _
        // Predicated region
        $region17: #{decoder_block_forward.1} parent=11 // pred_check
          %p298 = pneg %p86
        $region18: #{decoder_block_forward.1} parent=11 // pred_check_branch
          %300 = sbr.rel (%p298) target = $region20
        $region19: #{decoder_block_forward.1} parent=11 // pred_region
          _
        $region20: #{decoder_block_forward.1} parent=11 // pred_fallthru
          _
        // Predicated region
        $region21: #{decoder_block_forward.1} parent=11 // pred_check
          %p301 = pneg %p107
        $region22: #{decoder_block_forward.1} parent=11 // pred_check_branch
          %303 = sbr.rel (%p301) target = $region24
        $region23: #{decoder_block_forward.1} parent=11 // pred_region
          _
        $region24: #{decoder_block_forward.1} parent=11 // pred_fallthru
          _
        // Predicated region
        $region25: #{decoder_block_forward.1} parent=11 // pred_check
          %p304 = pneg %p128
        $region26: #{decoder_block_forward.1} parent=11 // pred_check_branch
          %306 = sbr.rel (%p304) target = $region28
        $region27: #{decoder_block_forward.1} parent=11 // pred_region
          _
        $region28: #{decoder_block_forward.1} parent=11 // pred_fallthru
          _
        // Predicated region
        $region29: #{decoder_block_forward.1} parent=11 // pred_check
          %p307 = pneg %p149
        $region30: #{decoder_block_forward.1} parent=11 // pred_check_branch
          %309 = sbr.rel (%p307) target = $region32
        $region31: #{decoder_block_forward.1} parent=11 // pred_region
          _
        $region32: #{decoder_block_forward.1} parent=11 // pred_fallthru
          _
        // Predicated region
        $region33: #{decoder_block_forward.1} parent=11 // pred_check
          %p310 = pneg %p170
        $region34: #{decoder_block_forward.1} parent=11 // pred_check_branch
          %312 = sbr.rel (%p310) target = $region36
        $region35: #{decoder_block_forward.1} parent=11 // pred_region
          _
        $region36: #{decoder_block_forward.1} parent=11 // pred_fallthru
          _
        // Predicated region
        $region37: #{decoder_block_forward.1} parent=11 // pred_check
          %p313 = pneg %p191
        $region38: #{decoder_block_forward.1} parent=11 // pred_check_branch
          %315 = sbr.rel (%p313) target = $region40
        $region39: #{decoder_block_forward.1} parent=11 // pred_region
          _
        $region40: #{decoder_block_forward.1} parent=11 // pred_fallthru
          _
        // Predicated region
        $region41: #{decoder_block_forward.1} parent=11 // pred_check
          %p316 = pneg %p212
        $region42: #{decoder_block_forward.1} parent=11 // pred_check_branch
          %318 = sbr.rel (%p316) target = $region44
        $region43: #{decoder_block_forward.1} parent=11 // pred_region
          _
        $region44: #{decoder_block_forward.1} parent=11 // pred_fallthru
          _
        // Predicated region
        $region45: #{decoder_block_forward.1} parent=11 // pred_check
          %p319 = pneg %p233
        $region46: #{decoder_block_forward.1} parent=11 // pred_check_branch
          %321 = sbr.rel (%p319) target = $region48
        $region47: #{decoder_block_forward.1} parent=11 // pred_region
          _
        $region48: #{decoder_block_forward.1} parent=11 // pred_fallthru
          _
        // Predicated region
        $region49: #{decoder_block_forward.1} parent=11 // pred_check
          %p322 = pneg %p254
        $region50: #{decoder_block_forward.1} parent=11 // pred_check_branch
          %324 = sbr.rel (%p322) target = $region52
        $region51: #{decoder_block_forward.1} parent=11 // pred_region
          %s326 = ssub.s32 16, 16
          %327 = vsyncadd [#allocation5], %s326
          %s329 = sshll.u32 %s10, 4
          %s330 = int_to_ptr.vmem [resolvable:$true] %s329
          %332 = dma.vmem_to_smem %s330, 16, [#allocation4], [#allocation5]
        $region52: #{decoder_block_forward.1} parent=11 // pred_fallthru
          _
      $region12: #{decoder_block_forward.1} parent=5 // pred_fallthru
        _
      %p333 = scmp.lt.s32.totalorder %s18, 2
      // Predicated region
      $region53: #{decoder_block_forward.1} parent=5 // pred_check
        %p334 = pneg %p333
      $region54: #{decoder_block_forward.1} parent=5 // pred_check_branch
        %336 = sbr.rel (%p334) target = $region56
      $region55: #{decoder_block_forward.1} parent=5 // pred_region
        // Predicated region
        $region57: #{decoder_block_forward.1} parent=55 // pred_check
          %p337 = pneg %p38
        $region58: #{decoder_block_forward.1} parent=55 // pred_check_branch
          %339 = sbr.rel (%p337) target = $region60
        $region59: #{decoder_block_forward.1} parent=55 // pred_region
          %s340 = smul.u32 32, %s18
          %p341 = scmp.lt.s32.totalorder %s340, 63
          %s342 = scalar_select %p341, %s340, 63
          %s343 = smul.addr %s342, 4
          %s344 = scalar_lea.vmem %s0, %s343
          %s345 = smul.u32 32, %s18
        $region60: #{decoder_block_forward.1} parent=55 // pred_fallthru
          _
      $region56: #{decoder_block_forward.1} parent=5 // pred_fallthru
        _
      %p346 = scmp.le.s32.totalorder 1, %s18
      %p347 = scmp.lt.s32.totalorder %s18, 3
      %p348 = pnand %p346, %p347
      %p349 = pneg %p348
      // Predicated region
      $region61: #{decoder_block_forward.1} parent=5 // pred_check
        _
      $region62: #{decoder_block_forward.1} parent=5 // pred_check_branch
        %351 = sbr.rel (%p348) target = $region64
      $region63: #{decoder_block_forward.1} parent=5 // pred_region
        %s352 = ssub.s32 %s18, 1
        // Predicated region
        $region65: #{decoder_block_forward.1} parent=63 // pred_check
          %p353 = pneg %p254
        $region66: #{decoder_block_forward.1} parent=63 // pred_check_branch
          %355 = sbr.rel (%p353) target = $region68
        $region67: #{decoder_block_forward.1} parent=63 // pred_region
          %356 = dma.done [#allocation5], 16
        $region68: #{decoder_block_forward.1} parent=63 // pred_fallthru
          _
        %357 = sfence
        %s358 = smul.u32 32, %s23
        %p359 = scmp.lt.s32.totalorder %s358, 63
        %s360 = scalar_select %p359, %s358, 63
        %s361 = smul.addr %s360, 4
        %s362 = scalar_lea.vmem %s0, %s361
        %p363 = pneg %p44
        %p364 = pneg %p41
        %p365 = pneg %p65
        %p366 = pneg %p62
        %p367 = pneg %p86
        %p368 = pneg %p83
        %p369 = pneg %p107
        %p370 = pneg %p104
        %p371 = pneg %p128
        %p372 = pneg %p125
        %p373 = pneg %p149
        %p374 = pneg %p146
        %p375 = pneg %p170
        %p376 = pneg %p167
        %p377 = pneg %p191
        %p378 = pneg %p188
        %p379 = pneg %p212
        %p380 = pneg %p209
        %p381 = pneg %p233
        %p382 = pneg %p230
        %p383 = pneg %p254
        %p384 = pneg %p251
        %p385 = pneg %p280
        %p386 = pneg %p277
        %s387 = smul.u32 32, %s23
        %p388 = scmp.lt.s32.totalorder %s387, 63
        %s389 = scalar_select %p388, %s387, 63
        %s390 = smul.addr %s389, 8
        %s391 = scalar_lea.vmem %s11, %s390
        %s392 = smul.u32 32, %s23
        %p393 = scmp.lt.s32.totalorder %s392, 63
        %s394 = scalar_select %p393, %s392, 63
        %s395 = smul.addr %s394, 4
        %s396 = scalar_lea.vmem %s0, %s395
        %s397 = smul.u32 32, %s23
        %s398 = smul.u32 32, %s23
        %p399 = scmp.lt.s32.totalorder %s398, 63
        %s400 = scalar_select %p399, %s398, 63
        %s401 = smul.addr %s400, 8
        %s402 = scalar_lea.vmem %s11, %s401
        %s403 = smul.u32 32, %s23
        %405 = vst [vmem:[#allocation2] sm:$0xff] 0
        %406 = vst [vmem:[#allocation2 + $0x8] sm:$0xf] 0
        %407 = vst [vmem:[#allocation2 + $0x88] sm:$0xf0] 0
        %408 = vst [vmem:[#allocation2 + $0x90] sm:$0xff] 0
        %v409 = vld [vmem:[%s396] sm:$0xf]
        %v410 = vld [vmem:[%s396 + $0x4] sm:$0xf]
        %v411 = vld [vmem:[%s396 + $0x8] sm:$0xf]
        %v412 = vld [vmem:[%s396 + $0xc] sm:$0xf]
        %v413 = vld [vmem:[%s396 + $0x10] sm:$0xf]
        %v414 = vld [vmem:[%s396 + $0x14] sm:$0xf]
        %v415 = vld [vmem:[%s396 + $0x18] sm:$0xf]
        %v416 = vld [vmem:[%s396 + $0x1c] sm:$0xf]
        %v417 = vld [vmem:[%s396 + $0x20] sm:$0xf]
        %v418 = vld [vmem:[%s396 + $0x24] sm:$0xf]
        %v419 = vld [vmem:[%s396 + $0x28] sm:$0xf]
        %v420 = vld [vmem:[%s396 + $0x2c] sm:$0xf]
        %v421 = vld [vmem:[%s396 + $0x30] sm:$0xf]
        %v422 = vld [vmem:[%s396 + $0x34] sm:$0xf]
        %v423 = vld [vmem:[%s396 + $0x38] sm:$0xf]
        %v424 = vld [vmem:[%s396 + $0x3c] sm:$0xf]
        %v425 = vld [vmem:[%s396 + $0x40] sm:$0xf]
        %v426 = vld [vmem:[%s396 + $0x44] sm:$0xf]
        %v427 = vld [vmem:[%s396 + $0x48] sm:$0xf]
        %v428 = vld [vmem:[%s396 + $0x4c] sm:$0xf]
        %v429 = vld [vmem:[%s396 + $0x50] sm:$0xf]
        %v430 = vld [vmem:[%s396 + $0x54] sm:$0xf]
        %v431 = vld [vmem:[%s396 + $0x58] sm:$0xf]
        %v432 = vld [vmem:[%s396 + $0x5c] sm:$0xf]
        %v433 = vld [vmem:[%s396 + $0x60] sm:$0xf]
        %v434 = vld [vmem:[%s396 + $0x64] sm:$0xf]
        %v435 = vld [vmem:[%s396 + $0x68] sm:$0xf]
        %v436 = vld [vmem:[%s396 + $0x6c] sm:$0xf]
        %v437 = vld [vmem:[%s396 + $0x70] sm:$0xf]
        %v438 = vld [vmem:[%s396 + $0x74] sm:$0xf]
        %v439 = vld [vmem:[%s396 + $0x78] sm:$0xf]
        %v440 = vld [vmem:[%s396 + $0x7c] sm:$0xf]
        %v441 = vld [vmem:[%s1] sm:$0xf]
        %v442 = vld [vmem:[%s1 + $0x4] sm:$0xf]
        %v443 = vld [vmem:[%s1 + $0x8] sm:$0xf]
        %v444 = vld [vmem:[%s1 + $0xc] sm:$0xf]
        %v445 = vld [vmem:[%s1 + $0x10] sm:$0xf]
        %v446 = vld [vmem:[%s1 + $0x14] sm:$0xf]
        %v447 = vld [vmem:[%s1 + $0x18] sm:$0xf]
        %v448 = vld [vmem:[%s1 + $0x1c] sm:$0xf]
        %v449 = vld [vmem:[%s1 + $0x20] sm:$0xf]
        %v450 = vld [vmem:[%s1 + $0x24] sm:$0xf]
        %v451 = vld [vmem:[%s1 + $0x28] sm:$0xf]
        %v452 = vld [vmem:[%s1 + $0x2c] sm:$0xf]
        %v453 = vld [vmem:[%s1 + $0x30] sm:$0xf]
        %v454 = vld [vmem:[%s1 + $0x34] sm:$0xf]
        %v455 = vld [vmem:[%s1 + $0x38] sm:$0xf]
        %v456 = vld [vmem:[%s1 + $0x3c] sm:$0xf]
        %v457 = vld [vmem:[%s2] sm:$0x1]
        %v459 = vlaneseq
        %v460 = vshrl.u32 %v459, 7
        %v461 = vsub.s32 0, %v460
        %v462 = vrot.slane %v457, %v461
        %v496 = vunpack.c.l.b16 %v409
        %v497 = vunpack.c.l.b16 %v410
        %v498 = vunpack.c.l.b16 %v411
        %v499 = vunpack.c.l.b16 %v412
        %v500 = vunpack.c.l.b16 %v413
        %v501 = vunpack.c.l.b16 %v414
        %v502 = vunpack.c.l.b16 %v415
        %v503 = vunpack.c.l.b16 %v416
        %v504 = vunpack.c.l.b16 %v417
        %v505 = vunpack.c.l.b16 %v418
        %v506 = vunpack.c.l.b16 %v419
        %v507 = vunpack.c.l.b16 %v420
        %v508 = vunpack.c.l.b16 %v421
        %v509 = vunpack.c.l.b16 %v422
        %v510 = vunpack.c.l.b16 %v423
        %v511 = vunpack.c.l.b16 %v424
        %v512 = vunpack.c.l.b16 %v425
        %v513 = vunpack.c.l.b16 %v426
        %v514 = vunpack.c.l.b16 %v427
        %v515 = vunpack.c.l.b16 %v428
        %v516 = vunpack.c.l.b16 %v429
        %v517 = vunpack.c.l.b16 %v430
        %v518 = vunpack.c.l.b16 %v431
        %v519 = vunpack.c.l.b16 %v432
        %v520 = vunpack.c.l.b16 %v433
        %v521 = vunpack.c.l.b16 %v434
        %v522 = vunpack.c.l.b16 %v435
        %v523 = vunpack.c.l.b16 %v436
        %v524 = vunpack.c.l.b16 %v437
        %v525 = vunpack.c.l.b16 %v438
        %v526 = vunpack.c.l.b16 %v439
        %v527 = vunpack.c.l.b16 %v440
        %v528 = vpack.c.b16 %v497, %v496
        %v529 = vpack.c.b16 %v499, %v498
        %v530 = vpack.c.b16 %v501, %v500
        %v531 = vpack.c.b16 %v503, %v502
        %v532 = vpack.c.b16 %v505, %v504
        %v533 = vpack.c.b16 %v507, %v506
        %v534 = vpack.c.b16 %v509, %v508
        %v535 = vpack.c.b16 %v511, %v510
        %v536 = vpack.c.b16 %v513, %v512
        %v537 = vpack.c.b16 %v515, %v514
        %v538 = vpack.c.b16 %v517, %v516
        %v539 = vpack.c.b16 %v519, %v518
        %v540 = vpack.c.b16 %v521, %v520
        %v541 = vpack.c.b16 %v523, %v522
        %v542 = vpack.c.b16 %v525, %v524
        %v543 = vpack.c.b16 %v527, %v526
        %v576 = vunpack.c.l.b16 %v441
        %v577 = vunpack.c.l.b16 %v442
        %v578 = vunpack.c.l.b16 %v443
        %v579 = vunpack.c.l.b16 %v444
        %v580 = vunpack.c.l.b16 %v445
        %v581 = vunpack.c.l.b16 %v446
        %v582 = vunpack.c.l.b16 %v447
        %v583 = vunpack.c.l.b16 %v448
        %v584 = vunpack.c.l.b16 %v449
        %v585 = vunpack.c.l.b16 %v450
        %v586 = vunpack.c.l.b16 %v451
        %v587 = vunpack.c.l.b16 %v452
        %v588 = vunpack.c.l.b16 %v453
        %v589 = vunpack.c.l.b16 %v454
        %v590 = vunpack.c.l.b16 %v455
        %v591 = vunpack.c.l.b16 %v456
        %v592 = vpack.c.b16 %v577, %v576
        %v593 = vpack.c.b16 %v579, %v578
        %v594 = vpack.c.b16 %v581, %v580
        %v595 = vpack.c.b16 %v583, %v582
        %v596 = vpack.c.b16 %v585, %v584
        %v597 = vpack.c.b16 %v587, %v586
        %v598 = vpack.c.b16 %v589, %v588
        %v599 = vpack.c.b16 %v591, %v590
        %608 = vmatprep.subr.bf16.mxu0 0
        %609 = vmatpush1.bf16.msra.mxu0 %v592
        %610 = vmatprep.subr.bf16.mxu0 0
        %611 = vmatpush1.bf16.msra.mxu0 %v593
        %612 = vmatprep.subr.bf16.mxu0 0
        %613 = vmatpush1.bf16.msra.mxu0 %v594
        %614 = vmatprep.subr.bf16.mxu0 0
        %615 = vmatpush1.bf16.msra.mxu0 %v595
        %616 = vmatprep.subr.bf16.mxu0 0
        %617 = vmatpush1.bf16.msra.mxu0 %v596
        %618 = vmatprep.subr.bf16.mxu0 0
        %619 = vmatpush1.bf16.msra.mxu0 %v597
        %620 = vmatprep.subr.bf16.mxu0 0
        %621 = vmatpush1.bf16.msra.mxu0 %v598
        %622 = vmatprep.subr.bf16.mxu0 0
        %623 = vmatpush1.bf16.msra.mxu0 %v599
        %624 = vmatprep.subr.bf16.mxu0 0
        %625 = vmatpush1.bf16.msra.mxu0 0
        %626 = vmatprep.subr.bf16.mxu0 0
        %627 = vmatpush1.bf16.msra.mxu0 0
        %628 = vmatprep.subr.bf16.mxu0 0
        %629 = vmatpush1.bf16.msra.mxu0 0
        %630 = vmatprep.subr.bf16.mxu0 0
        %631 = vmatpush1.bf16.msra.mxu0 0
        %632 = vmatprep.subr.bf16.mxu0 0
        %633 = vmatpush1.bf16.msra.mxu0 0
        %634 = vmatprep.subr.bf16.mxu0 0
        %635 = vmatpush1.bf16.msra.mxu0 0
        %636 = vmatprep.subr.bf16.mxu0 0
        %637 = vmatpush1.bf16.msra.mxu0 0
        %638 = vmatprep.subr.bf16.mxu0 0
        %639 = vmatpush1.bf16.msra.mxu0 0
        %640 = vmatprep.mubr.bf16.mxu0 0
        %641 = vmatmul.mubr.bf16.gmra.mrb[0].mxu0 %v528
        %v642 = vpop.f32.mrb[0].mxu0
        %v643 = vadd.f32 %v462, %v642
        %v644 = vpop.f32.mrb[0].mxu0
        %v645 = vpop.f32.mrb[0].mxu0
        %v646 = vadd.f32 %v462, %v645
        %v647 = vpop.f32.mrb[0].mxu0
        %648 = vmatprep.mubr.bf16.mxu0 0
        %649 = vmatmul.mubr.bf16.gmra.mrb[0].mxu0 %v529
        %v650 = vpop.f32.mrb[0].mxu0
        %v651 = vadd.f32 %v462, %v650
        %v652 = vpop.f32.mrb[0].mxu0
        %v653 = vpop.f32.mrb[0].mxu0
        %v654 = vadd.f32 %v462, %v653
        %v655 = vpop.f32.mrb[0].mxu0
        %656 = vmatprep.mubr.bf16.mxu0 0
        %657 = vmatmul.mubr.bf16.gmra.mrb[0].mxu0 %v530
        %v658 = vpop.f32.mrb[0].mxu0
        %v659 = vadd.f32 %v462, %v658
        %v660 = vpop.f32.mrb[0].mxu0
        %v661 = vpop.f32.mrb[0].mxu0
        %v662 = vadd.f32 %v462, %v661
        %v663 = vpop.f32.mrb[0].mxu0
        %664 = vmatprep.mubr.bf16.mxu0 0
        %665 = vmatmul.mubr.bf16.gmra.mrb[0].mxu0 %v531
        %v666 = vpop.f32.mrb[0].mxu0
        %v667 = vadd.f32 %v462, %v666
        %v668 = vpop.f32.mrb[0].mxu0
        %v669 = vpop.f32.mrb[0].mxu0
        %v670 = vadd.f32 %v462, %v669
        %v671 = vpop.f32.mrb[0].mxu0
        %672 = vmatprep.mubr.bf16.mxu0 0
        %673 = vmatmul.mubr.bf16.gmra.mrb[0].mxu0 %v532
        %v674 = vpop.f32.mrb[0].mxu0
        %v675 = vadd.f32 %v462, %v674
        %v676 = vpop.f32.mrb[0].mxu0
        %v677 = vpop.f32.mrb[0].mxu0
        %v678 = vadd.f32 %v462, %v677
        %v679 = vpop.f32.mrb[0].mxu0
        %680 = vmatprep.mubr.bf16.mxu0 0
        %681 = vmatmul.mubr.bf16.gmra.mrb[0].mxu0 %v533
        %v682 = vpop.f32.mrb[0].mxu0
        %v683 = vadd.f32 %v462, %v682
        %v684 = vpop.f32.mrb[0].mxu0
        %v685 = vpop.f32.mrb[0].mxu0
        %v686 = vadd.f32 %v462, %v685
        %v687 = vpop.f32.mrb[0].mxu0
        %688 = vmatprep.mubr.bf16.mxu0 0
        %689 = vmatmul.mubr.bf16.gmra.mrb[0].mxu0 %v534
        %v690 = vpop.f32.mrb[0].mxu0
        %v691 = vadd.f32 %v462, %v690
        %v692 = vpop.f32.mrb[0].mxu0
        %v693 = vpop.f32.mrb[0].mxu0
        %v694 = vadd.f32 %v462, %v693
        %v695 = vpop.f32.mrb[0].mxu0
        %696 = vmatprep.mubr.bf16.mxu0 0
        %697 = vmatmul.mubr.bf16.gmra.mrb[0].mxu0 %v535
        %v698 = vpop.f32.mrb[0].mxu0
        %v699 = vadd.f32 %v462, %v698
        %v700 = vpop.f32.mrb[0].mxu0
        %v701 = vpop.f32.mrb[0].mxu0
        %v702 = vadd.f32 %v462, %v701
        %v703 = vpop.f32.mrb[0].mxu0
        %704 = vmatprep.mubr.bf16.mxu0 0
        %705 = vmatmul.mubr.bf16.gmra.mrb[0].mxu0 %v536
        %v706 = vpop.f32.mrb[0].mxu0
        %v707 = vadd.f32 %v462, %v706
        %v708 = vpop.f32.mrb[0].mxu0
        %v709 = vpop.f32.mrb[0].mxu0
        %v710 = vadd.f32 %v462, %v709
        %v711 = vpop.f32.mrb[0].mxu0
        %712 = vmatprep.mubr.bf16.mxu0 0
        %713 = vmatmul.mubr.bf16.gmra.mrb[0].mxu0 %v537
        %v714 = vpop.f32.mrb[0].mxu0
        %v715 = vadd.f32 %v462, %v714
        %v716 = vpop.f32.mrb[0].mxu0
        %v717 = vpop.f32.mrb[0].mxu0
        %v718 = vadd.f32 %v462, %v717
        %v719 = vpop.f32.mrb[0].mxu0
        %720 = vmatprep.mubr.bf16.mxu0 0
        %721 = vmatmul.mubr.bf16.gmra.mrb[0].mxu0 %v538
        %v722 = vpop.f32.mrb[0].mxu0
        %v723 = vadd.f32 %v462, %v722
        %v724 = vpop.f32.mrb[0].mxu0
        %v725 = vpop.f32.mrb[0].mxu0
        %v726 = vadd.f32 %v462, %v725
        %v727 = vpop.f32.mrb[0].mxu0
        %728 = vmatprep.mubr.bf16.mxu0 0
        %729 = vmatmul.mubr.bf16.gmra.mrb[0].mxu0 %v539
        %v730 = vpop.f32.mrb[0].mxu0
        %v731 = vadd.f32 %v462, %v730
        %v732 = vpop.f32.mrb[0].mxu0
        %v733 = vpop.f32.mrb[0].mxu0
        %v734 = vadd.f32 %v462, %v733
        %v735 = vpop.f32.mrb[0].mxu0
        %736 = vmatprep.mubr.bf16.mxu0 0
        %737 = vmatmul.mubr.bf16.gmra.mrb[0].mxu0 %v540
        %v738 = vpop.f32.mrb[0].mxu0
        %v739 = vadd.f32 %v462, %v738
        %v740 = vpop.f32.mrb[0].mxu0
        %v741 = vpop.f32.mrb[0].mxu0
        %v742 = vadd.f32 %v462, %v741
        %v743 = vpop.f32.mrb[0].mxu0
        %744 = vmatprep.mubr.bf16.mxu0 0
        %745 = vmatmul.mubr.bf16.gmra.mrb[0].mxu0 %v541
        %v746 = vpop.f32.mrb[0].mxu0
        %v747 = vadd.f32 %v462, %v746
        %v748 = vpop.f32.mrb[0].mxu0
        %v749 = vpop.f32.mrb[0].mxu0
        %v750 = vadd.f32 %v462, %v749
        %v751 = vpop.f32.mrb[0].mxu0
        %752 = vmatprep.mubr.bf16.mxu0 0
        %753 = vmatmul.mubr.bf16.gmra.mrb[0].mxu0 %v542
        %v754 = vpop.f32.mrb[0].mxu0
        %v755 = vadd.f32 %v462, %v754
        %v756 = vpop.f32.mrb[0].mxu0
        %v757 = vpop.f32.mrb[0].mxu0
        %v758 = vadd.f32 %v462, %v757
        %v759 = vpop.f32.mrb[0].mxu0
        %760 = vmatprep.mubr.bf16.mxu0 0
        %761 = vmatmul.mubr.bf16.gmra.mrb[0].mxu0 %v543
        %v762 = vpop.f32.mrb[0].mxu0
        %v763 = vadd.f32 %v462, %v762
        %v764 = vpop.f32.mrb[0].mxu0
        %v765 = vpop.f32.mrb[0].mxu0
        %v766 = vadd.f32 %v462, %v765
        %v767 = vpop.f32.mrb[0].mxu0
        %768 = vdwg.mxu0
        %s769 = sld [smem:[#allocation4]]
        %vm770 = vcmp.ge.f32.partialorder %v643, 0.0
        %vm771 = vcmp.ge.f32.partialorder %v646, 0.0
        %vm772 = vcmp.ge.f32.partialorder %v651, 0.0
        %vm773 = vcmp.ge.f32.partialorder %v654, 0.0
        %vm774 = vcmp.ge.f32.partialorder %v659, 0.0
        %vm775 = vcmp.ge.f32.partialorder %v662, 0.0
        %vm776 = vcmp.ge.f32.partialorder %v667, 0.0
        %vm777 = vcmp.ge.f32.partialorder %v670, 0.0
        %vm778 = vcmp.ge.f32.partialorder %v675, 0.0
        %vm779 = vcmp.ge.f32.partialorder %v678, 0.0
        %vm780 = vcmp.ge.f32.partialorder %v683, 0.0
        %vm781 = vcmp.ge.f32.partialorder %v686, 0.0
        %vm782 = vcmp.ge.f32.partialorder %v691, 0.0
        %vm783 = vcmp.ge.f32.partialorder %v694, 0.0
        %vm784 = vcmp.ge.f32.partialorder %v699, 0.0
        %vm785 = vcmp.ge.f32.partialorder %v702, 0.0
        %vm786 = vcmp.ge.f32.partialorder %v707, 0.0
        %vm787 = vcmp.ge.f32.partialorder %v710, 0.0
        %vm788 = vcmp.ge.f32.partialorder %v715, 0.0
        %vm789 = vcmp.ge.f32.partialorder %v718, 0.0
        %vm790 = vcmp.ge.f32.partialorder %v723, 0.0
        %vm791 = vcmp.ge.f32.partialorder %v726, 0.0
        %vm792 = vcmp.ge.f32.partialorder %v731, 0.0
        %vm793 = vcmp.ge.f32.partialorder %v734, 0.0
        %vm794 = vcmp.ge.f32.partialorder %v739, 0.0
        %vm795 = vcmp.ge.f32.partialorder %v742, 0.0
        %vm796 = vcmp.ge.f32.partialorder %v747, 0.0
        %vm797 = vcmp.ge.f32.partialorder %v750, 0.0
        %vm798 = vcmp.ge.f32.partialorder %v755, 0.0
        %vm799 = vcmp.ge.f32.partialorder %v758, 0.0
        %vm800 = vcmp.ge.f32.partialorder %v763, 0.0
        %vm801 = vcmp.ge.f32.partialorder %v766, 0.0
        %v802 = vstv %s769
        %v803 = vmul.f32 %v802, %v643
        %v804 = vmul.f32 %v802, %v646
        %v805 = vmul.f32 %v802, %v651
        %v806 = vmul.f32 %v802, %v654
        %v807 = vmul.f32 %v802, %v659
        %v808 = vmul.f32 %v802, %v662
        %v809 = vmul.f32 %v802, %v667
        %v810 = vmul.f32 %v802, %v670
        %v811 = vmul.f32 %v802, %v675
        %v812 = vmul.f32 %v802, %v678
        %v813 = vmul.f32 %v802, %v683
        %v814 = vmul.f32 %v802, %v686
        %v815 = vmul.f32 %v802, %v691
        %v816 = vmul.f32 %v802, %v694
        %v817 = vmul.f32 %v802, %v699
        %v818 = vmul.f32 %v802, %v702
        %v819 = vmul.f32 %v802, %v707
        %v820 = vmul.f32 %v802, %v710
        %v821 = vmul.f32 %v802, %v715
        %v822 = vmul.f32 %v802, %v718
        %v823 = vmul.f32 %v802, %v723
        %v824 = vmul.f32 %v802, %v726
        %v825 = vmul.f32 %v802, %v731
        %v826 = vmul.f32 %v802, %v734
        %v827 = vmul.f32 %v802, %v739
        %v828 = vmul.f32 %v802, %v742
        %v829 = vmul.f32 %v802, %v747
        %v830 = vmul.f32 %v802, %v750
        %v831 = vmul.f32 %v802, %v755
        %v832 = vmul.f32 %v802, %v758
        %v833 = vmul.f32 %v802, %v763
        %v834 = vmul.f32 %v802, %v766
        %v835 = vsel %vm770, %v643, %v803
        %v836 = vsel %vm771, %v646, %v804
        %v837 = vsel %vm772, %v651, %v805
        %v838 = vsel %vm773, %v654, %v806
        %v839 = vsel %vm774, %v659, %v807
        %v840 = vsel %vm775, %v662, %v808
        %v841 = vsel %vm776, %v667, %v809
        %v842 = vsel %vm777, %v670, %v810
        %v843 = vsel %vm778, %v675, %v811
        %v844 = vsel %vm779, %v678, %v812
        %v845 = vsel %vm780, %v683, %v813
        %v846 = vsel %vm781, %v686, %v814
        %v847 = vsel %vm782, %v691, %v815
        %v848 = vsel %vm783, %v694, %v816
        %v849 = vsel %vm784, %v699, %v817
        %v850 = vsel %vm785, %v702, %v818
        %v851 = vsel %vm786, %v707, %v819
        %v852 = vsel %vm787, %v710, %v820
        %v853 = vsel %vm788, %v715, %v821
        %v854 = vsel %vm789, %v718, %v822
        %v855 = vsel %vm790, %v723, %v823
        %v856 = vsel %vm791, %v726, %v824
        %v857 = vsel %vm792, %v731, %v825
        %v858 = vsel %vm793, %v734, %v826
        %v859 = vsel %vm794, %v739, %v827
        %v860 = vsel %vm795, %v742, %v828
        %v861 = vsel %vm796, %v747, %v829
        %v862 = vsel %vm797, %v750, %v830
        %v863 = vsel %vm798, %v755, %v831
        %v864 = vsel %vm799, %v758, %v832
        %v865 = vsel %vm800, %v763, %v833
        %v866 = vsel %vm801, %v766, %v834
        %v867 = vld [vmem:[%s9] sm:$0xff]
        %v868 = vld [vmem:[%s9 + $0x8] sm:$0xff]
        %v869 = vld [vmem:[%s9 + $0x10] sm:$0xff]
        %v870 = vld [vmem:[%s9 + $0x18] sm:$0xff]
        %v871 = vld [vmem:[%s9 + $0x20] sm:$0xff]
        %v872 = vld [vmem:[%s9 + $0x28] sm:$0xff]
        %v873 = vld [vmem:[%s9 + $0x30] sm:$0xff]
        %v874 = vld [vmem:[%s9 + $0x38] sm:$0xff]
        %v875 = vld [vmem:[%s9 + $0x40] sm:$0xff]
        %v876 = vld [vmem:[%s9 + $0x48] sm:$0xff]
        %v877 = vld [vmem:[%s9 + $0x50] sm:$0xff]
        %v878 = vld [vmem:[%s9 + $0x58] sm:$0xff]
        %v879 = vld [vmem:[%s9 + $0x60] sm:$0xff]
        %v880 = vld [vmem:[%s9 + $0x68] sm:$0xff]
        %v881 = vld [vmem:[%s9 + $0x70] sm:$0xff]
        %v882 = vld [vmem:[%s9 + $0x78] sm:$0xff]
        %v883 = vld [vmem:[%s9 + $0x80] sm:$0xff]
        %v884 = vld [vmem:[%s9 + $0x88] sm:$0xff]
        %v885 = vld [vmem:[%s9 + $0x90] sm:$0xff]
        %v886 = vld [vmem:[%s9 + $0x98] sm:$0xff]
        %v887 = vld [vmem:[%s9 + $0xa0] sm:$0xff]
        %v888 = vld [vmem:[%s9 + $0xa8] sm:$0xff]
        %v889 = vld [vmem:[%s9 + $0xb0] sm:$0xff]
        %v890 = vld [vmem:[%s9 + $0xb8] sm:$0xff]
        %v891 = vld [vmem:[%s9 + $0xc0] sm:$0xff]
        %v892 = vld [vmem:[%s9 + $0xc8] sm:$0xff]
        %v893 = vld [vmem:[%s9 + $0xd0] sm:$0xff]
        %v894 = vld [vmem:[%s9 + $0xd8] sm:$0xff]
        %v895 = vld [vmem:[%s9 + $0xe0] sm:$0xff]
        %v896 = vld [vmem:[%s9 + $0xe8] sm:$0xff]
        %v897 = vld [vmem:[%s9 + $0xf0] sm:$0xff]
        %v898 = vld [vmem:[%s9 + $0xf8] sm:$0xff]
        %v899 = vmul.f32 %v835, %v867
        %v900 = vmul.f32 %v836, %v868
        %v901 = vmul.f32 %v837, %v869
        %v902 = vmul.f32 %v838, %v870
        %v903 = vmul.f32 %v839, %v871
        %v904 = vmul.f32 %v840, %v872
        %v905 = vmul.f32 %v841, %v873
        %v906 = vmul.f32 %v842, %v874
        %v907 = vmul.f32 %v843, %v875
        %v908 = vmul.f32 %v844, %v876
        %v909 = vmul.f32 %v845, %v877
        %v910 = vmul.f32 %v846, %v878
        %v911 = vmul.f32 %v847, %v879
        %v912 = vmul.f32 %v848, %v880
        %v913 = vmul.f32 %v849, %v881
        %v914 = vmul.f32 %v850, %v882
        %v915 = vmul.f32 %v851, %v883
        %v916 = vmul.f32 %v852, %v884
        %v917 = vmul.f32 %v853, %v885
        %v918 = vmul.f32 %v854, %v886
        %v919 = vmul.f32 %v855, %v887
        %v920 = vmul.f32 %v856, %v888
        %v921 = vmul.f32 %v857, %v889
        %v922 = vmul.f32 %v858, %v890
        %v923 = vmul.f32 %v859, %v891
        %v924 = vmul.f32 %v860, %v892
        %v925 = vmul.f32 %v861, %v893
        %v926 = vmul.f32 %v862, %v894
        %v927 = vmul.f32 %v863, %v895
        %v928 = vmul.f32 %v864, %v896
        %v929 = vmul.f32 %v865, %v897
        %v930 = vmul.f32 %v866, %v898
        %v931 = vpack.c.bf16 %v900, %v899
        %v932 = vpack.c.bf16 %v902, %v901
        %v933 = vpack.c.bf16 %v904, %v903
        %v934 = vpack.c.bf16 %v906, %v905
        %v935 = vpack.c.bf16 %v908, %v907
        %v936 = vpack.c.bf16 %v910, %v909
        %v937 = vpack.c.bf16 %v912, %v911
        %v938 = vpack.c.bf16 %v914, %v913
        %v939 = vpack.c.bf16 %v916, %v915
        %v940 = vpack.c.bf16 %v918, %v917
        %v941 = vpack.c.bf16 %v920, %v919
        %v942 = vpack.c.bf16 %v922, %v921
        %v943 = vpack.c.bf16 %v924, %v923
        %v944 = vpack.c.bf16 %v926, %v925
        %v945 = vpack.c.bf16 %v928, %v927
        %v946 = vpack.c.bf16 %v930, %v929
        %vm963 = vcmask 1043456
        %v964 = vrot.slane %v931, 4
        %v965 = vrot.slane %v932, 4
        %v966 = vsel %vm963, %v964, %v965
        %v967 = vrot.slane %v933, 4
        %v968 = vsel %vm963, %v965, %v967
        %v969 = vrot.slane %v934, 4
        %v970 = vsel %vm963, %v967, %v969
        %v971 = vrot.slane %v935, 4
        %v972 = vsel %vm963, %v969, %v971
        %v973 = vrot.slane %v936, 4
        %v974 = vsel %vm963, %v971, %v973
        %v975 = vrot.slane %v937, 4
        %v976 = vsel %vm963, %v973, %v975
        %v977 = vrot.slane %v938, 4
        %v978 = vsel %vm963, %v975, %v977
        %v979 = vrot.slane %v939, 4
        %v980 = vsel %vm963, %v977, %v979
        %v981 = vrot.slane %v940, 4
        %v982 = vsel %vm963, %v979, %v981
        %v983 = vrot.slane %v941, 4
        %v984 = vsel %vm963, %v981, %v983
        %v985 = vrot.slane %v942, 4
        %v986 = vsel %vm963, %v983, %v985
        %v987 = vrot.slane %v943, 4
        %v988 = vsel %vm963, %v985, %v987
        %v989 = vrot.slane %v944, 4
        %v990 = vsel %vm963, %v987, %v989
        %v991 = vrot.slane %v945, 4
        %v992 = vsel %vm963, %v989, %v991
        %v993 = vrot.slane %v946, 4
        %v994 = vsel %vm963, %v991, %v993
        %1012 = vst [vmem:[#allocation2 + $0x8] sm:$0xf0] %v964
        %1013 = vst [vmem:[#allocation2 + $0x10] sm:$0xff] %v966
        %1014 = vst [vmem:[#allocation2 + $0x18] sm:$0xff] %v968
        %1015 = vst [vmem:[#allocation2 + $0x20] sm:$0xff] %v970
        %1016 = vst [vmem:[#allocation2 + $0x28] sm:$0xff] %v972
        %1017 = vst [vmem:[#allocation2 + $0x30] sm:$0xff] %v974
        %1018 = vst [vmem:[#allocation2 + $0x38] sm:$0xff] %v976
        %1019 = vst [vmem:[#allocation2 + $0x40] sm:$0xff] %v978
        %1020 = vst [vmem:[#allocation2 + $0x48] sm:$0xff] %v980
        %1021 = vst [vmem:[#allocation2 + $0x50] sm:$0xff] %v982
        %1022 = vst [vmem:[#allocation2 + $0x58] sm:$0xff] %v984
        %1023 = vst [vmem:[#allocation2 + $0x60] sm:$0xff] %v986
        %1024 = vst [vmem:[#allocation2 + $0x68] sm:$0xff] %v988
        %1025 = vst [vmem:[#allocation2 + $0x70] sm:$0xff] %v990
        %1026 = vst [vmem:[#allocation2 + $0x78] sm:$0xff] %v992
        %1027 = vst [vmem:[#allocation2 + $0x80] sm:$0xff] %v994
        %1028 = vst [vmem:[#allocation2 + $0x88] sm:$0xf] %v993
        %v1029 = vld [vmem:[#allocation2] sm:$0xf8]
        %v1030 = vld [vmem:[#allocation2 + $0x8] sm:$0xff]
        %v1031 = vld [vmem:[#allocation2 + $0x10] sm:$0xff]
        %v1032 = vld [vmem:[#allocation2 + $0x18] sm:$0xff]
        %v1033 = vld [vmem:[#allocation2 + $0x20] sm:$0xff]
        %v1034 = vld [vmem:[#allocation2 + $0x28] sm:$0xff]
        %v1035 = vld [vmem:[#allocation2 + $0x30] sm:$0xff]
        %v1036 = vld [vmem:[#allocation2 + $0x38] sm:$0xff]
        %v1037 = vld [vmem:[#allocation2 + $0x40] sm:$0xff]
        %v1038 = vld [vmem:[#allocation2 + $0x48] sm:$0xff]
        %v1039 = vld [vmem:[#allocation2 + $0x50] sm:$0xff]
        %v1040 = vld [vmem:[#allocation2 + $0x58] sm:$0xff]
        %v1041 = vld [vmem:[#allocation2 + $0x60] sm:$0xff]
        %v1042 = vld [vmem:[#allocation2 + $0x68] sm:$0xff]
        %v1043 = vld [vmem:[#allocation2 + $0x70] sm:$0xff]
        %v1044 = vld [vmem:[#allocation2 + $0x78] sm:$0xff]
        %v1045 = vld [vmem:[#allocation2 + $0x80] sm:$0xf]
        %vm1046 = vsmask.f32 4352
        %v1048 = vshrl.u32 %v1029, 16
        %v1050 = vrot.slane %v1048, 3
        %v1051 = vshll.u32 %v1029, 16
        %v1053 = vrot.slane %v1051, 4
        %v1054 = vor.u32 %v1050, %v1053
        %v1056 = vshrl.u32 %v1030, 16
        %v1058 = vrot.slane %v1056, 3
        %v1059 = vshll.u32 %v1030, 16
        %v1061 = vrot.slane %v1059, 4
        %v1062 = vor.u32 %v1058, %v1061
        %v1063 = vsel %vm1046, %v1054, %v1062
        %v1065 = vshrl.u32 %v1031, 16
        %v1067 = vrot.slane %v1065, 3
        %v1068 = vshll.u32 %v1031, 16
        %v1070 = vrot.slane %v1068, 4
        %v1071 = vor.u32 %v1067, %v1070
        %v1072 = vsel %vm1046, %v1062, %v1071
        %v1074 = vshrl.u32 %v1032, 16
        %v1076 = vrot.slane %v1074, 3
        %v1077 = vshll.u32 %v1032, 16
        %v1079 = vrot.slane %v1077, 4
        %v1080 = vor.u32 %v1076, %v1079
        %v1081 = vsel %vm1046, %v1071, %v1080
        %v1083 = vshrl.u32 %v1033, 16
        %v1085 = vrot.slane %v1083, 3
        %v1086 = vshll.u32 %v1033, 16
        %v1088 = vrot.slane %v1086, 4
        %v1089 = vor.u32 %v1085, %v1088
        %v1090 = vsel %vm1046, %v1080, %v1089
        %v1092 = vshrl.u32 %v1034, 16
        %v1094 = vrot.slane %v1092, 3
        %v1095 = vshll.u32 %v1034, 16
        %v1097 = vrot.slane %v1095, 4
        %v1098 = vor.u32 %v1094, %v1097
        %v1099 = vsel %vm1046, %v1089, %v1098
        %v1101 = vshrl.u32 %v1035, 16
        %v1103 = vrot.slane %v1101, 3
        %v1104 = vshll.u32 %v1035, 16
        %v1106 = vrot.slane %v1104, 4
        %v1107 = vor.u32 %v1103, %v1106
        %v1108 = vsel %vm1046, %v1098, %v1107
        %v1110 = vshrl.u32 %v1036, 16
        %v1112 = vrot.slane %v1110, 3
        %v1113 = vshll.u32 %v1036, 16
        %v1115 = vrot.slane %v1113, 4
        %v1116 = vor.u32 %v1112, %v1115
        %v1117 = vsel %vm1046, %v1107, %v1116
        %v1119 = vshrl.u32 %v1037, 16
        %v1121 = vrot.slane %v1119, 3
        %v1122 = vshll.u32 %v1037, 16
        %v1124 = vrot.slane %v1122, 4
        %v1125 = vor.u32 %v1121, %v1124
        %v1126 = vsel %vm1046, %v1116, %v1125
        %v1128 = vshrl.u32 %v1038, 16
        %v1130 = vrot.slane %v1128, 3
        %v1131 = vshll.u32 %v1038, 16
        %v1133 = vrot.slane %v1131, 4
        %v1134 = vor.u32 %v1130, %v1133
        %v1135 = vsel %vm1046, %v1125, %v1134
        %v1137 = vshrl.u32 %v1039, 16
        %v1139 = vrot.slane %v1137, 3
        %v1140 = vshll.u32 %v1039, 16
        %v1142 = vrot.slane %v1140, 4
        %v1143 = vor.u32 %v1139, %v1142
        %v1144 = vsel %vm1046, %v1134, %v1143
        %v1146 = vshrl.u32 %v1040, 16
        %v1148 = vrot.slane %v1146, 3
        %v1149 = vshll.u32 %v1040, 16
        %v1151 = vrot.slane %v1149, 4
        %v1152 = vor.u32 %v1148, %v1151
        %v1153 = vsel %vm1046, %v1143, %v1152
        %v1155 = vshrl.u32 %v1041, 16
        %v1157 = vrot.slane %v1155, 3
        %v1158 = vshll.u32 %v1041, 16
        %v1160 = vrot.slane %v1158, 4
        %v1161 = vor.u32 %v1157, %v1160
        %v1162 = vsel %vm1046, %v1152, %v1161
        %v1164 = vshrl.u32 %v1042, 16
        %v1166 = vrot.slane %v1164, 3
        %v1167 = vshll.u32 %v1042, 16
        %v1169 = vrot.slane %v1167, 4
        %v1170 = vor.u32 %v1166, %v1169
        %v1171 = vsel %vm1046, %v1161, %v1170
        %v1173 = vshrl.u32 %v1043, 16
        %v1175 = vrot.slane %v1173, 3
        %v1176 = vshll.u32 %v1043, 16
        %v1178 = vrot.slane %v1176, 4
        %v1179 = vor.u32 %v1175, %v1178
        %v1180 = vsel %vm1046, %v1170, %v1179
        %v1182 = vshrl.u32 %v1044, 16
        %v1184 = vrot.slane %v1182, 3
        %v1185 = vshll.u32 %v1044, 16
        %v1187 = vrot.slane %v1185, 4
        %v1188 = vor.u32 %v1184, %v1187
        %v1189 = vsel %vm1046, %v1179, %v1188
        %v1191 = vshrl.u32 %v1045, 16
        %v1193 = vrot.slane %v1191, 3
        %v1194 = vshll.u32 %v1045, 16
        %v1196 = vrot.slane %v1194, 4
        %v1197 = vor.u32 %v1193, %v1196
        %v1198 = vsel %vm1046, %v1188, %v1197
        %1215 = vst [vmem:[#allocation3] sm:$0xff] %v1063
        %1216 = vst [vmem:[#allocation3 + $0x48] sm:$0xff] %v1072
        %1217 = vst [vmem:[#allocation3 + $0x90] sm:$0xff] %v1081
        %1218 = vst [vmem:[#allocation3 + $0xd8] sm:$0xff] %v1090
        %1219 = vst [vmem:[#allocation3 + $0x120] sm:$0xff] %v1099
        %1220 = vst [vmem:[#allocation3 + $0x168] sm:$0xff] %v1108
        %1221 = vst [vmem:[#allocation3 + $0x1b0] sm:$0xff] %v1117
        %1222 = vst [vmem:[#allocation3 + $0x1f8] sm:$0xff] %v1126
        %1223 = vst [vmem:[#allocation3 + $0x240] sm:$0xff] %v1135
        %1224 = vst [vmem:[#allocation3 + $0x288] sm:$0xff] %v1144
        %1225 = vst [vmem:[#allocation3 + $0x2d0] sm:$0xff] %v1153
        %1226 = vst [vmem:[#allocation3 + $0x318] sm:$0xff] %v1162
        %1227 = vst [vmem:[#allocation3 + $0x360] sm:$0xff] %v1171
        %1228 = vst [vmem:[#allocation3 + $0x3a8] sm:$0xff] %v1180
        %1229 = vst [vmem:[#allocation3 + $0x3f0] sm:$0xff] %v1189
        %1230 = vst [vmem:[#allocation3 + $0x438] sm:$0xff] %v1198
        %v1231 = vld [vmem:[#allocation2] sm:$0xf0]
        %v1232 = vld [vmem:[#allocation2 + $0x8] sm:$0xff]
        %v1233 = vld [vmem:[#allocation2 + $0x10] sm:$0xff]
        %v1234 = vld [vmem:[#allocation2 + $0x18] sm:$0xff]
        %v1235 = vld [vmem:[#allocation2 + $0x20] sm:$0xff]
        %v1236 = vld [vmem:[#allocation2 + $0x28] sm:$0xff]
        %v1237 = vld [vmem:[#allocation2 + $0x30] sm:$0xff]
        %v1238 = vld [vmem:[#allocation2 + $0x38] sm:$0xff]
        %v1239 = vld [vmem:[#allocation2 + $0x40] sm:$0xff]
        %v1240 = vld [vmem:[#allocation2 + $0x48] sm:$0xff]
        %v1241 = vld [vmem:[#allocation2 + $0x50] sm:$0xff]
        %v1242 = vld [vmem:[#allocation2 + $0x58] sm:$0xff]
        %v1243 = vld [vmem:[#allocation2 + $0x60] sm:$0xff]
        %v1244 = vld [vmem:[#allocation2 + $0x68] sm:$0xff]
        %v1245 = vld [vmem:[#allocation2 + $0x70] sm:$0xff]
        %v1246 = vld [vmem:[#allocation2 + $0x78] sm:$0xff]
        %v1247 = vld [vmem:[#allocation2 + $0x80] sm:$0xf]
        %v1265 = vrot.slane %v1231, 4
        %v1266 = vrot.slane %v1232, 4
        %v1267 = vsel %vm963, %v1265, %v1266
        %v1268 = vrot.slane %v1233, 4
        %v1269 = vsel %vm963, %v1266, %v1268
        %v1270 = vrot.slane %v1234, 4
        %v1271 = vsel %vm963, %v1268, %v1270
        %v1272 = vrot.slane %v1235, 4
        %v1273 = vsel %vm963, %v1270, %v1272
        %v1274 = vrot.slane %v1236, 4
        %v1275 = vsel %vm963, %v1272, %v1274
        %v1276 = vrot.slane %v1237, 4
        %v1277 = vsel %vm963, %v1274, %v1276
        %v1278 = vrot.slane %v1238, 4
        %v1279 = vsel %vm963, %v1276, %v1278
        %v1280 = vrot.slane %v1239, 4
        %v1281 = vsel %vm963, %v1278, %v1280
        %v1282 = vrot.slane %v1240, 4
        %v1283 = vsel %vm963, %v1280, %v1282
        %v1284 = vrot.slane %v1241, 4
        %v1285 = vsel %vm963, %v1282, %v1284
        %v1286 = vrot.slane %v1242, 4
        %v1287 = vsel %vm963, %v1284, %v1286
        %v1288 = vrot.slane %v1243, 4
        %v1289 = vsel %vm963, %v1286, %v1288
        %v1290 = vrot.slane %v1244, 4
        %v1291 = vsel %vm963, %v1288, %v1290
        %v1292 = vrot.slane %v1245, 4
        %v1293 = vsel %vm963, %v1290, %v1292
        %v1294 = vrot.slane %v1246, 4
        %v1295 = vsel %vm963, %v1292, %v1294
        %v1296 = vrot.slane %v1247, 4
        %v1297 = vsel %vm963, %v1294, %v1296
        %1314 = vst [vmem:[#allocation3 + $0x8] sm:$0xff] %v1267
        %1315 = vst [vmem:[#allocation3 + $0x50] sm:$0xff] %v1269
        %1316 = vst [vmem:[#allocation3 + $0x98] sm:$0xff] %v1271
        %1317 = vst [vmem:[#allocation3 + $0xe0] sm:$0xff] %v1273
        %1318 = vst [vmem:[#allocation3 + $0x128] sm:$0xff] %v1275
        %1319 = vst [vmem:[#allocation3 + $0x170] sm:$0xff] %v1277
        %1320 = vst [vmem:[#allocation3 + $0x1b8] sm:$0xff] %v1279
        %1321 = vst [vmem:[#allocation3 + $0x200] sm:$0xff] %v1281
        %1322 = vst [vmem:[#allocation3 + $0x248] sm:$0xff] %v1283
        %1323 = vst [vmem:[#allocation3 + $0x290] sm:$0xff] %v1285
        %1324 = vst [vmem:[#allocation3 + $0x2d8] sm:$0xff] %v1287
        %1325 = vst [vmem:[#allocation3 + $0x320] sm:$0xff] %v1289
        %1326 = vst [vmem:[#allocation3 + $0x368] sm:$0xff] %v1291
        %1327 = vst [vmem:[#allocation3 + $0x3b0] sm:$0xff] %v1293
        %1328 = vst [vmem:[#allocation3 + $0x3f8] sm:$0xff] %v1295
        %1329 = vst [vmem:[#allocation3 + $0x440] sm:$0xff] %v1297
        %v1330 = vld [vmem:[#allocation2] sm:$0xf0]
        %v1331 = vld [vmem:[#allocation2 + $0x8] sm:$0xff]
        %v1332 = vld [vmem:[#allocation2 + $0x10] sm:$0xff]
        %v1333 = vld [vmem:[#allocation2 + $0x18] sm:$0xff]
        %v1334 = vld [vmem:[#allocation2 + $0x20] sm:$0xff]
        %v1335 = vld [vmem:[#allocation2 + $0x28] sm:$0xff]
        %v1336 = vld [vmem:[#allocation2 + $0x30] sm:$0xff]
        %v1337 = vld [vmem:[#allocation2 + $0x38] sm:$0xff]
        %v1338 = vld [vmem:[#allocation2 + $0x40] sm:$0xff]
        %v1339 = vld [vmem:[#allocation2 + $0x48] sm:$0xff]
        %v1340 = vld [vmem:[#allocation2 + $0x50] sm:$0xff]
        %v1341 = vld [vmem:[#allocation2 + $0x58] sm:$0xff]
        %v1342 = vld [vmem:[#allocation2 + $0x60] sm:$0xff]
        %v1343 = vld [vmem:[#allocation2 + $0x68] sm:$0xff]
        %v1344 = vld [vmem:[#allocation2 + $0x70] sm:$0xff]
        %v1345 = vld [vmem:[#allocation2 + $0x78] sm:$0xff]
        %v1346 = vld [vmem:[#allocation2 + $0x80] sm:$0x1f]
        %vm1347 = vsmask.f32 3328
        %v1349 = vshrl.u32 %v1330, 16
        %v1351 = vrot.slane %v1349, 4
        %v1352 = vshll.u32 %v1330, 16
        %v1354 = vrot.slane %v1352, 5
        %v1355 = vor.u32 %v1351, %v1354
        %v1357 = vshrl.u32 %v1331, 16
        %v1359 = vrot.slane %v1357, 4
        %v1360 = vshll.u32 %v1331, 16
        %v1362 = vrot.slane %v1360, 5
        %v1363 = vor.u32 %v1359, %v1362
        %v1364 = vsel %vm1347, %v1355, %v1363
        %v1366 = vshrl.u32 %v1332, 16
        %v1368 = vrot.slane %v1366, 4
        %v1369 = vshll.u32 %v1332, 16
        %v1371 = vrot.slane %v1369, 5
        %v1372 = vor.u32 %v1368, %v1371
        %v1373 = vsel %vm1347, %v1363, %v1372
        %v1375 = vshrl.u32 %v1333, 16
        %v1377 = vrot.slane %v1375, 4
        %v1378 = vshll.u32 %v1333, 16
        %v1380 = vrot.slane %v1378, 5
        %v1381 = vor.u32 %v1377, %v1380
        %v1382 = vsel %vm1347, %v1372, %v1381
        %v1384 = vshrl.u32 %v1334, 16
        %v1386 = vrot.slane %v1384, 4
        %v1387 = vshll.u32 %v1334, 16
        %v1389 = vrot.slane %v1387, 5
        %v1390 = vor.u32 %v1386, %v1389
        %v1391 = vsel %vm1347, %v1381, %v1390
        %v1393 = vshrl.u32 %v1335, 16
        %v1395 = vrot.slane %v1393, 4
        %v1396 = vshll.u32 %v1335, 16
        %v1398 = vrot.slane %v1396, 5
        %v1399 = vor.u32 %v1395, %v1398
        %v1400 = vsel %vm1347, %v1390, %v1399
        %v1402 = vshrl.u32 %v1336, 16
        %v1404 = vrot.slane %v1402, 4
        %v1405 = vshll.u32 %v1336, 16
        %v1407 = vrot.slane %v1405, 5
        %v1408 = vor.u32 %v1404, %v1407
        %v1409 = vsel %vm1347, %v1399, %v1408
        %v1411 = vshrl.u32 %v1337, 16
        %v1413 = vrot.slane %v1411, 4
        %v1414 = vshll.u32 %v1337, 16
        %v1416 = vrot.slane %v1414, 5
        %v1417 = vor.u32 %v1413, %v1416
        %v1418 = vsel %vm1347, %v1408, %v1417
        %v1420 = vshrl.u32 %v1338, 16
        %v1422 = vrot.slane %v1420, 4
        %v1423 = vshll.u32 %v1338, 16
        %v1425 = vrot.slane %v1423, 5
        %v1426 = vor.u32 %v1422, %v1425
        %v1427 = vsel %vm1347, %v1417, %v1426
        %v1429 = vshrl.u32 %v1339, 16
        %v1431 = vrot.slane %v1429, 4
        %v1432 = vshll.u32 %v1339, 16
        %v1434 = vrot.slane %v1432, 5
        %v1435 = vor.u32 %v1431, %v1434
        %v1436 = vsel %vm1347, %v1426, %v1435
        %v1438 = vshrl.u32 %v1340, 16
        %v1440 = vrot.slane %v1438, 4
        %v1441 = vshll.u32 %v1340, 16
        %v1443 = vrot.slane %v1441, 5
        %v1444 = vor.u32 %v1440, %v1443
        %v1445 = vsel %vm1347, %v1435, %v1444
        %v1447 = vshrl.u32 %v1341, 16
        %v1449 = vrot.slane %v1447, 4
        %v1450 = vshll.u32 %v1341, 16
        %v1452 = vrot.slane %v1450, 5
        %v1453 = vor.u32 %v1449, %v1452
        %v1454 = vsel %vm1347, %v1444, %v1453
        %v1456 = vshrl.u32 %v1342, 16
        %v1458 = vrot.slane %v1456, 4
        %v1459 = vshll.u32 %v1342, 16
        %v1461 = vrot.slane %v1459, 5
        %v1462 = vor.u32 %v1458, %v1461
        %v1463 = vsel %vm1347, %v1453, %v1462
        %v1465 = vshrl.u32 %v1343, 16
        %v1467 = vrot.slane %v1465, 4
        %v1468 = vshll.u32 %v1343, 16
        %v1470 = vrot.slane %v1468, 5
        %v1471 = vor.u32 %v1467, %v1470
        %v1472 = vsel %vm1347, %v1462, %v1471
        %v1474 = vshrl.u32 %v1344, 16
        %v1476 = vrot.slane %v1474, 4
        %v1477 = vshll.u32 %v1344, 16
        %v1479 = vrot.slane %v1477, 5
        %v1480 = vor.u32 %v1476, %v1479
        %v1481 = vsel %vm1347, %v1471, %v1480
        %v1483 = vshrl.u32 %v1345, 16
        %v1485 = vrot.slane %v1483, 4
        %v1486 = vshll.u32 %v1345, 16
        %v1488 = vrot.slane %v1486, 5
        %v1489 = vor.u32 %v1485, %v1488
        %v1490 = vsel %vm1347, %v1480, %v1489
        %v1492 = vshrl.u32 %v1346, 16
        %v1494 = vrot.slane %v1492, 4
        %v1495 = vshll.u32 %v1346, 16
        %v1497 = vrot.slane %v1495, 5
        %v1498 = vor.u32 %v1494, %v1497
        %v1499 = vsel %vm1347, %v1489, %v1498
        %1516 = vst [vmem:[#allocation3 + $0x10] sm:$0xff] %v1364
        %1517 = vst [vmem:[#allocation3 + $0x58] sm:$0xff] %v1373
        %1518 = vst [vmem:[#allocation3 + $0xa0] sm:$0xff] %v1382
        %1519 = vst [vmem:[#allocation3 + $0xe8] sm:$0xff] %v1391
        %1520 = vst [vmem:[#allocation3 + $0x130] sm:$0xff] %v1400
        %1521 = vst [vmem:[#allocation3 + $0x178] sm:$0xff] %v1409
        %1522 = vst [vmem:[#allocation3 + $0x1c0] sm:$0xff] %v1418
        %1523 = vst [vmem:[#allocation3 + $0x208] sm:$0xff] %v1427
        %1524 = vst [vmem:[#allocation3 + $0x250] sm:$0xff] %v1436
        %1525 = vst [vmem:[#allocation3 + $0x298] sm:$0xff] %v1445
        %1526 = vst [vmem:[#allocation3 + $0x2e0] sm:$0xff] %v1454
        %1527 = vst [vmem:[#allocation3 + $0x328] sm:$0xff] %v1463
        %1528 = vst [vmem:[#allocation3 + $0x370] sm:$0xff] %v1472
        %1529 = vst [vmem:[#allocation3 + $0x3b8] sm:$0xff] %v1481
        %1530 = vst [vmem:[#allocation3 + $0x400] sm:$0xff] %v1490
        %1531 = vst [vmem:[#allocation3 + $0x448] sm:$0xff] %v1499
        %v1532 = vld [vmem:[#allocation2 + $0x8] sm:$0xf8]
        %v1533 = vld [vmem:[#allocation2 + $0x10] sm:$0xff]
        %v1534 = vld [vmem:[#allocation2 + $0x18] sm:$0xff]
        %v1535 = vld [vmem:[#allocation2 + $0x20] sm:$0xff]
        %v1536 = vld [vmem:[#allocation2 + $0x28] sm:$0xff]
        %v1537 = vld [vmem:[#allocation2 + $0x30] sm:$0xff]
        %v1538 = vld [vmem:[#allocation2 + $0x38] sm:$0xff]
        %v1539 = vld [vmem:[#allocation2 + $0x40] sm:$0xff]
        %v1540 = vld [vmem:[#allocation2 + $0x48] sm:$0xff]
        %v1541 = vld [vmem:[#allocation2 + $0x50] sm:$0xff]
        %v1542 = vld [vmem:[#allocation2 + $0x58] sm:$0xff]
        %v1543 = vld [vmem:[#allocation2 + $0x60] sm:$0xff]
        %v1544 = vld [vmem:[#allocation2 + $0x68] sm:$0xff]
        %v1545 = vld [vmem:[#allocation2 + $0x70] sm:$0xff]
        %v1546 = vld [vmem:[#allocation2 + $0x78] sm:$0xff]
        %v1547 = vld [vmem:[#allocation2 + $0x80] sm:$0xff]
        %v1548 = vld [vmem:[#allocation2 + $0x88] sm:$0xf]
        %v1550 = vshrl.u32 %v1532, 16
        %v1552 = vrot.slane %v1550, 3
        %v1553 = vshll.u32 %v1532, 16
        %v1555 = vrot.slane %v1553, 4
        %v1556 = vor.u32 %v1552, %v1555
        %v1558 = vshrl.u32 %v1533, 16
        %v1560 = vrot.slane %v1558, 3
        %v1561 = vshll.u32 %v1533, 16
        %v1563 = vrot.slane %v1561, 4
        %v1564 = vor.u32 %v1560, %v1563
        %v1565 = vsel %vm1046, %v1556, %v1564
        %v1567 = vshrl.u32 %v1534, 16
        %v1569 = vrot.slane %v1567, 3
        %v1570 = vshll.u32 %v1534, 16
        %v1572 = vrot.slane %v1570, 4
        %v1573 = vor.u32 %v1569, %v1572
        %v1574 = vsel %vm1046, %v1564, %v1573
        %v1576 = vshrl.u32 %v1535, 16
        %v1578 = vrot.slane %v1576, 3
        %v1579 = vshll.u32 %v1535, 16
        %v1581 = vrot.slane %v1579, 4
        %v1582 = vor.u32 %v1578, %v1581
        %v1583 = vsel %vm1046, %v1573, %v1582
        %v1585 = vshrl.u32 %v1536, 16
        %v1587 = vrot.slane %v1585, 3
        %v1588 = vshll.u32 %v1536, 16
        %v1590 = vrot.slane %v1588, 4
        %v1591 = vor.u32 %v1587, %v1590
        %v1592 = vsel %vm1046, %v1582, %v1591
        %v1594 = vshrl.u32 %v1537, 16
        %v1596 = vrot.slane %v1594, 3
        %v1597 = vshll.u32 %v1537, 16
        %v1599 = vrot.slane %v1597, 4
        %v1600 = vor.u32 %v1596, %v1599
        %v1601 = vsel %vm1046, %v1591, %v1600
        %v1603 = vshrl.u32 %v1538, 16
        %v1605 = vrot.slane %v1603, 3
        %v1606 = vshll.u32 %v1538, 16
        %v1608 = vrot.slane %v1606, 4
        %v1609 = vor.u32 %v1605, %v1608
        %v1610 = vsel %vm1046, %v1600, %v1609
        %v1612 = vshrl.u32 %v1539, 16
        %v1614 = vrot.slane %v1612, 3
        %v1615 = vshll.u32 %v1539, 16
        %v1617 = vrot.slane %v1615, 4
        %v1618 = vor.u32 %v1614, %v1617
        %v1619 = vsel %vm1046, %v1609, %v1618
        %v1621 = vshrl.u32 %v1540, 16
        %v1623 = vrot.slane %v1621, 3
        %v1624 = vshll.u32 %v1540, 16
        %v1626 = vrot.slane %v1624, 4
        %v1627 = vor.u32 %v1623, %v1626
        %v1628 = vsel %vm1046, %v1618, %v1627
        %v1630 = vshrl.u32 %v1541, 16
        %v1632 = vrot.slane %v1630, 3
        %v1633 = vshll.u32 %v1541, 16
        %v1635 = vrot.slane %v1633, 4
        %v1636 = vor.u32 %v1632, %v1635
        %v1637 = vsel %vm1046, %v1627, %v1636
        %v1639 = vshrl.u32 %v1542, 16
        %v1641 = vrot.slane %v1639, 3
        %v1642 = vshll.u32 %v1542, 16
        %v1644 = vrot.slane %v1642, 4
        %v1645 = vor.u32 %v1641, %v1644
        %v1646 = vsel %vm1046, %v1636, %v1645
        %v1648 = vshrl.u32 %v1543, 16
        %v1650 = vrot.slane %v1648, 3
        %v1651 = vshll.u32 %v1543, 16
        %v1653 = vrot.slane %v1651, 4
        %v1654 = vor.u32 %v1650, %v1653
        %v1655 = vsel %vm1046, %v1645, %v1654
        %v1657 = vshrl.u32 %v1544, 16
        %v1659 = vrot.slane %v1657, 3
        %v1660 = vshll.u32 %v1544, 16
        %v1662 = vrot.slane %v1660, 4
        %v1663 = vor.u32 %v1659, %v1662
        %v1664 = vsel %vm1046, %v1654, %v1663
        %v1666 = vshrl.u32 %v1545, 16
        %v1668 = vrot.slane %v1666, 3
        %v1669 = vshll.u32 %v1545, 16
        %v1671 = vrot.slane %v1669, 4
        %v1672 = vor.u32 %v1668, %v1671
        %v1673 = vsel %vm1046, %v1663, %v1672
        %v1675 = vshrl.u32 %v1546, 16
        %v1677 = vrot.slane %v1675, 3
        %v1678 = vshll.u32 %v1546, 16
        %v1680 = vrot.slane %v1678, 4
        %v1681 = vor.u32 %v1677, %v1680
        %v1682 = vsel %vm1046, %v1672, %v1681
        %v1684 = vshrl.u32 %v1547, 16
        %v1686 = vrot.slane %v1684, 3
        %v1687 = vshll.u32 %v1547, 16
        %v1689 = vrot.slane %v1687, 4
        %v1690 = vor.u32 %v1686, %v1689
        %v1691 = vsel %vm1046, %v1681, %v1690
        %v1693 = vshrl.u32 %v1548, 16
        %v1695 = vrot.slane %v1693, 3
        %v1696 = vshll.u32 %v1548, 16
        %v1698 = vrot.slane %v1696, 4
        %v1699 = vor.u32 %v1695, %v1698
        %v1700 = vsel %vm1046, %v1690, %v1699
        %1717 = vst [vmem:[#allocation3 + $0x18] sm:$0xff] %v1565
        %1718 = vst [vmem:[#allocation3 + $0x60] sm:$0xff] %v1574
        %1719 = vst [vmem:[#allocation3 + $0xa8] sm:$0xff] %v1583
        %1720 = vst [vmem:[#allocation3 + $0xf0] sm:$0xff] %v1592
        %1721 = vst [vmem:[#allocation3 + $0x138] sm:$0xff] %v1601
        %1722 = vst [vmem:[#allocation3 + $0x180] sm:$0xff] %v1610
        %1723 = vst [vmem:[#allocation3 + $0x1c8] sm:$0xff] %v1619
        %1724 = vst [vmem:[#allocation3 + $0x210] sm:$0xff] %v1628
        %1725 = vst [vmem:[#allocation3 + $0x258] sm:$0xff] %v1637
        %1726 = vst [vmem:[#allocation3 + $0x2a0] sm:$0xff] %v1646
        %1727 = vst [vmem:[#allocation3 + $0x2e8] sm:$0xff] %v1655
        %1728 = vst [vmem:[#allocation3 + $0x330] sm:$0xff] %v1664
        %1729 = vst [vmem:[#allocation3 + $0x378] sm:$0xff] %v1673
        %1730 = vst [vmem:[#allocation3 + $0x3c0] sm:$0xff] %v1682
        %1731 = vst [vmem:[#allocation3 + $0x408] sm:$0xff] %v1691
        %1732 = vst [vmem:[#allocation3 + $0x450] sm:$0xff] %v1700
        %v1733 = vld [vmem:[#allocation2 + $0x8] sm:$0xf0]
        %v1734 = vld [vmem:[#allocation2 + $0x10] sm:$0xff]
        %v1735 = vld [vmem:[#allocation2 + $0x18] sm:$0xff]
        %v1736 = vld [vmem:[#allocation2 + $0x20] sm:$0xff]
        %v1737 = vld [vmem:[#allocation2 + $0x28] sm:$0xff]
        %v1738 = vld [vmem:[#allocation2 + $0x30] sm:$0xff]
        %v1739 = vld [vmem:[#allocation2 + $0x38] sm:$0xff]
        %v1740 = vld [vmem:[#allocation2 + $0x40] sm:$0xff]
        %v1741 = vld [vmem:[#allocation2 + $0x48] sm:$0xff]
        %v1742 = vld [vmem:[#allocation2 + $0x50] sm:$0xff]
        %v1743 = vld [vmem:[#allocation2 + $0x58] sm:$0xff]
        %v1744 = vld [vmem:[#allocation2 + $0x60] sm:$0xff]
        %v1745 = vld [vmem:[#allocation2 + $0x68] sm:$0xff]
        %v1746 = vld [vmem:[#allocation2 + $0x70] sm:$0xff]
        %v1747 = vld [vmem:[#allocation2 + $0x78] sm:$0xff]
        %v1748 = vld [vmem:[#allocation2 + $0x80] sm:$0xff]
        %v1749 = vld [vmem:[#allocation2 + $0x88] sm:$0xf]
        %v1767 = vrot.slane %v1733, 4
        %v1768 = vrot.slane %v1734, 4
        %v1769 = vsel %vm963, %v1767, %v1768
        %v1770 = vrot.slane %v1735, 4
        %v1771 = vsel %vm963, %v1768, %v1770
        %v1772 = vrot.slane %v1736, 4
        %v1773 = vsel %vm963, %v1770, %v1772
        %v1774 = vrot.slane %v1737, 4
        %v1775 = vsel %vm963, %v1772, %v1774
        %v1776 = vrot.slane %v1738, 4
        %v1777 = vsel %vm963, %v1774, %v1776
        %v1778 = vrot.slane %v1739, 4
        %v1779 = vsel %vm963, %v1776, %v1778
        %v1780 = vrot.slane %v1740, 4
        %v1781 = vsel %vm963, %v1778, %v1780
        %v1782 = vrot.slane %v1741, 4
        %v1783 = vsel %vm963, %v1780, %v1782
        %v1784 = vrot.slane %v1742, 4
        %v1785 = vsel %vm963, %v1782, %v1784
        %v1786 = vrot.slane %v1743, 4
        %v1787 = vsel %vm963, %v1784, %v1786
        %v1788 = vrot.slane %v1744, 4
        %v1789 = vsel %vm963, %v1786, %v1788
        %v1790 = vrot.slane %v1745, 4
        %v1791 = vsel %vm963, %v1788, %v1790
        %v1792 = vrot.slane %v1746, 4
        %v1793 = vsel %vm963, %v1790, %v1792
        %v1794 = vrot.slane %v1747, 4
        %v1795 = vsel %vm963, %v1792, %v1794
        %v1796 = vrot.slane %v1748, 4
        %v1797 = vsel %vm963, %v1794, %v1796
        %v1798 = vrot.slane %v1749, 4
        %v1799 = vsel %vm963, %v1796, %v1798
        %1816 = vst [vmem:[#allocation3 + $0x20] sm:$0xff] %v1769
        %1817 = vst [vmem:[#allocation3 + $0x68] sm:$0xff] %v1771
        %1818 = vst [vmem:[#allocation3 + $0xb0] sm:$0xff] %v1773
        %1819 = vst [vmem:[#allocation3 + $0xf8] sm:$0xff] %v1775
        %1820 = vst [vmem:[#allocation3 + $0x140] sm:$0xff] %v1777
        %1821 = vst [vmem:[#allocation3 + $0x188] sm:$0xff] %v1779
        %1822 = vst [vmem:[#allocation3 + $0x1d0] sm:$0xff] %v1781
        %1823 = vst [vmem:[#allocation3 + $0x218] sm:$0xff] %v1783
        %1824 = vst [vmem:[#allocation3 + $0x260] sm:$0xff] %v1785
        %1825 = vst [vmem:[#allocation3 + $0x2a8] sm:$0xff] %v1787
        %1826 = vst [vmem:[#allocation3 + $0x2f0] sm:$0xff] %v1789
        %1827 = vst [vmem:[#allocation3 + $0x338] sm:$0xff] %v1791
        %1828 = vst [vmem:[#allocation3 + $0x380] sm:$0xff] %v1793
        %1829 = vst [vmem:[#allocation3 + $0x3c8] sm:$0xff] %v1795
        %1830 = vst [vmem:[#allocation3 + $0x410] sm:$0xff] %v1797
        %1831 = vst [vmem:[#allocation3 + $0x458] sm:$0xff] %v1799
        %v1832 = vld [vmem:[#allocation2 + $0x8] sm:$0xf0]
        %v1833 = vld [vmem:[#allocation2 + $0x10] sm:$0xff]
        %v1834 = vld [vmem:[#allocation2 + $0x18] sm:$0xff]
        %v1835 = vld [vmem:[#allocation2 + $0x20] sm:$0xff]
        %v1836 = vld [vmem:[#allocation2 + $0x28] sm:$0xff]
        %v1837 = vld [vmem:[#allocation2 + $0x30] sm:$0xff]
        %v1838 = vld [vmem:[#allocation2 + $0x38] sm:$0xff]
        %v1839 = vld [vmem:[#allocation2 + $0x40] sm:$0xff]
        %v1840 = vld [vmem:[#allocation2 + $0x48] sm:$0xff]
        %v1841 = vld [vmem:[#allocation2 + $0x50] sm:$0xff]
        %v1842 = vld [vmem:[#allocation2 + $0x58] sm:$0xff]
        %v1843 = vld [vmem:[#allocation2 + $0x60] sm:$0xff]
        %v1844 = vld [vmem:[#allocation2 + $0x68] sm:$0xff]
        %v1845 = vld [vmem:[#allocation2 + $0x70] sm:$0xff]
        %v1846 = vld [vmem:[#allocation2 + $0x78] sm:$0xff]
        %v1847 = vld [vmem:[#allocation2 + $0x80] sm:$0xff]
        %v1848 = vld [vmem:[#allocation2 + $0x88] sm:$0x1f]
        %v1850 = vshrl.u32 %v1832, 16
        %v1852 = vrot.slane %v1850, 4
        %v1853 = vshll.u32 %v1832, 16
        %v1855 = vrot.slane %v1853, 5
        %v1856 = vor.u32 %v1852, %v1855
        %v1858 = vshrl.u32 %v1833, 16
        %v1860 = vrot.slane %v1858, 4
        %v1861 = vshll.u32 %v1833, 16
        %v1863 = vrot.slane %v1861, 5
        %v1864 = vor.u32 %v1860, %v1863
        %v1865 = vsel %vm1347, %v1856, %v1864
        %v1867 = vshrl.u32 %v1834, 16
        %v1869 = vrot.slane %v1867, 4
        %v1870 = vshll.u32 %v1834, 16
        %v1872 = vrot.slane %v1870, 5
        %v1873 = vor.u32 %v1869, %v1872
        %v1874 = vsel %vm1347, %v1864, %v1873
        %v1876 = vshrl.u32 %v1835, 16
        %v1878 = vrot.slane %v1876, 4
        %v1879 = vshll.u32 %v1835, 16
        %v1881 = vrot.slane %v1879, 5
        %v1882 = vor.u32 %v1878, %v1881
        %v1883 = vsel %vm1347, %v1873, %v1882
        %v1885 = vshrl.u32 %v1836, 16
        %v1887 = vrot.slane %v1885, 4
        %v1888 = vshll.u32 %v1836, 16
        %v1890 = vrot.slane %v1888, 5
        %v1891 = vor.u32 %v1887, %v1890
        %v1892 = vsel %vm1347, %v1882, %v1891
        %v1894 = vshrl.u32 %v1837, 16
        %v1896 = vrot.slane %v1894, 4
        %v1897 = vshll.u32 %v1837, 16
        %v1899 = vrot.slane %v1897, 5
        %v1900 = vor.u32 %v1896, %v1899
        %v1901 = vsel %vm1347, %v1891, %v1900
        %v1903 = vshrl.u32 %v1838, 16
        %v1905 = vrot.slane %v1903, 4
        %v1906 = vshll.u32 %v1838, 16
        %v1908 = vrot.slane %v1906, 5
        %v1909 = vor.u32 %v1905, %v1908
        %v1910 = vsel %vm1347, %v1900, %v1909
        %v1912 = vshrl.u32 %v1839, 16
        %v1914 = vrot.slane %v1912, 4
        %v1915 = vshll.u32 %v1839, 16
        %v1917 = vrot.slane %v1915, 5
        %v1918 = vor.u32 %v1914, %v1917
        %v1919 = vsel %vm1347, %v1909, %v1918
        %v1921 = vshrl.u32 %v1840, 16
        %v1923 = vrot.slane %v1921, 4
        %v1924 = vshll.u32 %v1840, 16
        %v1926 = vrot.slane %v1924, 5
        %v1927 = vor.u32 %v1923, %v1926
        %v1928 = vsel %vm1347, %v1918, %v1927
        %v1930 = vshrl.u32 %v1841, 16
        %v1932 = vrot.slane %v1930, 4
        %v1933 = vshll.u32 %v1841, 16
        %v1935 = vrot.slane %v1933, 5
        %v1936 = vor.u32 %v1932, %v1935
        %v1937 = vsel %vm1347, %v1927, %v1936
        %v1939 = vshrl.u32 %v1842, 16
        %v1941 = vrot.slane %v1939, 4
        %v1942 = vshll.u32 %v1842, 16
        %v1944 = vrot.slane %v1942, 5
        %v1945 = vor.u32 %v1941, %v1944
        %v1946 = vsel %vm1347, %v1936, %v1945
        %v1948 = vshrl.u32 %v1843, 16
        %v1950 = vrot.slane %v1948, 4
        %v1951 = vshll.u32 %v1843, 16
        %v1953 = vrot.slane %v1951, 5
        %v1954 = vor.u32 %v1950, %v1953
        %v1955 = vsel %vm1347, %v1945, %v1954
        %v1957 = vshrl.u32 %v1844, 16
        %v1959 = vrot.slane %v1957, 4
        %v1960 = vshll.u32 %v1844, 16
        %v1962 = vrot.slane %v1960, 5
        %v1963 = vor.u32 %v1959, %v1962
        %v1964 = vsel %vm1347, %v1954, %v1963
        %v1966 = vshrl.u32 %v1845, 16
        %v1968 = vrot.slane %v1966, 4
        %v1969 = vshll.u32 %v1845, 16
        %v1971 = vrot.slane %v1969, 5
        %v1972 = vor.u32 %v1968, %v1971
        %v1973 = vsel %vm1347, %v1963, %v1972
        %v1975 = vshrl.u32 %v1846, 16
        %v1977 = vrot.slane %v1975, 4
        %v1978 = vshll.u32 %v1846, 16
        %v1980 = vrot.slane %v1978, 5
        %v1981 = vor.u32 %v1977, %v1980
        %v1982 = vsel %vm1347, %v1972, %v1981
        %v1984 = vshrl.u32 %v1847, 16
        %v1986 = vrot.slane %v1984, 4
        %v1987 = vshll.u32 %v1847, 16
        %v1989 = vrot.slane %v1987, 5
        %v1990 = vor.u32 %v1986, %v1989
        %v1991 = vsel %vm1347, %v1981, %v1990
        %v1993 = vshrl.u32 %v1848, 16
        %v1995 = vrot.slane %v1993, 4
        %v1996 = vshll.u32 %v1848, 16
        %v1998 = vrot.slane %v1996, 5
        %v1999 = vor.u32 %v1995, %v1998
        %v2000 = vsel %vm1347, %v1990, %v1999
        %2017 = vst [vmem:[#allocation3 + $0x28] sm:$0xff] %v1865
        %2018 = vst [vmem:[#allocation3 + $0x70] sm:$0xff] %v1874
        %2019 = vst [vmem:[#allocation3 + $0xb8] sm:$0xff] %v1883
        %2020 = vst [vmem:[#allocation3 + $0x100] sm:$0xff] %v1892
        %2021 = vst [vmem:[#allocation3 + $0x148] sm:$0xff] %v1901
        %2022 = vst [vmem:[#allocation3 + $0x190] sm:$0xff] %v1910
        %2023 = vst [vmem:[#allocation3 + $0x1d8] sm:$0xff] %v1919
        %2024 = vst [vmem:[#allocation3 + $0x220] sm:$0xff] %v1928
        %2025 = vst [vmem:[#allocation3 + $0x268] sm:$0xff] %v1937
        %2026 = vst [vmem:[#allocation3 + $0x2b0] sm:$0xff] %v1946
        %2027 = vst [vmem:[#allocation3 + $0x2f8] sm:$0xff] %v1955
        %2028 = vst [vmem:[#allocation3 + $0x340] sm:$0xff] %v1964
        %2029 = vst [vmem:[#allocation3 + $0x388] sm:$0xff] %v1973
        %2030 = vst [vmem:[#allocation3 + $0x3d0] sm:$0xff] %v1982
        %2031 = vst [vmem:[#allocation3 + $0x418] sm:$0xff] %v1991
        %2032 = vst [vmem:[#allocation3 + $0x460] sm:$0xff] %v2000
        %v2033 = vld [vmem:[#allocation2 + $0x10] sm:$0xf8]
        %v2034 = vld [vmem:[#allocation2 + $0x18] sm:$0xff]
        %v2035 = vld [vmem:[#allocation2 + $0x20] sm:$0xff]
        %v2036 = vld [vmem:[#allocation2 + $0x28] sm:$0xff]
        %v2037 = vld [vmem:[#allocation2 + $0x30] sm:$0xff]
        %v2038 = vld [vmem:[#allocation2 + $0x38] sm:$0xff]
        %v2039 = vld [vmem:[#allocation2 + $0x40] sm:$0xff]
        %v2040 = vld [vmem:[#allocation2 + $0x48] sm:$0xff]
        %v2041 = vld [vmem:[#allocation2 + $0x50] sm:$0xff]
        %v2042 = vld [vmem:[#allocation2 + $0x58] sm:$0xff]
        %v2043 = vld [vmem:[#allocation2 + $0x60] sm:$0xff]
        %v2044 = vld [vmem:[#allocation2 + $0x68] sm:$0xff]
        %v2045 = vld [vmem:[#allocation2 + $0x70] sm:$0xff]
        %v2046 = vld [vmem:[#allocation2 + $0x78] sm:$0xff]
        %v2047 = vld [vmem:[#allocation2 + $0x80] sm:$0xff]
        %v2048 = vld [vmem:[#allocation2 + $0x88] sm:$0xff]
        %v2049 = vld [vmem:[#allocation2 + $0x90] sm:$0xf]
        %v2051 = vshrl.u32 %v2033, 16
        %v2053 = vrot.slane %v2051, 3
        %v2054 = vshll.u32 %v2033, 16
        %v2056 = vrot.slane %v2054, 4
        %v2057 = vor.u32 %v2053, %v2056
        %v2059 = vshrl.u32 %v2034, 16
        %v2061 = vrot.slane %v2059, 3
        %v2062 = vshll.u32 %v2034, 16
        %v2064 = vrot.slane %v2062, 4
        %v2065 = vor.u32 %v2061, %v2064
        %v2066 = vsel %vm1046, %v2057, %v2065
        %v2068 = vshrl.u32 %v2035, 16
        %v2070 = vrot.slane %v2068, 3
        %v2071 = vshll.u32 %v2035, 16
        %v2073 = vrot.slane %v2071, 4
        %v2074 = vor.u32 %v2070, %v2073
        %v2075 = vsel %vm1046, %v2065, %v2074
        %v2077 = vshrl.u32 %v2036, 16
        %v2079 = vrot.slane %v2077, 3
        %v2080 = vshll.u32 %v2036, 16
        %v2082 = vrot.slane %v2080, 4
        %v2083 = vor.u32 %v2079, %v2082
        %v2084 = vsel %vm1046, %v2074, %v2083
        %v2086 = vshrl.u32 %v2037, 16
        %v2088 = vrot.slane %v2086, 3
        %v2089 = vshll.u32 %v2037, 16
        %v2091 = vrot.slane %v2089, 4
        %v2092 = vor.u32 %v2088, %v2091
        %v2093 = vsel %vm1046, %v2083, %v2092
        %v2095 = vshrl.u32 %v2038, 16
        %v2097 = vrot.slane %v2095, 3
        %v2098 = vshll.u32 %v2038, 16
        %v2100 = vrot.slane %v2098, 4
        %v2101 = vor.u32 %v2097, %v2100
        %v2102 = vsel %vm1046, %v2092, %v2101
        %v2104 = vshrl.u32 %v2039, 16
        %v2106 = vrot.slane %v2104, 3
        %v2107 = vshll.u32 %v2039, 16
        %v2109 = vrot.slane %v2107, 4
        %v2110 = vor.u32 %v2106, %v2109
        %v2111 = vsel %vm1046, %v2101, %v2110
        %v2113 = vshrl.u32 %v2040, 16
        %v2115 = vrot.slane %v2113, 3
        %v2116 = vshll.u32 %v2040, 16
        %v2118 = vrot.slane %v2116, 4
        %v2119 = vor.u32 %v2115, %v2118
        %v2120 = vsel %vm1046, %v2110, %v2119
        %v2122 = vshrl.u32 %v2041, 16
        %v2124 = vrot.slane %v2122, 3
        %v2125 = vshll.u32 %v2041, 16
        %v2127 = vrot.slane %v2125, 4
        %v2128 = vor.u32 %v2124, %v2127
        %v2129 = vsel %vm1046, %v2119, %v2128
        %v2131 = vshrl.u32 %v2042, 16
        %v2133 = vrot.slane %v2131, 3
        %v2134 = vshll.u32 %v2042, 16
        %v2136 = vrot.slane %v2134, 4
        %v2137 = vor.u32 %v2133, %v2136
        %v2138 = vsel %vm1046, %v2128, %v2137
        %v2140 = vshrl.u32 %v2043, 16
        %v2142 = vrot.slane %v2140, 3
        %v2143 = vshll.u32 %v2043, 16
        %v2145 = vrot.slane %v2143, 4
        %v2146 = vor.u32 %v2142, %v2145
        %v2147 = vsel %vm1046, %v2137, %v2146
        %v2149 = vshrl.u32 %v2044, 16
        %v2151 = vrot.slane %v2149, 3
        %v2152 = vshll.u32 %v2044, 16
        %v2154 = vrot.slane %v2152, 4
        %v2155 = vor.u32 %v2151, %v2154
        %v2156 = vsel %vm1046, %v2146, %v2155
        %v2158 = vshrl.u32 %v2045, 16
        %v2160 = vrot.slane %v2158, 3
        %v2161 = vshll.u32 %v2045, 16
        %v2163 = vrot.slane %v2161, 4
        %v2164 = vor.u32 %v2160, %v2163
        %v2165 = vsel %vm1046, %v2155, %v2164
        %v2167 = vshrl.u32 %v2046, 16
        %v2169 = vrot.slane %v2167, 3
        %v2170 = vshll.u32 %v2046, 16
        %v2172 = vrot.slane %v2170, 4
        %v2173 = vor.u32 %v2169, %v2172
        %v2174 = vsel %vm1046, %v2164, %v2173
        %v2176 = vshrl.u32 %v2047, 16
        %v2178 = vrot.slane %v2176, 3
        %v2179 = vshll.u32 %v2047, 16
        %v2181 = vrot.slane %v2179, 4
        %v2182 = vor.u32 %v2178, %v2181
        %v2183 = vsel %vm1046, %v2173, %v2182
        %v2185 = vshrl.u32 %v2048, 16
        %v2187 = vrot.slane %v2185, 3
        %v2188 = vshll.u32 %v2048, 16
        %v2190 = vrot.slane %v2188, 4
        %v2191 = vor.u32 %v2187, %v2190
        %v2192 = vsel %vm1046, %v2182, %v2191
        %v2194 = vshrl.u32 %v2049, 16
        %v2196 = vrot.slane %v2194, 3
        %v2197 = vshll.u32 %v2049, 16
        %v2199 = vrot.slane %v2197, 4
        %v2200 = vor.u32 %v2196, %v2199
        %v2201 = vsel %vm1046, %v2191, %v2200
        %2218 = vst [vmem:[#allocation3 + $0x30] sm:$0xff] %v2066
        %2219 = vst [vmem:[#allocation3 + $0x78] sm:$0xff] %v2075
        %2220 = vst [vmem:[#allocation3 + $0xc0] sm:$0xff] %v2084
        %2221 = vst [vmem:[#allocation3 + $0x108] sm:$0xff] %v2093
        %2222 = vst [vmem:[#allocation3 + $0x150] sm:$0xff] %v2102
        %2223 = vst [vmem:[#allocation3 + $0x198] sm:$0xff] %v2111
        %2224 = vst [vmem:[#allocation3 + $0x1e0] sm:$0xff] %v2120
        %2225 = vst [vmem:[#allocation3 + $0x228] sm:$0xff] %v2129
        %2226 = vst [vmem:[#allocation3 + $0x270] sm:$0xff] %v2138
        %2227 = vst [vmem:[#allocation3 + $0x2b8] sm:$0xff] %v2147
        %2228 = vst [vmem:[#allocation3 + $0x300] sm:$0xff] %v2156
        %2229 = vst [vmem:[#allocation3 + $0x348] sm:$0xff] %v2165
        %2230 = vst [vmem:[#allocation3 + $0x390] sm:$0xff] %v2174
        %2231 = vst [vmem:[#allocation3 + $0x3d8] sm:$0xff] %v2183
        %2232 = vst [vmem:[#allocation3 + $0x420] sm:$0xff] %v2192
        %2233 = vst [vmem:[#allocation3 + $0x468] sm:$0xff] %v2201
        %v2234 = vld [vmem:[#allocation2 + $0x10] sm:$0xf0]
        %v2235 = vld [vmem:[#allocation2 + $0x18] sm:$0xff]
        %v2236 = vld [vmem:[#allocation2 + $0x20] sm:$0xff]
        %v2237 = vld [vmem:[#allocation2 + $0x28] sm:$0xff]
        %v2238 = vld [vmem:[#allocation2 + $0x30] sm:$0xff]
        %v2239 = vld [vmem:[#allocation2 + $0x38] sm:$0xff]
        %v2240 = vld [vmem:[#allocation2 + $0x40] sm:$0xff]
        %v2241 = vld [vmem:[#allocation2 + $0x48] sm:$0xff]
        %v2242 = vld [vmem:[#allocation2 + $0x50] sm:$0xff]
        %v2243 = vld [vmem:[#allocation2 + $0x58] sm:$0xff]
        %v2244 = vld [vmem:[#allocation2 + $0x60] sm:$0xff]
        %v2245 = vld [vmem:[#allocation2 + $0x68] sm:$0xff]
        %v2246 = vld [vmem:[#allocation2 + $0x70] sm:$0xff]
        %v2247 = vld [vmem:[#allocation2 + $0x78] sm:$0xff]
        %v2248 = vld [vmem:[#allocation2 + $0x80] sm:$0xff]
        %v2249 = vld [vmem:[#allocation2 + $0x88] sm:$0xff]
        %v2250 = vld [vmem:[#allocation2 + $0x90] sm:$0xf]
        %v2268 = vrot.slane %v2234, 4
        %v2269 = vrot.slane %v2235, 4
        %v2270 = vsel %vm963, %v2268, %v2269
        %v2271 = vrot.slane %v2236, 4
        %v2272 = vsel %vm963, %v2269, %v2271
        %v2273 = vrot.slane %v2237, 4
        %v2274 = vsel %vm963, %v2271, %v2273
        %v2275 = vrot.slane %v2238, 4
        %v2276 = vsel %vm963, %v2273, %v2275
        %v2277 = vrot.slane %v2239, 4
        %v2278 = vsel %vm963, %v2275, %v2277
        %v2279 = vrot.slane %v2240, 4
        %v2280 = vsel %vm963, %v2277, %v2279
        %v2281 = vrot.slane %v2241, 4
        %v2282 = vsel %vm963, %v2279, %v2281
        %v2283 = vrot.slane %v2242, 4
        %v2284 = vsel %vm963, %v2281, %v2283
        %v2285 = vrot.slane %v2243, 4
        %v2286 = vsel %vm963, %v2283, %v2285
        %v2287 = vrot.slane %v2244, 4
        %v2288 = vsel %vm963, %v2285, %v2287
        %v2289 = vrot.slane %v2245, 4
        %v2290 = vsel %vm963, %v2287, %v2289
        %v2291 = vrot.slane %v2246, 4
        %v2292 = vsel %vm963, %v2289, %v2291
        %v2293 = vrot.slane %v2247, 4
        %v2294 = vsel %vm963, %v2291, %v2293
        %v2295 = vrot.slane %v2248, 4
        %v2296 = vsel %vm963, %v2293, %v2295
        %v2297 = vrot.slane %v2249, 4
        %v2298 = vsel %vm963, %v2295, %v2297
        %v2299 = vrot.slane %v2250, 4
        %v2300 = vsel %vm963, %v2297, %v2299
        %2317 = vst [vmem:[#allocation3 + $0x38] sm:$0xff] %v2270
        %2318 = vst [vmem:[#allocation3 + $0x80] sm:$0xff] %v2272
        %2319 = vst [vmem:[#allocation3 + $0xc8] sm:$0xff] %v2274
        %2320 = vst [vmem:[#allocation3 + $0x110] sm:$0xff] %v2276
        %2321 = vst [vmem:[#allocation3 + $0x158] sm:$0xff] %v2278
        %2322 = vst [vmem:[#allocation3 + $0x1a0] sm:$0xff] %v2280
        %2323 = vst [vmem:[#allocation3 + $0x1e8] sm:$0xff] %v2282
        %2324 = vst [vmem:[#allocation3 + $0x230] sm:$0xff] %v2284
        %2325 = vst [vmem:[#allocation3 + $0x278] sm:$0xff] %v2286
        %2326 = vst [vmem:[#allocation3 + $0x2c0] sm:$0xff] %v2288
        %2327 = vst [vmem:[#allocation3 + $0x308] sm:$0xff] %v2290
        %2328 = vst [vmem:[#allocation3 + $0x350] sm:$0xff] %v2292
        %2329 = vst [vmem:[#allocation3 + $0x398] sm:$0xff] %v2294
        %2330 = vst [vmem:[#allocation3 + $0x3e0] sm:$0xff] %v2296
        %2331 = vst [vmem:[#allocation3 + $0x428] sm:$0xff] %v2298
        %2332 = vst [vmem:[#allocation3 + $0x470] sm:$0xff] %v2300
        %v2333 = vld [vmem:[#allocation2 + $0x10] sm:$0xf0]
        %v2334 = vld [vmem:[#allocation2 + $0x18] sm:$0xff]
        %v2335 = vld [vmem:[#allocation2 + $0x20] sm:$0xff]
        %v2336 = vld [vmem:[#allocation2 + $0x28] sm:$0xff]
        %v2337 = vld [vmem:[#allocation2 + $0x30] sm:$0xff]
        %v2338 = vld [vmem:[#allocation2 + $0x38] sm:$0xff]
        %v2339 = vld [vmem:[#allocation2 + $0x40] sm:$0xff]
        %v2340 = vld [vmem:[#allocation2 + $0x48] sm:$0xff]
        %v2341 = vld [vmem:[#allocation2 + $0x50] sm:$0xff]
        %v2342 = vld [vmem:[#allocation2 + $0x58] sm:$0xff]
        %v2343 = vld [vmem:[#allocation2 + $0x60] sm:$0xff]
        %v2344 = vld [vmem:[#allocation2 + $0x68] sm:$0xff]
        %v2345 = vld [vmem:[#allocation2 + $0x70] sm:$0xff]
        %v2346 = vld [vmem:[#allocation2 + $0x78] sm:$0xff]
        %v2347 = vld [vmem:[#allocation2 + $0x80] sm:$0xff]
        %v2348 = vld [vmem:[#allocation2 + $0x88] sm:$0xff]
        %v2349 = vld [vmem:[#allocation2 + $0x90] sm:$0x1f]
        %v2351 = vshrl.u32 %v2333, 16
        %v2353 = vrot.slane %v2351, 4
        %v2354 = vshll.u32 %v2333, 16
        %v2356 = vrot.slane %v2354, 5
        %v2357 = vor.u32 %v2353, %v2356
        %v2359 = vshrl.u32 %v2334, 16
        %v2361 = vrot.slane %v2359, 4
        %v2362 = vshll.u32 %v2334, 16
        %v2364 = vrot.slane %v2362, 5
        %v2365 = vor.u32 %v2361, %v2364
        %v2366 = vsel %vm1347, %v2357, %v2365
        %v2368 = vshrl.u32 %v2335, 16
        %v2370 = vrot.slane %v2368, 4
        %v2371 = vshll.u32 %v2335, 16
        %v2373 = vrot.slane %v2371, 5
        %v2374 = vor.u32 %v2370, %v2373
        %v2375 = vsel %vm1347, %v2365, %v2374
        %v2377 = vshrl.u32 %v2336, 16
        %v2379 = vrot.slane %v2377, 4
        %v2380 = vshll.u32 %v2336, 16
        %v2382 = vrot.slane %v2380, 5
        %v2383 = vor.u32 %v2379, %v2382
        %v2384 = vsel %vm1347, %v2374, %v2383
        %v2386 = vshrl.u32 %v2337, 16
        %v2388 = vrot.slane %v2386, 4
        %v2389 = vshll.u32 %v2337, 16
        %v2391 = vrot.slane %v2389, 5
        %v2392 = vor.u32 %v2388, %v2391
        %v2393 = vsel %vm1347, %v2383, %v2392
        %v2395 = vshrl.u32 %v2338, 16
        %v2397 = vrot.slane %v2395, 4
        %v2398 = vshll.u32 %v2338, 16
        %v2400 = vrot.slane %v2398, 5
        %v2401 = vor.u32 %v2397, %v2400
        %v2402 = vsel %vm1347, %v2392, %v2401
        %v2404 = vshrl.u32 %v2339, 16
        %v2406 = vrot.slane %v2404, 4
        %v2407 = vshll.u32 %v2339, 16
        %v2409 = vrot.slane %v2407, 5
        %v2410 = vor.u32 %v2406, %v2409
        %v2411 = vsel %vm1347, %v2401, %v2410
        %v2413 = vshrl.u32 %v2340, 16
        %v2415 = vrot.slane %v2413, 4
        %v2416 = vshll.u32 %v2340, 16
        %v2418 = vrot.slane %v2416, 5
        %v2419 = vor.u32 %v2415, %v2418
        %v2420 = vsel %vm1347, %v2410, %v2419
        %v2422 = vshrl.u32 %v2341, 16
        %v2424 = vrot.slane %v2422, 4
        %v2425 = vshll.u32 %v2341, 16
        %v2427 = vrot.slane %v2425, 5
        %v2428 = vor.u32 %v2424, %v2427
        %v2429 = vsel %vm1347, %v2419, %v2428
        %v2431 = vshrl.u32 %v2342, 16
        %v2433 = vrot.slane %v2431, 4
        %v2434 = vshll.u32 %v2342, 16
        %v2436 = vrot.slane %v2434, 5
        %v2437 = vor.u32 %v2433, %v2436
        %v2438 = vsel %vm1347, %v2428, %v2437
        %v2440 = vshrl.u32 %v2343, 16
        %v2442 = vrot.slane %v2440, 4
        %v2443 = vshll.u32 %v2343, 16
        %v2445 = vrot.slane %v2443, 5
        %v2446 = vor.u32 %v2442, %v2445
        %v2447 = vsel %vm1347, %v2437, %v2446
        %v2449 = vshrl.u32 %v2344, 16
        %v2451 = vrot.slane %v2449, 4
        %v2452 = vshll.u32 %v2344, 16
        %v2454 = vrot.slane %v2452, 5
        %v2455 = vor.u32 %v2451, %v2454
        %v2456 = vsel %vm1347, %v2446, %v2455
        %v2458 = vshrl.u32 %v2345, 16
        %v2460 = vrot.slane %v2458, 4
        %v2461 = vshll.u32 %v2345, 16
        %v2463 = vrot.slane %v2461, 5
        %v2464 = vor.u32 %v2460, %v2463
        %v2465 = vsel %vm1347, %v2455, %v2464
        %v2467 = vshrl.u32 %v2346, 16
        %v2469 = vrot.slane %v2467, 4
        %v2470 = vshll.u32 %v2346, 16
        %v2472 = vrot.slane %v2470, 5
        %v2473 = vor.u32 %v2469, %v2472
        %v2474 = vsel %vm1347, %v2464, %v2473
        %v2476 = vshrl.u32 %v2347, 16
        %v2478 = vrot.slane %v2476, 4
        %v2479 = vshll.u32 %v2347, 16
        %v2481 = vrot.slane %v2479, 5
        %v2482 = vor.u32 %v2478, %v2481
        %v2483 = vsel %vm1347, %v2473, %v2482
        %v2485 = vshrl.u32 %v2348, 16
        %v2487 = vrot.slane %v2485, 4
        %v2488 = vshll.u32 %v2348, 16
        %v2490 = vrot.slane %v2488, 5
        %v2491 = vor.u32 %v2487, %v2490
        %v2492 = vsel %vm1347, %v2482, %v2491
        %v2494 = vshrl.u32 %v2349, 16
        %v2496 = vrot.slane %v2494, 4
        %v2497 = vshll.u32 %v2349, 16
        %v2499 = vrot.slane %v2497, 5
        %v2500 = vor.u32 %v2496, %v2499
        %v2501 = vsel %vm1347, %v2491, %v2500
        %2518 = vst [vmem:[#allocation3 + $0x40] sm:$0xff] %v2366
        %2519 = vst [vmem:[#allocation3 + $0x88] sm:$0xff] %v2375
        %2520 = vst [vmem:[#allocation3 + $0xd0] sm:$0xff] %v2384
        %2521 = vst [vmem:[#allocation3 + $0x118] sm:$0xff] %v2393
        %2522 = vst [vmem:[#allocation3 + $0x160] sm:$0xff] %v2402
        %2523 = vst [vmem:[#allocation3 + $0x1a8] sm:$0xff] %v2411
        %2524 = vst [vmem:[#allocation3 + $0x1f0] sm:$0xff] %v2420
        %2525 = vst [vmem:[#allocation3 + $0x238] sm:$0xff] %v2429
        %2526 = vst [vmem:[#allocation3 + $0x280] sm:$0xff] %v2438
        %2527 = vst [vmem:[#allocation3 + $0x2c8] sm:$0xff] %v2447
        %2528 = vst [vmem:[#allocation3 + $0x310] sm:$0xff] %v2456
        %2529 = vst [vmem:[#allocation3 + $0x358] sm:$0xff] %v2465
        %2530 = vst [vmem:[#allocation3 + $0x3a0] sm:$0xff] %v2474
        %2531 = vst [vmem:[#allocation3 + $0x3e8] sm:$0xff] %v2483
        %2532 = vst [vmem:[#allocation3 + $0x430] sm:$0xff] %v2492
        %2533 = vst [vmem:[#allocation3 + $0x478] sm:$0xff] %v2501
        %v2534 = vld [vmem:[#allocation3] sm:$0xff]
        %v2535 = vld [vmem:[#allocation3 + $0x8] sm:$0xff]
        %v2536 = vld [vmem:[#allocation3 + $0x10] sm:$0xff]
        %v2537 = vld [vmem:[#allocation3 + $0x18] sm:$0xff]
        %v2538 = vld [vmem:[#allocation3 + $0x20] sm:$0xff]
        %v2539 = vld [vmem:[#allocation3 + $0x28] sm:$0xff]
        %v2540 = vld [vmem:[#allocation3 + $0x30] sm:$0xff]
        %v2541 = vld [vmem:[#allocation3 + $0x38] sm:$0xff]
        %v2542 = vld [vmem:[#allocation3 + $0x40] sm:$0xff]
        %v2543 = vld [vmem:[#allocation3 + $0x48] sm:$0xff]
        %v2544 = vld [vmem:[#allocation3 + $0x50] sm:$0xff]
        %v2545 = vld [vmem:[#allocation3 + $0x58] sm:$0xff]
        %v2546 = vld [vmem:[#allocation3 + $0x60] sm:$0xff]
        %v2547 = vld [vmem:[#allocation3 + $0x68] sm:$0xff]
        %v2548 = vld [vmem:[#allocation3 + $0x70] sm:$0xff]
        %v2549 = vld [vmem:[#allocation3 + $0x78] sm:$0xff]
        %v2550 = vld [vmem:[#allocation3 + $0x80] sm:$0xff]
        %v2551 = vld [vmem:[#allocation3 + $0x88] sm:$0xff]
        %v2552 = vld [vmem:[#allocation3 + $0x90] sm:$0xff]
        %v2553 = vld [vmem:[#allocation3 + $0x98] sm:$0xff]
        %v2554 = vld [vmem:[#allocation3 + $0xa0] sm:$0xff]
        %v2555 = vld [vmem:[#allocation3 + $0xa8] sm:$0xff]
        %v2556 = vld [vmem:[#allocation3 + $0xb0] sm:$0xff]
        %v2557 = vld [vmem:[#allocation3 + $0xb8] sm:$0xff]
        %v2558 = vld [vmem:[#allocation3 + $0xc0] sm:$0xff]
        %v2559 = vld [vmem:[#allocation3 + $0xc8] sm:$0xff]
        %v2560 = vld [vmem:[#allocation3 + $0xd0] sm:$0xff]
        %v2561 = vld [vmem:[#allocation3 + $0xd8] sm:$0xff]
        %v2562 = vld [vmem:[#allocation3 + $0xe0] sm:$0xff]
        %v2563 = vld [vmem:[#allocation3 + $0xe8] sm:$0xff]
        %v2564 = vld [vmem:[#allocation3 + $0xf0] sm:$0xff]
        %v2565 = vld [vmem:[#allocation3 + $0xf8] sm:$0xff]
        %v2566 = vld [vmem:[#allocation3 + $0x100] sm:$0xff]
        %v2567 = vld [vmem:[#allocation3 + $0x108] sm:$0xff]
        %v2568 = vld [vmem:[#allocation3 + $0x110] sm:$0xff]
        %v2569 = vld [vmem:[#allocation3 + $0x118] sm:$0xff]
        %v2570 = vld [vmem:[#allocation3 + $0x120] sm:$0xff]
        %v2571 = vld [vmem:[#allocation3 + $0x128] sm:$0xff]
        %v2572 = vld [vmem:[#allocation3 + $0x130] sm:$0xff]
        %v2573 = vld [vmem:[#allocation3 + $0x138] sm:$0xff]
        %v2574 = vld [vmem:[#allocation3 + $0x140] sm:$0xff]
        %v2575 = vld [vmem:[#allocation3 + $0x148] sm:$0xff]
        %v2576 = vld [vmem:[#allocation3 + $0x150] sm:$0xff]
        %v2577 = vld [vmem:[#allocation3 + $0x158] sm:$0xff]
        %v2578 = vld [vmem:[#allocation3 + $0x160] sm:$0xff]
        %v2579 = vld [vmem:[#allocation3 + $0x168] sm:$0xff]
        %v2580 = vld [vmem:[#allocation3 + $0x170] sm:$0xff]
        %v2581 = vld [vmem:[#allocation3 + $0x178] sm:$0xff]
        %v2582 = vld [vmem:[#allocation3 + $0x180] sm:$0xff]
        %v2583 = vld [vmem:[#allocation3 + $0x188] sm:$0xff]
        %v2584 = vld [vmem:[#allocation3 + $0x190] sm:$0xff]
        %v2585 = vld [vmem:[#allocation3 + $0x198] sm:$0xff]
        %v2586 = vld [vmem:[#allocation3 + $0x1a0] sm:$0xff]
        %v2587 = vld [vmem:[#allocation3 + $0x1a8] sm:$0xff]
        %v2588 = vld [vmem:[#allocation3 + $0x1b0] sm:$0xff]
        %v2589 = vld [vmem:[#allocation3 + $0x1b8] sm:$0xff]
        %v2590 = vld [vmem:[#allocation3 + $0x1c0] sm:$0xff]
        %v2591 = vld [vmem:[#allocation3 + $0x1c8] sm:$0xff]
        %v2592 = vld [vmem:[#allocation3 + $0x1d0] sm:$0xff]
        %v2593 = vld [vmem:[#allocation3 + $0x1d8] sm:$0xff]
        %v2594 = vld [vmem:[#allocation3 + $0x1e0] sm:$0xff]
        %v2595 = vld [vmem:[#allocation3 + $0x1e8] sm:$0xff]
        %v2596 = vld [vmem:[#allocation3 + $0x1f0] sm:$0xff]
        %v2597 = vld [vmem:[#allocation3 + $0x1f8] sm:$0xff]
        %v2598 = vld [vmem:[#allocation3 + $0x200] sm:$0xff]
        %v2599 = vld [vmem:[#allocation3 + $0x208] sm:$0xff]
        %v2600 = vld [vmem:[#allocation3 + $0x210] sm:$0xff]
        %v2601 = vld [vmem:[#allocation3 + $0x218] sm:$0xff]
        %v2602 = vld [vmem:[#allocation3 + $0x220] sm:$0xff]
        %v2603 = vld [vmem:[#allocation3 + $0x228] sm:$0xff]
        %v2604 = vld [vmem:[#allocation3 + $0x230] sm:$0xff]
        %v2605 = vld [vmem:[#allocation3 + $0x238] sm:$0xff]
        %v2606 = vld [vmem:[#allocation3 + $0x240] sm:$0xff]
        %v2607 = vld [vmem:[#allocation3 + $0x248] sm:$0xff]
        %v2608 = vld [vmem:[#allocation3 + $0x250] sm:$0xff]
        %v2609 = vld [vmem:[#allocation3 + $0x258] sm:$0xff]
        %v2610 = vld [vmem:[#allocation3 + $0x260] sm:$0xff]
        %v2611 = vld [vmem:[#allocation3 + $0x268] sm:$0xff]
        %v2612 = vld [vmem:[#allocation3 + $0x270] sm:$0xff]
        %v2613 = vld [vmem:[#allocation3 + $0x278] sm:$0xff]
        %v2614 = vld [vmem:[#allocation3 + $0x280] sm:$0xff]
        %v2615 = vld [vmem:[#allocation3 + $0x288] sm:$0xff]
        %v2616 = vld [vmem:[#allocation3 + $0x290] sm:$0xff]
        %v2617 = vld [vmem:[#allocation3 + $0x298] sm:$0xff]
        %v2618 = vld [vmem:[#allocation3 + $0x2a0] sm:$0xff]
        %v2619 = vld [vmem:[#allocation3 + $0x2a8] sm:$0xff]
        %v2620 = vld [vmem:[#allocation3 + $0x2b0] sm:$0xff]
        %v2621 = vld [vmem:[#allocation3 + $0x2b8] sm:$0xff]
        %v2622 = vld [vmem:[#allocation3 + $0x2c0] sm:$0xff]
        %v2623 = vld [vmem:[#allocation3 + $0x2c8] sm:$0xff]
        %v2624 = vld [vmem:[#allocation3 + $0x2d0] sm:$0xff]
        %v2625 = vld [vmem:[#allocation3 + $0x2d8] sm:$0xff]
        %v2626 = vld [vmem:[#allocation3 + $0x2e0] sm:$0xff]
        %v2627 = vld [vmem:[#allocation3 + $0x2e8] sm:$0xff]
        %v2628 = vld [vmem:[#allocation3 + $0x2f0] sm:$0xff]
        %v2629 = vld [vmem:[#allocation3 + $0x2f8] sm:$0xff]
        %v2630 = vld [vmem:[#allocation3 + $0x300] sm:$0xff]
        %v2631 = vld [vmem:[#allocation3 + $0x308] sm:$0xff]
        %v2632 = vld [vmem:[#allocation3 + $0x310] sm:$0xff]
        %v2633 = vld [vmem:[#allocation3 + $0x318] sm:$0xff]
        %v2634 = vld [vmem:[#allocation3 + $0x320] sm:$0xff]
        %v2635 = vld [vmem:[#allocation3 + $0x328] sm:$0xff]
        %v2636 = vld [vmem:[#allocation3 + $0x330] sm:$0xff]
        %v2637 = vld [vmem:[#allocation3 + $0x338] sm:$0xff]
        %v2638 = vld [vmem:[#allocation3 + $0x340] sm:$0xff]
        %v2639 = vld [vmem:[#allocation3 + $0x348] sm:$0xff]
        %v2640 = vld [vmem:[#allocation3 + $0x350] sm:$0xff]
        %v2641 = vld [vmem:[#allocation3 + $0x358] sm:$0xff]
        %v2642 = vld [vmem:[#allocation3 + $0x360] sm:$0xff]
        %v2643 = vld [vmem:[#allocation3 + $0x368] sm:$0xff]
        %v2644 = vld [vmem:[#allocation3 + $0x370] sm:$0xff]
        %v2645 = vld [vmem:[#allocation3 + $0x378] sm:$0xff]
        %v2646 = vld [vmem:[#allocation3 + $0x380] sm:$0xff]
        %v2647 = vld [vmem:[#allocation3 + $0x388] sm:$0xff]
        %v2648 = vld [vmem:[#allocation3 + $0x390] sm:$0xff]
        %v2649 = vld [vmem:[#allocation3 + $0x398] sm:$0xff]
        %v2650 = vld [vmem:[#allocation3 + $0x3a0] sm:$0xff]
        %v2651 = vld [vmem:[#allocation3 + $0x3a8] sm:$0xff]
        %v2652 = vld [vmem:[#allocation3 + $0x3b0] sm:$0xff]
        %v2653 = vld [vmem:[#allocation3 + $0x3b8] sm:$0xff]
        %v2654 = vld [vmem:[#allocation3 + $0x3c0] sm:$0xff]
        %v2655 = vld [vmem:[#allocation3 + $0x3c8] sm:$0xff]
        %v2656 = vld [vmem:[#allocation3 + $0x3d0] sm:$0xff]
        %v2657 = vld [vmem:[#allocation3 + $0x3d8] sm:$0xff]
        %v2658 = vld [vmem:[#allocation3 + $0x3e0] sm:$0xff]
        %v2659 = vld [vmem:[#allocation3 + $0x3e8] sm:$0xff]
        %v2660 = vld [vmem:[#allocation3 + $0x3f0] sm:$0xff]
        %v2661 = vld [vmem:[#allocation3 + $0x3f8] sm:$0xff]
        %v2662 = vld [vmem:[#allocation3 + $0x400] sm:$0xff]
        %v2663 = vld [vmem:[#allocation3 + $0x408] sm:$0xff]
        %v2664 = vld [vmem:[#allocation3 + $0x410] sm:$0xff]
        %v2665 = vld [vmem:[#allocation3 + $0x418] sm:$0xff]
        %v2666 = vld [vmem:[#allocation3 + $0x420] sm:$0xff]
        %v2667 = vld [vmem:[#allocation3 + $0x428] sm:$0xff]
        %v2668 = vld [vmem:[#allocation3 + $0x430] sm:$0xff]
        %v2669 = vld [vmem:[#allocation3 + $0x438] sm:$0xff]
        %v2670 = vld [vmem:[#allocation3 + $0x440] sm:$0xff]
        %v2671 = vld [vmem:[#allocation3 + $0x448] sm:$0xff]
        %v2672 = vld [vmem:[#allocation3 + $0x450] sm:$0xff]
        %v2673 = vld [vmem:[#allocation3 + $0x458] sm:$0xff]
        %v2674 = vld [vmem:[#allocation3 + $0x460] sm:$0xff]
        %v2675 = vld [vmem:[#allocation3 + $0x468] sm:$0xff]
        %v2676 = vld [vmem:[#allocation3 + $0x470] sm:$0xff]
        %v2677 = vld [vmem:[#allocation3 + $0x478] sm:$0xff]
        %v2678 = vld [vmem:[%s3] sm:$0xf]
        %v2679 = vld [vmem:[%s3 + $0x4] sm:$0xf]
        %v2680 = vld [vmem:[%s3 + $0x8] sm:$0xf]
        %v2681 = vld [vmem:[%s3 + $0xc] sm:$0xf]
        %v2682 = vld [vmem:[%s3 + $0x10] sm:$0xf]
        %v2683 = vld [vmem:[%s3 + $0x14] sm:$0xf]
        %v2684 = vld [vmem:[%s3 + $0x18] sm:$0xf]
        %v2685 = vld [vmem:[%s3 + $0x1c] sm:$0xf]
        %v2686 = vld [vmem:[%s3 + $0x20] sm:$0xf]
        %v2687 = vld [vmem:[%s3 + $0x24] sm:$0xf]
        %v2688 = vld [vmem:[%s3 + $0x28] sm:$0xf]
        %v2689 = vld [vmem:[%s3 + $0x2c] sm:$0xf]
        %v2690 = vld [vmem:[%s3 + $0x30] sm:$0xf]
        %v2691 = vld [vmem:[%s3 + $0x34] sm:$0xf]
        %v2692 = vld [vmem:[%s3 + $0x38] sm:$0xf]
        %v2693 = vld [vmem:[%s3 + $0x3c] sm:$0xf]
        %v2694 = vld [vmem:[%s3 + $0x40] sm:$0xf]
        %v2695 = vld [vmem:[%s3 + $0x44] sm:$0xf]
        %v2696 = vld [vmem:[%s3 + $0x48] sm:$0xf]
        %v2697 = vld [vmem:[%s3 + $0x4c] sm:$0xf]
        %v2698 = vld [vmem:[%s3 + $0x50] sm:$0xf]
        %v2699 = vld [vmem:[%s3 + $0x54] sm:$0xf]
        %v2700 = vld [vmem:[%s3 + $0x58] sm:$0xf]
        %v2701 = vld [vmem:[%s3 + $0x5c] sm:$0xf]
        %v2702 = vld [vmem:[%s3 + $0x60] sm:$0xf]
        %v2703 = vld [vmem:[%s3 + $0x64] sm:$0xf]
        %v2704 = vld [vmem:[%s3 + $0x68] sm:$0xf]
        %v2705 = vld [vmem:[%s3 + $0x6c] sm:$0xf]
        %v2706 = vld [vmem:[%s3 + $0x70] sm:$0xf]
        %v2707 = vld [vmem:[%s3 + $0x74] sm:$0xf]
        %v2708 = vld [vmem:[%s3 + $0x78] sm:$0xf]
        %v2709 = vld [vmem:[%s3 + $0x7c] sm:$0xf]
        %v2710 = vld [vmem:[%s3 + $0x80] sm:$0xf]
        %v2711 = vld [vmem:[%s3 + $0x84] sm:$0xf]
        %v2712 = vld [vmem:[%s3 + $0x88] sm:$0xf]
        %v2713 = vld [vmem:[%s3 + $0x8c] sm:$0xf]
        %v2714 = vld [vmem:[%s3 + $0x90] sm:$0xf]
        %v2715 = vld [vmem:[%s3 + $0x94] sm:$0xf]
        %v2716 = vld [vmem:[%s3 + $0x98] sm:$0xf]
        %v2717 = vld [vmem:[%s3 + $0x9c] sm:$0xf]
        %v2718 = vld [vmem:[%s3 + $0xa0] sm:$0xf]
        %v2719 = vld [vmem:[%s3 + $0xa4] sm:$0xf]
        %v2720 = vld [vmem:[%s3 + $0xa8] sm:$0xf]
        %v2721 = vld [vmem:[%s3 + $0xac] sm:$0xf]
        %v2722 = vld [vmem:[%s3 + $0xb0] sm:$0xf]
        %v2723 = vld [vmem:[%s3 + $0xb4] sm:$0xf]
        %v2724 = vld [vmem:[%s3 + $0xb8] sm:$0xf]
        %v2725 = vld [vmem:[%s3 + $0xbc] sm:$0xf]
        %v2726 = vld [vmem:[%s3 + $0xc0] sm:$0xf]
        %v2727 = vld [vmem:[%s3 + $0xc4] sm:$0xf]
        %v2728 = vld [vmem:[%s3 + $0xc8] sm:$0xf]
        %v2729 = vld [vmem:[%s3 + $0xcc] sm:$0xf]
        %v2730 = vld [vmem:[%s3 + $0xd0] sm:$0xf]
        %v2731 = vld [vmem:[%s3 + $0xd4] sm:$0xf]
        %v2732 = vld [vmem:[%s3 + $0xd8] sm:$0xf]
        %v2733 = vld [vmem:[%s3 + $0xdc] sm:$0xf]
        %v2734 = vld [vmem:[%s3 + $0xe0] sm:$0xf]
        %v2735 = vld [vmem:[%s3 + $0xe4] sm:$0xf]
        %v2736 = vld [vmem:[%s3 + $0xe8] sm:$0xf]
        %v2737 = vld [vmem:[%s3 + $0xec] sm:$0xf]
        %v2738 = vld [vmem:[%s3 + $0xf0] sm:$0xf]
        %v2739 = vld [vmem:[%s3 + $0xf4] sm:$0xf]
        %v2740 = vld [vmem:[%s3 + $0xf8] sm:$0xf]
        %v2741 = vld [vmem:[%s3 + $0xfc] sm:$0xf]
        %v2742 = vld [vmem:[%s3 + $0x100] sm:$0xf]
        %v2743 = vld [vmem:[%s3 + $0x104] sm:$0xf]
        %v2744 = vld [vmem:[%s3 + $0x108] sm:$0xf]
        %v2745 = vld [vmem:[%s3 + $0x10c] sm:$0xf]
        %v2746 = vld [vmem:[%s3 + $0x110] sm:$0xf]
        %v2747 = vld [vmem:[%s3 + $0x114] sm:$0xf]
        %v2748 = vld [vmem:[%s3 + $0x118] sm:$0xf]
        %v2749 = vld [vmem:[%s3 + $0x11c] sm:$0xf]
        %v2750 = vld [vmem:[%s3 + $0x120] sm:$0xf]
        %v2751 = vld [vmem:[%s3 + $0x124] sm:$0xf]
        %v2752 = vld [vmem:[%s3 + $0x128] sm:$0xf]
        %v2753 = vld [vmem:[%s3 + $0x12c] sm:$0xf]
        %v2754 = vld [vmem:[%s3 + $0x130] sm:$0xf]
        %v2755 = vld [vmem:[%s3 + $0x134] sm:$0xf]
        %v2756 = vld [vmem:[%s3 + $0x138] sm:$0xf]
        %v2757 = vld [vmem:[%s3 + $0x13c] sm:$0xf]
        %v2758 = vld [vmem:[%s3 + $0x140] sm:$0xf]
        %v2759 = vld [vmem:[%s3 + $0x144] sm:$0xf]
        %v2760 = vld [vmem:[%s3 + $0x148] sm:$0xf]
        %v2761 = vld [vmem:[%s3 + $0x14c] sm:$0xf]
        %v2762 = vld [vmem:[%s3 + $0x150] sm:$0xf]
        %v2763 = vld [vmem:[%s3 + $0x154] sm:$0xf]
        %v2764 = vld [vmem:[%s3 + $0x158] sm:$0xf]
        %v2765 = vld [vmem:[%s3 + $0x15c] sm:$0xf]
        %v2766 = vld [vmem:[%s3 + $0x160] sm:$0xf]
        %v2767 = vld [vmem:[%s3 + $0x164] sm:$0xf]
        %v2768 = vld [vmem:[%s3 + $0x168] sm:$0xf]
        %v2769 = vld [vmem:[%s3 + $0x16c] sm:$0xf]
        %v2770 = vld [vmem:[%s3 + $0x170] sm:$0xf]
        %v2771 = vld [vmem:[%s3 + $0x174] sm:$0xf]
        %v2772 = vld [vmem:[%s3 + $0x178] sm:$0xf]
        %v2773 = vld [vmem:[%s3 + $0x17c] sm:$0xf]
        %v2774 = vld [vmem:[%s3 + $0x180] sm:$0xf]
        %v2775 = vld [vmem:[%s3 + $0x184] sm:$0xf]
        %v2776 = vld [vmem:[%s3 + $0x188] sm:$0xf]
        %v2777 = vld [vmem:[%s3 + $0x18c] sm:$0xf]
        %v2778 = vld [vmem:[%s3 + $0x190] sm:$0xf]
        %v2779 = vld [vmem:[%s3 + $0x194] sm:$0xf]
        %v2780 = vld [vmem:[%s3 + $0x198] sm:$0xf]
        %v2781 = vld [vmem:[%s3 + $0x19c] sm:$0xf]
        %v2782 = vld [vmem:[%s3 + $0x1a0] sm:$0xf]
        %v2783 = vld [vmem:[%s3 + $0x1a4] sm:$0xf]
        %v2784 = vld [vmem:[%s3 + $0x1a8] sm:$0xf]
        %v2785 = vld [vmem:[%s3 + $0x1ac] sm:$0xf]
        %v2786 = vld [vmem:[%s3 + $0x1b0] sm:$0xf]
        %v2787 = vld [vmem:[%s3 + $0x1b4] sm:$0xf]
        %v2788 = vld [vmem:[%s3 + $0x1b8] sm:$0xf]
        %v2789 = vld [vmem:[%s3 + $0x1bc] sm:$0xf]
        %v2790 = vld [vmem:[%s3 + $0x1c0] sm:$0xf]
        %v2791 = vld [vmem:[%s3 + $0x1c4] sm:$0xf]
        %v2792 = vld [vmem:[%s3 + $0x1c8] sm:$0xf]
        %v2793 = vld [vmem:[%s3 + $0x1cc] sm:$0xf]
        %v2794 = vld [vmem:[%s3 + $0x1d0] sm:$0xf]
        %v2795 = vld [vmem:[%s3 + $0x1d4] sm:$0xf]
        %v2796 = vld [vmem:[%s3 + $0x1d8] sm:$0xf]
        %v2797 = vld [vmem:[%s3 + $0x1dc] sm:$0xf]
        %v2798 = vld [vmem:[%s3 + $0x1e0] sm:$0xf]
        %v2799 = vld [vmem:[%s3 + $0x1e4] sm:$0xf]
        %v2800 = vld [vmem:[%s3 + $0x1e8] sm:$0xf]
        %v2801 = vld [vmem:[%s3 + $0x1ec] sm:$0xf]
        %v2802 = vld [vmem:[%s3 + $0x1f0] sm:$0xf]
        %v2803 = vld [vmem:[%s3 + $0x1f4] sm:$0xf]
        %v2804 = vld [vmem:[%s3 + $0x1f8] sm:$0xf]
        %v2805 = vld [vmem:[%s3 + $0x1fc] sm:$0xf]
        %v2806 = vld [vmem:[%s3 + $0x200] sm:$0xf]
        %v2807 = vld [vmem:[%s3 + $0x204] sm:$0xf]
        %v2808 = vld [vmem:[%s3 + $0x208] sm:$0xf]
        %v2809 = vld [vmem:[%s3 + $0x20c] sm:$0xf]
        %v2810 = vld [vmem:[%s3 + $0x210] sm:$0xf]
        %v2811 = vld [vmem:[%s3 + $0x214] sm:$0xf]
        %v2812 = vld [vmem:[%s3 + $0x218] sm:$0xf]
        %v2813 = vld [vmem:[%s3 + $0x21c] sm:$0xf]
        %v2814 = vld [vmem:[%s3 + $0x220] sm:$0xf]
        %v2815 = vld [vmem:[%s3 + $0x224] sm:$0xf]
        %v2816 = vld [vmem:[%s3 + $0x228] sm:$0xf]
        %v2817 = vld [vmem:[%s3 + $0x22c] sm:$0xf]
        %v2818 = vld [vmem:[%s3 + $0x230] sm:$0xf]
        %v2819 = vld [vmem:[%s3 + $0x234] sm:$0xf]
        %v2820 = vld [vmem:[%s3 + $0x238] sm:$0xf]
        %v2821 = vld [vmem:[%s3 + $0x23c] sm:$0xf]
        %v2822 = vld [vmem:[%s4] sm:$0x1]
        %v2824 = vlaneseq
        %v2825 = vshrl.u32 %v2824, 7
        %v2826 = vsub.s32 0, %v2825
        %v2827 = vrot.slane %v2822, %v2826
        %v2973 = vunpack.c.l.b16 %v2678
        %v2974 = vunpack.c.l.b16 %v2679
        %v2975 = vunpack.c.l.b16 %v2680
        %v2976 = vunpack.c.l.b16 %v2681
        %v2977 = vunpack.c.l.b16 %v2682
        %v2978 = vunpack.c.l.b16 %v2683
        %v2979 = vunpack.c.l.b16 %v2684
        %v2980 = vunpack.c.l.b16 %v2685
        %v2981 = vunpack.c.l.b16 %v2686
        %v2982 = vunpack.c.l.b16 %v2687
        %v2983 = vunpack.c.l.b16 %v2688
        %v2984 = vunpack.c.l.b16 %v2689
        %v2985 = vunpack.c.l.b16 %v2690
        %v2986 = vunpack.c.l.b16 %v2691
        %v2987 = vunpack.c.l.b16 %v2692
        %v2988 = vunpack.c.l.b16 %v2693
        %v2989 = vunpack.c.l.b16 %v2694
        %v2990 = vunpack.c.l.b16 %v2695
        %v2991 = vunpack.c.l.b16 %v2696
        %v2992 = vunpack.c.l.b16 %v2697
        %v2993 = vunpack.c.l.b16 %v2698
        %v2994 = vunpack.c.l.b16 %v2699
        %v2995 = vunpack.c.l.b16 %v2700
        %v2996 = vunpack.c.l.b16 %v2701
        %v2997 = vunpack.c.l.b16 %v2702
        %v2998 = vunpack.c.l.b16 %v2703
        %v2999 = vunpack.c.l.b16 %v2704
        %v3000 = vunpack.c.l.b16 %v2705
        %v3001 = vunpack.c.l.b16 %v2706
        %v3002 = vunpack.c.l.b16 %v2707
        %v3003 = vunpack.c.l.b16 %v2708
        %v3004 = vunpack.c.l.b16 %v2709
        %v3005 = vunpack.c.l.b16 %v2710
        %v3006 = vunpack.c.l.b16 %v2711
        %v3007 = vunpack.c.l.b16 %v2712
        %v3008 = vunpack.c.l.b16 %v2713
        %v3009 = vunpack.c.l.b16 %v2714
        %v3010 = vunpack.c.l.b16 %v2715
        %v3011 = vunpack.c.l.b16 %v2716
        %v3012 = vunpack.c.l.b16 %v2717
        %v3013 = vunpack.c.l.b16 %v2718
        %v3014 = vunpack.c.l.b16 %v2719
        %v3015 = vunpack.c.l.b16 %v2720
        %v3016 = vunpack.c.l.b16 %v2721
        %v3017 = vunpack.c.l.b16 %v2722
        %v3018 = vunpack.c.l.b16 %v2723
        %v3019 = vunpack.c.l.b16 %v2724
        %v3020 = vunpack.c.l.b16 %v2725
        %v3021 = vunpack.c.l.b16 %v2726
        %v3022 = vunpack.c.l.b16 %v2727
        %v3023 = vunpack.c.l.b16 %v2728
        %v3024 = vunpack.c.l.b16 %v2729
        %v3025 = vunpack.c.l.b16 %v2730
        %v3026 = vunpack.c.l.b16 %v2731
        %v3027 = vunpack.c.l.b16 %v2732
        %v3028 = vunpack.c.l.b16 %v2733
        %v3029 = vunpack.c.l.b16 %v2734
        %v3030 = vunpack.c.l.b16 %v2735
        %v3031 = vunpack.c.l.b16 %v2736
        %v3032 = vunpack.c.l.b16 %v2737
        %v3033 = vunpack.c.l.b16 %v2738
        %v3034 = vunpack.c.l.b16 %v2739
        %v3035 = vunpack.c.l.b16 %v2740
        %v3036 = vunpack.c.l.b16 %v2741
        %v3037 = vunpack.c.l.b16 %v2742
        %v3038 = vunpack.c.l.b16 %v2743
        %v3039 = vunpack.c.l.b16 %v2744
        %v3040 = vunpack.c.l.b16 %v2745
        %v3041 = vunpack.c.l.b16 %v2746
        %v3042 = vunpack.c.l.b16 %v2747
        %v3043 = vunpack.c.l.b16 %v2748
        %v3044 = vunpack.c.l.b16 %v2749
        %v3045 = vunpack.c.l.b16 %v2750
        %v3046 = vunpack.c.l.b16 %v2751
        %v3047 = vunpack.c.l.b16 %v2752
        %v3048 = vunpack.c.l.b16 %v2753
        %v3049 = vunpack.c.l.b16 %v2754
        %v3050 = vunpack.c.l.b16 %v2755
        %v3051 = vunpack.c.l.b16 %v2756
        %v3052 = vunpack.c.l.b16 %v2757
        %v3053 = vunpack.c.l.b16 %v2758
        %v3054 = vunpack.c.l.b16 %v2759
        %v3055 = vunpack.c.l.b16 %v2760
        %v3056 = vunpack.c.l.b16 %v2761
        %v3057 = vunpack.c.l.b16 %v2762
        %v3058 = vunpack.c.l.b16 %v2763
        %v3059 = vunpack.c.l.b16 %v2764
        %v3060 = vunpack.c.l.b16 %v2765
        %v3061 = vunpack.c.l.b16 %v2766
        %v3062 = vunpack.c.l.b16 %v2767
        %v3063 = vunpack.c.l.b16 %v2768
        %v3064 = vunpack.c.l.b16 %v2769
        %v3065 = vunpack.c.l.b16 %v2770
        %v3066 = vunpack.c.l.b16 %v2771
        %v3067 = vunpack.c.l.b16 %v2772
        %v3068 = vunpack.c.l.b16 %v2773
        %v3069 = vunpack.c.l.b16 %v2774
        %v3070 = vunpack.c.l.b16 %v2775
        %v3071 = vunpack.c.l.b16 %v2776
        %v3072 = vunpack.c.l.b16 %v2777
        %v3073 = vunpack.c.l.b16 %v2778
        %v3074 = vunpack.c.l.b16 %v2779
        %v3075 = vunpack.c.l.b16 %v2780
        %v3076 = vunpack.c.l.b16 %v2781
        %v3077 = vunpack.c.l.b16 %v2782
        %v3078 = vunpack.c.l.b16 %v2783
        %v3079 = vunpack.c.l.b16 %v2784
        %v3080 = vunpack.c.l.b16 %v2785
        %v3081 = vunpack.c.l.b16 %v2786
        %v3082 = vunpack.c.l.b16 %v2787
        %v3083 = vunpack.c.l.b16 %v2788
        %v3084 = vunpack.c.l.b16 %v2789
        %v3085 = vunpack.c.l.b16 %v2790
        %v3086 = vunpack.c.l.b16 %v2791
        %v3087 = vunpack.c.l.b16 %v2792
        %v3088 = vunpack.c.l.b16 %v2793
        %v3089 = vunpack.c.l.b16 %v2794
        %v3090 = vunpack.c.l.b16 %v2795
        %v3091 = vunpack.c.l.b16 %v2796
        %v3092 = vunpack.c.l.b16 %v2797
        %v3093 = vunpack.c.l.b16 %v2798
        %v3094 = vunpack.c.l.b16 %v2799
        %v3095 = vunpack.c.l.b16 %v2800
        %v3096 = vunpack.c.l.b16 %v2801
        %v3097 = vunpack.c.l.b16 %v2802
        %v3098 = vunpack.c.l.b16 %v2803
        %v3099 = vunpack.c.l.b16 %v2804
        %v3100 = vunpack.c.l.b16 %v2805
        %v3101 = vunpack.c.l.b16 %v2806
        %v3102 = vunpack.c.l.b16 %v2807
        %v3103 = vunpack.c.l.b16 %v2808
        %v3104 = vunpack.c.l.b16 %v2809
        %v3105 = vunpack.c.l.b16 %v2810
        %v3106 = vunpack.c.l.b16 %v2811
        %v3107 = vunpack.c.l.b16 %v2812
        %v3108 = vunpack.c.l.b16 %v2813
        %v3109 = vunpack.c.l.b16 %v2814
        %v3110 = vunpack.c.l.b16 %v2815
        %v3111 = vunpack.c.l.b16 %v2816
        %v3112 = vunpack.c.l.b16 %v2817
        %v3113 = vunpack.c.l.b16 %v2818
        %v3114 = vunpack.c.l.b16 %v2819
        %v3115 = vunpack.c.l.b16 %v2820
        %v3116 = vunpack.c.l.b16 %v2821
        %v3117 = vpack.c.b16 %v2974, %v2973
        %v3118 = vpack.c.b16 %v2976, %v2975
        %v3119 = vpack.c.b16 %v2978, %v2977
        %v3120 = vpack.c.b16 %v2980, %v2979
        %v3121 = vpack.c.b16 %v2982, %v2981
        %v3122 = vpack.c.b16 %v2984, %v2983
        %v3123 = vpack.c.b16 %v2986, %v2985
        %v3124 = vpack.c.b16 %v2988, %v2987
        %v3125 = vpack.c.b16 %v2990, %v2989
        %v3126 = vpack.c.b16 %v2992, %v2991
        %v3127 = vpack.c.b16 %v2994, %v2993
        %v3128 = vpack.c.b16 %v2996, %v2995
        %v3129 = vpack.c.b16 %v2998, %v2997
        %v3130 = vpack.c.b16 %v3000, %v2999
        %v3131 = vpack.c.b16 %v3002, %v3001
        %v3132 = vpack.c.b16 %v3004, %v3003
        %v3133 = vpack.c.b16 %v3006, %v3005
        %v3134 = vpack.c.b16 %v3008, %v3007
        %v3135 = vpack.c.b16 %v3010, %v3009
        %v3136 = vpack.c.b16 %v3012, %v3011
        %v3137 = vpack.c.b16 %v3014, %v3013
        %v3138 = vpack.c.b16 %v3016, %v3015
        %v3139 = vpack.c.b16 %v3018, %v3017
        %v3140 = vpack.c.b16 %v3020, %v3019
        %v3141 = vpack.c.b16 %v3022, %v3021
        %v3142 = vpack.c.b16 %v3024, %v3023
        %v3143 = vpack.c.b16 %v3026, %v3025
        %v3144 = vpack.c.b16 %v3028, %v3027
        %v3145 = vpack.c.b16 %v3030, %v3029
        %v3146 = vpack.c.b16 %v3032, %v3031
        %v3147 = vpack.c.b16 %v3034, %v3033
        %v3148 = vpack.c.b16 %v3036, %v3035
        %v3149 = vpack.c.b16 %v3038, %v3037
        %v3150 = vpack.c.b16 %v3040, %v3039
        %v3151 = vpack.c.b16 %v3042, %v3041
        %v3152 = vpack.c.b16 %v3044, %v3043
        %v3153 = vpack.c.b16 %v3046, %v3045
        %v3154 = vpack.c.b16 %v3048, %v3047
        %v3155 = vpack.c.b16 %v3050, %v3049
        %v3156 = vpack.c.b16 %v3052, %v3051
        %v3157 = vpack.c.b16 %v3054, %v3053
        %v3158 = vpack.c.b16 %v3056, %v3055
        %v3159 = vpack.c.b16 %v3058, %v3057
        %v3160 = vpack.c.b16 %v3060, %v3059
        %v3161 = vpack.c.b16 %v3062, %v3061
        %v3162 = vpack.c.b16 %v3064, %v3063
        %v3163 = vpack.c.b16 %v3066, %v3065
        %v3164 = vpack.c.b16 %v3068, %v3067
        %v3165 = vpack.c.b16 %v3070, %v3069
        %v3166 = vpack.c.b16 %v3072, %v3071
        %v3167 = vpack.c.b16 %v3074, %v3073
        %v3168 = vpack.c.b16 %v3076, %v3075
        %v3169 = vpack.c.b16 %v3078, %v3077
        %v3170 = vpack.c.b16 %v3080, %v3079
        %v3171 = vpack.c.b16 %v3082, %v3081
        %v3172 = vpack.c.b16 %v3084, %v3083
        %v3173 = vpack.c.b16 %v3086, %v3085
        %v3174 = vpack.c.b16 %v3088, %v3087
        %v3175 = vpack.c.b16 %v3090, %v3089
        %v3176 = vpack.c.b16 %v3092, %v3091
        %v3177 = vpack.c.b16 %v3094, %v3093
        %v3178 = vpack.c.b16 %v3096, %v3095
        %v3179 = vpack.c.b16 %v3098, %v3097
        %v3180 = vpack.c.b16 %v3100, %v3099
        %v3181 = vpack.c.b16 %v3102, %v3101
        %v3182 = vpack.c.b16 %v3104, %v3103
        %v3183 = vpack.c.b16 %v3106, %v3105
        %v3184 = vpack.c.b16 %v3108, %v3107
        %v3185 = vpack.c.b16 %v3110, %v3109
        %v3186 = vpack.c.b16 %v3112, %v3111
        %v3187 = vpack.c.b16 %v3114, %v3113
        %v3188 = vpack.c.b16 %v3116, %v3115
        %3261 = vmatprep.subr.bf16.mxu0 0
        %3262 = vmatpush1.bf16.msra.mxu0 %v3117
        %3263 = vmatprep.subr.bf16.mxu0 0
        %3264 = vmatpush1.bf16.msra.mxu0 %v3118
        %3265 = vmatprep.subr.bf16.mxu0 0
        %3266 = vmatpush1.bf16.msra.mxu0 %v3119
        %3267 = vmatprep.subr.bf16.mxu0 0
        %3268 = vmatpush1.bf16.msra.mxu0 %v3120
        %3269 = vmatprep.subr.bf16.mxu0 0
        %3270 = vmatpush1.bf16.msra.mxu0 %v3121
        %3271 = vmatprep.subr.bf16.mxu0 0
        %3272 = vmatpush1.bf16.msra.mxu0 %v3122
        %3273 = vmatprep.subr.bf16.mxu0 0
        %3274 = vmatpush1.bf16.msra.mxu0 %v3123
        %3275 = vmatprep.subr.bf16.mxu0 0
        %3276 = vmatpush1.bf16.msra.mxu0 %v3124
        %3277 = vmatprep.subr.bf16.mxu0 0
        %3278 = vmatpush1.bf16.msra.mxu0 %v3125
        %3279 = vmatprep.subr.bf16.mxu0 0
        %3280 = vmatpush1.bf16.msra.mxu0 %v3126
        %3281 = vmatprep.subr.bf16.mxu0 0
        %3282 = vmatpush1.bf16.msra.mxu0 %v3127
        %3283 = vmatprep.subr.bf16.mxu0 0
        %3284 = vmatpush1.bf16.msra.mxu0 %v3128
        %3285 = vmatprep.subr.bf16.mxu0 0
        %3286 = vmatpush1.bf16.msra.mxu0 %v3129
        %3287 = vmatprep.subr.bf16.mxu0 0
        %3288 = vmatpush1.bf16.msra.mxu0 %v3130
        %3289 = vmatprep.subr.bf16.mxu0 0
        %3290 = vmatpush1.bf16.msra.mxu0 %v3131
        %3291 = vmatprep.subr.bf16.mxu0 0
        %3292 = vmatpush1.bf16.msra.mxu0 %v3132
        %3293 = vmatprep.mubr.bf16.mxu0 %v2535
        %3294 = vmatmul.mubr.bf16.gmra.mrb[0].mxu0 %v2534
        %v3295 = vpop.f32.mrb[0].mxu0
        %v3296 = vadd.f32 %v2827, %v3295
        %v3297 = vpop.f32.mrb[0].mxu0
        %v3298 = vpop.f32.mrb[0].mxu0
        %v3299 = vadd.f32 %v2827, %v3298
        %v3300 = vpop.f32.mrb[0].mxu0
        %3301 = vmatprep.mubr.bf16.mxu0 %v2544
        %3302 = vmatmul.mubr.bf16.gmra.mrb[0].mxu0 %v2543
        %v3303 = vpop.f32.mrb[0].mxu0
        %v3304 = vadd.f32 %v2827, %v3303
        %v3305 = vpop.f32.mrb[0].mxu0
        %v3306 = vpop.f32.mrb[0].mxu0
        %v3307 = vadd.f32 %v2827, %v3306
        %v3308 = vpop.f32.mrb[0].mxu0
        %3309 = vmatprep.mubr.bf16.mxu0 %v2553
        %3310 = vmatmul.mubr.bf16.gmra.mrb[0].mxu0 %v2552
        %v3311 = vpop.f32.mrb[0].mxu0
        %v3312 = vadd.f32 %v2827, %v3311
        %v3313 = vpop.f32.mrb[0].mxu0
        %v3314 = vpop.f32.mrb[0].mxu0
        %v3315 = vadd.f32 %v2827, %v3314
        %v3316 = vpop.f32.mrb[0].mxu0
        %3317 = vmatprep.mubr.bf16.mxu0 %v2562
        %3318 = vmatmul.mubr.bf16.gmra.mrb[0].mxu0 %v2561
        %v3319 = vpop.f32.mrb[0].mxu0
        %v3320 = vadd.f32 %v2827, %v3319
        %v3321 = vpop.f32.mrb[0].mxu0
        %v3322 = vpop.f32.mrb[0].mxu0
        %v3323 = vadd.f32 %v2827, %v3322
        %v3324 = vpop.f32.mrb[0].mxu0
        %3325 = vmatprep.mubr.bf16.mxu0 %v2571
        %3326 = vmatmul.mubr.bf16.gmra.mrb[0].mxu0 %v2570
        %v3327 = vpop.f32.mrb[0].mxu0
        %v3328 = vadd.f32 %v2827, %v3327
        %v3329 = vpop.f32.mrb[0].mxu0
        %v3330 = vpop.f32.mrb[0].mxu0
        %v3331 = vadd.f32 %v2827, %v3330
        %v3332 = vpop.f32.mrb[0].mxu0
        %3333 = vmatprep.mubr.bf16.mxu0 %v2580
        %3334 = vmatmul.mubr.bf16.gmra.mrb[0].mxu0 %v2579
        %v3335 = vpop.f32.mrb[0].mxu0
        %v3336 = vadd.f32 %v2827, %v3335
        %v3337 = vpop.f32.mrb[0].mxu0
        %v3338 = vpop.f32.mrb[0].mxu0
        %v3339 = vadd.f32 %v2827, %v3338
        %v3340 = vpop.f32.mrb[0].mxu0
        %3341 = vmatprep.mubr.bf16.mxu0 %v2589
        %3342 = vmatmul.mubr.bf16.gmra.mrb[0].mxu0 %v2588
        %v3343 = vpop.f32.mrb[0].mxu0
        %v3344 = vadd.f32 %v2827, %v3343
        %v3345 = vpop.f32.mrb[0].mxu0
        %v3346 = vpop.f32.mrb[0].mxu0
        %v3347 = vadd.f32 %v2827, %v3346
        %v3348 = vpop.f32.mrb[0].mxu0
        %3349 = vmatprep.mubr.bf16.mxu0 %v2598
        %3350 = vmatmul.mubr.bf16.gmra.mrb[0].mxu0 %v2597
        %v3351 = vpop.f32.mrb[0].mxu0
        %v3352 = vadd.f32 %v2827, %v3351
        %v3353 = vpop.f32.mrb[0].mxu0
        %v3354 = vpop.f32.mrb[0].mxu0
        %v3355 = vadd.f32 %v2827, %v3354
        %v3356 = vpop.f32.mrb[0].mxu0
        %3357 = vmatprep.mubr.bf16.mxu0 %v2607
        %3358 = vmatmul.mubr.bf16.gmra.mrb[0].mxu0 %v2606
        %v3359 = vpop.f32.mrb[0].mxu0
        %v3360 = vadd.f32 %v2827, %v3359
        %v3361 = vpop.f32.mrb[0].mxu0
        %v3362 = vpop.f32.mrb[0].mxu0
        %v3363 = vadd.f32 %v2827, %v3362
        %v3364 = vpop.f32.mrb[0].mxu0
        %3365 = vmatprep.mubr.bf16.mxu0 %v2616
        %3366 = vmatmul.mubr.bf16.gmra.mrb[0].mxu0 %v2615
        %v3367 = vpop.f32.mrb[0].mxu0
        %v3368 = vadd.f32 %v2827, %v3367
        %v3369 = vpop.f32.mrb[0].mxu0
        %v3370 = vpop.f32.mrb[0].mxu0
        %v3371 = vadd.f32 %v2827, %v3370
        %v3372 = vpop.f32.mrb[0].mxu0
        %3373 = vmatprep.mubr.bf16.mxu0 %v2625
        %3374 = vmatmul.mubr.bf16.gmra.mrb[0].mxu0 %v2624
        %v3375 = vpop.f32.mrb[0].mxu0
        %v3376 = vadd.f32 %v2827, %v3375
        %v3377 = vpop.f32.mrb[0].mxu0
        %v3378 = vpop.f32.mrb[0].mxu0
        %v3379 = vadd.f32 %v2827, %v3378
        %v3380 = vpop.f32.mrb[0].mxu0
        %3381 = vmatprep.mubr.bf16.mxu0 %v2634
        %3382 = vmatmul.mubr.bf16.gmra.mrb[0].mxu0 %v2633
        %v3383 = vpop.f32.mrb[0].mxu0
        %v3384 = vadd.f32 %v2827, %v3383
        %v3385 = vpop.f32.mrb[0].mxu0
        %v3386 = vpop.f32.mrb[0].mxu0
        %v3387 = vadd.f32 %v2827, %v3386
        %v3388 = vpop.f32.mrb[0].mxu0
        %3389 = vmatprep.mubr.bf16.mxu0 %v2643
        %3390 = vmatmul.mubr.bf16.gmra.mrb[0].mxu0 %v2642
        %v3391 = vpop.f32.mrb[0].mxu0
        %v3392 = vadd.f32 %v2827, %v3391
        %v3393 = vpop.f32.mrb[0].mxu0
        %v3394 = vpop.f32.mrb[0].mxu0
        %v3395 = vadd.f32 %v2827, %v3394
        %v3396 = vpop.f32.mrb[0].mxu0
        %3397 = vmatprep.mubr.bf16.mxu0 %v2652
        %3398 = vmatmul.mubr.bf16.gmra.mrb[0].mxu0 %v2651
        %v3399 = vpop.f32.mrb[0].mxu0
        %v3400 = vadd.f32 %v2827, %v3399
        %v3401 = vpop.f32.mrb[0].mxu0
        %v3402 = vpop.f32.mrb[0].mxu0
        %v3403 = vadd.f32 %v2827, %v3402
        %v3404 = vpop.f32.mrb[0].mxu0
        %3405 = vmatprep.mubr.bf16.mxu0 %v2661
        %3406 = vmatmul.mubr.bf16.gmra.mrb[0].mxu0 %v2660
        %v3407 = vpop.f32.mrb[0].mxu0
        %v3408 = vadd.f32 %v2827, %v3407
        %v3409 = vpop.f32.mrb[0].mxu0
        %v3410 = vpop.f32.mrb[0].mxu0
        %v3411 = vadd.f32 %v2827, %v3410
        %v3412 = vpop.f32.mrb[0].mxu0
        %3413 = vmatprep.mubr.bf16.mxu0 %v2670
        %3414 = vmatmul.mubr.bf16.gmra.mrb[0].mxu0 %v2669
        %v3415 = vpop.f32.mrb[0].mxu0
        %v3416 = vadd.f32 %v2827, %v3415
        %v3417 = vpop.f32.mrb[0].mxu0
        %v3418 = vpop.f32.mrb[0].mxu0
        %v3419 = vadd.f32 %v2827, %v3418
        %v3420 = vpop.f32.mrb[0].mxu0
        %3421 = vdwg.mxu0
        %3422 = vmatprep.subr.bf16.mxu0 0
        %3423 = vmatpush1.bf16.msra.mxu0 %v3133
        %3424 = vmatprep.subr.bf16.mxu0 0
        %3425 = vmatpush1.bf16.msra.mxu0 %v3134
        %3426 = vmatprep.subr.bf16.mxu0 0
        %3427 = vmatpush1.bf16.msra.mxu0 %v3135
        %3428 = vmatprep.subr.bf16.mxu0 0
        %3429 = vmatpush1.bf16.msra.mxu0 %v3136
        %3430 = vmatprep.subr.bf16.mxu0 0
        %3431 = vmatpush1.bf16.msra.mxu0 %v3137
        %3432 = vmatprep.subr.bf16.mxu0 0
        %3433 = vmatpush1.bf16.msra.mxu0 %v3138
        %3434 = vmatprep.subr.bf16.mxu0 0
        %3435 = vmatpush1.bf16.msra.mxu0 %v3139
        %3436 = vmatprep.subr.bf16.mxu0 0
        %3437 = vmatpush1.bf16.msra.mxu0 %v3140
        %3438 = vmatprep.subr.bf16.mxu0 0
        %3439 = vmatpush1.bf16.msra.mxu0 %v3141
        %3440 = vmatprep.subr.bf16.mxu0 0
        %3441 = vmatpush1.bf16.msra.mxu0 %v3142
        %3442 = vmatprep.subr.bf16.mxu0 0
        %3443 = vmatpush1.bf16.msra.mxu0 %v3143
        %3444 = vmatprep.subr.bf16.mxu0 0
        %3445 = vmatpush1.bf16.msra.mxu0 %v3144
        %3446 = vmatprep.subr.bf16.mxu0 0
        %3447 = vmatpush1.bf16.msra.mxu0 %v3145
        %3448 = vmatprep.subr.bf16.mxu0 0
        %3449 = vmatpush1.bf16.msra.mxu0 %v3146
        %3450 = vmatprep.subr.bf16.mxu0 0
        %3451 = vmatpush1.bf16.msra.mxu0 %v3147
        %3452 = vmatprep.subr.bf16.mxu0 0
        %3453 = vmatpush1.bf16.msra.mxu0 %v3148
        %3454 = vmatprep.mubr.bf16.mxu0 %v2537
        %3455 = vmatmul.mubr.bf16.gmra.mrb[0].mxu0 %v2536
        %v3456 = vpop.f32.mrb[0].mxu0
        %v3457 = vadd.f32 %v3296, %v3456
        %v3458 = vpop.f32.mrb[0].mxu0
        %v3459 = vpop.f32.mrb[0].mxu0
        %v3460 = vadd.f32 %v3299, %v3459
        %v3461 = vpop.f32.mrb[0].mxu0
        %3462 = vmatprep.mubr.bf16.mxu0 %v2546
        %3463 = vmatmul.mubr.bf16.gmra.mrb[0].mxu0 %v2545
        %v3464 = vpop.f32.mrb[0].mxu0
        %v3465 = vadd.f32 %v3304, %v3464
        %v3466 = vpop.f32.mrb[0].mxu0
        %v3467 = vpop.f32.mrb[0].mxu0
        %v3468 = vadd.f32 %v3307, %v3467
        %v3469 = vpop.f32.mrb[0].mxu0
        %3470 = vmatprep.mubr.bf16.mxu0 %v2555
        %3471 = vmatmul.mubr.bf16.gmra.mrb[0].mxu0 %v2554
        %v3472 = vpop.f32.mrb[0].mxu0
        %v3473 = vadd.f32 %v3312, %v3472
        %v3474 = vpop.f32.mrb[0].mxu0
        %v3475 = vpop.f32.mrb[0].mxu0
        %v3476 = vadd.f32 %v3315, %v3475
        %v3477 = vpop.f32.mrb[0].mxu0
        %3478 = vmatprep.mubr.bf16.mxu0 %v2564
        %3479 = vmatmul.mubr.bf16.gmra.mrb[0].mxu0 %v2563
        %v3480 = vpop.f32.mrb[0].mxu0
        %v3481 = vadd.f32 %v3320, %v3480
        %v3482 = vpop.f32.mrb[0].mxu0
        %v3483 = vpop.f32.mrb[0].mxu0
        %v3484 = vadd.f32 %v3323, %v3483
        %v3485 = vpop.f32.mrb[0].mxu0
        %3486 = vmatprep.mubr.bf16.mxu0 %v2573
        %3487 = vmatmul.mubr.bf16.gmra.mrb[0].mxu0 %v2572
        %v3488 = vpop.f32.mrb[0].mxu0
        %v3489 = vadd.f32 %v3328, %v3488
        %v3490 = vpop.f32.mrb[0].mxu0
        %v3491 = vpop.f32.mrb[0].mxu0
        %v3492 = vadd.f32 %v3331, %v3491
        %v3493 = vpop.f32.mrb[0].mxu0
        %3494 = vmatprep.mubr.bf16.mxu0 %v2582
        %3495 = vmatmul.mubr.bf16.gmra.mrb[0].mxu0 %v2581
        %v3496 = vpop.f32.mrb[0].mxu0
        %v3497 = vadd.f32 %v3336, %v3496
        %v3498 = vpop.f32.mrb[0].mxu0
        %v3499 = vpop.f32.mrb[0].mxu0
        %v3500 = vadd.f32 %v3339, %v3499
        %v3501 = vpop.f32.mrb[0].mxu0
        %3502 = vmatprep.mubr.bf16.mxu0 %v2591
        %3503 = vmatmul.mubr.bf16.gmra.mrb[0].mxu0 %v2590
        %v3504 = vpop.f32.mrb[0].mxu0
        %v3505 = vadd.f32 %v3344, %v3504
        %v3506 = vpop.f32.mrb[0].mxu0
        %v3507 = vpop.f32.mrb[0].mxu0
        %v3508 = vadd.f32 %v3347, %v3507
        %v3509 = vpop.f32.mrb[0].mxu0
        %3510 = vmatprep.mubr.bf16.mxu0 %v2600
        %3511 = vmatmul.mubr.bf16.gmra.mrb[0].mxu0 %v2599
        %v3512 = vpop.f32.mrb[0].mxu0
        %v3513 = vadd.f32 %v3352, %v3512
        %v3514 = vpop.f32.mrb[0].mxu0
        %v3515 = vpop.f32.mrb[0].mxu0
        %v3516 = vadd.f32 %v3355, %v3515
        %v3517 = vpop.f32.mrb[0].mxu0
        %3518 = vmatprep.mubr.bf16.mxu0 %v2609
        %3519 = vmatmul.mubr.bf16.gmra.mrb[0].mxu0 %v2608
        %v3520 = vpop.f32.mrb[0].mxu0
        %v3521 = vadd.f32 %v3360, %v3520
        %v3522 = vpop.f32.mrb[0].mxu0
        %v3523 = vpop.f32.mrb[0].mxu0
        %v3524 = vadd.f32 %v3363, %v3523
        %v3525 = vpop.f32.mrb[0].mxu0
        %3526 = vmatprep.mubr.bf16.mxu0 %v2618
        %3527 = vmatmul.mubr.bf16.gmra.mrb[0].mxu0 %v2617
        %v3528 = vpop.f32.mrb[0].mxu0
        %v3529 = vadd.f32 %v3368, %v3528
        %v3530 = vpop.f32.mrb[0].mxu0
        %v3531 = vpop.f32.mrb[0].mxu0
        %v3532 = vadd.f32 %v3371, %v3531
        %v3533 = vpop.f32.mrb[0].mxu0
        %3534 = vmatprep.mubr.bf16.mxu0 %v2627
        %3535 = vmatmul.mubr.bf16.gmra.mrb[0].mxu0 %v2626
        %v3536 = vpop.f32.mrb[0].mxu0
        %v3537 = vadd.f32 %v3376, %v3536
        %v3538 = vpop.f32.mrb[0].mxu0
        %v3539 = vpop.f32.mrb[0].mxu0
        %v3540 = vadd.f32 %v3379, %v3539
        %v3541 = vpop.f32.mrb[0].mxu0
        %3542 = vmatprep.mubr.bf16.mxu0 %v2636
        %3543 = vmatmul.mubr.bf16.gmra.mrb[0].mxu0 %v2635
        %v3544 = vpop.f32.mrb[0].mxu0
        %v3545 = vadd.f32 %v3384, %v3544
        %v3546 = vpop.f32.mrb[0].mxu0
        %v3547 = vpop.f32.mrb[0].mxu0
        %v3548 = vadd.f32 %v3387, %v3547
        %v3549 = vpop.f32.mrb[0].mxu0
        %3550 = vmatprep.mubr.bf16.mxu0 %v2645
        %3551 = vmatmul.mubr.bf16.gmra.mrb[0].mxu0 %v2644
        %v3552 = vpop.f32.mrb[0].mxu0
        %v3553 = vadd.f32 %v3392, %v3552
        %v3554 = vpop.f32.mrb[0].mxu0
        %v3555 = vpop.f32.mrb[0].mxu0
        %v3556 = vadd.f32 %v3395, %v3555
        %v3557 = vpop.f32.mrb[0].mxu0
        %3558 = vmatprep.mubr.bf16.mxu0 %v2654
        %3559 = vmatmul.mubr.bf16.gmra.mrb[0].mxu0 %v2653
        %v3560 = vpop.f32.mrb[0].mxu0
        %v3561 = vadd.f32 %v3400, %v3560
        %v3562 = vpop.f32.mrb[0].mxu0
        %v3563 = vpop.f32.mrb[0].mxu0
        %v3564 = vadd.f32 %v3403, %v3563
        %v3565 = vpop.f32.mrb[0].mxu0
        %3566 = vmatprep.mubr.bf16.mxu0 %v2663
        %3567 = vmatmul.mubr.bf16.gmra.mrb[0].mxu0 %v2662
        %v3568 = vpop.f32.mrb[0].mxu0
        %v3569 = vadd.f32 %v3408, %v3568
        %v3570 = vpop.f32.mrb[0].mxu0
        %v3571 = vpop.f32.mrb[0].mxu0
        %v3572 = vadd.f32 %v3411, %v3571
        %v3573 = vpop.f32.mrb[0].mxu0
        %3574 = vmatprep.mubr.bf16.mxu0 %v2672
        %3575 = vmatmul.mubr.bf16.gmra.mrb[0].mxu0 %v2671
        %v3576 = vpop.f32.mrb[0].mxu0
        %v3577 = vadd.f32 %v3416, %v3576
        %v3578 = vpop.f32.mrb[0].mxu0
        %v3579 = vpop.f32.mrb[0].mxu0
        %v3580 = vadd.f32 %v3419, %v3579
        %v3581 = vpop.f32.mrb[0].mxu0
        %3582 = vdwg.mxu0
        %3583 = vmatprep.subr.bf16.mxu0 0
        %3584 = vmatpush1.bf16.msra.mxu0 %v3149
        %3585 = vmatprep.subr.bf16.mxu0 0
        %3586 = vmatpush1.bf16.msra.mxu0 %v3150
        %3587 = vmatprep.subr.bf16.mxu0 0
        %3588 = vmatpush1.bf16.msra.mxu0 %v3151
        %3589 = vmatprep.subr.bf16.mxu0 0
        %3590 = vmatpush1.bf16.msra.mxu0 %v3152
        %3591 = vmatprep.subr.bf16.mxu0 0
        %3592 = vmatpush1.bf16.msra.mxu0 %v3153
        %3593 = vmatprep.subr.bf16.mxu0 0
        %3594 = vmatpush1.bf16.msra.mxu0 %v3154
        %3595 = vmatprep.subr.bf16.mxu0 0
        %3596 = vmatpush1.bf16.msra.mxu0 %v3155
        %3597 = vmatprep.subr.bf16.mxu0 0
        %3598 = vmatpush1.bf16.msra.mxu0 %v3156
        %3599 = vmatprep.subr.bf16.mxu0 0
        %3600 = vmatpush1.bf16.msra.mxu0 %v3157
        %3601 = vmatprep.subr.bf16.mxu0 0
        %3602 = vmatpush1.bf16.msra.mxu0 %v3158
        %3603 = vmatprep.subr.bf16.mxu0 0
        %3604 = vmatpush1.bf16.msra.mxu0 %v3159
        %3605 = vmatprep.subr.bf16.mxu0 0
        %3606 = vmatpush1.bf16.msra.mxu0 %v3160
        %3607 = vmatprep.subr.bf16.mxu0 0
        %3608 = vmatpush1.bf16.msra.mxu0 %v3161
        %3609 = vmatprep.subr.bf16.mxu0 0
        %3610 = vmatpush1.bf16.msra.mxu0 %v3162
        %3611 = vmatprep.subr.bf16.mxu0 0
        %3612 = vmatpush1.bf16.msra.mxu0 %v3163
        %3613 = vmatprep.subr.bf16.mxu0 0
        %3614 = vmatpush1.bf16.msra.mxu0 %v3164
        %3615 = vmatprep.mubr.bf16.mxu0 %v2539
        %3616 = vmatmul.mubr.bf16.gmra.mrb[0].mxu0 %v2538
        %v3617 = vpop.f32.mrb[0].mxu0
        %v3618 = vadd.f32 %v3457, %v3617
        %v3619 = vpop.f32.mrb[0].mxu0
        %v3620 = vpop.f32.mrb[0].mxu0
        %v3621 = vadd.f32 %v3460, %v3620
        %v3622 = vpop.f32.mrb[0].mxu0
        %3623 = vmatprep.mubr.bf16.mxu0 %v2548
        %3624 = vmatmul.mubr.bf16.gmra.mrb[0].mxu0 %v2547
        %v3625 = vpop.f32.mrb[0].mxu0
        %v3626 = vadd.f32 %v3465, %v3625
        %v3627 = vpop.f32.mrb[0].mxu0
        %v3628 = vpop.f32.mrb[0].mxu0
        %v3629 = vadd.f32 %v3468, %v3628
        %v3630 = vpop.f32.mrb[0].mxu0
        %3631 = vmatprep.mubr.bf16.mxu0 %v2557
        %3632 = vmatmul.mubr.bf16.gmra.mrb[0].mxu0 %v2556
        %v3633 = vpop.f32.mrb[0].mxu0
        %v3634 = vadd.f32 %v3473, %v3633
        %v3635 = vpop.f32.mrb[0].mxu0
        %v3636 = vpop.f32.mrb[0].mxu0
        %v3637 = vadd.f32 %v3476, %v3636
        %v3638 = vpop.f32.mrb[0].mxu0
        %3639 = vmatprep.mubr.bf16.mxu0 %v2566
        %3640 = vmatmul.mubr.bf16.gmra.mrb[0].mxu0 %v2565
        %v3641 = vpop.f32.mrb[0].mxu0
        %v3642 = vadd.f32 %v3481, %v3641
        %v3643 = vpop.f32.mrb[0].mxu0
        %v3644 = vpop.f32.mrb[0].mxu0
        %v3645 = vadd.f32 %v3484, %v3644
        %v3646 = vpop.f32.mrb[0].mxu0
        %3647 = vmatprep.mubr.bf16.mxu0 %v2575
        %3648 = vmatmul.mubr.bf16.gmra.mrb[0].mxu0 %v2574
        %v3649 = vpop.f32.mrb[0].mxu0
        %v3650 = vadd.f32 %v3489, %v3649
        %v3651 = vpop.f32.mrb[0].mxu0
        %v3652 = vpop.f32.mrb[0].mxu0
        %v3653 = vadd.f32 %v3492, %v3652
        %v3654 = vpop.f32.mrb[0].mxu0
        %3655 = vmatprep.mubr.bf16.mxu0 %v2584
        %3656 = vmatmul.mubr.bf16.gmra.mrb[0].mxu0 %v2583
        %v3657 = vpop.f32.mrb[0].mxu0
        %v3658 = vadd.f32 %v3497, %v3657
        %v3659 = vpop.f32.mrb[0].mxu0
        %v3660 = vpop.f32.mrb[0].mxu0
        %v3661 = vadd.f32 %v3500, %v3660
        %v3662 = vpop.f32.mrb[0].mxu0
        %3663 = vmatprep.mubr.bf16.mxu0 %v2593
        %3664 = vmatmul.mubr.bf16.gmra.mrb[0].mxu0 %v2592
        %v3665 = vpop.f32.mrb[0].mxu0
        %v3666 = vadd.f32 %v3505, %v3665
        %v3667 = vpop.f32.mrb[0].mxu0
        %v3668 = vpop.f32.mrb[0].mxu0
        %v3669 = vadd.f32 %v3508, %v3668
        %v3670 = vpop.f32.mrb[0].mxu0
        %3671 = vmatprep.mubr.bf16.mxu0 %v2602
        %3672 = vmatmul.mubr.bf16.gmra.mrb[0].mxu0 %v2601
        %v3673 = vpop.f32.mrb[0].mxu0
        %v3674 = vadd.f32 %v3513, %v3673
        %v3675 = vpop.f32.mrb[0].mxu0
        %v3676 = vpop.f32.mrb[0].mxu0
        %v3677 = vadd.f32 %v3516, %v3676
        %v3678 = vpop.f32.mrb[0].mxu0
        %3679 = vmatprep.mubr.bf16.mxu0 %v2611
        %3680 = vmatmul.mubr.bf16.gmra.mrb[0].mxu0 %v2610
        %v3681 = vpop.f32.mrb[0].mxu0
        %v3682 = vadd.f32 %v3521, %v3681
        %v3683 = vpop.f32.mrb[0].mxu0
        %v3684 = vpop.f32.mrb[0].mxu0
        %v3685 = vadd.f32 %v3524, %v3684
        %v3686 = vpop.f32.mrb[0].mxu0
        %3687 = vmatprep.mubr.bf16.mxu0 %v2620
        %3688 = vmatmul.mubr.bf16.gmra.mrb[0].mxu0 %v2619
        %v3689 = vpop.f32.mrb[0].mxu0
        %v3690 = vadd.f32 %v3529, %v3689
        %v3691 = vpop.f32.mrb[0].mxu0
        %v3692 = vpop.f32.mrb[0].mxu0
        %v3693 = vadd.f32 %v3532, %v3692
        %v3694 = vpop.f32.mrb[0].mxu0
        %3695 = vmatprep.mubr.bf16.mxu0 %v2629
        %3696 = vmatmul.mubr.bf16.gmra.mrb[0].mxu0 %v2628
        %v3697 = vpop.f32.mrb[0].mxu0
        %v3698 = vadd.f32 %v3537, %v3697
        %v3699 = vpop.f32.mrb[0].mxu0
        %v3700 = vpop.f32.mrb[0].mxu0
        %v3701 = vadd.f32 %v3540, %v3700
        %v3702 = vpop.f32.mrb[0].mxu0
        %3703 = vmatprep.mubr.bf16.mxu0 %v2638
        %3704 = vmatmul.mubr.bf16.gmra.mrb[0].mxu0 %v2637
        %v3705 = vpop.f32.mrb[0].mxu0
        %v3706 = vadd.f32 %v3545, %v3705
        %v3707 = vpop.f32.mrb[0].mxu0
        %v3708 = vpop.f32.mrb[0].mxu0
        %v3709 = vadd.f32 %v3548, %v3708
        %v3710 = vpop.f32.mrb[0].mxu0
        %3711 = vmatprep.mubr.bf16.mxu0 %v2647
        %3712 = vmatmul.mubr.bf16.gmra.mrb[0].mxu0 %v2646
        %v3713 = vpop.f32.mrb[0].mxu0
        %v3714 = vadd.f32 %v3553, %v3713
        %v3715 = vpop.f32.mrb[0].mxu0
        %v3716 = vpop.f32.mrb[0].mxu0
        %v3717 = vadd.f32 %v3556, %v3716
        %v3718 = vpop.f32.mrb[0].mxu0
        %3719 = vmatprep.mubr.bf16.mxu0 %v2656
        %3720 = vmatmul.mubr.bf16.gmra.mrb[0].mxu0 %v2655
        %v3721 = vpop.f32.mrb[0].mxu0
        %v3722 = vadd.f32 %v3561, %v3721
        %v3723 = vpop.f32.mrb[0].mxu0
        %v3724 = vpop.f32.mrb[0].mxu0
        %v3725 = vadd.f32 %v3564, %v3724
        %v3726 = vpop.f32.mrb[0].mxu0
        %3727 = vmatprep.mubr.bf16.mxu0 %v2665
        %3728 = vmatmul.mubr.bf16.gmra.mrb[0].mxu0 %v2664
        %v3729 = vpop.f32.mrb[0].mxu0
        %v3730 = vadd.f32 %v3569, %v3729
        %v3731 = vpop.f32.mrb[0].mxu0
        %v3732 = vpop.f32.mrb[0].mxu0
        %v3733 = vadd.f32 %v3572, %v3732
        %v3734 = vpop.f32.mrb[0].mxu0
        %3735 = vmatprep.mubr.bf16.mxu0 %v2674
        %3736 = vmatmul.mubr.bf16.gmra.mrb[0].mxu0 %v2673
        %v3737 = vpop.f32.mrb[0].mxu0
        %v3738 = vadd.f32 %v3577, %v3737
        %v3739 = vpop.f32.mrb[0].mxu0
        %v3740 = vpop.f32.mrb[0].mxu0
        %v3741 = vadd.f32 %v3580, %v3740
        %v3742 = vpop.f32.mrb[0].mxu0
        %3743 = vdwg.mxu0
        %3744 = vmatprep.subr.bf16.mxu0 0
        %3745 = vmatpush1.bf16.msra.mxu0 %v3165
        %3746 = vmatprep.subr.bf16.mxu0 0
        %3747 = vmatpush1.bf16.msra.mxu0 %v3166
        %3748 = vmatprep.subr.bf16.mxu0 0
        %3749 = vmatpush1.bf16.msra.mxu0 %v3167
        %3750 = vmatprep.subr.bf16.mxu0 0
        %3751 = vmatpush1.bf16.msra.mxu0 %v3168
        %3752 = vmatprep.subr.bf16.mxu0 0
        %3753 = vmatpush1.bf16.msra.mxu0 %v3169
        %3754 = vmatprep.subr.bf16.mxu0 0
        %3755 = vmatpush1.bf16.msra.mxu0 %v3170
        %3756 = vmatprep.subr.bf16.mxu0 0
        %3757 = vmatpush1.bf16.msra.mxu0 %v3171
        %3758 = vmatprep.subr.bf16.mxu0 0
        %3759 = vmatpush1.bf16.msra.mxu0 %v3172
        %3760 = vmatprep.subr.bf16.mxu0 0
        %3761 = vmatpush1.bf16.msra.mxu0 %v3173
        %3762 = vmatprep.subr.bf16.mxu0 0
        %3763 = vmatpush1.bf16.msra.mxu0 %v3174
        %3764 = vmatprep.subr.bf16.mxu0 0
        %3765 = vmatpush1.bf16.msra.mxu0 %v3175
        %3766 = vmatprep.subr.bf16.mxu0 0
        %3767 = vmatpush1.bf16.msra.mxu0 %v3176
        %3768 = vmatprep.subr.bf16.mxu0 0
        %3769 = vmatpush1.bf16.msra.mxu0 %v3177
        %3770 = vmatprep.subr.bf16.mxu0 0
        %3771 = vmatpush1.bf16.msra.mxu0 %v3178
        %3772 = vmatprep.subr.bf16.mxu0 0
        %3773 = vmatpush1.bf16.msra.mxu0 %v3179
        %3774 = vmatprep.subr.bf16.mxu0 0
        %3775 = vmatpush1.bf16.msra.mxu0 %v3180
        %3776 = vmatprep.mubr.bf16.mxu0 %v2541
        %3777 = vmatmul.mubr.bf16.gmra.mrb[0].mxu0 %v2540
        %v3778 = vpop.f32.mrb[0].mxu0
        %v3779 = vadd.f32 %v3618, %v3778
        %v3780 = vpop.f32.mrb[0].mxu0
        %v3781 = vpop.f32.mrb[0].mxu0
        %v3782 = vadd.f32 %v3621, %v3781
        %v3783 = vpop.f32.mrb[0].mxu0
        %3784 = vmatprep.mubr.bf16.mxu0 %v2550
        %3785 = vmatmul.mubr.bf16.gmra.mrb[0].mxu0 %v2549
        %v3786 = vpop.f32.mrb[0].mxu0
        %v3787 = vadd.f32 %v3626, %v3786
        %v3788 = vpop.f32.mrb[0].mxu0
        %v3789 = vpop.f32.mrb[0].mxu0
        %v3790 = vadd.f32 %v3629, %v3789
        %v3791 = vpop.f32.mrb[0].mxu0
        %3792 = vmatprep.mubr.bf16.mxu0 %v2559
        %3793 = vmatmul.mubr.bf16.gmra.mrb[0].mxu0 %v2558
        %v3794 = vpop.f32.mrb[0].mxu0
        %v3795 = vadd.f32 %v3634, %v3794
        %v3796 = vpop.f32.mrb[0].mxu0
        %v3797 = vpop.f32.mrb[0].mxu0
        %v3798 = vadd.f32 %v3637, %v3797
        %v3799 = vpop.f32.mrb[0].mxu0
        %3800 = vmatprep.mubr.bf16.mxu0 %v2568
        %3801 = vmatmul.mubr.bf16.gmra.mrb[0].mxu0 %v2567
        %v3802 = vpop.f32.mrb[0].mxu0
        %v3803 = vadd.f32 %v3642, %v3802
        %v3804 = vpop.f32.mrb[0].mxu0
        %v3805 = vpop.f32.mrb[0].mxu0
        %v3806 = vadd.f32 %v3645, %v3805
        %v3807 = vpop.f32.mrb[0].mxu0
        %3808 = vmatprep.mubr.bf16.mxu0 %v2577
        %3809 = vmatmul.mubr.bf16.gmra.mrb[0].mxu0 %v2576
        %v3810 = vpop.f32.mrb[0].mxu0
        %v3811 = vadd.f32 %v3650, %v3810
        %v3812 = vpop.f32.mrb[0].mxu0
        %v3813 = vpop.f32.mrb[0].mxu0
        %v3814 = vadd.f32 %v3653, %v3813
        %v3815 = vpop.f32.mrb[0].mxu0
        %3816 = vmatprep.mubr.bf16.mxu0 %v2586
        %3817 = vmatmul.mubr.bf16.gmra.mrb[0].mxu0 %v2585
        %v3818 = vpop.f32.mrb[0].mxu0
        %v3819 = vadd.f32 %v3658, %v3818
        %v3820 = vpop.f32.mrb[0].mxu0
        %v3821 = vpop.f32.mrb[0].mxu0
        %v3822 = vadd.f32 %v3661, %v3821
        %v3823 = vpop.f32.mrb[0].mxu0
        %3824 = vmatprep.mubr.bf16.mxu0 %v2595
        %3825 = vmatmul.mubr.bf16.gmra.mrb[0].mxu0 %v2594
        %v3826 = vpop.f32.mrb[0].mxu0
        %v3827 = vadd.f32 %v3666, %v3826
        %v3828 = vpop.f32.mrb[0].mxu0
        %v3829 = vpop.f32.mrb[0].mxu0
        %v3830 = vadd.f32 %v3669, %v3829
        %v3831 = vpop.f32.mrb[0].mxu0
        %3832 = vmatprep.mubr.bf16.mxu0 %v2604
        %3833 = vmatmul.mubr.bf16.gmra.mrb[0].mxu0 %v2603
        %v3834 = vpop.f32.mrb[0].mxu0
        %v3835 = vadd.f32 %v3674, %v3834
        %v3836 = vpop.f32.mrb[0].mxu0
        %v3837 = vpop.f32.mrb[0].mxu0
        %v3838 = vadd.f32 %v3677, %v3837
        %v3839 = vpop.f32.mrb[0].mxu0
        %3840 = vmatprep.mubr.bf16.mxu0 %v2613
        %3841 = vmatmul.mubr.bf16.gmra.mrb[0].mxu0 %v2612
        %v3842 = vpop.f32.mrb[0].mxu0
        %v3843 = vadd.f32 %v3682, %v3842
        %v3844 = vpop.f32.mrb[0].mxu0
        %v3845 = vpop.f32.mrb[0].mxu0
        %v3846 = vadd.f32 %v3685, %v3845
        %v3847 = vpop.f32.mrb[0].mxu0
        %3848 = vmatprep.mubr.bf16.mxu0 %v2622
        %3849 = vmatmul.mubr.bf16.gmra.mrb[0].mxu0 %v2621
        %v3850 = vpop.f32.mrb[0].mxu0
        %v3851 = vadd.f32 %v3690, %v3850
        %v3852 = vpop.f32.mrb[0].mxu0
        %v3853 = vpop.f32.mrb[0].mxu0
        %v3854 = vadd.f32 %v3693, %v3853
        %v3855 = vpop.f32.mrb[0].mxu0
        %3856 = vmatprep.mubr.bf16.mxu0 %v2631
        %3857 = vmatmul.mubr.bf16.gmra.mrb[0].mxu0 %v2630
        %v3858 = vpop.f32.mrb[0].mxu0
        %v3859 = vadd.f32 %v3698, %v3858
        %v3860 = vpop.f32.mrb[0].mxu0
        %v3861 = vpop.f32.mrb[0].mxu0
        %v3862 = vadd.f32 %v3701, %v3861
        %v3863 = vpop.f32.mrb[0].mxu0
        %3864 = vmatprep.mubr.bf16.mxu0 %v2640
        %3865 = vmatmul.mubr.bf16.gmra.mrb[0].mxu0 %v2639
        %v3866 = vpop.f32.mrb[0].mxu0
        %v3867 = vadd.f32 %v3706, %v3866
        %v3868 = vpop.f32.mrb[0].mxu0
        %v3869 = vpop.f32.mrb[0].mxu0
        %v3870 = vadd.f32 %v3709, %v3869
        %v3871 = vpop.f32.mrb[0].mxu0
        %3872 = vmatprep.mubr.bf16.mxu0 %v2649
        %3873 = vmatmul.mubr.bf16.gmra.mrb[0].mxu0 %v2648
        %v3874 = vpop.f32.mrb[0].mxu0
        %v3875 = vadd.f32 %v3714, %v3874
        %v3876 = vpop.f32.mrb[0].mxu0
        %v3877 = vpop.f32.mrb[0].mxu0
        %v3878 = vadd.f32 %v3717, %v3877
        %v3879 = vpop.f32.mrb[0].mxu0
        %3880 = vmatprep.mubr.bf16.mxu0 %v2658
        %3881 = vmatmul.mubr.bf16.gmra.mrb[0].mxu0 %v2657
        %v3882 = vpop.f32.mrb[0].mxu0
        %v3883 = vadd.f32 %v3722, %v3882
        %v3884 = vpop.f32.mrb[0].mxu0
        %v3885 = vpop.f32.mrb[0].mxu0
        %v3886 = vadd.f32 %v3725, %v3885
        %v3887 = vpop.f32.mrb[0].mxu0
        %3888 = vmatprep.mubr.bf16.mxu0 %v2667
        %3889 = vmatmul.mubr.bf16.gmra.mrb[0].mxu0 %v2666
        %v3890 = vpop.f32.mrb[0].mxu0
        %v3891 = vadd.f32 %v3730, %v3890
        %v3892 = vpop.f32.mrb[0].mxu0
        %v3893 = vpop.f32.mrb[0].mxu0
        %v3894 = vadd.f32 %v3733, %v3893
        %v3895 = vpop.f32.mrb[0].mxu0
        %3896 = vmatprep.mubr.bf16.mxu0 %v2676
        %3897 = vmatmul.mubr.bf16.gmra.mrb[0].mxu0 %v2675
        %v3898 = vpop.f32.mrb[0].mxu0
        %v3899 = vadd.f32 %v3738, %v3898
        %v3900 = vpop.f32.mrb[0].mxu0
        %v3901 = vpop.f32.mrb[0].mxu0
        %v3902 = vadd.f32 %v3741, %v3901
        %v3903 = vpop.f32.mrb[0].mxu0
        %3904 = vdwg.mxu0
        %3905 = vmatprep.subr.bf16.mxu0 0
        %3906 = vmatpush1.bf16.msra.mxu0 %v3181
        %3907 = vmatprep.subr.bf16.mxu0 0
        %3908 = vmatpush1.bf16.msra.mxu0 %v3182
        %3909 = vmatprep.subr.bf16.mxu0 0
        %3910 = vmatpush1.bf16.msra.mxu0 %v3183
        %3911 = vmatprep.subr.bf16.mxu0 0
        %3912 = vmatpush1.bf16.msra.mxu0 %v3184
        %3913 = vmatprep.subr.bf16.mxu0 0
        %3914 = vmatpush1.bf16.msra.mxu0 %v3185
        %3915 = vmatprep.subr.bf16.mxu0 0
        %3916 = vmatpush1.bf16.msra.mxu0 %v3186
        %3917 = vmatprep.subr.bf16.mxu0 0
        %3918 = vmatpush1.bf16.msra.mxu0 %v3187
        %3919 = vmatprep.subr.bf16.mxu0 0
        %3920 = vmatpush1.bf16.msra.mxu0 %v3188
        %3921 = vmatprep.subr.bf16.mxu0 0
        %3922 = vmatpush1.bf16.msra.mxu0 0
        %3923 = vmatprep.subr.bf16.mxu0 0
        %3924 = vmatpush1.bf16.msra.mxu0 0
        %3925 = vmatprep.subr.bf16.mxu0 0
        %3926 = vmatpush1.bf16.msra.mxu0 0
        %3927 = vmatprep.subr.bf16.mxu0 0
        %3928 = vmatpush1.bf16.msra.mxu0 0
        %3929 = vmatprep.subr.bf16.mxu0 0
        %3930 = vmatpush1.bf16.msra.mxu0 0
        %3931 = vmatprep.subr.bf16.mxu0 0
        %3932 = vmatpush1.bf16.msra.mxu0 0
        %3933 = vmatprep.subr.bf16.mxu0 0
        %3934 = vmatpush1.bf16.msra.mxu0 0
        %3935 = vmatprep.subr.bf16.mxu0 0
        %3936 = vmatpush1.bf16.msra.mxu0 0
        %3937 = vmatprep.mubr.bf16.mxu0 0
        %3938 = vmatmul.mubr.bf16.gmra.mrb[0].mxu0 %v2542
        %v3939 = vpop.f32.mrb[0].mxu0
        %v3940 = vadd.f32 %v3779, %v3939
        %v3941 = vpop.f32.mrb[0].mxu0
        %v3942 = vpop.f32.mrb[0].mxu0
        %v3943 = vadd.f32 %v3782, %v3942
        %v3944 = vpop.f32.mrb[0].mxu0
        %3945 = vmatprep.mubr.bf16.mxu0 0
        %3946 = vmatmul.mubr.bf16.gmra.mrb[0].mxu0 %v2551
        %v3947 = vpop.f32.mrb[0].mxu0
        %v3948 = vadd.f32 %v3787, %v3947
        %v3949 = vpop.f32.mrb[0].mxu0
        %v3950 = vpop.f32.mrb[0].mxu0
        %v3951 = vadd.f32 %v3790, %v3950
        %v3952 = vpop.f32.mrb[0].mxu0
        %3953 = vmatprep.mubr.bf16.mxu0 0
        %3954 = vmatmul.mubr.bf16.gmra.mrb[0].mxu0 %v2560
        %v3955 = vpop.f32.mrb[0].mxu0
        %v3956 = vadd.f32 %v3795, %v3955
        %v3957 = vpop.f32.mrb[0].mxu0
        %v3958 = vpop.f32.mrb[0].mxu0
        %v3959 = vadd.f32 %v3798, %v3958
        %v3960 = vpop.f32.mrb[0].mxu0
        %3961 = vmatprep.mubr.bf16.mxu0 0
        %3962 = vmatmul.mubr.bf16.gmra.mrb[0].mxu0 %v2569
        %v3963 = vpop.f32.mrb[0].mxu0
        %v3964 = vadd.f32 %v3803, %v3963
        %v3965 = vpop.f32.mrb[0].mxu0
        %v3966 = vpop.f32.mrb[0].mxu0
        %v3967 = vadd.f32 %v3806, %v3966
        %v3968 = vpop.f32.mrb[0].mxu0
        %3969 = vmatprep.mubr.bf16.mxu0 0
        %3970 = vmatmul.mubr.bf16.gmra.mrb[0].mxu0 %v2578
        %v3971 = vpop.f32.mrb[0].mxu0
        %v3972 = vadd.f32 %v3811, %v3971
        %v3973 = vpop.f32.mrb[0].mxu0
        %v3974 = vpop.f32.mrb[0].mxu0
        %v3975 = vadd.f32 %v3814, %v3974
        %v3976 = vpop.f32.mrb[0].mxu0
        %3977 = vmatprep.mubr.bf16.mxu0 0
        %3978 = vmatmul.mubr.bf16.gmra.mrb[0].mxu0 %v2587
        %v3979 = vpop.f32.mrb[0].mxu0
        %v3980 = vadd.f32 %v3819, %v3979
        %v3981 = vpop.f32.mrb[0].mxu0
        %v3982 = vpop.f32.mrb[0].mxu0
        %v3983 = vadd.f32 %v3822, %v3982
        %v3984 = vpop.f32.mrb[0].mxu0
        %3985 = vmatprep.mubr.bf16.mxu0 0
        %3986 = vmatmul.mubr.bf16.gmra.mrb[0].mxu0 %v2596
        %v3987 = vpop.f32.mrb[0].mxu0
        %v3988 = vadd.f32 %v3827, %v3987
        %v3989 = vpop.f32.mrb[0].mxu0
        %v3990 = vpop.f32.mrb[0].mxu0
        %v3991 = vadd.f32 %v3830, %v3990
        %v3992 = vpop.f32.mrb[0].mxu0
        %3993 = vmatprep.mubr.bf16.mxu0 0
        %3994 = vmatmul.mubr.bf16.gmra.mrb[0].mxu0 %v2605
        %v3995 = vpop.f32.mrb[0].mxu0
        %v3996 = vadd.f32 %v3835, %v3995
        %v3997 = vpop.f32.mrb[0].mxu0
        %v3998 = vpop.f32.mrb[0].mxu0
        %v3999 = vadd.f32 %v3838, %v3998
        %v4000 = vpop.f32.mrb[0].mxu0
        %4001 = vmatprep.mubr.bf16.mxu0 0
        %4002 = vmatmul.mubr.bf16.gmra.mrb[0].mxu0 %v2614
        %v4003 = vpop.f32.mrb[0].mxu0
        %v4004 = vadd.f32 %v3843, %v4003
        %v4005 = vpop.f32.mrb[0].mxu0
        %v4006 = vpop.f32.mrb[0].mxu0
        %v4007 = vadd.f32 %v3846, %v4006
        %v4008 = vpop.f32.mrb[0].mxu0
        %4009 = vmatprep.mubr.bf16.mxu0 0
        %4010 = vmatmul.mubr.bf16.gmra.mrb[0].mxu0 %v2623
        %v4011 = vpop.f32.mrb[0].mxu0
        %v4012 = vadd.f32 %v3851, %v4011
        %v4013 = vpop.f32.mrb[0].mxu0
        %v4014 = vpop.f32.mrb[0].mxu0
        %v4015 = vadd.f32 %v3854, %v4014
        %v4016 = vpop.f32.mrb[0].mxu0
        %4017 = vmatprep.mubr.bf16.mxu0 0
        %4018 = vmatmul.mubr.bf16.gmra.mrb[0].mxu0 %v2632
        %v4019 = vpop.f32.mrb[0].mxu0
        %v4020 = vadd.f32 %v3859, %v4019
        %v4021 = vpop.f32.mrb[0].mxu0
        %v4022 = vpop.f32.mrb[0].mxu0
        %v4023 = vadd.f32 %v3862, %v4022
        %v4024 = vpop.f32.mrb[0].mxu0
        %4025 = vmatprep.mubr.bf16.mxu0 0
        %4026 = vmatmul.mubr.bf16.gmra.mrb[0].mxu0 %v2641
        %v4027 = vpop.f32.mrb[0].mxu0
        %v4028 = vadd.f32 %v3867, %v4027
        %v4029 = vpop.f32.mrb[0].mxu0
        %v4030 = vpop.f32.mrb[0].mxu0
        %v4031 = vadd.f32 %v3870, %v4030
        %v4032 = vpop.f32.mrb[0].mxu0
        %4033 = vmatprep.mubr.bf16.mxu0 0
        %4034 = vmatmul.mubr.bf16.gmra.mrb[0].mxu0 %v2650
        %v4035 = vpop.f32.mrb[0].mxu0
        %v4036 = vadd.f32 %v3875, %v4035
        %v4037 = vpop.f32.mrb[0].mxu0
        %v4038 = vpop.f32.mrb[0].mxu0
        %v4039 = vadd.f32 %v3878, %v4038
        %v4040 = vpop.f32.mrb[0].mxu0
        %4041 = vmatprep.mubr.bf16.mxu0 0
        %4042 = vmatmul.mubr.bf16.gmra.mrb[0].mxu0 %v2659
        %v4043 = vpop.f32.mrb[0].mxu0
        %v4044 = vadd.f32 %v3883, %v4043
        %v4045 = vpop.f32.mrb[0].mxu0
        %v4046 = vpop.f32.mrb[0].mxu0
        %v4047 = vadd.f32 %v3886, %v4046
        %v4048 = vpop.f32.mrb[0].mxu0
        %4049 = vmatprep.mubr.bf16.mxu0 0
        %4050 = vmatmul.mubr.bf16.gmra.mrb[0].mxu0 %v2668
        %v4051 = vpop.f32.mrb[0].mxu0
        %v4052 = vadd.f32 %v3891, %v4051
        %v4053 = vpop.f32.mrb[0].mxu0
        %v4054 = vpop.f32.mrb[0].mxu0
        %v4055 = vadd.f32 %v3894, %v4054
        %v4056 = vpop.f32.mrb[0].mxu0
        %4057 = vmatprep.mubr.bf16.mxu0 0
        %4058 = vmatmul.mubr.bf16.gmra.mrb[0].mxu0 %v2677
        %v4059 = vpop.f32.mrb[0].mxu0
        %v4060 = vadd.f32 %v3899, %v4059
        %v4061 = vpop.f32.mrb[0].mxu0
        %v4062 = vpop.f32.mrb[0].mxu0
        %v4063 = vadd.f32 %v3902, %v4062
        %v4064 = vpop.f32.mrb[0].mxu0
        %4065 = vdwg.mxu0
        %s4066 = sld [smem:[#allocation4 + $0x1]]
        %vm4067 = vcmp.ge.f32.partialorder %v3940, 0.0
        %vm4068 = vcmp.ge.f32.partialorder %v3943, 0.0
        %vm4069 = vcmp.ge.f32.partialorder %v3948, 0.0
        %vm4070 = vcmp.ge.f32.partialorder %v3951, 0.0
        %vm4071 = vcmp.ge.f32.partialorder %v3956, 0.0
        %vm4072 = vcmp.ge.f32.partialorder %v3959, 0.0
        %vm4073 = vcmp.ge.f32.partialorder %v3964, 0.0
        %vm4074 = vcmp.ge.f32.partialorder %v3967, 0.0
        %vm4075 = vcmp.ge.f32.partialorder %v3972, 0.0
        %vm4076 = vcmp.ge.f32.partialorder %v3975, 0.0
        %vm4077 = vcmp.ge.f32.partialorder %v3980, 0.0
        %vm4078 = vcmp.ge.f32.partialorder %v3983, 0.0
        %vm4079 = vcmp.ge.f32.partialorder %v3988, 0.0
        %vm4080 = vcmp.ge.f32.partialorder %v3991, 0.0
        %vm4081 = vcmp.ge.f32.partialorder %v3996, 0.0
        %vm4082 = vcmp.ge.f32.partialorder %v3999, 0.0
        %vm4083 = vcmp.ge.f32.partialorder %v4004, 0.0
        %vm4084 = vcmp.ge.f32.partialorder %v4007, 0.0
        %vm4085 = vcmp.ge.f32.partialorder %v4012, 0.0
        %vm4086 = vcmp.ge.f32.partialorder %v4015, 0.0
        %vm4087 = vcmp.ge.f32.partialorder %v4020, 0.0
        %vm4088 = vcmp.ge.f32.partialorder %v4023, 0.0
        %vm4089 = vcmp.ge.f32.partialorder %v4028, 0.0
        %vm4090 = vcmp.ge.f32.partialorder %v4031, 0.0
        %vm4091 = vcmp.ge.f32.partialorder %v4036, 0.0
        %vm4092 = vcmp.ge.f32.partialorder %v4039, 0.0
        %vm4093 = vcmp.ge.f32.partialorder %v4044, 0.0
        %vm4094 = vcmp.ge.f32.partialorder %v4047, 0.0
        %vm4095 = vcmp.ge.f32.partialorder %v4052, 0.0
        %vm4096 = vcmp.ge.f32.partialorder %v4055, 0.0
        %vm4097 = vcmp.ge.f32.partialorder %v4060, 0.0
        %vm4098 = vcmp.ge.f32.partialorder %v4063, 0.0
        %v4099 = vstv %s4066
        %v4100 = vmul.f32 %v4099, %v3940
        %v4101 = vmul.f32 %v4099, %v3943
        %v4102 = vmul.f32 %v4099, %v3948
        %v4103 = vmul.f32 %v4099, %v3951
        %v4104 = vmul.f32 %v4099, %v3956
        %v4105 = vmul.f32 %v4099, %v3959
        %v4106 = vmul.f32 %v4099, %v3964
        %v4107 = vmul.f32 %v4099, %v3967
        %v4108 = vmul.f32 %v4099, %v3972
        %v4109 = vmul.f32 %v4099, %v3975
        %v4110 = vmul.f32 %v4099, %v3980
        %v4111 = vmul.f32 %v4099, %v3983
        %v4112 = vmul.f32 %v4099, %v3988
        %v4113 = vmul.f32 %v4099, %v3991
        %v4114 = vmul.f32 %v4099, %v3996
        %v4115 = vmul.f32 %v4099, %v3999
        %v4116 = vmul.f32 %v4099, %v4004
        %v4117 = vmul.f32 %v4099, %v4007
        %v4118 = vmul.f32 %v4099, %v4012
        %v4119 = vmul.f32 %v4099, %v4015
        %v4120 = vmul.f32 %v4099, %v4020
        %v4121 = vmul.f32 %v4099, %v4023
        %v4122 = vmul.f32 %v4099, %v4028
        %v4123 = vmul.f32 %v4099, %v4031
        %v4124 = vmul.f32 %v4099, %v4036
        %v4125 = vmul.f32 %v4099, %v4039
        %v4126 = vmul.f32 %v4099, %v4044
        %v4127 = vmul.f32 %v4099, %v4047
        %v4128 = vmul.f32 %v4099, %v4052
        %v4129 = vmul.f32 %v4099, %v4055
        %v4130 = vmul.f32 %v4099, %v4060
        %v4131 = vmul.f32 %v4099, %v4063
        %v4132 = vsel %vm4067, %v3940, %v4100
        %v4133 = vsel %vm4068, %v3943, %v4101
        %v4134 = vsel %vm4069, %v3948, %v4102
        %v4135 = vsel %vm4070, %v3951, %v4103
        %v4136 = vsel %vm4071, %v3956, %v4104
        %v4137 = vsel %vm4072, %v3959, %v4105
        %v4138 = vsel %vm4073, %v3964, %v4106
        %v4139 = vsel %vm4074, %v3967, %v4107
        %v4140 = vsel %vm4075, %v3972, %v4108
        %v4141 = vsel %vm4076, %v3975, %v4109
        %v4142 = vsel %vm4077, %v3980, %v4110
        %v4143 = vsel %vm4078, %v3983, %v4111
        %v4144 = vsel %vm4079, %v3988, %v4112
        %v4145 = vsel %vm4080, %v3991, %v4113
        %v4146 = vsel %vm4081, %v3996, %v4114
        %v4147 = vsel %vm4082, %v3999, %v4115
        %v4148 = vsel %vm4083, %v4004, %v4116
        %v4149 = vsel %vm4084, %v4007, %v4117
        %v4150 = vsel %vm4085, %v4012, %v4118
        %v4151 = vsel %vm4086, %v4015, %v4119
        %v4152 = vsel %vm4087, %v4020, %v4120
        %v4153 = vsel %vm4088, %v4023, %v4121
        %v4154 = vsel %vm4089, %v4028, %v4122
        %v4155 = vsel %vm4090, %v4031, %v4123
        %v4156 = vsel %vm4091, %v4036, %v4124
        %v4157 = vsel %vm4092, %v4039, %v4125
        %v4158 = vsel %vm4093, %v4044, %v4126
        %v4159 = vsel %vm4094, %v4047, %v4127
        %v4160 = vsel %vm4095, %v4052, %v4128
        %v4161 = vsel %vm4096, %v4055, %v4129
        %v4162 = vsel %vm4097, %v4060, %v4130
        %v4163 = vsel %vm4098, %v4063, %v4131
        %v4164 = vld [vmem:[%s9] sm:$0xff]
        %v4165 = vld [vmem:[%s9 + $0x8] sm:$0xff]
        %v4166 = vld [vmem:[%s9 + $0x10] sm:$0xff]
        %v4167 = vld [vmem:[%s9 + $0x18] sm:$0xff]
        %v4168 = vld [vmem:[%s9 + $0x20] sm:$0xff]
        %v4169 = vld [vmem:[%s9 + $0x28] sm:$0xff]
        %v4170 = vld [vmem:[%s9 + $0x30] sm:$0xff]
        %v4171 = vld [vmem:[%s9 + $0x38] sm:$0xff]
        %v4172 = vld [vmem:[%s9 + $0x40] sm:$0xff]
        %v4173 = vld [vmem:[%s9 + $0x48] sm:$0xff]
        %v4174 = vld [vmem:[%s9 + $0x50] sm:$0xff]
        %v4175 = vld [vmem:[%s9 + $0x58] sm:$0xff]
        %v4176 = vld [vmem:[%s9 + $0x60] sm:$0xff]
        %v4177 = vld [vmem:[%s9 + $0x68] sm:$0xff]
        %v4178 = vld [vmem:[%s9 + $0x70] sm:$0xff]
        %v4179 = vld [vmem:[%s9 + $0x78] sm:$0xff]
        %v4180 = vld [vmem:[%s9 + $0x80] sm:$0xff]
        %v4181 = vld [vmem:[%s9 + $0x88] sm:$0xff]
        %v4182 = vld [vmem:[%s9 + $0x90] sm:$0xff]
        %v4183 = vld [vmem:[%s9 + $0x98] sm:$0xff]
        %v4184 = vld [vmem:[%s9 + $0xa0] sm:$0xff]
        %v4185 = vld [vmem:[%s9 + $0xa8] sm:$0xff]
        %v4186 = vld [vmem:[%s9 + $0xb0] sm:$0xff]
        %v4187 = vld [vmem:[%s9 + $0xb8] sm:$0xff]
        %v4188 = vld [vmem:[%s9 + $0xc0] sm:$0xff]
        %v4189 = vld [vmem:[%s9 + $0xc8] sm:$0xff]
        %v4190 = vld [vmem:[%s9 + $0xd0] sm:$0xff]
        %v4191 = vld [vmem:[%s9 + $0xd8] sm:$0xff]
        %v4192 = vld [vmem:[%s9 + $0xe0] sm:$0xff]
        %v4193 = vld [vmem:[%s9 + $0xe8] sm:$0xff]
        %v4194 = vld [vmem:[%s9 + $0xf0] sm:$0xff]
        %v4195 = vld [vmem:[%s9 + $0xf8] sm:$0xff]
        %v4196 = vmul.f32 %v4132, %v4164
        %v4197 = vmul.f32 %v4133, %v4165
        %v4198 = vmul.f32 %v4134, %v4166
        %v4199 = vmul.f32 %v4135, %v4167
        %v4200 = vmul.f32 %v4136, %v4168
        %v4201 = vmul.f32 %v4137, %v4169
        %v4202 = vmul.f32 %v4138, %v4170
        %v4203 = vmul.f32 %v4139, %v4171
        %v4204 = vmul.f32 %v4140, %v4172
        %v4205 = vmul.f32 %v4141, %v4173
        %v4206 = vmul.f32 %v4142, %v4174
        %v4207 = vmul.f32 %v4143, %v4175
        %v4208 = vmul.f32 %v4144, %v4176
        %v4209 = vmul.f32 %v4145, %v4177
        %v4210 = vmul.f32 %v4146, %v4178
        %v4211 = vmul.f32 %v4147, %v4179
        %v4212 = vmul.f32 %v4148, %v4180
        %v4213 = vmul.f32 %v4149, %v4181
        %v4214 = vmul.f32 %v4150, %v4182
        %v4215 = vmul.f32 %v4151, %v4183
        %v4216 = vmul.f32 %v4152, %v4184
        %v4217 = vmul.f32 %v4153, %v4185
        %v4218 = vmul.f32 %v4154, %v4186
        %v4219 = vmul.f32 %v4155, %v4187
        %v4220 = vmul.f32 %v4156, %v4188
        %v4221 = vmul.f32 %v4157, %v4189
        %v4222 = vmul.f32 %v4158, %v4190
        %v4223 = vmul.f32 %v4159, %v4191
        %v4224 = vmul.f32 %v4160, %v4192
        %v4225 = vmul.f32 %v4161, %v4193
        %v4226 = vmul.f32 %v4162, %v4194
        %v4227 = vmul.f32 %v4163, %v4195
        %v4228 = vpack.c.bf16 %v4197, %v4196
        %v4229 = vpack.c.bf16 %v4199, %v4198
        %v4230 = vpack.c.bf16 %v4201, %v4200
        %v4231 = vpack.c.bf16 %v4203, %v4202
        %v4232 = vpack.c.bf16 %v4205, %v4204
        %v4233 = vpack.c.bf16 %v4207, %v4206
        %v4234 = vpack.c.bf16 %v4209, %v4208
        %v4235 = vpack.c.bf16 %v4211, %v4210
        %v4236 = vpack.c.bf16 %v4213, %v4212
        %v4237 = vpack.c.bf16 %v4215, %v4214
        %v4238 = vpack.c.bf16 %v4217, %v4216
        %v4239 = vpack.c.bf16 %v4219, %v4218
        %v4240 = vpack.c.bf16 %v4221, %v4220
        %v4241 = vpack.c.bf16 %v4223, %v4222
        %v4242 = vpack.c.bf16 %v4225, %v4224
        %v4243 = vpack.c.bf16 %v4227, %v4226
        %v4260 = vrot.slane %v4228, 4
        %v4261 = vrot.slane %v4229, 4
        %v4262 = vsel %vm963, %v4260, %v4261
        %v4263 = vrot.slane %v4230, 4
        %v4264 = vsel %vm963, %v4261, %v4263
        %v4265 = vrot.slane %v4231, 4
        %v4266 = vsel %vm963, %v4263, %v4265
        %v4267 = vrot.slane %v4232, 4
        %v4268 = vsel %vm963, %v4265, %v4267
        %v4269 = vrot.slane %v4233, 4
        %v4270 = vsel %vm963, %v4267, %v4269
        %v4271 = vrot.slane %v4234, 4
        %v4272 = vsel %vm963, %v4269, %v4271
        %v4273 = vrot.slane %v4235, 4
        %v4274 = vsel %vm963, %v4271, %v4273
        %v4275 = vrot.slane %v4236, 4
        %v4276 = vsel %vm963, %v4273, %v4275
        %v4277 = vrot.slane %v4237, 4
        %v4278 = vsel %vm963, %v4275, %v4277
        %v4279 = vrot.slane %v4238, 4
        %v4280 = vsel %vm963, %v4277, %v4279
        %v4281 = vrot.slane %v4239, 4
        %v4282 = vsel %vm963, %v4279, %v4281
        %v4283 = vrot.slane %v4240, 4
        %v4284 = vsel %vm963, %v4281, %v4283
        %v4285 = vrot.slane %v4241, 4
        %v4286 = vsel %vm963, %v4283, %v4285
        %v4287 = vrot.slane %v4242, 4
        %v4288 = vsel %vm963, %v4285, %v4287
        %v4289 = vrot.slane %v4243, 4
        %v4290 = vsel %vm963, %v4287, %v4289
        %4308 = vst [vmem:[#allocation2 + $0x8] sm:$0xf0] %v4260
        %4309 = vst [vmem:[#allocation2 + $0x10] sm:$0xff] %v4262
        %4310 = vst [vmem:[#allocation2 + $0x18] sm:$0xff] %v4264
        %4311 = vst [vmem:[#allocation2 + $0x20] sm:$0xff] %v4266
        %4312 = vst [vmem:[#allocation2 + $0x28] sm:$0xff] %v4268
        %4313 = vst [vmem:[#allocation2 + $0x30] sm:$0xff] %v4270
        %4314 = vst [vmem:[#allocation2 + $0x38] sm:$0xff] %v4272
        %4315 = vst [vmem:[#allocation2 + $0x40] sm:$0xff] %v4274
        %4316 = vst [vmem:[#allocation2 + $0x48] sm:$0xff] %v4276
        %4317 = vst [vmem:[#allocation2 + $0x50] sm:$0xff] %v4278
        %4318 = vst [vmem:[#allocation2 + $0x58] sm:$0xff] %v4280
        %4319 = vst [vmem:[#allocation2 + $0x60] sm:$0xff] %v4282
        %4320 = vst [vmem:[#allocation2 + $0x68] sm:$0xff] %v4284
        %4321 = vst [vmem:[#allocation2 + $0x70] sm:$0xff] %v4286
        %4322 = vst [vmem:[#allocation2 + $0x78] sm:$0xff] %v4288
        %4323 = vst [vmem:[#allocation2 + $0x80] sm:$0xff] %v4290
        %4324 = vst [vmem:[#allocation2 + $0x88] sm:$0xf] %v4289
        %v4325 = vld [vmem:[#allocation2] sm:$0xf8]
        %v4326 = vld [vmem:[#allocation2 + $0x8] sm:$0xff]
        %v4327 = vld [vmem:[#allocation2 + $0x10] sm:$0xff]
        %v4328 = vld [vmem:[#allocation2 + $0x18] sm:$0xff]
        %v4329 = vld [vmem:[#allocation2 + $0x20] sm:$0xff]
        %v4330 = vld [vmem:[#allocation2 + $0x28] sm:$0xff]
        %v4331 = vld [vmem:[#allocation2 + $0x30] sm:$0xff]
        %v4332 = vld [vmem:[#allocation2 + $0x38] sm:$0xff]
        %v4333 = vld [vmem:[#allocation2 + $0x40] sm:$0xff]
        %v4334 = vld [vmem:[#allocation2 + $0x48] sm:$0xff]
        %v4335 = vld [vmem:[#allocation2 + $0x50] sm:$0xff]
        %v4336 = vld [vmem:[#allocation2 + $0x58] sm:$0xff]
        %v4337 = vld [vmem:[#allocation2 + $0x60] sm:$0xff]
        %v4338 = vld [vmem:[#allocation2 + $0x68] sm:$0xff]
        %v4339 = vld [vmem:[#allocation2 + $0x70] sm:$0xff]
        %v4340 = vld [vmem:[#allocation2 + $0x78] sm:$0xff]
        %v4341 = vld [vmem:[#allocation2 + $0x80] sm:$0xf]
        %v4343 = vshrl.u32 %v4325, 16
        %v4345 = vrot.slane %v4343, 3
        %v4346 = vshll.u32 %v4325, 16
        %v4348 = vrot.slane %v4346, 4
        %v4349 = vor.u32 %v4345, %v4348
        %v4351 = vshrl.u32 %v4326, 16
        %v4353 = vrot.slane %v4351, 3
        %v4354 = vshll.u32 %v4326, 16
        %v4356 = vrot.slane %v4354, 4
        %v4357 = vor.u32 %v4353, %v4356
        %v4358 = vsel %vm1046, %v4349, %v4357
        %v4360 = vshrl.u32 %v4327, 16
        %v4362 = vrot.slane %v4360, 3
        %v4363 = vshll.u32 %v4327, 16
        %v4365 = vrot.slane %v4363, 4
        %v4366 = vor.u32 %v4362, %v4365
        %v4367 = vsel %vm1046, %v4357, %v4366
        %v4369 = vshrl.u32 %v4328, 16
        %v4371 = vrot.slane %v4369, 3
        %v4372 = vshll.u32 %v4328, 16
        %v4374 = vrot.slane %v4372, 4
        %v4375 = vor.u32 %v4371, %v4374
        %v4376 = vsel %vm1046, %v4366, %v4375
        %v4378 = vshrl.u32 %v4329, 16
        %v4380 = vrot.slane %v4378, 3
        %v4381 = vshll.u32 %v4329, 16
        %v4383 = vrot.slane %v4381, 4
        %v4384 = vor.u32 %v4380, %v4383
        %v4385 = vsel %vm1046, %v4375, %v4384
        %v4387 = vshrl.u32 %v4330, 16
        %v4389 = vrot.slane %v4387, 3
        %v4390 = vshll.u32 %v4330, 16
        %v4392 = vrot.slane %v4390, 4
        %v4393 = vor.u32 %v4389, %v4392
        %v4394 = vsel %vm1046, %v4384, %v4393
        %v4396 = vshrl.u32 %v4331, 16
        %v4398 = vrot.slane %v4396, 3
        %v4399 = vshll.u32 %v4331, 16
        %v4401 = vrot.slane %v4399, 4
        %v4402 = vor.u32 %v4398, %v4401
        %v4403 = vsel %vm1046, %v4393, %v4402
        %v4405 = vshrl.u32 %v4332, 16
        %v4407 = vrot.slane %v4405, 3
        %v4408 = vshll.u32 %v4332, 16
        %v4410 = vrot.slane %v4408, 4
        %v4411 = vor.u32 %v4407, %v4410
        %v4412 = vsel %vm1046, %v4402, %v4411
        %v4414 = vshrl.u32 %v4333, 16
        %v4416 = vrot.slane %v4414, 3
        %v4417 = vshll.u32 %v4333, 16
        %v4419 = vrot.slane %v4417, 4
        %v4420 = vor.u32 %v4416, %v4419
        %v4421 = vsel %vm1046, %v4411, %v4420
        %v4423 = vshrl.u32 %v4334, 16
        %v4425 = vrot.slane %v4423, 3
        %v4426 = vshll.u32 %v4334, 16
        %v4428 = vrot.slane %v4426, 4
        %v4429 = vor.u32 %v4425, %v4428
        %v4430 = vsel %vm1046, %v4420, %v4429
        %v4432 = vshrl.u32 %v4335, 16
        %v4434 = vrot.slane %v4432, 3
        %v4435 = vshll.u32 %v4335, 16
        %v4437 = vrot.slane %v4435, 4
        %v4438 = vor.u32 %v4434, %v4437
        %v4439 = vsel %vm1046, %v4429, %v4438
        %v4441 = vshrl.u32 %v4336, 16
        %v4443 = vrot.slane %v4441, 3
        %v4444 = vshll.u32 %v4336, 16
        %v4446 = vrot.slane %v4444, 4
        %v4447 = vor.u32 %v4443, %v4446
        %v4448 = vsel %vm1046, %v4438, %v4447
        %v4450 = vshrl.u32 %v4337, 16
        %v4452 = vrot.slane %v4450, 3
        %v4453 = vshll.u32 %v4337, 16
        %v4455 = vrot.slane %v4453, 4
        %v4456 = vor.u32 %v4452, %v4455
        %v4457 = vsel %vm1046, %v4447, %v4456
        %v4459 = vshrl.u32 %v4338, 16
        %v4461 = vrot.slane %v4459, 3
        %v4462 = vshll.u32 %v4338, 16
        %v4464 = vrot.slane %v4462, 4
        %v4465 = vor.u32 %v4461, %v4464
        %v4466 = vsel %vm1046, %v4456, %v4465
        %v4468 = vshrl.u32 %v4339, 16
        %v4470 = vrot.slane %v4468, 3
        %v4471 = vshll.u32 %v4339, 16
        %v4473 = vrot.slane %v4471, 4
        %v4474 = vor.u32 %v4470, %v4473
        %v4475 = vsel %vm1046, %v4465, %v4474
        %v4477 = vshrl.u32 %v4340, 16
        %v4479 = vrot.slane %v4477, 3
        %v4480 = vshll.u32 %v4340, 16
        %v4482 = vrot.slane %v4480, 4
        %v4483 = vor.u32 %v4479, %v4482
        %v4484 = vsel %vm1046, %v4474, %v4483
        %v4486 = vshrl.u32 %v4341, 16
        %v4488 = vrot.slane %v4486, 3
        %v4489 = vshll.u32 %v4341, 16
        %v4491 = vrot.slane %v4489, 4
        %v4492 = vor.u32 %v4488, %v4491
        %v4493 = vsel %vm1046, %v4483, %v4492
        %4510 = vst [vmem:[#allocation3] sm:$0xff] %v4358
        %4511 = vst [vmem:[#allocation3 + $0x48] sm:$0xff] %v4367
        %4512 = vst [vmem:[#allocation3 + $0x90] sm:$0xff] %v4376
        %4513 = vst [vmem:[#allocation3 + $0xd8] sm:$0xff] %v4385
        %4514 = vst [vmem:[#allocation3 + $0x120] sm:$0xff] %v4394
        %4515 = vst [vmem:[#allocation3 + $0x168] sm:$0xff] %v4403
        %4516 = vst [vmem:[#allocation3 + $0x1b0] sm:$0xff] %v4412
        %4517 = vst [vmem:[#allocation3 + $0x1f8] sm:$0xff] %v4421
        %4518 = vst [vmem:[#allocation3 + $0x240] sm:$0xff] %v4430
        %4519 = vst [vmem:[#allocation3 + $0x288] sm:$0xff] %v4439
        %4520 = vst [vmem:[#allocation3 + $0x2d0] sm:$0xff] %v4448
        %4521 = vst [vmem:[#allocation3 + $0x318] sm:$0xff] %v4457
        %4522 = vst [vmem:[#allocation3 + $0x360] sm:$0xff] %v4466
        %4523 = vst [vmem:[#allocation3 + $0x3a8] sm:$0xff] %v4475
        %4524 = vst [vmem:[#allocation3 + $0x3f0] sm:$0xff] %v4484
        %4525 = vst [vmem:[#allocation3 + $0x438] sm:$0xff] %v4493
        %v4526 = vld [vmem:[#allocation2] sm:$0xf0]
        %v4527 = vld [vmem:[#allocation2 + $0x8] sm:$0xff]
        %v4528 = vld [vmem:[#allocation2 + $0x10] sm:$0xff]
        %v4529 = vld [vmem:[#allocation2 + $0x18] sm:$0xff]
        %v4530 = vld [vmem:[#allocation2 + $0x20] sm:$0xff]
        %v4531 = vld [vmem:[#allocation2 + $0x28] sm:$0xff]
        %v4532 = vld [vmem:[#allocation2 + $0x30] sm:$0xff]
        %v4533 = vld [vmem:[#allocation2 + $0x38] sm:$0xff]
        %v4534 = vld [vmem:[#allocation2 + $0x40] sm:$0xff]
        %v4535 = vld [vmem:[#allocation2 + $0x48] sm:$0xff]
        %v4536 = vld [vmem:[#allocation2 + $0x50] sm:$0xff]
        %v4537 = vld [vmem:[#allocation2 + $0x58] sm:$0xff]
        %v4538 = vld [vmem:[#allocation2 + $0x60] sm:$0xff]
        %v4539 = vld [vmem:[#allocation2 + $0x68] sm:$0xff]
        %v4540 = vld [vmem:[#allocation2 + $0x70] sm:$0xff]
        %v4541 = vld [vmem:[#allocation2 + $0x78] sm:$0xff]
        %v4542 = vld [vmem:[#allocation2 + $0x80] sm:$0xf]
        %v4560 = vrot.slane %v4526, 4
        %v4561 = vrot.slane %v4527, 4
        %v4562 = vsel %vm963, %v4560, %v4561
        %v4563 = vrot.slane %v4528, 4
        %v4564 = vsel %vm963, %v4561, %v4563
        %v4565 = vrot.slane %v4529, 4
        %v4566 = vsel %vm963, %v4563, %v4565
        %v4567 = vrot.slane %v4530, 4
        %v4568 = vsel %vm963, %v4565, %v4567
        %v4569 = vrot.slane %v4531, 4
        %v4570 = vsel %vm963, %v4567, %v4569
        %v4571 = vrot.slane %v4532, 4
        %v4572 = vsel %vm963, %v4569, %v4571
        %v4573 = vrot.slane %v4533, 4
        %v4574 = vsel %vm963, %v4571, %v4573
        %v4575 = vrot.slane %v4534, 4
        %v4576 = vsel %vm963, %v4573, %v4575
        %v4577 = vrot.slane %v4535, 4
        %v4578 = vsel %vm963, %v4575, %v4577
        %v4579 = vrot.slane %v4536, 4
        %v4580 = vsel %vm963, %v4577, %v4579
        %v4581 = vrot.slane %v4537, 4
        %v4582 = vsel %vm963, %v4579, %v4581
        %v4583 = vrot.slane %v4538, 4
        %v4584 = vsel %vm963, %v4581, %v4583
        %v4585 = vrot.slane %v4539, 4
        %v4586 = vsel %vm963, %v4583, %v4585
        %v4587 = vrot.slane %v4540, 4
        %v4588 = vsel %vm963, %v4585, %v4587
        %v4589 = vrot.slane %v4541, 4
        %v4590 = vsel %vm963, %v4587, %v4589
        %v4591 = vrot.slane %v4542, 4
        %v4592 = vsel %vm963, %v4589, %v4591
        %4609 = vst [vmem:[#allocation3 + $0x8] sm:$0xff] %v4562
        %4610 = vst [vmem:[#allocation3 + $0x50] sm:$0xff] %v4564
        %4611 = vst [vmem:[#allocation3 + $0x98] sm:$0xff] %v4566
        %4612 = vst [vmem:[#allocation3 + $0xe0] sm:$0xff] %v4568
        %4613 = vst [vmem:[#allocation3 + $0x128] sm:$0xff] %v4570
        %4614 = vst [vmem:[#allocation3 + $0x170] sm:$0xff] %v4572
        %4615 = vst [vmem:[#allocation3 + $0x1b8] sm:$0xff] %v4574
        %4616 = vst [vmem:[#allocation3 + $0x200] sm:$0xff] %v4576
        %4617 = vst [vmem:[#allocation3 + $0x248] sm:$0xff] %v4578
        %4618 = vst [vmem:[#allocation3 + $0x290] sm:$0xff] %v4580
        %4619 = vst [vmem:[#allocation3 + $0x2d8] sm:$0xff] %v4582
        %4620 = vst [vmem:[#allocation3 + $0x320] sm:$0xff] %v4584
        %4621 = vst [vmem:[#allocation3 + $0x368] sm:$0xff] %v4586
        %4622 = vst [vmem:[#allocation3 + $0x3b0] sm:$0xff] %v4588
        %4623 = vst [vmem:[#allocation3 + $0x3f8] sm:$0xff] %v4590
        %4624 = vst [vmem:[#allocation3 + $0x440] sm:$0xff] %v4592
        %v4625 = vld [vmem:[#allocation2] sm:$0xf0]
        %v4626 = vld [vmem:[#allocation2 + $0x8] sm:$0xff]
        %v4627 = vld [vmem:[#allocation2 + $0x10] sm:$0xff]
        %v4628 = vld [vmem:[#allocation2 + $0x18] sm:$0xff]
        %v4629 = vld [vmem:[#allocation2 + $0x20] sm:$0xff]
        %v4630 = vld [vmem:[#allocation2 + $0x28] sm:$0xff]
        %v4631 = vld [vmem:[#allocation2 + $0x30] sm:$0xff]
        %v4632 = vld [vmem:[#allocation2 + $0x38] sm:$0xff]
        %v4633 = vld [vmem:[#allocation2 + $0x40] sm:$0xff]
        %v4634 = vld [vmem:[#allocation2 + $0x48] sm:$0xff]
        %v4635 = vld [vmem:[#allocation2 + $0x50] sm:$0xff]
        %v4636 = vld [vmem:[#allocation2 + $0x58] sm:$0xff]
        %v4637 = vld [vmem:[#allocation2 + $0x60] sm:$0xff]
        %v4638 = vld [vmem:[#allocation2 + $0x68] sm:$0xff]
        %v4639 = vld [vmem:[#allocation2 + $0x70] sm:$0xff]
        %v4640 = vld [vmem:[#allocation2 + $0x78] sm:$0xff]
        %v4641 = vld [vmem:[#allocation2 + $0x80] sm:$0x1f]
        %v4643 = vshrl.u32 %v4625, 16
        %v4645 = vrot.slane %v4643, 4
        %v4646 = vshll.u32 %v4625, 16
        %v4648 = vrot.slane %v4646, 5
        %v4649 = vor.u32 %v4645, %v4648
        %v4651 = vshrl.u32 %v4626, 16
        %v4653 = vrot.slane %v4651, 4
        %v4654 = vshll.u32 %v4626, 16
        %v4656 = vrot.slane %v4654, 5
        %v4657 = vor.u32 %v4653, %v4656
        %v4658 = vsel %vm1347, %v4649, %v4657
        %v4660 = vshrl.u32 %v4627, 16
        %v4662 = vrot.slane %v4660, 4
        %v4663 = vshll.u32 %v4627, 16
        %v4665 = vrot.slane %v4663, 5
        %v4666 = vor.u32 %v4662, %v4665
        %v4667 = vsel %vm1347, %v4657, %v4666
        %v4669 = vshrl.u32 %v4628, 16
        %v4671 = vrot.slane %v4669, 4
        %v4672 = vshll.u32 %v4628, 16
        %v4674 = vrot.slane %v4672, 5
        %v4675 = vor.u32 %v4671, %v4674
        %v4676 = vsel %vm1347, %v4666, %v4675
        %v4678 = vshrl.u32 %v4629, 16
        %v4680 = vrot.slane %v4678, 4
        %v4681 = vshll.u32 %v4629, 16
        %v4683 = vrot.slane %v4681, 5
        %v4684 = vor.u32 %v4680, %v4683
        %v4685 = vsel %vm1347, %v4675, %v4684
        %v4687 = vshrl.u32 %v4630, 16
        %v4689 = vrot.slane %v4687, 4
        %v4690 = vshll.u32 %v4630, 16
        %v4692 = vrot.slane %v4690, 5
        %v4693 = vor.u32 %v4689, %v4692
        %v4694 = vsel %vm1347, %v4684, %v4693
        %v4696 = vshrl.u32 %v4631, 16
        %v4698 = vrot.slane %v4696, 4
        %v4699 = vshll.u32 %v4631, 16
        %v4701 = vrot.slane %v4699, 5
        %v4702 = vor.u32 %v4698, %v4701
        %v4703 = vsel %vm1347, %v4693, %v4702
        %v4705 = vshrl.u32 %v4632, 16
        %v4707 = vrot.slane %v4705, 4
        %v4708 = vshll.u32 %v4632, 16
        %v4710 = vrot.slane %v4708, 5
        %v4711 = vor.u32 %v4707, %v4710
        %v4712 = vsel %vm1347, %v4702, %v4711
        %v4714 = vshrl.u32 %v4633, 16
        %v4716 = vrot.slane %v4714, 4
        %v4717 = vshll.u32 %v4633, 16
        %v4719 = vrot.slane %v4717, 5
        %v4720 = vor.u32 %v4716, %v4719
        %v4721 = vsel %vm1347, %v4711, %v4720
        %v4723 = vshrl.u32 %v4634, 16
        %v4725 = vrot.slane %v4723, 4
        %v4726 = vshll.u32 %v4634, 16
        %v4728 = vrot.slane %v4726, 5
        %v4729 = vor.u32 %v4725, %v4728
        %v4730 = vsel %vm1347, %v4720, %v4729
        %v4732 = vshrl.u32 %v4635, 16
        %v4734 = vrot.slane %v4732, 4
        %v4735 = vshll.u32 %v4635, 16
        %v4737 = vrot.slane %v4735, 5
        %v4738 = vor.u32 %v4734, %v4737
        %v4739 = vsel %vm1347, %v4729, %v4738
        %v4741 = vshrl.u32 %v4636, 16
        %v4743 = vrot.slane %v4741, 4
        %v4744 = vshll.u32 %v4636, 16
        %v4746 = vrot.slane %v4744, 5
        %v4747 = vor.u32 %v4743, %v4746
        %v4748 = vsel %vm1347, %v4738, %v4747
        %v4750 = vshrl.u32 %v4637, 16
        %v4752 = vrot.slane %v4750, 4
        %v4753 = vshll.u32 %v4637, 16
        %v4755 = vrot.slane %v4753, 5
        %v4756 = vor.u32 %v4752, %v4755
        %v4757 = vsel %vm1347, %v4747, %v4756
        %v4759 = vshrl.u32 %v4638, 16
        %v4761 = vrot.slane %v4759, 4
        %v4762 = vshll.u32 %v4638, 16
        %v4764 = vrot.slane %v4762, 5
        %v4765 = vor.u32 %v4761, %v4764
        %v4766 = vsel %vm1347, %v4756, %v4765
        %v4768 = vshrl.u32 %v4639, 16
        %v4770 = vrot.slane %v4768, 4
        %v4771 = vshll.u32 %v4639, 16
        %v4773 = vrot.slane %v4771, 5
        %v4774 = vor.u32 %v4770, %v4773
        %v4775 = vsel %vm1347, %v4765, %v4774
        %v4777 = vshrl.u32 %v4640, 16
        %v4779 = vrot.slane %v4777, 4
        %v4780 = vshll.u32 %v4640, 16
        %v4782 = vrot.slane %v4780, 5
        %v4783 = vor.u32 %v4779, %v4782
        %v4784 = vsel %vm1347, %v4774, %v4783
        %v4786 = vshrl.u32 %v4641, 16
        %v4788 = vrot.slane %v4786, 4
        %v4789 = vshll.u32 %v4641, 16
        %v4791 = vrot.slane %v4789, 5
        %v4792 = vor.u32 %v4788, %v4791
        %v4793 = vsel %vm1347, %v4783, %v4792
        %4810 = vst [vmem:[#allocation3 + $0x10] sm:$0xff] %v4658
        %4811 = vst [vmem:[#allocation3 + $0x58] sm:$0xff] %v4667
        %4812 = vst [vmem:[#allocation3 + $0xa0] sm:$0xff] %v4676
        %4813 = vst [vmem:[#allocation3 + $0xe8] sm:$0xff] %v4685
        %4814 = vst [vmem:[#allocation3 + $0x130] sm:$0xff] %v4694
        %4815 = vst [vmem:[#allocation3 + $0x178] sm:$0xff] %v4703
        %4816 = vst [vmem:[#allocation3 + $0x1c0] sm:$0xff] %v4712
        %4817 = vst [vmem:[#allocation3 + $0x208] sm:$0xff] %v4721
        %4818 = vst [vmem:[#allocation3 + $0x250] sm:$0xff] %v4730
        %4819 = vst [vmem:[#allocation3 + $0x298] sm:$0xff] %v4739
        %4820 = vst [vmem:[#allocation3 + $0x2e0] sm:$0xff] %v4748
        %4821 = vst [vmem:[#allocation3 + $0x328] sm:$0xff] %v4757
        %4822 = vst [vmem:[#allocation3 + $0x370] sm:$0xff] %v4766
        %4823 = vst [vmem:[#allocation3 + $0x3b8] sm:$0xff] %v4775
        %4824 = vst [vmem:[#allocation3 + $0x400] sm:$0xff] %v4784
        %4825 = vst [vmem:[#allocation3 + $0x448] sm:$0xff] %v4793
        %v4826 = vld [vmem:[#allocation2 + $0x8] sm:$0xf8]
        %v4827 = vld [vmem:[#allocation2 + $0x10] sm:$0xff]
        %v4828 = vld [vmem:[#allocation2 + $0x18] sm:$0xff]
        %v4829 = vld [vmem:[#allocation2 + $0x20] sm:$0xff]
        %v4830 = vld [vmem:[#allocation2 + $0x28] sm:$0xff]
        %v4831 = vld [vmem:[#allocation2 + $0x30] sm:$0xff]
        %v4832 = vld [vmem:[#allocation2 + $0x38] sm:$0xff]
        %v4833 = vld [vmem:[#allocation2 + $0x40] sm:$0xff]
        %v4834 = vld [vmem:[#allocation2 + $0x48] sm:$0xff]
        %v4835 = vld [vmem:[#allocation2 + $0x50] sm:$0xff]
        %v4836 = vld [vmem:[#allocation2 + $0x58] sm:$0xff]
        %v4837 = vld [vmem:[#allocation2 + $0x60] sm:$0xff]
        %v4838 = vld [vmem:[#allocation2 + $0x68] sm:$0xff]
        %v4839 = vld [vmem:[#allocation2 + $0x70] sm:$0xff]
        %v4840 = vld [vmem:[#allocation2 + $0x78] sm:$0xff]
        %v4841 = vld [vmem:[#allocation2 + $0x80] sm:$0xff]
        %v4842 = vld [vmem:[#allocation2 + $0x88] sm:$0xf]
        %v4844 = vshrl.u32 %v4826, 16
        %v4846 = vrot.slane %v4844, 3
        %v4847 = vshll.u32 %v4826, 16
        %v4849 = vrot.slane %v4847, 4
        %v4850 = vor.u32 %v4846, %v4849
        %v4852 = vshrl.u32 %v4827, 16
        %v4854 = vrot.slane %v4852, 3
        %v4855 = vshll.u32 %v4827, 16
        %v4857 = vrot.slane %v4855, 4
        %v4858 = vor.u32 %v4854, %v4857
        %v4859 = vsel %vm1046, %v4850, %v4858
        %v4861 = vshrl.u32 %v4828, 16
        %v4863 = vrot.slane %v4861, 3
        %v4864 = vshll.u32 %v4828, 16
        %v4866 = vrot.slane %v4864, 4
        %v4867 = vor.u32 %v4863, %v4866
        %v4868 = vsel %vm1046, %v4858, %v4867
        %v4870 = vshrl.u32 %v4829, 16
        %v4872 = vrot.slane %v4870, 3
        %v4873 = vshll.u32 %v4829, 16
        %v4875 = vrot.slane %v4873, 4
        %v4876 = vor.u32 %v4872, %v4875
        %v4877 = vsel %vm1046, %v4867, %v4876
        %v4879 = vshrl.u32 %v4830, 16
        %v4881 = vrot.slane %v4879, 3
        %v4882 = vshll.u32 %v4830, 16
        %v4884 = vrot.slane %v4882, 4
        %v4885 = vor.u32 %v4881, %v4884
        %v4886 = vsel %vm1046, %v4876, %v4885
        %v4888 = vshrl.u32 %v4831, 16
        %v4890 = vrot.slane %v4888, 3
        %v4891 = vshll.u32 %v4831, 16
        %v4893 = vrot.slane %v4891, 4
        %v4894 = vor.u32 %v4890, %v4893
        %v4895 = vsel %vm1046, %v4885, %v4894
        %v4897 = vshrl.u32 %v4832, 16
        %v4899 = vrot.slane %v4897, 3
        %v4900 = vshll.u32 %v4832, 16
        %v4902 = vrot.slane %v4900, 4
        %v4903 = vor.u32 %v4899, %v4902
        %v4904 = vsel %vm1046, %v4894, %v4903
        %v4906 = vshrl.u32 %v4833, 16
        %v4908 = vrot.slane %v4906, 3
        %v4909 = vshll.u32 %v4833, 16
        %v4911 = vrot.slane %v4909, 4
        %v4912 = vor.u32 %v4908, %v4911
        %v4913 = vsel %vm1046, %v4903, %v4912
        %v4915 = vshrl.u32 %v4834, 16
        %v4917 = vrot.slane %v4915, 3
        %v4918 = vshll.u32 %v4834, 16
        %v4920 = vrot.slane %v4918, 4
        %v4921 = vor.u32 %v4917, %v4920
        %v4922 = vsel %vm1046, %v4912, %v4921
        %v4924 = vshrl.u32 %v4835, 16
        %v4926 = vrot.slane %v4924, 3
        %v4927 = vshll.u32 %v4835, 16
        %v4929 = vrot.slane %v4927, 4
        %v4930 = vor.u32 %v4926, %v4929
        %v4931 = vsel %vm1046, %v4921, %v4930
        %v4933 = vshrl.u32 %v4836, 16
        %v4935 = vrot.slane %v4933, 3
        %v4936 = vshll.u32 %v4836, 16
        %v4938 = vrot.slane %v4936, 4
        %v4939 = vor.u32 %v4935, %v4938
        %v4940 = vsel %vm1046, %v4930, %v4939
        %v4942 = vshrl.u32 %v4837, 16
        %v4944 = vrot.slane %v4942, 3
        %v4945 = vshll.u32 %v4837, 16
        %v4947 = vrot.slane %v4945, 4
        %v4948 = vor.u32 %v4944, %v4947
        %v4949 = vsel %vm1046, %v4939, %v4948
        %v4951 = vshrl.u32 %v4838, 16
        %v4953 = vrot.slane %v4951, 3
        %v4954 = vshll.u32 %v4838, 16
        %v4956 = vrot.slane %v4954, 4
        %v4957 = vor.u32 %v4953, %v4956
        %v4958 = vsel %vm1046, %v4948, %v4957
        %v4960 = vshrl.u32 %v4839, 16
        %v4962 = vrot.slane %v4960, 3
        %v4963 = vshll.u32 %v4839, 16
        %v4965 = vrot.slane %v4963, 4
        %v4966 = vor.u32 %v4962, %v4965
        %v4967 = vsel %vm1046, %v4957, %v4966
        %v4969 = vshrl.u32 %v4840, 16
        %v4971 = vrot.slane %v4969, 3
        %v4972 = vshll.u32 %v4840, 16
        %v4974 = vrot.slane %v4972, 4
        %v4975 = vor.u32 %v4971, %v4974
        %v4976 = vsel %vm1046, %v4966, %v4975
        %v4978 = vshrl.u32 %v4841, 16
        %v4980 = vrot.slane %v4978, 3
        %v4981 = vshll.u32 %v4841, 16
        %v4983 = vrot.slane %v4981, 4
        %v4984 = vor.u32 %v4980, %v4983
        %v4985 = vsel %vm1046, %v4975, %v4984
        %v4987 = vshrl.u32 %v4842, 16
        %v4989 = vrot.slane %v4987, 3
        %v4990 = vshll.u32 %v4842, 16
        %v4992 = vrot.slane %v4990, 4
        %v4993 = vor.u32 %v4989, %v4992
        %v4994 = vsel %vm1046, %v4984, %v4993
        %5011 = vst [vmem:[#allocation3 + $0x18] sm:$0xff] %v4859
        %5012 = vst [vmem:[#allocation3 + $0x60] sm:$0xff] %v4868
        %5013 = vst [vmem:[#allocation3 + $0xa8] sm:$0xff] %v4877
        %5014 = vst [vmem:[#allocation3 + $0xf0] sm:$0xff] %v4886
        %5015 = vst [vmem:[#allocation3 + $0x138] sm:$0xff] %v4895
        %5016 = vst [vmem:[#allocation3 + $0x180] sm:$0xff] %v4904
        %5017 = vst [vmem:[#allocation3 + $0x1c8] sm:$0xff] %v4913
        %5018 = vst [vmem:[#allocation3 + $0x210] sm:$0xff] %v4922
        %5019 = vst [vmem:[#allocation3 + $0x258] sm:$0xff] %v4931
        %5020 = vst [vmem:[#allocation3 + $0x2a0] sm:$0xff] %v4940
        %5021 = vst [vmem:[#allocation3 + $0x2e8] sm:$0xff] %v4949
        %5022 = vst [vmem:[#allocation3 + $0x330] sm:$0xff] %v4958
        %5023 = vst [vmem:[#allocation3 + $0x378] sm:$0xff] %v4967
        %5024 = vst [vmem:[#allocation3 + $0x3c0] sm:$0xff] %v4976
        %5025 = vst [vmem:[#allocation3 + $0x408] sm:$0xff] %v4985
        %5026 = vst [vmem:[#allocation3 + $0x450] sm:$0xff] %v4994
        %v5027 = vld [vmem:[#allocation2 + $0x8] sm:$0xf0]
        %v5028 = vld [vmem:[#allocation2 + $0x10] sm:$0xff]
        %v5029 = vld [vmem:[#allocation2 + $0x18] sm:$0xff]
        %v5030 = vld [vmem:[#allocation2 + $0x20] sm:$0xff]
        %v5031 = vld [vmem:[#allocation2 + $0x28] sm:$0xff]
        %v5032 = vld [vmem:[#allocation2 + $0x30] sm:$0xff]
        %v5033 = vld [vmem:[#allocation2 + $0x38] sm:$0xff]
        %v5034 = vld [vmem:[#allocation2 + $0x40] sm:$0xff]
        %v5035 = vld [vmem:[#allocation2 + $0x48] sm:$0xff]
        %v5036 = vld [vmem:[#allocation2 + $0x50] sm:$0xff]
        %v5037 = vld [vmem:[#allocation2 + $0x58] sm:$0xff]
        %v5038 = vld [vmem:[#allocation2 + $0x60] sm:$0xff]
        %v5039 = vld [vmem:[#allocation2 + $0x68] sm:$0xff]
        %v5040 = vld [vmem:[#allocation2 + $0x70] sm:$0xff]
        %v5041 = vld [vmem:[#allocation2 + $0x78] sm:$0xff]
        %v5042 = vld [vmem:[#allocation2 + $0x80] sm:$0xff]
        %v5043 = vld [vmem:[#allocation2 + $0x88] sm:$0xf]
        %v5061 = vrot.slane %v5027, 4
        %v5062 = vrot.slane %v5028, 4
        %v5063 = vsel %vm963, %v5061, %v5062
        %v5064 = vrot.slane %v5029, 4
        %v5065 = vsel %vm963, %v5062, %v5064
        %v5066 = vrot.slane %v5030, 4
        %v5067 = vsel %vm963, %v5064, %v5066
        %v5068 = vrot.slane %v5031, 4
        %v5069 = vsel %vm963, %v5066, %v5068
        %v5070 = vrot.slane %v5032, 4
        %v5071 = vsel %vm963, %v5068, %v5070
        %v5072 = vrot.slane %v5033, 4
        %v5073 = vsel %vm963, %v5070, %v5072
        %v5074 = vrot.slane %v5034, 4
        %v5075 = vsel %vm963, %v5072, %v5074
        %v5076 = vrot.slane %v5035, 4
        %v5077 = vsel %vm963, %v5074, %v5076
        %v5078 = vrot.slane %v5036, 4
        %v5079 = vsel %vm963, %v5076, %v5078
        %v5080 = vrot.slane %v5037, 4
        %v5081 = vsel %vm963, %v5078, %v5080
        %v5082 = vrot.slane %v5038, 4
        %v5083 = vsel %vm963, %v5080, %v5082
        %v5084 = vrot.slane %v5039, 4
        %v5085 = vsel %vm963, %v5082, %v5084
        %v5086 = vrot.slane %v5040, 4
        %v5087 = vsel %vm963, %v5084, %v5086
        %v5088 = vrot.slane %v5041, 4
        %v5089 = vsel %vm963, %v5086, %v5088
        %v5090 = vrot.slane %v5042, 4
        %v5091 = vsel %vm963, %v5088, %v5090
        %v5092 = vrot.slane %v5043, 4
        %v5093 = vsel %vm963, %v5090, %v5092
        %5110 = vst [vmem:[#allocation3 + $0x20] sm:$0xff] %v5063
        %5111 = vst [vmem:[#allocation3 + $0x68] sm:$0xff] %v5065
        %5112 = vst [vmem:[#allocation3 + $0xb0] sm:$0xff] %v5067
        %5113 = vst [vmem:[#allocation3 + $0xf8] sm:$0xff] %v5069
        %5114 = vst [vmem:[#allocation3 + $0x140] sm:$0xff] %v5071
        %5115 = vst [vmem:[#allocation3 + $0x188] sm:$0xff] %v5073
        %5116 = vst [vmem:[#allocation3 + $0x1d0] sm:$0xff] %v5075
        %5117 = vst [vmem:[#allocation3 + $0x218] sm:$0xff] %v5077
        %5118 = vst [vmem:[#allocation3 + $0x260] sm:$0xff] %v5079
        %5119 = vst [vmem:[#allocation3 + $0x2a8] sm:$0xff] %v5081
        %5120 = vst [vmem:[#allocation3 + $0x2f0] sm:$0xff] %v5083
        %5121 = vst [vmem:[#allocation3 + $0x338] sm:$0xff] %v5085
        %5122 = vst [vmem:[#allocation3 + $0x380] sm:$0xff] %v5087
        %5123 = vst [vmem:[#allocation3 + $0x3c8] sm:$0xff] %v5089
        %5124 = vst [vmem:[#allocation3 + $0x410] sm:$0xff] %v5091
        %5125 = vst [vmem:[#allocation3 + $0x458] sm:$0xff] %v5093
        %v5126 = vld [vmem:[#allocation2 + $0x8] sm:$0xf0]
        %v5127 = vld [vmem:[#allocation2 + $0x10] sm:$0xff]
        %v5128 = vld [vmem:[#allocation2 + $0x18] sm:$0xff]
        %v5129 = vld [vmem:[#allocation2 + $0x20] sm:$0xff]
        %v5130 = vld [vmem:[#allocation2 + $0x28] sm:$0xff]
        %v5131 = vld [vmem:[#allocation2 + $0x30] sm:$0xff]
        %v5132 = vld [vmem:[#allocation2 + $0x38] sm:$0xff]
        %v5133 = vld [vmem:[#allocation2 + $0x40] sm:$0xff]
        %v5134 = vld [vmem:[#allocation2 + $0x48] sm:$0xff]
        %v5135 = vld [vmem:[#allocation2 + $0x50] sm:$0xff]
        %v5136 = vld [vmem:[#allocation2 + $0x58] sm:$0xff]
        %v5137 = vld [vmem:[#allocation2 + $0x60] sm:$0xff]
        %v5138 = vld [vmem:[#allocation2 + $0x68] sm:$0xff]
        %v5139 = vld [vmem:[#allocation2 + $0x70] sm:$0xff]
        %v5140 = vld [vmem:[#allocation2 + $0x78] sm:$0xff]
        %v5141 = vld [vmem:[#allocation2 + $0x80] sm:$0xff]
        %v5142 = vld [vmem:[#allocation2 + $0x88] sm:$0x1f]
        %v5144 = vshrl.u32 %v5126, 16
        %v5146 = vrot.slane %v5144, 4
        %v5147 = vshll.u32 %v5126, 16
        %v5149 = vrot.slane %v5147, 5
        %v5150 = vor.u32 %v5146, %v5149
        %v5152 = vshrl.u32 %v5127, 16
        %v5154 = vrot.slane %v5152, 4
        %v5155 = vshll.u32 %v5127, 16
        %v5157 = vrot.slane %v5155, 5
        %v5158 = vor.u32 %v5154, %v5157
        %v5159 = vsel %vm1347, %v5150, %v5158
        %v5161 = vshrl.u32 %v5128, 16
        %v5163 = vrot.slane %v5161, 4
        %v5164 = vshll.u32 %v5128, 16
        %v5166 = vrot.slane %v5164, 5
        %v5167 = vor.u32 %v5163, %v5166
        %v5168 = vsel %vm1347, %v5158, %v5167
        %v5170 = vshrl.u32 %v5129, 16
        %v5172 = vrot.slane %v5170, 4
        %v5173 = vshll.u32 %v5129, 16
        %v5175 = vrot.slane %v5173, 5
        %v5176 = vor.u32 %v5172, %v5175
        %v5177 = vsel %vm1347, %v5167, %v5176
        %v5179 = vshrl.u32 %v5130, 16
        %v5181 = vrot.slane %v5179, 4
        %v5182 = vshll.u32 %v5130, 16
        %v5184 = vrot.slane %v5182, 5
        %v5185 = vor.u32 %v5181, %v5184
        %v5186 = vsel %vm1347, %v5176, %v5185
        %v5188 = vshrl.u32 %v5131, 16
        %v5190 = vrot.slane %v5188, 4
        %v5191 = vshll.u32 %v5131, 16
        %v5193 = vrot.slane %v5191, 5
        %v5194 = vor.u32 %v5190, %v5193
        %v5195 = vsel %vm1347, %v5185, %v5194
        %v5197 = vshrl.u32 %v5132, 16
        %v5199 = vrot.slane %v5197, 4
        %v5200 = vshll.u32 %v5132, 16
        %v5202 = vrot.slane %v5200, 5
        %v5203 = vor.u32 %v5199, %v5202
        %v5204 = vsel %vm1347, %v5194, %v5203
        %v5206 = vshrl.u32 %v5133, 16
        %v5208 = vrot.slane %v5206, 4
        %v5209 = vshll.u32 %v5133, 16
        %v5211 = vrot.slane %v5209, 5
        %v5212 = vor.u32 %v5208, %v5211
        %v5213 = vsel %vm1347, %v5203, %v5212
        %v5215 = vshrl.u32 %v5134, 16
        %v5217 = vrot.slane %v5215, 4
        %v5218 = vshll.u32 %v5134, 16
        %v5220 = vrot.slane %v5218, 5
        %v5221 = vor.u32 %v5217, %v5220
        %v5222 = vsel %vm1347, %v5212, %v5221
        %v5224 = vshrl.u32 %v5135, 16
        %v5226 = vrot.slane %v5224, 4
        %v5227 = vshll.u32 %v5135, 16
        %v5229 = vrot.slane %v5227, 5
        %v5230 = vor.u32 %v5226, %v5229
        %v5231 = vsel %vm1347, %v5221, %v5230
        %v5233 = vshrl.u32 %v5136, 16
        %v5235 = vrot.slane %v5233, 4
        %v5236 = vshll.u32 %v5136, 16
        %v5238 = vrot.slane %v5236, 5
        %v5239 = vor.u32 %v5235, %v5238
        %v5240 = vsel %vm1347, %v5230, %v5239
        %v5242 = vshrl.u32 %v5137, 16
        %v5244 = vrot.slane %v5242, 4
        %v5245 = vshll.u32 %v5137, 16
        %v5247 = vrot.slane %v5245, 5
        %v5248 = vor.u32 %v5244, %v5247
        %v5249 = vsel %vm1347, %v5239, %v5248
        %v5251 = vshrl.u32 %v5138, 16
        %v5253 = vrot.slane %v5251, 4
        %v5254 = vshll.u32 %v5138, 16
        %v5256 = vrot.slane %v5254, 5
        %v5257 = vor.u32 %v5253, %v5256
        %v5258 = vsel %vm1347, %v5248, %v5257
        %v5260 = vshrl.u32 %v5139, 16
        %v5262 = vrot.slane %v5260, 4
        %v5263 = vshll.u32 %v5139, 16
        %v5265 = vrot.slane %v5263, 5
        %v5266 = vor.u32 %v5262, %v5265
        %v5267 = vsel %vm1347, %v5257, %v5266
        %v5269 = vshrl.u32 %v5140, 16
        %v5271 = vrot.slane %v5269, 4
        %v5272 = vshll.u32 %v5140, 16
        %v5274 = vrot.slane %v5272, 5
        %v5275 = vor.u32 %v5271, %v5274
        %v5276 = vsel %vm1347, %v5266, %v5275
        %v5278 = vshrl.u32 %v5141, 16
        %v5280 = vrot.slane %v5278, 4
        %v5281 = vshll.u32 %v5141, 16
        %v5283 = vrot.slane %v5281, 5
        %v5284 = vor.u32 %v5280, %v5283
        %v5285 = vsel %vm1347, %v5275, %v5284
        %v5287 = vshrl.u32 %v5142, 16
        %v5289 = vrot.slane %v5287, 4
        %v5290 = vshll.u32 %v5142, 16
        %v5292 = vrot.slane %v5290, 5
        %v5293 = vor.u32 %v5289, %v5292
        %v5294 = vsel %vm1347, %v5284, %v5293
        %5311 = vst [vmem:[#allocation3 + $0x28] sm:$0xff] %v5159
        %5312 = vst [vmem:[#allocation3 + $0x70] sm:$0xff] %v5168
        %5313 = vst [vmem:[#allocation3 + $0xb8] sm:$0xff] %v5177
        %5314 = vst [vmem:[#allocation3 + $0x100] sm:$0xff] %v5186
        %5315 = vst [vmem:[#allocation3 + $0x148] sm:$0xff] %v5195
        %5316 = vst [vmem:[#allocation3 + $0x190] sm:$0xff] %v5204
        %5317 = vst [vmem:[#allocation3 + $0x1d8] sm:$0xff] %v5213
        %5318 = vst [vmem:[#allocation3 + $0x220] sm:$0xff] %v5222
        %5319 = vst [vmem:[#allocation3 + $0x268] sm:$0xff] %v5231
        %5320 = vst [vmem:[#allocation3 + $0x2b0] sm:$0xff] %v5240
        %5321 = vst [vmem:[#allocation3 + $0x2f8] sm:$0xff] %v5249
        %5322 = vst [vmem:[#allocation3 + $0x340] sm:$0xff] %v5258
        %5323 = vst [vmem:[#allocation3 + $0x388] sm:$0xff] %v5267
        %5324 = vst [vmem:[#allocation3 + $0x3d0] sm:$0xff] %v5276
        %5325 = vst [vmem:[#allocation3 + $0x418] sm:$0xff] %v5285
        %5326 = vst [vmem:[#allocation3 + $0x460] sm:$0xff] %v5294
        %v5327 = vld [vmem:[#allocation2 + $0x10] sm:$0xf8]
        %v5328 = vld [vmem:[#allocation2 + $0x18] sm:$0xff]
        %v5329 = vld [vmem:[#allocation2 + $0x20] sm:$0xff]
        %v5330 = vld [vmem:[#allocation2 + $0x28] sm:$0xff]
        %v5331 = vld [vmem:[#allocation2 + $0x30] sm:$0xff]
        %v5332 = vld [vmem:[#allocation2 + $0x38] sm:$0xff]
        %v5333 = vld [vmem:[#allocation2 + $0x40] sm:$0xff]
        %v5334 = vld [vmem:[#allocation2 + $0x48] sm:$0xff]
        %v5335 = vld [vmem:[#allocation2 + $0x50] sm:$0xff]
        %v5336 = vld [vmem:[#allocation2 + $0x58] sm:$0xff]
        %v5337 = vld [vmem:[#allocation2 + $0x60] sm:$0xff]
        %v5338 = vld [vmem:[#allocation2 + $0x68] sm:$0xff]
        %v5339 = vld [vmem:[#allocation2 + $0x70] sm:$0xff]
        %v5340 = vld [vmem:[#allocation2 + $0x78] sm:$0xff]
        %v5341 = vld [vmem:[#allocation2 + $0x80] sm:$0xff]
        %v5342 = vld [vmem:[#allocation2 + $0x88] sm:$0xff]
        %v5343 = vld [vmem:[#allocation2 + $0x90] sm:$0xf]
        %v5345 = vshrl.u32 %v5327, 16
        %v5347 = vrot.slane %v5345, 3
        %v5348 = vshll.u32 %v5327, 16
        %v5350 = vrot.slane %v5348, 4
        %v5351 = vor.u32 %v5347, %v5350
        %v5353 = vshrl.u32 %v5328, 16
        %v5355 = vrot.slane %v5353, 3
        %v5356 = vshll.u32 %v5328, 16
        %v5358 = vrot.slane %v5356, 4
        %v5359 = vor.u32 %v5355, %v5358
        %v5360 = vsel %vm1046, %v5351, %v5359
        %v5362 = vshrl.u32 %v5329, 16
        %v5364 = vrot.slane %v5362, 3
        %v5365 = vshll.u32 %v5329, 16
        %v5367 = vrot.slane %v5365, 4
        %v5368 = vor.u32 %v5364, %v5367
        %v5369 = vsel %vm1046, %v5359, %v5368
        %v5371 = vshrl.u32 %v5330, 16
        %v5373 = vrot.slane %v5371, 3
        %v5374 = vshll.u32 %v5330, 16
        %v5376 = vrot.slane %v5374, 4
        %v5377 = vor.u32 %v5373, %v5376
        %v5378 = vsel %vm1046, %v5368, %v5377
        %v5380 = vshrl.u32 %v5331, 16
        %v5382 = vrot.slane %v5380, 3
        %v5383 = vshll.u32 %v5331, 16
        %v5385 = vrot.slane %v5383, 4
        %v5386 = vor.u32 %v5382, %v5385
        %v5387 = vsel %vm1046, %v5377, %v5386
        %v5389 = vshrl.u32 %v5332, 16
        %v5391 = vrot.slane %v5389, 3
        %v5392 = vshll.u32 %v5332, 16
        %v5394 = vrot.slane %v5392, 4
        %v5395 = vor.u32 %v5391, %v5394
        %v5396 = vsel %vm1046, %v5386, %v5395
        %v5398 = vshrl.u32 %v5333, 16
        %v5400 = vrot.slane %v5398, 3
        %v5401 = vshll.u32 %v5333, 16
        %v5403 = vrot.slane %v5401, 4
        %v5404 = vor.u32 %v5400, %v5403
        %v5405 = vsel %vm1046, %v5395, %v5404
        %v5407 = vshrl.u32 %v5334, 16
        %v5409 = vrot.slane %v5407, 3
        %v5410 = vshll.u32 %v5334, 16
        %v5412 = vrot.slane %v5410, 4
        %v5413 = vor.u32 %v5409, %v5412
        %v5414 = vsel %vm1046, %v5404, %v5413
        %v5416 = vshrl.u32 %v5335, 16
        %v5418 = vrot.slane %v5416, 3
        %v5419 = vshll.u32 %v5335, 16
        %v5421 = vrot.slane %v5419, 4
        %v5422 = vor.u32 %v5418, %v5421
        %v5423 = vsel %vm1046, %v5413, %v5422
        %v5425 = vshrl.u32 %v5336, 16
        %v5427 = vrot.slane %v5425, 3
        %v5428 = vshll.u32 %v5336, 16
        %v5430 = vrot.slane %v5428, 4
        %v5431 = vor.u32 %v5427, %v5430
        %v5432 = vsel %vm1046, %v5422, %v5431
        %v5434 = vshrl.u32 %v5337, 16
        %v5436 = vrot.slane %v5434, 3
        %v5437 = vshll.u32 %v5337, 16
        %v5439 = vrot.slane %v5437, 4
        %v5440 = vor.u32 %v5436, %v5439
        %v5441 = vsel %vm1046, %v5431, %v5440
        %v5443 = vshrl.u32 %v5338, 16
        %v5445 = vrot.slane %v5443, 3
        %v5446 = vshll.u32 %v5338, 16
        %v5448 = vrot.slane %v5446, 4
        %v5449 = vor.u32 %v5445, %v5448
        %v5450 = vsel %vm1046, %v5440, %v5449
        %v5452 = vshrl.u32 %v5339, 16
        %v5454 = vrot.slane %v5452, 3
        %v5455 = vshll.u32 %v5339, 16
        %v5457 = vrot.slane %v5455, 4
        %v5458 = vor.u32 %v5454, %v5457
        %v5459 = vsel %vm1046, %v5449, %v5458
        %v5461 = vshrl.u32 %v5340, 16
        %v5463 = vrot.slane %v5461, 3
        %v5464 = vshll.u32 %v5340, 16
        %v5466 = vrot.slane %v5464, 4
        %v5467 = vor.u32 %v5463, %v5466
        %v5468 = vsel %vm1046, %v5458, %v5467
        %v5470 = vshrl.u32 %v5341, 16
        %v5472 = vrot.slane %v5470, 3
        %v5473 = vshll.u32 %v5341, 16
        %v5475 = vrot.slane %v5473, 4
        %v5476 = vor.u32 %v5472, %v5475
        %v5477 = vsel %vm1046, %v5467, %v5476
        %v5479 = vshrl.u32 %v5342, 16
        %v5481 = vrot.slane %v5479, 3
        %v5482 = vshll.u32 %v5342, 16
        %v5484 = vrot.slane %v5482, 4
        %v5485 = vor.u32 %v5481, %v5484
        %v5486 = vsel %vm1046, %v5476, %v5485
        %v5488 = vshrl.u32 %v5343, 16
        %v5490 = vrot.slane %v5488, 3
        %v5491 = vshll.u32 %v5343, 16
        %v5493 = vrot.slane %v5491, 4
        %v5494 = vor.u32 %v5490, %v5493
        %v5495 = vsel %vm1046, %v5485, %v5494
        %5512 = vst [vmem:[#allocation3 + $0x30] sm:$0xff] %v5360
        %5513 = vst [vmem:[#allocation3 + $0x78] sm:$0xff] %v5369
        %5514 = vst [vmem:[#allocation3 + $0xc0] sm:$0xff] %v5378
        %5515 = vst [vmem:[#allocation3 + $0x108] sm:$0xff] %v5387
        %5516 = vst [vmem:[#allocation3 + $0x150] sm:$0xff] %v5396
        %5517 = vst [vmem:[#allocation3 + $0x198] sm:$0xff] %v5405
        %5518 = vst [vmem:[#allocation3 + $0x1e0] sm:$0xff] %v5414
        %5519 = vst [vmem:[#allocation3 + $0x228] sm:$0xff] %v5423
        %5520 = vst [vmem:[#allocation3 + $0x270] sm:$0xff] %v5432
        %5521 = vst [vmem:[#allocation3 + $0x2b8] sm:$0xff] %v5441
        %5522 = vst [vmem:[#allocation3 + $0x300] sm:$0xff] %v5450
        %5523 = vst [vmem:[#allocation3 + $0x348] sm:$0xff] %v5459
        %5524 = vst [vmem:[#allocation3 + $0x390] sm:$0xff] %v5468
        %5525 = vst [vmem:[#allocation3 + $0x3d8] sm:$0xff] %v5477
        %5526 = vst [vmem:[#allocation3 + $0x420] sm:$0xff] %v5486
        %5527 = vst [vmem:[#allocation3 + $0x468] sm:$0xff] %v5495
        %v5528 = vld [vmem:[#allocation2 + $0x10] sm:$0xf0]
        %v5529 = vld [vmem:[#allocation2 + $0x18] sm:$0xff]
        %v5530 = vld [vmem:[#allocation2 + $0x20] sm:$0xff]
        %v5531 = vld [vmem:[#allocation2 + $0x28] sm:$0xff]
        %v5532 = vld [vmem:[#allocation2 + $0x30] sm:$0xff]
        %v5533 = vld [vmem:[#allocation2 + $0x38] sm:$0xff]
        %v5534 = vld [vmem:[#allocation2 + $0x40] sm:$0xff]
        %v5535 = vld [vmem:[#allocation2 + $0x48] sm:$0xff]
        %v5536 = vld [vmem:[#allocation2 + $0x50] sm:$0xff]
        %v5537 = vld [vmem:[#allocation2 + $0x58] sm:$0xff]
        %v5538 = vld [vmem:[#allocation2 + $0x60] sm:$0xff]
        %v5539 = vld [vmem:[#allocation2 + $0x68] sm:$0xff]
        %v5540 = vld [vmem:[#allocation2 + $0x70] sm:$0xff]
        %v5541 = vld [vmem:[#allocation2 + $0x78] sm:$0xff]
        %v5542 = vld [vmem:[#allocation2 + $0x80] sm:$0xff]
        %v5543 = vld [vmem:[#allocation2 + $0x88] sm:$0xff]
        %v5544 = vld [vmem:[#allocation2 + $0x90] sm:$0xf]
        %v5562 = vrot.slane %v5528, 4
        %v5563 = vrot.slane %v5529, 4
        %v5564 = vsel %vm963, %v5562, %v5563
        %v5565 = vrot.slane %v5530, 4
        %v5566 = vsel %vm963, %v5563, %v5565
        %v5567 = vrot.slane %v5531, 4
        %v5568 = vsel %vm963, %v5565, %v5567
        %v5569 = vrot.slane %v5532, 4
        %v5570 = vsel %vm963, %v5567, %v5569
        %v5571 = vrot.slane %v5533, 4
        %v5572 = vsel %vm963, %v5569, %v5571
        %v5573 = vrot.slane %v5534, 4
        %v5574 = vsel %vm963, %v5571, %v5573
        %v5575 = vrot.slane %v5535, 4
        %v5576 = vsel %vm963, %v5573, %v5575
        %v5577 = vrot.slane %v5536, 4
        %v5578 = vsel %vm963, %v5575, %v5577
        %v5579 = vrot.slane %v5537, 4
        %v5580 = vsel %vm963, %v5577, %v5579
        %v5581 = vrot.slane %v5538, 4
        %v5582 = vsel %vm963, %v5579, %v5581
        %v5583 = vrot.slane %v5539, 4
        %v5584 = vsel %vm963, %v5581, %v5583
        %v5585 = vrot.slane %v5540, 4
        %v5586 = vsel %vm963, %v5583, %v5585
        %v5587 = vrot.slane %v5541, 4
        %v5588 = vsel %vm963, %v5585, %v5587
        %v5589 = vrot.slane %v5542, 4
        %v5590 = vsel %vm963, %v5587, %v5589
        %v5591 = vrot.slane %v5543, 4
        %v5592 = vsel %vm963, %v5589, %v5591
        %v5593 = vrot.slane %v5544, 4
        %v5594 = vsel %vm963, %v5591, %v5593
        %5611 = vst [vmem:[#allocation3 + $0x38] sm:$0xff] %v5564
        %5612 = vst [vmem:[#allocation3 + $0x80] sm:$0xff] %v5566
        %5613 = vst [vmem:[#allocation3 + $0xc8] sm:$0xff] %v5568
        %5614 = vst [vmem:[#allocation3 + $0x110] sm:$0xff] %v5570
        %5615 = vst [vmem:[#allocation3 + $0x158] sm:$0xff] %v5572
        %5616 = vst [vmem:[#allocation3 + $0x1a0] sm:$0xff] %v5574
        %5617 = vst [vmem:[#allocation3 + $0x1e8] sm:$0xff] %v5576
        %5618 = vst [vmem:[#allocation3 + $0x230] sm:$0xff] %v5578
        %5619 = vst [vmem:[#allocation3 + $0x278] sm:$0xff] %v5580
        %5620 = vst [vmem:[#allocation3 + $0x2c0] sm:$0xff] %v5582
        %5621 = vst [vmem:[#allocation3 + $0x308] sm:$0xff] %v5584
        %5622 = vst [vmem:[#allocation3 + $0x350] sm:$0xff] %v5586
        %5623 = vst [vmem:[#allocation3 + $0x398] sm:$0xff] %v5588
        %5624 = vst [vmem:[#allocation3 + $0x3e0] sm:$0xff] %v5590
        %5625 = vst [vmem:[#allocation3 + $0x428] sm:$0xff] %v5592
        %5626 = vst [vmem:[#allocation3 + $0x470] sm:$0xff] %v5594
        %v5627 = vld [vmem:[#allocation2 + $0x10] sm:$0xf0]
        %v5628 = vld [vmem:[#allocation2 + $0x18] sm:$0xff]
        %v5629 = vld [vmem:[#allocation2 + $0x20] sm:$0xff]
        %v5630 = vld [vmem:[#allocation2 + $0x28] sm:$0xff]
        %v5631 = vld [vmem:[#allocation2 + $0x30] sm:$0xff]
        %v5632 = vld [vmem:[#allocation2 + $0x38] sm:$0xff]
        %v5633 = vld [vmem:[#allocation2 + $0x40] sm:$0xff]
        %v5634 = vld [vmem:[#allocation2 + $0x48] sm:$0xff]
        %v5635 = vld [vmem:[#allocation2 + $0x50] sm:$0xff]
        %v5636 = vld [vmem:[#allocation2 + $0x58] sm:$0xff]
        %v5637 = vld [vmem:[#allocation2 + $0x60] sm:$0xff]
        %v5638 = vld [vmem:[#allocation2 + $0x68] sm:$0xff]
        %v5639 = vld [vmem:[#allocation2 + $0x70] sm:$0xff]
        %v5640 = vld [vmem:[#allocation2 + $0x78] sm:$0xff]
        %v5641 = vld [vmem:[#allocation2 + $0x80] sm:$0xff]
        %v5642 = vld [vmem:[#allocation2 + $0x88] sm:$0xff]
        %v5643 = vld [vmem:[#allocation2 + $0x90] sm:$0x1f]
        %v5645 = vshrl.u32 %v5627, 16
        %v5647 = vrot.slane %v5645, 4
        %v5648 = vshll.u32 %v5627, 16
        %v5650 = vrot.slane %v5648, 5
        %v5651 = vor.u32 %v5647, %v5650
        %v5653 = vshrl.u32 %v5628, 16
        %v5655 = vrot.slane %v5653, 4
        %v5656 = vshll.u32 %v5628, 16
        %v5658 = vrot.slane %v5656, 5
        %v5659 = vor.u32 %v5655, %v5658
        %v5660 = vsel %vm1347, %v5651, %v5659
        %v5662 = vshrl.u32 %v5629, 16
        %v5664 = vrot.slane %v5662, 4
        %v5665 = vshll.u32 %v5629, 16
        %v5667 = vrot.slane %v5665, 5
        %v5668 = vor.u32 %v5664, %v5667
        %v5669 = vsel %vm1347, %v5659, %v5668
        %v5671 = vshrl.u32 %v5630, 16
        %v5673 = vrot.slane %v5671, 4
        %v5674 = vshll.u32 %v5630, 16
        %v5676 = vrot.slane %v5674, 5
        %v5677 = vor.u32 %v5673, %v5676
        %v5678 = vsel %vm1347, %v5668, %v5677
        %v5680 = vshrl.u32 %v5631, 16
        %v5682 = vrot.slane %v5680, 4
        %v5683 = vshll.u32 %v5631, 16
        %v5685 = vrot.slane %v5683, 5
        %v5686 = vor.u32 %v5682, %v5685
        %v5687 = vsel %vm1347, %v5677, %v5686
        %v5689 = vshrl.u32 %v5632, 16
        %v5691 = vrot.slane %v5689, 4
        %v5692 = vshll.u32 %v5632, 16
        %v5694 = vrot.slane %v5692, 5
        %v5695 = vor.u32 %v5691, %v5694
        %v5696 = vsel %vm1347, %v5686, %v5695
        %v5698 = vshrl.u32 %v5633, 16
        %v5700 = vrot.slane %v5698, 4
        %v5701 = vshll.u32 %v5633, 16
        %v5703 = vrot.slane %v5701, 5
        %v5704 = vor.u32 %v5700, %v5703
        %v5705 = vsel %vm1347, %v5695, %v5704
        %v5707 = vshrl.u32 %v5634, 16
        %v5709 = vrot.slane %v5707, 4
        %v5710 = vshll.u32 %v5634, 16
        %v5712 = vrot.slane %v5710, 5
        %v5713 = vor.u32 %v5709, %v5712
        %v5714 = vsel %vm1347, %v5704, %v5713
        %v5716 = vshrl.u32 %v5635, 16
        %v5718 = vrot.slane %v5716, 4
        %v5719 = vshll.u32 %v5635, 16
        %v5721 = vrot.slane %v5719, 5
        %v5722 = vor.u32 %v5718, %v5721
        %v5723 = vsel %vm1347, %v5713, %v5722
        %v5725 = vshrl.u32 %v5636, 16
        %v5727 = vrot.slane %v5725, 4
        %v5728 = vshll.u32 %v5636, 16
        %v5730 = vrot.slane %v5728, 5
        %v5731 = vor.u32 %v5727, %v5730
        %v5732 = vsel %vm1347, %v5722, %v5731
        %v5734 = vshrl.u32 %v5637, 16
        %v5736 = vrot.slane %v5734, 4
        %v5737 = vshll.u32 %v5637, 16
        %v5739 = vrot.slane %v5737, 5
        %v5740 = vor.u32 %v5736, %v5739
        %v5741 = vsel %vm1347, %v5731, %v5740
        %v5743 = vshrl.u32 %v5638, 16
        %v5745 = vrot.slane %v5743, 4
        %v5746 = vshll.u32 %v5638, 16
        %v5748 = vrot.slane %v5746, 5
        %v5749 = vor.u32 %v5745, %v5748
        %v5750 = vsel %vm1347, %v5740, %v5749
        %v5752 = vshrl.u32 %v5639, 16
        %v5754 = vrot.slane %v5752, 4
        %v5755 = vshll.u32 %v5639, 16
        %v5757 = vrot.slane %v5755, 5
        %v5758 = vor.u32 %v5754, %v5757
        %v5759 = vsel %vm1347, %v5749, %v5758
        %v5761 = vshrl.u32 %v5640, 16
        %v5763 = vrot.slane %v5761, 4
        %v5764 = vshll.u32 %v5640, 16
        %v5766 = vrot.slane %v5764, 5
        %v5767 = vor.u32 %v5763, %v5766
        %v5768 = vsel %vm1347, %v5758, %v5767
        %v5770 = vshrl.u32 %v5641, 16
        %v5772 = vrot.slane %v5770, 4
        %v5773 = vshll.u32 %v5641, 16
        %v5775 = vrot.slane %v5773, 5
        %v5776 = vor.u32 %v5772, %v5775
        %v5777 = vsel %vm1347, %v5767, %v5776
        %v5779 = vshrl.u32 %v5642, 16
        %v5781 = vrot.slane %v5779, 4
        %v5782 = vshll.u32 %v5642, 16
        %v5784 = vrot.slane %v5782, 5
        %v5785 = vor.u32 %v5781, %v5784
        %v5786 = vsel %vm1347, %v5776, %v5785
        %v5788 = vshrl.u32 %v5643, 16
        %v5790 = vrot.slane %v5788, 4
        %v5791 = vshll.u32 %v5643, 16
        %v5793 = vrot.slane %v5791, 5
        %v5794 = vor.u32 %v5790, %v5793
        %v5795 = vsel %vm1347, %v5785, %v5794
        %5812 = vst [vmem:[#allocation3 + $0x40] sm:$0xff] %v5660
        %5813 = vst [vmem:[#allocation3 + $0x88] sm:$0xff] %v5669
        %5814 = vst [vmem:[#allocation3 + $0xd0] sm:$0xff] %v5678
        %5815 = vst [vmem:[#allocation3 + $0x118] sm:$0xff] %v5687
        %5816 = vst [vmem:[#allocation3 + $0x160] sm:$0xff] %v5696
        %5817 = vst [vmem:[#allocation3 + $0x1a8] sm:$0xff] %v5705
        %5818 = vst [vmem:[#allocation3 + $0x1f0] sm:$0xff] %v5714
        %5819 = vst [vmem:[#allocation3 + $0x238] sm:$0xff] %v5723
        %5820 = vst [vmem:[#allocation3 + $0x280] sm:$0xff] %v5732
        %5821 = vst [vmem:[#allocation3 + $0x2c8] sm:$0xff] %v5741
        %5822 = vst [vmem:[#allocation3 + $0x310] sm:$0xff] %v5750
        %5823 = vst [vmem:[#allocation3 + $0x358] sm:$0xff] %v5759
        %5824 = vst [vmem:[#allocation3 + $0x3a0] sm:$0xff] %v5768
        %5825 = vst [vmem:[#allocation3 + $0x3e8] sm:$0xff] %v5777
        %5826 = vst [vmem:[#allocation3 + $0x430] sm:$0xff] %v5786
        %5827 = vst [vmem:[#allocation3 + $0x478] sm:$0xff] %v5795
        %v5828 = vld [vmem:[#allocation3] sm:$0xff]
        %v5829 = vld [vmem:[#allocation3 + $0x8] sm:$0xff]
        %v5830 = vld [vmem:[#allocation3 + $0x10] sm:$0xff]
        %v5831 = vld [vmem:[#allocation3 + $0x18] sm:$0xff]
        %v5832 = vld [vmem:[#allocation3 + $0x20] sm:$0xff]
        %v5833 = vld [vmem:[#allocation3 + $0x28] sm:$0xff]
        %v5834 = vld [vmem:[#allocation3 + $0x30] sm:$0xff]
        %v5835 = vld [vmem:[#allocation3 + $0x38] sm:$0xff]
        %v5836 = vld [vmem:[#allocation3 + $0x40] sm:$0xff]
        %v5837 = vld [vmem:[#allocation3 + $0x48] sm:$0xff]
        %v5838 = vld [vmem:[#allocation3 + $0x50] sm:$0xff]
        %v5839 = vld [vmem:[#allocation3 + $0x58] sm:$0xff]
        %v5840 = vld [vmem:[#allocation3 + $0x60] sm:$0xff]
        %v5841 = vld [vmem:[#allocation3 + $0x68] sm:$0xff]
        %v5842 = vld [vmem:[#allocation3 + $0x70] sm:$0xff]
        %v5843 = vld [vmem:[#allocation3 + $0x78] sm:$0xff]
        %v5844 = vld [vmem:[#allocation3 + $0x80] sm:$0xff]
        %v5845 = vld [vmem:[#allocation3 + $0x88] sm:$0xff]
        %v5846 = vld [vmem:[#allocation3 + $0x90] sm:$0xff]
        %v5847 = vld [vmem:[#allocation3 + $0x98] sm:$0xff]
        %v5848 = vld [vmem:[#allocation3 + $0xa0] sm:$0xff]
        %v5849 = vld [vmem:[#allocation3 + $0xa8] sm:$0xff]
        %v5850 = vld [vmem:[#allocation3 + $0xb0] sm:$0xff]
        %v5851 = vld [vmem:[#allocation3 + $0xb8] sm:$0xff]
        %v5852 = vld [vmem:[#allocation3 + $0xc0] sm:$0xff]
        %v5853 = vld [vmem:[#allocation3 + $0xc8] sm:$0xff]
        %v5854 = vld [vmem:[#allocation3 + $0xd0] sm:$0xff]
        %v5855 = vld [vmem:[#allocation3 + $0xd8] sm:$0xff]
        %v5856 = vld [vmem:[#allocation3 + $0xe0] sm:$0xff]
        %v5857 = vld [vmem:[#allocation3 + $0xe8] sm:$0xff]
        %v5858 = vld [vmem:[#allocation3 + $0xf0] sm:$0xff]
        %v5859 = vld [vmem:[#allocation3 + $0xf8] sm:$0xff]
        %v5860 = vld [vmem:[#allocation3 + $0x100] sm:$0xff]
        %v5861 = vld [vmem:[#allocation3 + $0x108] sm:$0xff]
        %v5862 = vld [vmem:[#allocation3 + $0x110] sm:$0xff]
        %v5863 = vld [vmem:[#allocation3 + $0x118] sm:$0xff]
        %v5864 = vld [vmem:[#allocation3 + $0x120] sm:$0xff]
        %v5865 = vld [vmem:[#allocation3 + $0x128] sm:$0xff]
        %v5866 = vld [vmem:[#allocation3 + $0x130] sm:$0xff]
        %v5867 = vld [vmem:[#allocation3 + $0x138] sm:$0xff]
        %v5868 = vld [vmem:[#allocation3 + $0x140] sm:$0xff]
        %v5869 = vld [vmem:[#allocation3 + $0x148] sm:$0xff]
        %v5870 = vld [vmem:[#allocation3 + $0x150] sm:$0xff]
        %v5871 = vld [vmem:[#allocation3 + $0x158] sm:$0xff]
        %v5872 = vld [vmem:[#allocation3 + $0x160] sm:$0xff]
        %v5873 = vld [vmem:[#allocation3 + $0x168] sm:$0xff]
        %v5874 = vld [vmem:[#allocation3 + $0x170] sm:$0xff]
        %v5875 = vld [vmem:[#allocation3 + $0x178] sm:$0xff]
        %v5876 = vld [vmem:[#allocation3 + $0x180] sm:$0xff]
        %v5877 = vld [vmem:[#allocation3 + $0x188] sm:$0xff]
        %v5878 = vld [vmem:[#allocation3 + $0x190] sm:$0xff]
        %v5879 = vld [vmem:[#allocation3 + $0x198] sm:$0xff]
        %v5880 = vld [vmem:[#allocation3 + $0x1a0] sm:$0xff]
        %v5881 = vld [vmem:[#allocation3 + $0x1a8] sm:$0xff]
        %v5882 = vld [vmem:[#allocation3 + $0x1b0] sm:$0xff]
        %v5883 = vld [vmem:[#allocation3 + $0x1b8] sm:$0xff]
        %v5884 = vld [vmem:[#allocation3 + $0x1c0] sm:$0xff]
        %v5885 = vld [vmem:[#allocation3 + $0x1c8] sm:$0xff]
        %v5886 = vld [vmem:[#allocation3 + $0x1d0] sm:$0xff]
        %v5887 = vld [vmem:[#allocation3 + $0x1d8] sm:$0xff]
        %v5888 = vld [vmem:[#allocation3 + $0x1e0] sm:$0xff]
        %v5889 = vld [vmem:[#allocation3 + $0x1e8] sm:$0xff]
        %v5890 = vld [vmem:[#allocation3 + $0x1f0] sm:$0xff]
        %v5891 = vld [vmem:[#allocation3 + $0x1f8] sm:$0xff]
        %v5892 = vld [vmem:[#allocation3 + $0x200] sm:$0xff]
        %v5893 = vld [vmem:[#allocation3 + $0x208] sm:$0xff]
        %v5894 = vld [vmem:[#allocation3 + $0x210] sm:$0xff]
        %v5895 = vld [vmem:[#allocation3 + $0x218] sm:$0xff]
        %v5896 = vld [vmem:[#allocation3 + $0x220] sm:$0xff]
        %v5897 = vld [vmem:[#allocation3 + $0x228] sm:$0xff]
        %v5898 = vld [vmem:[#allocation3 + $0x230] sm:$0xff]
        %v5899 = vld [vmem:[#allocation3 + $0x238] sm:$0xff]
        %v5900 = vld [vmem:[#allocation3 + $0x240] sm:$0xff]
        %v5901 = vld [vmem:[#allocation3 + $0x248] sm:$0xff]
        %v5902 = vld [vmem:[#allocation3 + $0x250] sm:$0xff]
        %v5903 = vld [vmem:[#allocation3 + $0x258] sm:$0xff]
        %v5904 = vld [vmem:[#allocation3 + $0x260] sm:$0xff]
        %v5905 = vld [vmem:[#allocation3 + $0x268] sm:$0xff]
        %v5906 = vld [vmem:[#allocation3 + $0x270] sm:$0xff]
        %v5907 = vld [vmem:[#allocation3 + $0x278] sm:$0xff]
        %v5908 = vld [vmem:[#allocation3 + $0x280] sm:$0xff]
        %v5909 = vld [vmem:[#allocation3 + $0x288] sm:$0xff]
        %v5910 = vld [vmem:[#allocation3 + $0x290] sm:$0xff]
        %v5911 = vld [vmem:[#allocation3 + $0x298] sm:$0xff]
        %v5912 = vld [vmem:[#allocation3 + $0x2a0] sm:$0xff]
        %v5913 = vld [vmem:[#allocation3 + $0x2a8] sm:$0xff]
        %v5914 = vld [vmem:[#allocation3 + $0x2b0] sm:$0xff]
        %v5915 = vld [vmem:[#allocation3 + $0x2b8] sm:$0xff]
        %v5916 = vld [vmem:[#allocation3 + $0x2c0] sm:$0xff]
        %v5917 = vld [vmem:[#allocation3 + $0x2c8] sm:$0xff]
        %v5918 = vld [vmem:[#allocation3 + $0x2d0] sm:$0xff]
        %v5919 = vld [vmem:[#allocation3 + $0x2d8] sm:$0xff]
        %v5920 = vld [vmem:[#allocation3 + $0x2e0] sm:$0xff]
        %v5921 = vld [vmem:[#allocation3 + $0x2e8] sm:$0xff]
        %v5922 = vld [vmem:[#allocation3 + $0x2f0] sm:$0xff]
        %v5923 = vld [vmem:[#allocation3 + $0x2f8] sm:$0xff]
        %v5924 = vld [vmem:[#allocation3 + $0x300] sm:$0xff]
        %v5925 = vld [vmem:[#allocation3 + $0x308] sm:$0xff]
        %v5926 = vld [vmem:[#allocation3 + $0x310] sm:$0xff]
        %v5927 = vld [vmem:[#allocation3 + $0x318] sm:$0xff]
        %v5928 = vld [vmem:[#allocation3 + $0x320] sm:$0xff]
        %v5929 = vld [vmem:[#allocation3 + $0x328] sm:$0xff]
        %v5930 = vld [vmem:[#allocation3 + $0x330] sm:$0xff]
        %v5931 = vld [vmem:[#allocation3 + $0x338] sm:$0xff]
        %v5932 = vld [vmem:[#allocation3 + $0x340] sm:$0xff]
        %v5933 = vld [vmem:[#allocation3 + $0x348] sm:$0xff]
        %v5934 = vld [vmem:[#allocation3 + $0x350] sm:$0xff]
        %v5935 = vld [vmem:[#allocation3 + $0x358] sm:$0xff]
        %v5936 = vld [vmem:[#allocation3 + $0x360] sm:$0xff]
        %v5937 = vld [vmem:[#allocation3 + $0x368] sm:$0xff]
        %v5938 = vld [vmem:[#allocation3 + $0x370] sm:$0xff]
        %v5939 = vld [vmem:[#allocation3 + $0x378] sm:$0xff]
        %v5940 = vld [vmem:[#allocation3 + $0x380] sm:$0xff]
        %v5941 = vld [vmem:[#allocation3 + $0x388] sm:$0xff]
        %v5942 = vld [vmem:[#allocation3 + $0x390] sm:$0xff]
        %v5943 = vld [vmem:[#allocation3 + $0x398] sm:$0xff]
        %v5944 = vld [vmem:[#allocation3 + $0x3a0] sm:$0xff]
        %v5945 = vld [vmem:[#allocation3 + $0x3a8] sm:$0xff]
        %v5946 = vld [vmem:[#allocation3 + $0x3b0] sm:$0xff]
        %v5947 = vld [vmem:[#allocation3 + $0x3b8] sm:$0xff]
        %v5948 = vld [vmem:[#allocation3 + $0x3c0] sm:$0xff]
        %v5949 = vld [vmem:[#allocation3 + $0x3c8] sm:$0xff]
        %v5950 = vld [vmem:[#allocation3 + $0x3d0] sm:$0xff]
        %v5951 = vld [vmem:[#allocation3 + $0x3d8] sm:$0xff]
        %v5952 = vld [vmem:[#allocation3 + $0x3e0] sm:$0xff]
        %v5953 = vld [vmem:[#allocation3 + $0x3e8] sm:$0xff]
        %v5954 = vld [vmem:[#allocation3 + $0x3f0] sm:$0xff]
        %v5955 = vld [vmem:[#allocation3 + $0x3f8] sm:$0xff]
        %v5956 = vld [vmem:[#allocation3 + $0x400] sm:$0xff]
        %v5957 = vld [vmem:[#allocation3 + $0x408] sm:$0xff]
        %v5958 = vld [vmem:[#allocation3 + $0x410] sm:$0xff]
        %v5959 = vld [vmem:[#allocation3 + $0x418] sm:$0xff]
        %v5960 = vld [vmem:[#allocation3 + $0x420] sm:$0xff]
        %v5961 = vld [vmem:[#allocation3 + $0x428] sm:$0xff]
        %v5962 = vld [vmem:[#allocation3 + $0x430] sm:$0xff]
        %v5963 = vld [vmem:[#allocation3 + $0x438] sm:$0xff]
        %v5964 = vld [vmem:[#allocation3 + $0x440] sm:$0xff]
        %v5965 = vld [vmem:[#allocation3 + $0x448] sm:$0xff]
        %v5966 = vld [vmem:[#allocation3 + $0x450] sm:$0xff]
        %v5967 = vld [vmem:[#allocation3 + $0x458] sm:$0xff]
        %v5968 = vld [vmem:[#allocation3 + $0x460] sm:$0xff]
        %v5969 = vld [vmem:[#allocation3 + $0x468] sm:$0xff]
        %v5970 = vld [vmem:[#allocation3 + $0x470] sm:$0xff]
        %v5971 = vld [vmem:[#allocation3 + $0x478] sm:$0xff]
        %v5972 = vld [vmem:[%s5] sm:$0xf]
        %v5973 = vld [vmem:[%s5 + $0x4] sm:$0xf]
        %v5974 = vld [vmem:[%s5 + $0x8] sm:$0xf]
        %v5975 = vld [vmem:[%s5 + $0xc] sm:$0xf]
        %v5976 = vld [vmem:[%s5 + $0x10] sm:$0xf]
        %v5977 = vld [vmem:[%s5 + $0x14] sm:$0xf]
        %v5978 = vld [vmem:[%s5 + $0x18] sm:$0xf]
        %v5979 = vld [vmem:[%s5 + $0x1c] sm:$0xf]
        %v5980 = vld [vmem:[%s5 + $0x20] sm:$0xf]
        %v5981 = vld [vmem:[%s5 + $0x24] sm:$0xf]
        %v5982 = vld [vmem:[%s5 + $0x28] sm:$0xf]
        %v5983 = vld [vmem:[%s5 + $0x2c] sm:$0xf]
        %v5984 = vld [vmem:[%s5 + $0x30] sm:$0xf]
        %v5985 = vld [vmem:[%s5 + $0x34] sm:$0xf]
        %v5986 = vld [vmem:[%s5 + $0x38] sm:$0xf]
        %v5987 = vld [vmem:[%s5 + $0x3c] sm:$0xf]
        %v5988 = vld [vmem:[%s5 + $0x40] sm:$0xf]
        %v5989 = vld [vmem:[%s5 + $0x44] sm:$0xf]
        %v5990 = vld [vmem:[%s5 + $0x48] sm:$0xf]
        %v5991 = vld [vmem:[%s5 + $0x4c] sm:$0xf]
        %v5992 = vld [vmem:[%s5 + $0x50] sm:$0xf]
        %v5993 = vld [vmem:[%s5 + $0x54] sm:$0xf]
        %v5994 = vld [vmem:[%s5 + $0x58] sm:$0xf]
        %v5995 = vld [vmem:[%s5 + $0x5c] sm:$0xf]
        %v5996 = vld [vmem:[%s5 + $0x60] sm:$0xf]
        %v5997 = vld [vmem:[%s5 + $0x64] sm:$0xf]
        %v5998 = vld [vmem:[%s5 + $0x68] sm:$0xf]
        %v5999 = vld [vmem:[%s5 + $0x6c] sm:$0xf]
        %v6000 = vld [vmem:[%s5 + $0x70] sm:$0xf]
        %v6001 = vld [vmem:[%s5 + $0x74] sm:$0xf]
        %v6002 = vld [vmem:[%s5 + $0x78] sm:$0xf]
        %v6003 = vld [vmem:[%s5 + $0x7c] sm:$0xf]
        %v6004 = vld [vmem:[%s5 + $0x80] sm:$0xf]
        %v6005 = vld [vmem:[%s5 + $0x84] sm:$0xf]
        %v6006 = vld [vmem:[%s5 + $0x88] sm:$0xf]
        %v6007 = vld [vmem:[%s5 + $0x8c] sm:$0xf]
        %v6008 = vld [vmem:[%s5 + $0x90] sm:$0xf]
        %v6009 = vld [vmem:[%s5 + $0x94] sm:$0xf]
        %v6010 = vld [vmem:[%s5 + $0x98] sm:$0xf]
        %v6011 = vld [vmem:[%s5 + $0x9c] sm:$0xf]
        %v6012 = vld [vmem:[%s5 + $0xa0] sm:$0xf]
        %v6013 = vld [vmem:[%s5 + $0xa4] sm:$0xf]
        %v6014 = vld [vmem:[%s5 + $0xa8] sm:$0xf]
        %v6015 = vld [vmem:[%s5 + $0xac] sm:$0xf]
        %v6016 = vld [vmem:[%s5 + $0xb0] sm:$0xf]
        %v6017 = vld [vmem:[%s5 + $0xb4] sm:$0xf]
        %v6018 = vld [vmem:[%s5 + $0xb8] sm:$0xf]
        %v6019 = vld [vmem:[%s5 + $0xbc] sm:$0xf]
        %v6020 = vld [vmem:[%s5 + $0xc0] sm:$0xf]
        %v6021 = vld [vmem:[%s5 + $0xc4] sm:$0xf]
        %v6022 = vld [vmem:[%s5 + $0xc8] sm:$0xf]
        %v6023 = vld [vmem:[%s5 + $0xcc] sm:$0xf]
        %v6024 = vld [vmem:[%s5 + $0xd0] sm:$0xf]
        %v6025 = vld [vmem:[%s5 + $0xd4] sm:$0xf]
        %v6026 = vld [vmem:[%s5 + $0xd8] sm:$0xf]
        %v6027 = vld [vmem:[%s5 + $0xdc] sm:$0xf]
        %v6028 = vld [vmem:[%s5 + $0xe0] sm:$0xf]
        %v6029 = vld [vmem:[%s5 + $0xe4] sm:$0xf]
        %v6030 = vld [vmem:[%s5 + $0xe8] sm:$0xf]
        %v6031 = vld [vmem:[%s5 + $0xec] sm:$0xf]
        %v6032 = vld [vmem:[%s5 + $0xf0] sm:$0xf]
        %v6033 = vld [vmem:[%s5 + $0xf4] sm:$0xf]
        %v6034 = vld [vmem:[%s5 + $0xf8] sm:$0xf]
        %v6035 = vld [vmem:[%s5 + $0xfc] sm:$0xf]
        %v6036 = vld [vmem:[%s5 + $0x100] sm:$0xf]
        %v6037 = vld [vmem:[%s5 + $0x104] sm:$0xf]
        %v6038 = vld [vmem:[%s5 + $0x108] sm:$0xf]
        %v6039 = vld [vmem:[%s5 + $0x10c] sm:$0xf]
        %v6040 = vld [vmem:[%s5 + $0x110] sm:$0xf]
        %v6041 = vld [vmem:[%s5 + $0x114] sm:$0xf]
        %v6042 = vld [vmem:[%s5 + $0x118] sm:$0xf]
        %v6043 = vld [vmem:[%s5 + $0x11c] sm:$0xf]
        %v6044 = vld [vmem:[%s5 + $0x120] sm:$0xf]
        %v6045 = vld [vmem:[%s5 + $0x124] sm:$0xf]
        %v6046 = vld [vmem:[%s5 + $0x128] sm:$0xf]
        %v6047 = vld [vmem:[%s5 + $0x12c] sm:$0xf]
        %v6048 = vld [vmem:[%s5 + $0x130] sm:$0xf]
        %v6049 = vld [vmem:[%s5 + $0x134] sm:$0xf]
        %v6050 = vld [vmem:[%s5 + $0x138] sm:$0xf]
        %v6051 = vld [vmem:[%s5 + $0x13c] sm:$0xf]
        %v6052 = vld [vmem:[%s5 + $0x140] sm:$0xf]
        %v6053 = vld [vmem:[%s5 + $0x144] sm:$0xf]
        %v6054 = vld [vmem:[%s5 + $0x148] sm:$0xf]
        %v6055 = vld [vmem:[%s5 + $0x14c] sm:$0xf]
        %v6056 = vld [vmem:[%s5 + $0x150] sm:$0xf]
        %v6057 = vld [vmem:[%s5 + $0x154] sm:$0xf]
        %v6058 = vld [vmem:[%s5 + $0x158] sm:$0xf]
        %v6059 = vld [vmem:[%s5 + $0x15c] sm:$0xf]
        %v6060 = vld [vmem:[%s5 + $0x160] sm:$0xf]
        %v6061 = vld [vmem:[%s5 + $0x164] sm:$0xf]
        %v6062 = vld [vmem:[%s5 + $0x168] sm:$0xf]
        %v6063 = vld [vmem:[%s5 + $0x16c] sm:$0xf]
        %v6064 = vld [vmem:[%s5 + $0x170] sm:$0xf]
        %v6065 = vld [vmem:[%s5 + $0x174] sm:$0xf]
        %v6066 = vld [vmem:[%s5 + $0x178] sm:$0xf]
        %v6067 = vld [vmem:[%s5 + $0x17c] sm:$0xf]
        %v6068 = vld [vmem:[%s5 + $0x180] sm:$0xf]
        %v6069 = vld [vmem:[%s5 + $0x184] sm:$0xf]
        %v6070 = vld [vmem:[%s5 + $0x188] sm:$0xf]
        %v6071 = vld [vmem:[%s5 + $0x18c] sm:$0xf]
        %v6072 = vld [vmem:[%s5 + $0x190] sm:$0xf]
        %v6073 = vld [vmem:[%s5 + $0x194] sm:$0xf]
        %v6074 = vld [vmem:[%s5 + $0x198] sm:$0xf]
        %v6075 = vld [vmem:[%s5 + $0x19c] sm:$0xf]
        %v6076 = vld [vmem:[%s5 + $0x1a0] sm:$0xf]
        %v6077 = vld [vmem:[%s5 + $0x1a4] sm:$0xf]
        %v6078 = vld [vmem:[%s5 + $0x1a8] sm:$0xf]
        %v6079 = vld [vmem:[%s5 + $0x1ac] sm:$0xf]
        %v6080 = vld [vmem:[%s5 + $0x1b0] sm:$0xf]
        %v6081 = vld [vmem:[%s5 + $0x1b4] sm:$0xf]
        %v6082 = vld [vmem:[%s5 + $0x1b8] sm:$0xf]
        %v6083 = vld [vmem:[%s5 + $0x1bc] sm:$0xf]
        %v6084 = vld [vmem:[%s5 + $0x1c0] sm:$0xf]
        %v6085 = vld [vmem:[%s5 + $0x1c4] sm:$0xf]
        %v6086 = vld [vmem:[%s5 + $0x1c8] sm:$0xf]
        %v6087 = vld [vmem:[%s5 + $0x1cc] sm:$0xf]
        %v6088 = vld [vmem:[%s5 + $0x1d0] sm:$0xf]
        %v6089 = vld [vmem:[%s5 + $0x1d4] sm:$0xf]
        %v6090 = vld [vmem:[%s5 + $0x1d8] sm:$0xf]
        %v6091 = vld [vmem:[%s5 + $0x1dc] sm:$0xf]
        %v6092 = vld [vmem:[%s5 + $0x1e0] sm:$0xf]
        %v6093 = vld [vmem:[%s5 + $0x1e4] sm:$0xf]
        %v6094 = vld [vmem:[%s5 + $0x1e8] sm:$0xf]
        %v6095 = vld [vmem:[%s5 + $0x1ec] sm:$0xf]
        %v6096 = vld [vmem:[%s5 + $0x1f0] sm:$0xf]
        %v6097 = vld [vmem:[%s5 + $0x1f4] sm:$0xf]
        %v6098 = vld [vmem:[%s5 + $0x1f8] sm:$0xf]
        %v6099 = vld [vmem:[%s5 + $0x1fc] sm:$0xf]
        %v6100 = vld [vmem:[%s5 + $0x200] sm:$0xf]
        %v6101 = vld [vmem:[%s5 + $0x204] sm:$0xf]
        %v6102 = vld [vmem:[%s5 + $0x208] sm:$0xf]
        %v6103 = vld [vmem:[%s5 + $0x20c] sm:$0xf]
        %v6104 = vld [vmem:[%s5 + $0x210] sm:$0xf]
        %v6105 = vld [vmem:[%s5 + $0x214] sm:$0xf]
        %v6106 = vld [vmem:[%s5 + $0x218] sm:$0xf]
        %v6107 = vld [vmem:[%s5 + $0x21c] sm:$0xf]
        %v6108 = vld [vmem:[%s5 + $0x220] sm:$0xf]
        %v6109 = vld [vmem:[%s5 + $0x224] sm:$0xf]
        %v6110 = vld [vmem:[%s5 + $0x228] sm:$0xf]
        %v6111 = vld [vmem:[%s5 + $0x22c] sm:$0xf]
        %v6112 = vld [vmem:[%s5 + $0x230] sm:$0xf]
        %v6113 = vld [vmem:[%s5 + $0x234] sm:$0xf]
        %v6114 = vld [vmem:[%s5 + $0x238] sm:$0xf]
        %v6115 = vld [vmem:[%s5 + $0x23c] sm:$0xf]
        %v6116 = vld [vmem:[%s6] sm:$0x1]
        %v6118 = vlaneseq
        %v6119 = vshrl.u32 %v6118, 7
        %v6120 = vsub.s32 0, %v6119
        %v6121 = vrot.slane %v6116, %v6120
        %v6267 = vunpack.c.l.b16 %v5972
        %v6268 = vunpack.c.l.b16 %v5973
        %v6269 = vunpack.c.l.b16 %v5974
        %v6270 = vunpack.c.l.b16 %v5975
        %v6271 = vunpack.c.l.b16 %v5976
        %v6272 = vunpack.c.l.b16 %v5977
        %v6273 = vunpack.c.l.b16 %v5978
        %v6274 = vunpack.c.l.b16 %v5979
        %v6275 = vunpack.c.l.b16 %v5980
        %v6276 = vunpack.c.l.b16 %v5981
        %v6277 = vunpack.c.l.b16 %v5982
        %v6278 = vunpack.c.l.b16 %v5983
        %v6279 = vunpack.c.l.b16 %v5984
        %v6280 = vunpack.c.l.b16 %v5985
        %v6281 = vunpack.c.l.b16 %v5986
        %v6282 = vunpack.c.l.b16 %v5987
        %v6283 = vunpack.c.l.b16 %v5988
        %v6284 = vunpack.c.l.b16 %v5989
        %v6285 = vunpack.c.l.b16 %v5990
        %v6286 = vunpack.c.l.b16 %v5991
        %v6287 = vunpack.c.l.b16 %v5992
        %v6288 = vunpack.c.l.b16 %v5993
        %v6289 = vunpack.c.l.b16 %v5994
        %v6290 = vunpack.c.l.b16 %v5995
        %v6291 = vunpack.c.l.b16 %v5996
        %v6292 = vunpack.c.l.b16 %v5997
        %v6293 = vunpack.c.l.b16 %v5998
        %v6294 = vunpack.c.l.b16 %v5999
        %v6295 = vunpack.c.l.b16 %v6000
        %v6296 = vunpack.c.l.b16 %v6001
        %v6297 = vunpack.c.l.b16 %v6002
        %v6298 = vunpack.c.l.b16 %v6003
        %v6299 = vunpack.c.l.b16 %v6004
        %v6300 = vunpack.c.l.b16 %v6005
        %v6301 = vunpack.c.l.b16 %v6006
        %v6302 = vunpack.c.l.b16 %v6007
        %v6303 = vunpack.c.l.b16 %v6008
        %v6304 = vunpack.c.l.b16 %v6009
        %v6305 = vunpack.c.l.b16 %v6010
        %v6306 = vunpack.c.l.b16 %v6011
        %v6307 = vunpack.c.l.b16 %v6012
        %v6308 = vunpack.c.l.b16 %v6013
        %v6309 = vunpack.c.l.b16 %v6014
        %v6310 = vunpack.c.l.b16 %v6015
        %v6311 = vunpack.c.l.b16 %v6016
        %v6312 = vunpack.c.l.b16 %v6017
        %v6313 = vunpack.c.l.b16 %v6018
        %v6314 = vunpack.c.l.b16 %v6019
        %v6315 = vunpack.c.l.b16 %v6020
        %v6316 = vunpack.c.l.b16 %v6021
        %v6317 = vunpack.c.l.b16 %v6022
        %v6318 = vunpack.c.l.b16 %v6023
        %v6319 = vunpack.c.l.b16 %v6024
        %v6320 = vunpack.c.l.b16 %v6025
        %v6321 = vunpack.c.l.b16 %v6026
        %v6322 = vunpack.c.l.b16 %v6027
        %v6323 = vunpack.c.l.b16 %v6028
        %v6324 = vunpack.c.l.b16 %v6029
        %v6325 = vunpack.c.l.b16 %v6030
        %v6326 = vunpack.c.l.b16 %v6031
        %v6327 = vunpack.c.l.b16 %v6032
        %v6328 = vunpack.c.l.b16 %v6033
        %v6329 = vunpack.c.l.b16 %v6034
        %v6330 = vunpack.c.l.b16 %v6035
        %v6331 = vunpack.c.l.b16 %v6036
        %v6332 = vunpack.c.l.b16 %v6037
        %v6333 = vunpack.c.l.b16 %v6038
        %v6334 = vunpack.c.l.b16 %v6039
        %v6335 = vunpack.c.l.b16 %v6040
        %v6336 = vunpack.c.l.b16 %v6041
        %v6337 = vunpack.c.l.b16 %v6042
        %v6338 = vunpack.c.l.b16 %v6043
        %v6339 = vunpack.c.l.b16 %v6044
        %v6340 = vunpack.c.l.b16 %v6045
        %v6341 = vunpack.c.l.b16 %v6046
        %v6342 = vunpack.c.l.b16 %v6047
        %v6343 = vunpack.c.l.b16 %v6048
        %v6344 = vunpack.c.l.b16 %v6049
        %v6345 = vunpack.c.l.b16 %v6050
        %v6346 = vunpack.c.l.b16 %v6051
        %v6347 = vunpack.c.l.b16 %v6052
        %v6348 = vunpack.c.l.b16 %v6053
        %v6349 = vunpack.c.l.b16 %v6054
        %v6350 = vunpack.c.l.b16 %v6055
        %v6351 = vunpack.c.l.b16 %v6056
        %v6352 = vunpack.c.l.b16 %v6057
        %v6353 = vunpack.c.l.b16 %v6058
        %v6354 = vunpack.c.l.b16 %v6059
        %v6355 = vunpack.c.l.b16 %v6060
        %v6356 = vunpack.c.l.b16 %v6061
        %v6357 = vunpack.c.l.b16 %v6062
        %v6358 = vunpack.c.l.b16 %v6063
        %v6359 = vunpack.c.l.b16 %v6064
        %v6360 = vunpack.c.l.b16 %v6065
        %v6361 = vunpack.c.l.b16 %v6066
        %v6362 = vunpack.c.l.b16 %v6067
        %v6363 = vunpack.c.l.b16 %v6068
        %v6364 = vunpack.c.l.b16 %v6069
        %v6365 = vunpack.c.l.b16 %v6070
        %v6366 = vunpack.c.l.b16 %v6071
        %v6367 = vunpack.c.l.b16 %v6072
        %v6368 = vunpack.c.l.b16 %v6073
        %v6369 = vunpack.c.l.b16 %v6074
        %v6370 = vunpack.c.l.b16 %v6075
        %v6371 = vunpack.c.l.b16 %v6076
        %v6372 = vunpack.c.l.b16 %v6077
        %v6373 = vunpack.c.l.b16 %v6078
        %v6374 = vunpack.c.l.b16 %v6079
        %v6375 = vunpack.c.l.b16 %v6080
        %v6376 = vunpack.c.l.b16 %v6081
        %v6377 = vunpack.c.l.b16 %v6082
        %v6378 = vunpack.c.l.b16 %v6083
        %v6379 = vunpack.c.l.b16 %v6084
        %v6380 = vunpack.c.l.b16 %v6085
        %v6381 = vunpack.c.l.b16 %v6086
        %v6382 = vunpack.c.l.b16 %v6087
        %v6383 = vunpack.c.l.b16 %v6088
        %v6384 = vunpack.c.l.b16 %v6089
        %v6385 = vunpack.c.l.b16 %v6090
        %v6386 = vunpack.c.l.b16 %v6091
        %v6387 = vunpack.c.l.b16 %v6092
        %v6388 = vunpack.c.l.b16 %v6093
        %v6389 = vunpack.c.l.b16 %v6094
        %v6390 = vunpack.c.l.b16 %v6095
        %v6391 = vunpack.c.l.b16 %v6096
        %v6392 = vunpack.c.l.b16 %v6097
        %v6393 = vunpack.c.l.b16 %v6098
        %v6394 = vunpack.c.l.b16 %v6099
        %v6395 = vunpack.c.l.b16 %v6100
        %v6396 = vunpack.c.l.b16 %v6101
        %v6397 = vunpack.c.l.b16 %v6102
        %v6398 = vunpack.c.l.b16 %v6103
        %v6399 = vunpack.c.l.b16 %v6104
        %v6400 = vunpack.c.l.b16 %v6105
        %v6401 = vunpack.c.l.b16 %v6106
        %v6402 = vunpack.c.l.b16 %v6107
        %v6403 = vunpack.c.l.b16 %v6108
        %v6404 = vunpack.c.l.b16 %v6109
        %v6405 = vunpack.c.l.b16 %v6110
        %v6406 = vunpack.c.l.b16 %v6111
        %v6407 = vunpack.c.l.b16 %v6112
        %v6408 = vunpack.c.l.b16 %v6113
        %v6409 = vunpack.c.l.b16 %v6114
        %v6410 = vunpack.c.l.b16 %v6115
        %v6411 = vpack.c.b16 %v6268, %v6267
        %v6412 = vpack.c.b16 %v6270, %v6269
        %v6413 = vpack.c.b16 %v6272, %v6271
        %v6414 = vpack.c.b16 %v6274, %v6273
        %v6415 = vpack.c.b16 %v6276, %v6275
        %v6416 = vpack.c.b16 %v6278, %v6277
        %v6417 = vpack.c.b16 %v6280, %v6279
        %v6418 = vpack.c.b16 %v6282, %v6281
        %v6419 = vpack.c.b16 %v6284, %v6283
        %v6420 = vpack.c.b16 %v6286, %v6285
        %v6421 = vpack.c.b16 %v6288, %v6287
        %v6422 = vpack.c.b16 %v6290, %v6289
        %v6423 = vpack.c.b16 %v6292, %v6291
        %v6424 = vpack.c.b16 %v6294, %v6293
        %v6425 = vpack.c.b16 %v6296, %v6295
        %v6426 = vpack.c.b16 %v6298, %v6297
        %v6427 = vpack.c.b16 %v6300, %v6299
        %v6428 = vpack.c.b16 %v6302, %v6301
        %v6429 = vpack.c.b16 %v6304, %v6303
        %v6430 = vpack.c.b16 %v6306, %v6305
        %v6431 = vpack.c.b16 %v6308, %v6307
        %v6432 = vpack.c.b16 %v6310, %v6309
        %v6433 = vpack.c.b16 %v6312, %v6311
        %v6434 = vpack.c.b16 %v6314, %v6313
        %v6435 = vpack.c.b16 %v6316, %v6315
        %v6436 = vpack.c.b16 %v6318, %v6317
        %v6437 = vpack.c.b16 %v6320, %v6319
        %v6438 = vpack.c.b16 %v6322, %v6321
        %v6439 = vpack.c.b16 %v6324, %v6323
        %v6440 = vpack.c.b16 %v6326, %v6325
        %v6441 = vpack.c.b16 %v6328, %v6327
        %v6442 = vpack.c.b16 %v6330, %v6329
        %v6443 = vpack.c.b16 %v6332, %v6331
        %v6444 = vpack.c.b16 %v6334, %v6333
        %v6445 = vpack.c.b16 %v6336, %v6335
        %v6446 = vpack.c.b16 %v6338, %v6337
        %v6447 = vpack.c.b16 %v6340, %v6339
        %v6448 = vpack.c.b16 %v6342, %v6341
        %v6449 = vpack.c.b16 %v6344, %v6343
        %v6450 = vpack.c.b16 %v6346, %v6345
        %v6451 = vpack.c.b16 %v6348, %v6347
        %v6452 = vpack.c.b16 %v6350, %v6349
        %v6453 = vpack.c.b16 %v6352, %v6351
        %v6454 = vpack.c.b16 %v6354, %v6353
        %v6455 = vpack.c.b16 %v6356, %v6355
        %v6456 = vpack.c.b16 %v6358, %v6357
        %v6457 = vpack.c.b16 %v6360, %v6359
        %v6458 = vpack.c.b16 %v6362, %v6361
        %v6459 = vpack.c.b16 %v6364, %v6363
        %v6460 = vpack.c.b16 %v6366, %v6365
        %v6461 = vpack.c.b16 %v6368, %v6367
        %v6462 = vpack.c.b16 %v6370, %v6369
        %v6463 = vpack.c.b16 %v6372, %v6371
        %v6464 = vpack.c.b16 %v6374, %v6373
        %v6465 = vpack.c.b16 %v6376, %v6375
        %v6466 = vpack.c.b16 %v6378, %v6377
        %v6467 = vpack.c.b16 %v6380, %v6379
        %v6468 = vpack.c.b16 %v6382, %v6381
        %v6469 = vpack.c.b16 %v6384, %v6383
        %v6470 = vpack.c.b16 %v6386, %v6385
        %v6471 = vpack.c.b16 %v6388, %v6387
        %v6472 = vpack.c.b16 %v6390, %v6389
        %v6473 = vpack.c.b16 %v6392, %v6391
        %v6474 = vpack.c.b16 %v6394, %v6393
        %v6475 = vpack.c.b16 %v6396, %v6395
        %v6476 = vpack.c.b16 %v6398, %v6397
        %v6477 = vpack.c.b16 %v6400, %v6399
        %v6478 = vpack.c.b16 %v6402, %v6401
        %v6479 = vpack.c.b16 %v6404, %v6403
        %v6480 = vpack.c.b16 %v6406, %v6405
        %v6481 = vpack.c.b16 %v6408, %v6407
        %v6482 = vpack.c.b16 %v6410, %v6409
        %6555 = vmatprep.subr.bf16.mxu0 0
        %6556 = vmatpush1.bf16.msra.mxu0 %v6411
        %6557 = vmatprep.subr.bf16.mxu0 0
        %6558 = vmatpush1.bf16.msra.mxu0 %v6412
        %6559 = vmatprep.subr.bf16.mxu0 0
        %6560 = vmatpush1.bf16.msra.mxu0 %v6413
        %6561 = vmatprep.subr.bf16.mxu0 0
        %6562 = vmatpush1.bf16.msra.mxu0 %v6414
        %6563 = vmatprep.subr.bf16.mxu0 0
        %6564 = vmatpush1.bf16.msra.mxu0 %v6415
        %6565 = vmatprep.subr.bf16.mxu0 0
        %6566 = vmatpush1.bf16.msra.mxu0 %v6416
        %6567 = vmatprep.subr.bf16.mxu0 0
        %6568 = vmatpush1.bf16.msra.mxu0 %v6417
        %6569 = vmatprep.subr.bf16.mxu0 0
        %6570 = vmatpush1.bf16.msra.mxu0 %v6418
        %6571 = vmatprep.subr.bf16.mxu0 0
        %6572 = vmatpush1.bf16.msra.mxu0 %v6419
        %6573 = vmatprep.subr.bf16.mxu0 0
        %6574 = vmatpush1.bf16.msra.mxu0 %v6420
        %6575 = vmatprep.subr.bf16.mxu0 0
        %6576 = vmatpush1.bf16.msra.mxu0 %v6421
        %6577 = vmatprep.subr.bf16.mxu0 0
        %6578 = vmatpush1.bf16.msra.mxu0 %v6422
        %6579 = vmatprep.subr.bf16.mxu0 0
        %6580 = vmatpush1.bf16.msra.mxu0 %v6423
        %6581 = vmatprep.subr.bf16.mxu0 0
        %6582 = vmatpush1.bf16.msra.mxu0 %v6424
        %6583 = vmatprep.subr.bf16.mxu0 0
        %6584 = vmatpush1.bf16.msra.mxu0 %v6425
        %6585 = vmatprep.subr.bf16.mxu0 0
        %6586 = vmatpush1.bf16.msra.mxu0 %v6426
        %6587 = vmatprep.mubr.bf16.mxu0 %v5829
        %6588 = vmatmul.mubr.bf16.gmra.mrb[0].mxu0 %v5828
        %v6589 = vpop.f32.mrb[0].mxu0
        %v6590 = vadd.f32 %v6121, %v6589
        %v6591 = vpop.f32.mrb[0].mxu0
        %v6592 = vpop.f32.mrb[0].mxu0
        %v6593 = vadd.f32 %v6121, %v6592
        %v6594 = vpop.f32.mrb[0].mxu0
        %6595 = vmatprep.mubr.bf16.mxu0 %v5838
        %6596 = vmatmul.mubr.bf16.gmra.mrb[0].mxu0 %v5837
        %v6597 = vpop.f32.mrb[0].mxu0
        %v6598 = vadd.f32 %v6121, %v6597
        %v6599 = vpop.f32.mrb[0].mxu0
        %v6600 = vpop.f32.mrb[0].mxu0
        %v6601 = vadd.f32 %v6121, %v6600
        %v6602 = vpop.f32.mrb[0].mxu0
        %6603 = vmatprep.mubr.bf16.mxu0 %v5847
        %6604 = vmatmul.mubr.bf16.gmra.mrb[0].mxu0 %v5846
        %v6605 = vpop.f32.mrb[0].mxu0
        %v6606 = vadd.f32 %v6121, %v6605
        %v6607 = vpop.f32.mrb[0].mxu0
        %v6608 = vpop.f32.mrb[0].mxu0
        %v6609 = vadd.f32 %v6121, %v6608
        %v6610 = vpop.f32.mrb[0].mxu0
        %6611 = vmatprep.mubr.bf16.mxu0 %v5856
        %6612 = vmatmul.mubr.bf16.gmra.mrb[0].mxu0 %v5855
        %v6613 = vpop.f32.mrb[0].mxu0
        %v6614 = vadd.f32 %v6121, %v6613
        %v6615 = vpop.f32.mrb[0].mxu0
        %v6616 = vpop.f32.mrb[0].mxu0
        %v6617 = vadd.f32 %v6121, %v6616
        %v6618 = vpop.f32.mrb[0].mxu0
        %6619 = vmatprep.mubr.bf16.mxu0 %v5865
        %6620 = vmatmul.mubr.bf16.gmra.mrb[0].mxu0 %v5864
        %v6621 = vpop.f32.mrb[0].mxu0
        %v6622 = vadd.f32 %v6121, %v6621
        %v6623 = vpop.f32.mrb[0].mxu0
        %v6624 = vpop.f32.mrb[0].mxu0
        %v6625 = vadd.f32 %v6121, %v6624
        %v6626 = vpop.f32.mrb[0].mxu0
        %6627 = vmatprep.mubr.bf16.mxu0 %v5874
        %6628 = vmatmul.mubr.bf16.gmra.mrb[0].mxu0 %v5873
        %v6629 = vpop.f32.mrb[0].mxu0
        %v6630 = vadd.f32 %v6121, %v6629
        %v6631 = vpop.f32.mrb[0].mxu0
        %v6632 = vpop.f32.mrb[0].mxu0
        %v6633 = vadd.f32 %v6121, %v6632
        %v6634 = vpop.f32.mrb[0].mxu0
        %6635 = vmatprep.mubr.bf16.mxu0 %v5883
        %6636 = vmatmul.mubr.bf16.gmra.mrb[0].mxu0 %v5882
        %v6637 = vpop.f32.mrb[0].mxu0
        %v6638 = vadd.f32 %v6121, %v6637
        %v6639 = vpop.f32.mrb[0].mxu0
        %v6640 = vpop.f32.mrb[0].mxu0
        %v6641 = vadd.f32 %v6121, %v6640
        %v6642 = vpop.f32.mrb[0].mxu0
        %6643 = vmatprep.mubr.bf16.mxu0 %v5892
        %6644 = vmatmul.mubr.bf16.gmra.mrb[0].mxu0 %v5891
        %v6645 = vpop.f32.mrb[0].mxu0
        %v6646 = vadd.f32 %v6121, %v6645
        %v6647 = vpop.f32.mrb[0].mxu0
        %v6648 = vpop.f32.mrb[0].mxu0
        %v6649 = vadd.f32 %v6121, %v6648
        %v6650 = vpop.f32.mrb[0].mxu0
        %6651 = vmatprep.mubr.bf16.mxu0 %v5901
        %6652 = vmatmul.mubr.bf16.gmra.mrb[0].mxu0 %v5900
        %v6653 = vpop.f32.mrb[0].mxu0
        %v6654 = vadd.f32 %v6121, %v6653
        %v6655 = vpop.f32.mrb[0].mxu0
        %v6656 = vpop.f32.mrb[0].mxu0
        %v6657 = vadd.f32 %v6121, %v6656
        %v6658 = vpop.f32.mrb[0].mxu0
        %6659 = vmatprep.mubr.bf16.mxu0 %v5910
        %6660 = vmatmul.mubr.bf16.gmra.mrb[0].mxu0 %v5909
        %v6661 = vpop.f32.mrb[0].mxu0
        %v6662 = vadd.f32 %v6121, %v6661
        %v6663 = vpop.f32.mrb[0].mxu0
        %v6664 = vpop.f32.mrb[0].mxu0
        %v6665 = vadd.f32 %v6121, %v6664
        %v6666 = vpop.f32.mrb[0].mxu0
        %6667 = vmatprep.mubr.bf16.mxu0 %v5919
        %6668 = vmatmul.mubr.bf16.gmra.mrb[0].mxu0 %v5918
        %v6669 = vpop.f32.mrb[0].mxu0
        %v6670 = vadd.f32 %v6121, %v6669
        %v6671 = vpop.f32.mrb[0].mxu0
        %v6672 = vpop.f32.mrb[0].mxu0
        %v6673 = vadd.f32 %v6121, %v6672
        %v6674 = vpop.f32.mrb[0].mxu0
        %6675 = vmatprep.mubr.bf16.mxu0 %v5928
        %6676 = vmatmul.mubr.bf16.gmra.mrb[0].mxu0 %v5927
        %v6677 = vpop.f32.mrb[0].mxu0
        %v6678 = vadd.f32 %v6121, %v6677
        %v6679 = vpop.f32.mrb[0].mxu0
        %v6680 = vpop.f32.mrb[0].mxu0
        %v6681 = vadd.f32 %v6121, %v6680
        %v6682 = vpop.f32.mrb[0].mxu0
        %6683 = vmatprep.mubr.bf16.mxu0 %v5937
        %6684 = vmatmul.mubr.bf16.gmra.mrb[0].mxu0 %v5936
        %v6685 = vpop.f32.mrb[0].mxu0
        %v6686 = vadd.f32 %v6121, %v6685
        %v6687 = vpop.f32.mrb[0].mxu0
        %v6688 = vpop.f32.mrb[0].mxu0
        %v6689 = vadd.f32 %v6121, %v6688
        %v6690 = vpop.f32.mrb[0].mxu0
        %6691 = vmatprep.mubr.bf16.mxu0 %v5946
        %6692 = vmatmul.mubr.bf16.gmra.mrb[0].mxu0 %v5945
        %v6693 = vpop.f32.mrb[0].mxu0
        %v6694 = vadd.f32 %v6121, %v6693
        %v6695 = vpop.f32.mrb[0].mxu0
        %v6696 = vpop.f32.mrb[0].mxu0
        %v6697 = vadd.f32 %v6121, %v6696
        %v6698 = vpop.f32.mrb[0].mxu0
        %6699 = vmatprep.mubr.bf16.mxu0 %v5955
        %6700 = vmatmul.mubr.bf16.gmra.mrb[0].mxu0 %v5954
        %v6701 = vpop.f32.mrb[0].mxu0
        %v6702 = vadd.f32 %v6121, %v6701
        %v6703 = vpop.f32.mrb[0].mxu0
        %v6704 = vpop.f32.mrb[0].mxu0
        %v6705 = vadd.f32 %v6121, %v6704
        %v6706 = vpop.f32.mrb[0].mxu0
        %6707 = vmatprep.mubr.bf16.mxu0 %v5964
        %6708 = vmatmul.mubr.bf16.gmra.mrb[0].mxu0 %v5963
        %v6709 = vpop.f32.mrb[0].mxu0
        %v6710 = vadd.f32 %v6121, %v6709
        %v6711 = vpop.f32.mrb[0].mxu0
        %v6712 = vpop.f32.mrb[0].mxu0
        %v6713 = vadd.f32 %v6121, %v6712
        %v6714 = vpop.f32.mrb[0].mxu0
        %6715 = vdwg.mxu0
        %6716 = vmatprep.subr.bf16.mxu0 0
        %6717 = vmatpush1.bf16.msra.mxu0 %v6427
        %6718 = vmatprep.subr.bf16.mxu0 0
        %6719 = vmatpush1.bf16.msra.mxu0 %v6428
        %6720 = vmatprep.subr.bf16.mxu0 0
        %6721 = vmatpush1.bf16.msra.mxu0 %v6429
        %6722 = vmatprep.subr.bf16.mxu0 0
        %6723 = vmatpush1.bf16.msra.mxu0 %v6430
        %6724 = vmatprep.subr.bf16.mxu0 0
        %6725 = vmatpush1.bf16.msra.mxu0 %v6431
        %6726 = vmatprep.subr.bf16.mxu0 0
        %6727 = vmatpush1.bf16.msra.mxu0 %v6432
        %6728 = vmatprep.subr.bf16.mxu0 0
        %6729 = vmatpush1.bf16.msra.mxu0 %v6433
        %6730 = vmatprep.subr.bf16.mxu0 0
        %6731 = vmatpush1.bf16.msra.mxu0 %v6434
        %6732 = vmatprep.subr.bf16.mxu0 0
        %6733 = vmatpush1.bf16.msra.mxu0 %v6435
        %6734 = vmatprep.subr.bf16.mxu0 0
        %6735 = vmatpush1.bf16.msra.mxu0 %v6436
        %6736 = vmatprep.subr.bf16.mxu0 0
        %6737 = vmatpush1.bf16.msra.mxu0 %v6437
        %6738 = vmatprep.subr.bf16.mxu0 0
        %6739 = vmatpush1.bf16.msra.mxu0 %v6438
        %6740 = vmatprep.subr.bf16.mxu0 0
        %6741 = vmatpush1.bf16.msra.mxu0 %v6439
        %6742 = vmatprep.subr.bf16.mxu0 0
        %6743 = vmatpush1.bf16.msra.mxu0 %v6440
        %6744 = vmatprep.subr.bf16.mxu0 0
        %6745 = vmatpush1.bf16.msra.mxu0 %v6441
        %6746 = vmatprep.subr.bf16.mxu0 0
        %6747 = vmatpush1.bf16.msra.mxu0 %v6442
        %6748 = vmatprep.mubr.bf16.mxu0 %v5831
        %6749 = vmatmul.mubr.bf16.gmra.mrb[0].mxu0 %v5830
        %v6750 = vpop.f32.mrb[0].mxu0
        %v6751 = vadd.f32 %v6590, %v6750
        %v6752 = vpop.f32.mrb[0].mxu0
        %v6753 = vpop.f32.mrb[0].mxu0
        %v6754 = vadd.f32 %v6593, %v6753
        %v6755 = vpop.f32.mrb[0].mxu0
        %6756 = vmatprep.mubr.bf16.mxu0 %v5840
        %6757 = vmatmul.mubr.bf16.gmra.mrb[0].mxu0 %v5839
        %v6758 = vpop.f32.mrb[0].mxu0
        %v6759 = vadd.f32 %v6598, %v6758
        %v6760 = vpop.f32.mrb[0].mxu0
        %v6761 = vpop.f32.mrb[0].mxu0
        %v6762 = vadd.f32 %v6601, %v6761
        %v6763 = vpop.f32.mrb[0].mxu0
        %6764 = vmatprep.mubr.bf16.mxu0 %v5849
        %6765 = vmatmul.mubr.bf16.gmra.mrb[0].mxu0 %v5848
        %v6766 = vpop.f32.mrb[0].mxu0
        %v6767 = vadd.f32 %v6606, %v6766
        %v6768 = vpop.f32.mrb[0].mxu0
        %v6769 = vpop.f32.mrb[0].mxu0
        %v6770 = vadd.f32 %v6609, %v6769
        %v6771 = vpop.f32.mrb[0].mxu0
        %6772 = vmatprep.mubr.bf16.mxu0 %v5858
        %6773 = vmatmul.mubr.bf16.gmra.mrb[0].mxu0 %v5857
        %v6774 = vpop.f32.mrb[0].mxu0
        %v6775 = vadd.f32 %v6614, %v6774
        %v6776 = vpop.f32.mrb[0].mxu0
        %v6777 = vpop.f32.mrb[0].mxu0
        %v6778 = vadd.f32 %v6617, %v6777
        %v6779 = vpop.f32.mrb[0].mxu0
        %6780 = vmatprep.mubr.bf16.mxu0 %v5867
        %6781 = vmatmul.mubr.bf16.gmra.mrb[0].mxu0 %v5866
        %v6782 = vpop.f32.mrb[0].mxu0
        %v6783 = vadd.f32 %v6622, %v6782
        %v6784 = vpop.f32.mrb[0].mxu0
        %v6785 = vpop.f32.mrb[0].mxu0
        %v6786 = vadd.f32 %v6625, %v6785
        %v6787 = vpop.f32.mrb[0].mxu0
        %6788 = vmatprep.mubr.bf16.mxu0 %v5876
        %6789 = vmatmul.mubr.bf16.gmra.mrb[0].mxu0 %v5875
        %v6790 = vpop.f32.mrb[0].mxu0
        %v6791 = vadd.f32 %v6630, %v6790
        %v6792 = vpop.f32.mrb[0].mxu0
        %v6793 = vpop.f32.mrb[0].mxu0
        %v6794 = vadd.f32 %v6633, %v6793
        %v6795 = vpop.f32.mrb[0].mxu0
        %6796 = vmatprep.mubr.bf16.mxu0 %v5885
        %6797 = vmatmul.mubr.bf16.gmra.mrb[0].mxu0 %v5884
        %v6798 = vpop.f32.mrb[0].mxu0
        %v6799 = vadd.f32 %v6638, %v6798
        %v6800 = vpop.f32.mrb[0].mxu0
        %v6801 = vpop.f32.mrb[0].mxu0
        %v6802 = vadd.f32 %v6641, %v6801
        %v6803 = vpop.f32.mrb[0].mxu0
        %6804 = vmatprep.mubr.bf16.mxu0 %v5894
        %6805 = vmatmul.mubr.bf16.gmra.mrb[0].mxu0 %v5893
        %v6806 = vpop.f32.mrb[0].mxu0
        %v6807 = vadd.f32 %v6646, %v6806
        %v6808 = vpop.f32.mrb[0].mxu0
        %v6809 = vpop.f32.mrb[0].mxu0
        %v6810 = vadd.f32 %v6649, %v6809
        %v6811 = vpop.f32.mrb[0].mxu0
        %6812 = vmatprep.mubr.bf16.mxu0 %v5903
        %6813 = vmatmul.mubr.bf16.gmra.mrb[0].mxu0 %v5902
        %v6814 = vpop.f32.mrb[0].mxu0
        %v6815 = vadd.f32 %v6654, %v6814
        %v6816 = vpop.f32.mrb[0].mxu0
        %v6817 = vpop.f32.mrb[0].mxu0
        %v6818 = vadd.f32 %v6657, %v6817
        %v6819 = vpop.f32.mrb[0].mxu0
        %6820 = vmatprep.mubr.bf16.mxu0 %v5912
        %6821 = vmatmul.mubr.bf16.gmra.mrb[0].mxu0 %v5911
        %v6822 = vpop.f32.mrb[0].mxu0
        %v6823 = vadd.f32 %v6662, %v6822
        %v6824 = vpop.f32.mrb[0].mxu0
        %v6825 = vpop.f32.mrb[0].mxu0
        %v6826 = vadd.f32 %v6665, %v6825
        %v6827 = vpop.f32.mrb[0].mxu0
        %6828 = vmatprep.mubr.bf16.mxu0 %v5921
        %6829 = vmatmul.mubr.bf16.gmra.mrb[0].mxu0 %v5920
        %v6830 = vpop.f32.mrb[0].mxu0
        %v6831 = vadd.f32 %v6670, %v6830
        %v6832 = vpop.f32.mrb[0].mxu0
        %v6833 = vpop.f32.mrb[0].mxu0
        %v6834 = vadd.f32 %v6673, %v6833
        %v6835 = vpop.f32.mrb[0].mxu0
        %6836 = vmatprep.mubr.bf16.mxu0 %v5930
        %6837 = vmatmul.mubr.bf16.gmra.mrb[0].mxu0 %v5929
        %v6838 = vpop.f32.mrb[0].mxu0
        %v6839 = vadd.f32 %v6678, %v6838
        %v6840 = vpop.f32.mrb[0].mxu0
        %v6841 = vpop.f32.mrb[0].mxu0
        %v6842 = vadd.f32 %v6681, %v6841
        %v6843 = vpop.f32.mrb[0].mxu0
        %6844 = vmatprep.mubr.bf16.mxu0 %v5939
        %6845 = vmatmul.mubr.bf16.gmra.mrb[0].mxu0 %v5938
        %v6846 = vpop.f32.mrb[0].mxu0
        %v6847 = vadd.f32 %v6686, %v6846
        %v6848 = vpop.f32.mrb[0].mxu0
        %v6849 = vpop.f32.mrb[0].mxu0
        %v6850 = vadd.f32 %v6689, %v6849
        %v6851 = vpop.f32.mrb[0].mxu0
        %6852 = vmatprep.mubr.bf16.mxu0 %v5948
        %6853 = vmatmul.mubr.bf16.gmra.mrb[0].mxu0 %v5947
        %v6854 = vpop.f32.mrb[0].mxu0
        %v6855 = vadd.f32 %v6694, %v6854
        %v6856 = vpop.f32.mrb[0].mxu0
        %v6857 = vpop.f32.mrb[0].mxu0
        %v6858 = vadd.f32 %v6697, %v6857
        %v6859 = vpop.f32.mrb[0].mxu0
        %6860 = vmatprep.mubr.bf16.mxu0 %v5957
        %6861 = vmatmul.mubr.bf16.gmra.mrb[0].mxu0 %v5956
        %v6862 = vpop.f32.mrb[0].mxu0
        %v6863 = vadd.f32 %v6702, %v6862
        %v6864 = vpop.f32.mrb[0].mxu0
        %v6865 = vpop.f32.mrb[0].mxu0
        %v6866 = vadd.f32 %v6705, %v6865
        %v6867 = vpop.f32.mrb[0].mxu0
        %6868 = vmatprep.mubr.bf16.mxu0 %v5966
        %6869 = vmatmul.mubr.bf16.gmra.mrb[0].mxu0 %v5965
        %v6870 = vpop.f32.mrb[0].mxu0
        %v6871 = vadd.f32 %v6710, %v6870
        %v6872 = vpop.f32.mrb[0].mxu0
        %v6873 = vpop.f32.mrb[0].mxu0
        %v6874 = vadd.f32 %v6713, %v6873
        %v6875 = vpop.f32.mrb[0].mxu0
        %6876 = vdwg.mxu0
        %6877 = vmatprep.subr.bf16.mxu0 0
        %6878 = vmatpush1.bf16.msra.mxu0 %v6443
        %6879 = vmatprep.subr.bf16.mxu0 0
        %6880 = vmatpush1.bf16.msra.mxu0 %v6444
        %6881 = vmatprep.subr.bf16.mxu0 0
        %6882 = vmatpush1.bf16.msra.mxu0 %v6445
        %6883 = vmatprep.subr.bf16.mxu0 0
        %6884 = vmatpush1.bf16.msra.mxu0 %v6446
        %6885 = vmatprep.subr.bf16.mxu0 0
        %6886 = vmatpush1.bf16.msra.mxu0 %v6447
        %6887 = vmatprep.subr.bf16.mxu0 0
        %6888 = vmatpush1.bf16.msra.mxu0 %v6448
        %6889 = vmatprep.subr.bf16.mxu0 0
        %6890 = vmatpush1.bf16.msra.mxu0 %v6449
        %6891 = vmatprep.subr.bf16.mxu0 0
        %6892 = vmatpush1.bf16.msra.mxu0 %v6450
        %6893 = vmatprep.subr.bf16.mxu0 0
        %6894 = vmatpush1.bf16.msra.mxu0 %v6451
        %6895 = vmatprep.subr.bf16.mxu0 0
        %6896 = vmatpush1.bf16.msra.mxu0 %v6452
        %6897 = vmatprep.subr.bf16.mxu0 0
        %6898 = vmatpush1.bf16.msra.mxu0 %v6453
        %6899 = vmatprep.subr.bf16.mxu0 0
        %6900 = vmatpush1.bf16.msra.mxu0 %v6454
        %6901 = vmatprep.subr.bf16.mxu0 0
        %6902 = vmatpush1.bf16.msra.mxu0 %v6455
        %6903 = vmatprep.subr.bf16.mxu0 0
        %6904 = vmatpush1.bf16.msra.mxu0 %v6456
        %6905 = vmatprep.subr.bf16.mxu0 0
        %6906 = vmatpush1.bf16.msra.mxu0 %v6457
        %6907 = vmatprep.subr.bf16.mxu0 0
        %6908 = vmatpush1.bf16.msra.mxu0 %v6458
        %6909 = vmatprep.mubr.bf16.mxu0 %v5833
        %6910 = vmatmul.mubr.bf16.gmra.mrb[0].mxu0 %v5832
        %v6911 = vpop.f32.mrb[0].mxu0
        %v6912 = vadd.f32 %v6751, %v6911
        %v6913 = vpop.f32.mrb[0].mxu0
        %v6914 = vpop.f32.mrb[0].mxu0
        %v6915 = vadd.f32 %v6754, %v6914
        %v6916 = vpop.f32.mrb[0].mxu0
        %6917 = vmatprep.mubr.bf16.mxu0 %v5842
        %6918 = vmatmul.mubr.bf16.gmra.mrb[0].mxu0 %v5841
        %v6919 = vpop.f32.mrb[0].mxu0
        %v6920 = vadd.f32 %v6759, %v6919
        %v6921 = vpop.f32.mrb[0].mxu0
        %v6922 = vpop.f32.mrb[0].mxu0
        %v6923 = vadd.f32 %v6762, %v6922
        %v6924 = vpop.f32.mrb[0].mxu0
        %6925 = vmatprep.mubr.bf16.mxu0 %v5851
        %6926 = vmatmul.mubr.bf16.gmra.mrb[0].mxu0 %v5850
        %v6927 = vpop.f32.mrb[0].mxu0
        %v6928 = vadd.f32 %v6767, %v6927
        %v6929 = vpop.f32.mrb[0].mxu0
        %v6930 = vpop.f32.mrb[0].mxu0
        %v6931 = vadd.f32 %v6770, %v6930
        %v6932 = vpop.f32.mrb[0].mxu0
        %6933 = vmatprep.mubr.bf16.mxu0 %v5860
        %6934 = vmatmul.mubr.bf16.gmra.mrb[0].mxu0 %v5859
        %v6935 = vpop.f32.mrb[0].mxu0
        %v6936 = vadd.f32 %v6775, %v6935
        %v6937 = vpop.f32.mrb[0].mxu0
        %v6938 = vpop.f32.mrb[0].mxu0
        %v6939 = vadd.f32 %v6778, %v6938
        %v6940 = vpop.f32.mrb[0].mxu0
        %6941 = vmatprep.mubr.bf16.mxu0 %v5869
        %6942 = vmatmul.mubr.bf16.gmra.mrb[0].mxu0 %v5868
        %v6943 = vpop.f32.mrb[0].mxu0
        %v6944 = vadd.f32 %v6783, %v6943
        %v6945 = vpop.f32.mrb[0].mxu0
        %v6946 = vpop.f32.mrb[0].mxu0
        %v6947 = vadd.f32 %v6786, %v6946
        %v6948 = vpop.f32.mrb[0].mxu0
        %6949 = vmatprep.mubr.bf16.mxu0 %v5878
        %6950 = vmatmul.mubr.bf16.gmra.mrb[0].mxu0 %v5877
        %v6951 = vpop.f32.mrb[0].mxu0
        %v6952 = vadd.f32 %v6791, %v6951
        %v6953 = vpop.f32.mrb[0].mxu0
        %v6954 = vpop.f32.mrb[0].mxu0
        %v6955 = vadd.f32 %v6794, %v6954
        %v6956 = vpop.f32.mrb[0].mxu0
        %6957 = vmatprep.mubr.bf16.mxu0 %v5887
        %6958 = vmatmul.mubr.bf16.gmra.mrb[0].mxu0 %v5886
        %v6959 = vpop.f32.mrb[0].mxu0
        %v6960 = vadd.f32 %v6799, %v6959
        %v6961 = vpop.f32.mrb[0].mxu0
        %v6962 = vpop.f32.mrb[0].mxu0
        %v6963 = vadd.f32 %v6802, %v6962
        %v6964 = vpop.f32.mrb[0].mxu0
        %6965 = vmatprep.mubr.bf16.mxu0 %v5896
        %6966 = vmatmul.mubr.bf16.gmra.mrb[0].mxu0 %v5895
        %v6967 = vpop.f32.mrb[0].mxu0
        %v6968 = vadd.f32 %v6807, %v6967
        %v6969 = vpop.f32.mrb[0].mxu0
        %v6970 = vpop.f32.mrb[0].mxu0
        %v6971 = vadd.f32 %v6810, %v6970
        %v6972 = vpop.f32.mrb[0].mxu0
        %6973 = vmatprep.mubr.bf16.mxu0 %v5905
        %6974 = vmatmul.mubr.bf16.gmra.mrb[0].mxu0 %v5904
        %v6975 = vpop.f32.mrb[0].mxu0
        %v6976 = vadd.f32 %v6815, %v6975
        %v6977 = vpop.f32.mrb[0].mxu0
        %v6978 = vpop.f32.mrb[0].mxu0
        %v6979 = vadd.f32 %v6818, %v6978
        %v6980 = vpop.f32.mrb[0].mxu0
        %6981 = vmatprep.mubr.bf16.mxu0 %v5914
        %6982 = vmatmul.mubr.bf16.gmra.mrb[0].mxu0 %v5913
        %v6983 = vpop.f32.mrb[0].mxu0
        %v6984 = vadd.f32 %v6823, %v6983
        %v6985 = vpop.f32.mrb[0].mxu0
        %v6986 = vpop.f32.mrb[0].mxu0
        %v6987 = vadd.f32 %v6826, %v6986
        %v6988 = vpop.f32.mrb[0].mxu0
        %6989 = vmatprep.mubr.bf16.mxu0 %v5923
        %6990 = vmatmul.mubr.bf16.gmra.mrb[0].mxu0 %v5922
        %v6991 = vpop.f32.mrb[0].mxu0
        %v6992 = vadd.f32 %v6831, %v6991
        %v6993 = vpop.f32.mrb[0].mxu0
        %v6994 = vpop.f32.mrb[0].mxu0
        %v6995 = vadd.f32 %v6834, %v6994
        %v6996 = vpop.f32.mrb[0].mxu0
        %6997 = vmatprep.mubr.bf16.mxu0 %v5932
        %6998 = vmatmul.mubr.bf16.gmra.mrb[0].mxu0 %v5931
        %v6999 = vpop.f32.mrb[0].mxu0
        %v7000 = vadd.f32 %v6839, %v6999
        %v7001 = vpop.f32.mrb[0].mxu0
        %v7002 = vpop.f32.mrb[0].mxu0
        %v7003 = vadd.f32 %v6842, %v7002
        %v7004 = vpop.f32.mrb[0].mxu0
        %7005 = vmatprep.mubr.bf16.mxu0 %v5941
        %7006 = vmatmul.mubr.bf16.gmra.mrb[0].mxu0 %v5940
        %v7007 = vpop.f32.mrb[0].mxu0
        %v7008 = vadd.f32 %v6847, %v7007
        %v7009 = vpop.f32.mrb[0].mxu0
        %v7010 = vpop.f32.mrb[0].mxu0
        %v7011 = vadd.f32 %v6850, %v7010
        %v7012 = vpop.f32.mrb[0].mxu0
        %7013 = vmatprep.mubr.bf16.mxu0 %v5950
        %7014 = vmatmul.mubr.bf16.gmra.mrb[0].mxu0 %v5949
        %v7015 = vpop.f32.mrb[0].mxu0
        %v7016 = vadd.f32 %v6855, %v7015
        %v7017 = vpop.f32.mrb[0].mxu0
        %v7018 = vpop.f32.mrb[0].mxu0
        %v7019 = vadd.f32 %v6858, %v7018
        %v7020 = vpop.f32.mrb[0].mxu0
        %7021 = vmatprep.mubr.bf16.mxu0 %v5959
        %7022 = vmatmul.mubr.bf16.gmra.mrb[0].mxu0 %v5958
        %v7023 = vpop.f32.mrb[0].mxu0
        %v7024 = vadd.f32 %v6863, %v7023
        %v7025 = vpop.f32.mrb[0].mxu0
        %v7026 = vpop.f32.mrb[0].mxu0
        %v7027 = vadd.f32 %v6866, %v7026
        %v7028 = vpop.f32.mrb[0].mxu0
        %7029 = vmatprep.mubr.bf16.mxu0 %v5968
        %7030 = vmatmul.mubr.bf16.gmra.mrb[0].mxu0 %v5967
        %v7031 = vpop.f32.mrb[0].mxu0
        %v7032 = vadd.f32 %v6871, %v7031
        %v7033 = vpop.f32.mrb[0].mxu0
        %v7034 = vpop.f32.mrb[0].mxu0
        %v7035 = vadd.f32 %v6874, %v7034
        %v7036 = vpop.f32.mrb[0].mxu0
        %7037 = vdwg.mxu0
        %7038 = vmatprep.subr.bf16.mxu0 0
        %7039 = vmatpush1.bf16.msra.mxu0 %v6459
        %7040 = vmatprep.subr.bf16.mxu0 0
        %7041 = vmatpush1.bf16.msra.mxu0 %v6460
        %7042 = vmatprep.subr.bf16.mxu0 0
        %7043 = vmatpush1.bf16.msra.mxu0 %v6461
        %7044 = vmatprep.subr.bf16.mxu0 0
        %7045 = vmatpush1.bf16.msra.mxu0 %v6462
        %7046 = vmatprep.subr.bf16.mxu0 0
        %7047 = vmatpush1.bf16.msra.mxu0 %v6463
        %7048 = vmatprep.subr.bf16.mxu0 0
        %7049 = vmatpush1.bf16.msra.mxu0 %v6464
        %7050 = vmatprep.subr.bf16.mxu0 0
        %7051 = vmatpush1.bf16.msra.mxu0 %v6465
        %7052 = vmatprep.subr.bf16.mxu0 0
        %7053 = vmatpush1.bf16.msra.mxu0 %v6466
        %7054 = vmatprep.subr.bf16.mxu0 0
        %7055 = vmatpush1.bf16.msra.mxu0 %v6467
        %7056 = vmatprep.subr.bf16.mxu0 0
        %7057 = vmatpush1.bf16.msra.mxu0 %v6468
        %7058 = vmatprep.subr.bf16.mxu0 0
        %7059 = vmatpush1.bf16.msra.mxu0 %v6469
        %7060 = vmatprep.subr.bf16.mxu0 0
        %7061 = vmatpush1.bf16.msra.mxu0 %v6470
        %7062 = vmatprep.subr.bf16.mxu0 0
        %7063 = vmatpush1.bf16.msra.mxu0 %v6471
        %7064 = vmatprep.subr.bf16.mxu0 0
        %7065 = vmatpush1.bf16.msra.mxu0 %v6472
        %7066 = vmatprep.subr.bf16.mxu0 0
        %7067 = vmatpush1.bf16.msra.mxu0 %v6473
        %7068 = vmatprep.subr.bf16.mxu0 0
        %7069 = vmatpush1.bf16.msra.mxu0 %v6474
        %7070 = vmatprep.mubr.bf16.mxu0 %v5835
        %7071 = vmatmul.mubr.bf16.gmra.mrb[0].mxu0 %v5834
        %v7072 = vpop.f32.mrb[0].mxu0
        %v7073 = vadd.f32 %v6912, %v7072
        %v7074 = vpop.f32.mrb[0].mxu0
        %v7075 = vpop.f32.mrb[0].mxu0
        %v7076 = vadd.f32 %v6915, %v7075
        %v7077 = vpop.f32.mrb[0].mxu0
        %7078 = vmatprep.mubr.bf16.mxu0 %v5844
        %7079 = vmatmul.mubr.bf16.gmra.mrb[0].mxu0 %v5843
        %v7080 = vpop.f32.mrb[0].mxu0
        %v7081 = vadd.f32 %v6920, %v7080
        %v7082 = vpop.f32.mrb[0].mxu0
        %v7083 = vpop.f32.mrb[0].mxu0
        %v7084 = vadd.f32 %v6923, %v7083
        %v7085 = vpop.f32.mrb[0].mxu0
        %7086 = vmatprep.mubr.bf16.mxu0 %v5853
        %7087 = vmatmul.mubr.bf16.gmra.mrb[0].mxu0 %v5852
        %v7088 = vpop.f32.mrb[0].mxu0
        %v7089 = vadd.f32 %v6928, %v7088
        %v7090 = vpop.f32.mrb[0].mxu0
        %v7091 = vpop.f32.mrb[0].mxu0
        %v7092 = vadd.f32 %v6931, %v7091
        %v7093 = vpop.f32.mrb[0].mxu0
        %7094 = vmatprep.mubr.bf16.mxu0 %v5862
        %7095 = vmatmul.mubr.bf16.gmra.mrb[0].mxu0 %v5861
        %v7096 = vpop.f32.mrb[0].mxu0
        %v7097 = vadd.f32 %v6936, %v7096
        %v7098 = vpop.f32.mrb[0].mxu0
        %v7099 = vpop.f32.mrb[0].mxu0
        %v7100 = vadd.f32 %v6939, %v7099
        %v7101 = vpop.f32.mrb[0].mxu0
        %7102 = vmatprep.mubr.bf16.mxu0 %v5871
        %7103 = vmatmul.mubr.bf16.gmra.mrb[0].mxu0 %v5870
        %v7104 = vpop.f32.mrb[0].mxu0
        %v7105 = vadd.f32 %v6944, %v7104
        %v7106 = vpop.f32.mrb[0].mxu0
        %v7107 = vpop.f32.mrb[0].mxu0
        %v7108 = vadd.f32 %v6947, %v7107
        %v7109 = vpop.f32.mrb[0].mxu0
        %7110 = vmatprep.mubr.bf16.mxu0 %v5880
        %7111 = vmatmul.mubr.bf16.gmra.mrb[0].mxu0 %v5879
        %v7112 = vpop.f32.mrb[0].mxu0
        %v7113 = vadd.f32 %v6952, %v7112
        %v7114 = vpop.f32.mrb[0].mxu0
        %v7115 = vpop.f32.mrb[0].mxu0
        %v7116 = vadd.f32 %v6955, %v7115
        %v7117 = vpop.f32.mrb[0].mxu0
        %7118 = vmatprep.mubr.bf16.mxu0 %v5889
        %7119 = vmatmul.mubr.bf16.gmra.mrb[0].mxu0 %v5888
        %v7120 = vpop.f32.mrb[0].mxu0
        %v7121 = vadd.f32 %v6960, %v7120
        %v7122 = vpop.f32.mrb[0].mxu0
        %v7123 = vpop.f32.mrb[0].mxu0
        %v7124 = vadd.f32 %v6963, %v7123
        %v7125 = vpop.f32.mrb[0].mxu0
        %7126 = vmatprep.mubr.bf16.mxu0 %v5898
        %7127 = vmatmul.mubr.bf16.gmra.mrb[0].mxu0 %v5897
        %v7128 = vpop.f32.mrb[0].mxu0
        %v7129 = vadd.f32 %v6968, %v7128
        %v7130 = vpop.f32.mrb[0].mxu0
        %v7131 = vpop.f32.mrb[0].mxu0
        %v7132 = vadd.f32 %v6971, %v7131
        %v7133 = vpop.f32.mrb[0].mxu0
        %7134 = vmatprep.mubr.bf16.mxu0 %v5907
        %7135 = vmatmul.mubr.bf16.gmra.mrb[0].mxu0 %v5906
        %v7136 = vpop.f32.mrb[0].mxu0
        %v7137 = vadd.f32 %v6976, %v7136
        %v7138 = vpop.f32.mrb[0].mxu0
        %v7139 = vpop.f32.mrb[0].mxu0
        %v7140 = vadd.f32 %v6979, %v7139
        %v7141 = vpop.f32.mrb[0].mxu0
        %7142 = vmatprep.mubr.bf16.mxu0 %v5916
        %7143 = vmatmul.mubr.bf16.gmra.mrb[0].mxu0 %v5915
        %v7144 = vpop.f32.mrb[0].mxu0
        %v7145 = vadd.f32 %v6984, %v7144
        %v7146 = vpop.f32.mrb[0].mxu0
        %v7147 = vpop.f32.mrb[0].mxu0
        %v7148 = vadd.f32 %v6987, %v7147
        %v7149 = vpop.f32.mrb[0].mxu0
        %7150 = vmatprep.mubr.bf16.mxu0 %v5925
        %7151 = vmatmul.mubr.bf16.gmra.mrb[0].mxu0 %v5924
        %v7152 = vpop.f32.mrb[0].mxu0
        %v7153 = vadd.f32 %v6992, %v7152
        %v7154 = vpop.f32.mrb[0].mxu0
        %v7155 = vpop.f32.mrb[0].mxu0
        %v7156 = vadd.f32 %v6995, %v7155
        %v7157 = vpop.f32.mrb[0].mxu0
        %7158 = vmatprep.mubr.bf16.mxu0 %v5934
        %7159 = vmatmul.mubr.bf16.gmra.mrb[0].mxu0 %v5933
        %v7160 = vpop.f32.mrb[0].mxu0
        %v7161 = vadd.f32 %v7000, %v7160
        %v7162 = vpop.f32.mrb[0].mxu0
        %v7163 = vpop.f32.mrb[0].mxu0
        %v7164 = vadd.f32 %v7003, %v7163
        %v7165 = vpop.f32.mrb[0].mxu0
        %7166 = vmatprep.mubr.bf16.mxu0 %v5943
        %7167 = vmatmul.mubr.bf16.gmra.mrb[0].mxu0 %v5942
        %v7168 = vpop.f32.mrb[0].mxu0
        %v7169 = vadd.f32 %v7008, %v7168
        %v7170 = vpop.f32.mrb[0].mxu0
        %v7171 = vpop.f32.mrb[0].mxu0
        %v7172 = vadd.f32 %v7011, %v7171
        %v7173 = vpop.f32.mrb[0].mxu0
        %7174 = vmatprep.mubr.bf16.mxu0 %v5952
        %7175 = vmatmul.mubr.bf16.gmra.mrb[0].mxu0 %v5951
        %v7176 = vpop.f32.mrb[0].mxu0
        %v7177 = vadd.f32 %v7016, %v7176
        %v7178 = vpop.f32.mrb[0].mxu0
        %v7179 = vpop.f32.mrb[0].mxu0
        %v7180 = vadd.f32 %v7019, %v7179
        %v7181 = vpop.f32.mrb[0].mxu0
        %7182 = vmatprep.mubr.bf16.mxu0 %v5961
        %7183 = vmatmul.mubr.bf16.gmra.mrb[0].mxu0 %v5960
        %v7184 = vpop.f32.mrb[0].mxu0
        %v7185 = vadd.f32 %v7024, %v7184
        %v7186 = vpop.f32.mrb[0].mxu0
        %v7187 = vpop.f32.mrb[0].mxu0
        %v7188 = vadd.f32 %v7027, %v7187
        %v7189 = vpop.f32.mrb[0].mxu0
        %7190 = vmatprep.mubr.bf16.mxu0 %v5970
        %7191 = vmatmul.mubr.bf16.gmra.mrb[0].mxu0 %v5969
        %v7192 = vpop.f32.mrb[0].mxu0
        %v7193 = vadd.f32 %v7032, %v7192
        %v7194 = vpop.f32.mrb[0].mxu0
        %v7195 = vpop.f32.mrb[0].mxu0
        %v7196 = vadd.f32 %v7035, %v7195
        %v7197 = vpop.f32.mrb[0].mxu0
        %7198 = vdwg.mxu0
        %7199 = vmatprep.subr.bf16.mxu0 0
        %7200 = vmatpush1.bf16.msra.mxu0 %v6475
        %7201 = vmatprep.subr.bf16.mxu0 0
        %7202 = vmatpush1.bf16.msra.mxu0 %v6476
        %7203 = vmatprep.subr.bf16.mxu0 0
        %7204 = vmatpush1.bf16.msra.mxu0 %v6477
        %7205 = vmatprep.subr.bf16.mxu0 0
        %7206 = vmatpush1.bf16.msra.mxu0 %v6478
        %7207 = vmatprep.subr.bf16.mxu0 0
        %7208 = vmatpush1.bf16.msra.mxu0 %v6479
        %7209 = vmatprep.subr.bf16.mxu0 0
        %7210 = vmatpush1.bf16.msra.mxu0 %v6480
        %7211 = vmatprep.subr.bf16.mxu0 0
        %7212 = vmatpush1.bf16.msra.mxu0 %v6481
        %7213 = vmatprep.subr.bf16.mxu0 0
        %7214 = vmatpush1.bf16.msra.mxu0 %v6482
        %7215 = vmatprep.subr.bf16.mxu0 0
        %7216 = vmatpush1.bf16.msra.mxu0 0
        %7217 = vmatprep.subr.bf16.mxu0 0
        %7218 = vmatpush1.bf16.msra.mxu0 0
        %7219 = vmatprep.subr.bf16.mxu0 0
        %7220 = vmatpush1.bf16.msra.mxu0 0
        %7221 = vmatprep.subr.bf16.mxu0 0
        %7222 = vmatpush1.bf16.msra.mxu0 0
        %7223 = vmatprep.subr.bf16.mxu0 0
        %7224 = vmatpush1.bf16.msra.mxu0 0
        %7225 = vmatprep.subr.bf16.mxu0 0
        %7226 = vmatpush1.bf16.msra.mxu0 0
        %7227 = vmatprep.subr.bf16.mxu0 0
        %7228 = vmatpush1.bf16.msra.mxu0 0
        %7229 = vmatprep.subr.bf16.mxu0 0
        %7230 = vmatpush1.bf16.msra.mxu0 0
        %7231 = vmatprep.mubr.bf16.mxu0 0
        %7232 = vmatmul.mubr.bf16.gmra.mrb[0].mxu0 %v5836
        %v7233 = vpop.f32.mrb[0].mxu0
        %v7234 = vadd.f32 %v7073, %v7233
        %v7235 = vpop.f32.mrb[0].mxu0
        %v7236 = vpop.f32.mrb[0].mxu0
        %v7237 = vadd.f32 %v7076, %v7236
        %v7238 = vpop.f32.mrb[0].mxu0
        %7239 = vmatprep.mubr.bf16.mxu0 0
        %7240 = vmatmul.mubr.bf16.gmra.mrb[0].mxu0 %v5845
        %v7241 = vpop.f32.mrb[0].mxu0
        %v7242 = vadd.f32 %v7081, %v7241
        %v7243 = vpop.f32.mrb[0].mxu0
        %v7244 = vpop.f32.mrb[0].mxu0
        %v7245 = vadd.f32 %v7084, %v7244
        %v7246 = vpop.f32.mrb[0].mxu0
        %7247 = vmatprep.mubr.bf16.mxu0 0
        %7248 = vmatmul.mubr.bf16.gmra.mrb[0].mxu0 %v5854
        %v7249 = vpop.f32.mrb[0].mxu0
        %v7250 = vadd.f32 %v7089, %v7249
        %v7251 = vpop.f32.mrb[0].mxu0
        %v7252 = vpop.f32.mrb[0].mxu0
        %v7253 = vadd.f32 %v7092, %v7252
        %v7254 = vpop.f32.mrb[0].mxu0
        %7255 = vmatprep.mubr.bf16.mxu0 0
        %7256 = vmatmul.mubr.bf16.gmra.mrb[0].mxu0 %v5863
        %v7257 = vpop.f32.mrb[0].mxu0
        %v7258 = vadd.f32 %v7097, %v7257
        %v7259 = vpop.f32.mrb[0].mxu0
        %v7260 = vpop.f32.mrb[0].mxu0
        %v7261 = vadd.f32 %v7100, %v7260
        %v7262 = vpop.f32.mrb[0].mxu0
        %7263 = vmatprep.mubr.bf16.mxu0 0
        %7264 = vmatmul.mubr.bf16.gmra.mrb[0].mxu0 %v5872
        %v7265 = vpop.f32.mrb[0].mxu0
        %v7266 = vadd.f32 %v7105, %v7265
        %v7267 = vpop.f32.mrb[0].mxu0
        %v7268 = vpop.f32.mrb[0].mxu0
        %v7269 = vadd.f32 %v7108, %v7268
        %v7270 = vpop.f32.mrb[0].mxu0
        %7271 = vmatprep.mubr.bf16.mxu0 0
        %7272 = vmatmul.mubr.bf16.gmra.mrb[0].mxu0 %v5881
        %v7273 = vpop.f32.mrb[0].mxu0
        %v7274 = vadd.f32 %v7113, %v7273
        %v7275 = vpop.f32.mrb[0].mxu0
        %v7276 = vpop.f32.mrb[0].mxu0
        %v7277 = vadd.f32 %v7116, %v7276
        %v7278 = vpop.f32.mrb[0].mxu0
        %7279 = vmatprep.mubr.bf16.mxu0 0
        %7280 = vmatmul.mubr.bf16.gmra.mrb[0].mxu0 %v5890
        %v7281 = vpop.f32.mrb[0].mxu0
        %v7282 = vadd.f32 %v7121, %v7281
        %v7283 = vpop.f32.mrb[0].mxu0
        %v7284 = vpop.f32.mrb[0].mxu0
        %v7285 = vadd.f32 %v7124, %v7284
        %v7286 = vpop.f32.mrb[0].mxu0
        %7287 = vmatprep.mubr.bf16.mxu0 0
        %7288 = vmatmul.mubr.bf16.gmra.mrb[0].mxu0 %v5899
        %v7289 = vpop.f32.mrb[0].mxu0
        %v7290 = vadd.f32 %v7129, %v7289
        %v7291 = vpop.f32.mrb[0].mxu0
        %v7292 = vpop.f32.mrb[0].mxu0
        %v7293 = vadd.f32 %v7132, %v7292
        %v7294 = vpop.f32.mrb[0].mxu0
        %7295 = vmatprep.mubr.bf16.mxu0 0
        %7296 = vmatmul.mubr.bf16.gmra.mrb[0].mxu0 %v5908
        %v7297 = vpop.f32.mrb[0].mxu0
        %v7298 = vadd.f32 %v7137, %v7297
        %v7299 = vpop.f32.mrb[0].mxu0
        %v7300 = vpop.f32.mrb[0].mxu0
        %v7301 = vadd.f32 %v7140, %v7300
        %v7302 = vpop.f32.mrb[0].mxu0
        %7303 = vmatprep.mubr.bf16.mxu0 0
        %7304 = vmatmul.mubr.bf16.gmra.mrb[0].mxu0 %v5917
        %v7305 = vpop.f32.mrb[0].mxu0
        %v7306 = vadd.f32 %v7145, %v7305
        %v7307 = vpop.f32.mrb[0].mxu0
        %v7308 = vpop.f32.mrb[0].mxu0
        %v7309 = vadd.f32 %v7148, %v7308
        %v7310 = vpop.f32.mrb[0].mxu0
        %7311 = vmatprep.mubr.bf16.mxu0 0
        %7312 = vmatmul.mubr.bf16.gmra.mrb[0].mxu0 %v5926
        %v7313 = vpop.f32.mrb[0].mxu0
        %v7314 = vadd.f32 %v7153, %v7313
        %v7315 = vpop.f32.mrb[0].mxu0
        %v7316 = vpop.f32.mrb[0].mxu0
        %v7317 = vadd.f32 %v7156, %v7316
        %v7318 = vpop.f32.mrb[0].mxu0
        %7319 = vmatprep.mubr.bf16.mxu0 0
        %7320 = vmatmul.mubr.bf16.gmra.mrb[0].mxu0 %v5935
        %v7321 = vpop.f32.mrb[0].mxu0
        %v7322 = vadd.f32 %v7161, %v7321
        %v7323 = vpop.f32.mrb[0].mxu0
        %v7324 = vpop.f32.mrb[0].mxu0
        %v7325 = vadd.f32 %v7164, %v7324
        %v7326 = vpop.f32.mrb[0].mxu0
        %7327 = vmatprep.mubr.bf16.mxu0 0
        %7328 = vmatmul.mubr.bf16.gmra.mrb[0].mxu0 %v5944
        %v7329 = vpop.f32.mrb[0].mxu0
        %v7330 = vadd.f32 %v7169, %v7329
        %v7331 = vpop.f32.mrb[0].mxu0
        %v7332 = vpop.f32.mrb[0].mxu0
        %v7333 = vadd.f32 %v7172, %v7332
        %v7334 = vpop.f32.mrb[0].mxu0
        %7335 = vmatprep.mubr.bf16.mxu0 0
        %7336 = vmatmul.mubr.bf16.gmra.mrb[0].mxu0 %v5953
        %v7337 = vpop.f32.mrb[0].mxu0
        %v7338 = vadd.f32 %v7177, %v7337
        %v7339 = vpop.f32.mrb[0].mxu0
        %v7340 = vpop.f32.mrb[0].mxu0
        %v7341 = vadd.f32 %v7180, %v7340
        %v7342 = vpop.f32.mrb[0].mxu0
        %7343 = vmatprep.mubr.bf16.mxu0 0
        %7344 = vmatmul.mubr.bf16.gmra.mrb[0].mxu0 %v5962
        %v7345 = vpop.f32.mrb[0].mxu0
        %v7346 = vadd.f32 %v7185, %v7345
        %v7347 = vpop.f32.mrb[0].mxu0
        %v7348 = vpop.f32.mrb[0].mxu0
        %v7349 = vadd.f32 %v7188, %v7348
        %v7350 = vpop.f32.mrb[0].mxu0
        %7351 = vmatprep.mubr.bf16.mxu0 0
        %7352 = vmatmul.mubr.bf16.gmra.mrb[0].mxu0 %v5971
        %v7353 = vpop.f32.mrb[0].mxu0
        %v7354 = vadd.f32 %v7193, %v7353
        %v7355 = vpop.f32.mrb[0].mxu0
        %v7356 = vpop.f32.mrb[0].mxu0
        %v7357 = vadd.f32 %v7196, %v7356
        %v7358 = vpop.f32.mrb[0].mxu0
        %7359 = vdwg.mxu0
        %s7360 = sld [smem:[#allocation4 + $0x2]]
        %vm7361 = vcmp.ge.f32.partialorder %v7234, 0.0
        %vm7362 = vcmp.ge.f32.partialorder %v7237, 0.0
        %vm7363 = vcmp.ge.f32.partialorder %v7242, 0.0
        %vm7364 = vcmp.ge.f32.partialorder %v7245, 0.0
        %vm7365 = vcmp.ge.f32.partialorder %v7250, 0.0
        %vm7366 = vcmp.ge.f32.partialorder %v7253, 0.0
        %vm7367 = vcmp.ge.f32.partialorder %v7258, 0.0
        %vm7368 = vcmp.ge.f32.partialorder %v7261, 0.0
        %vm7369 = vcmp.ge.f32.partialorder %v7266, 0.0
        %vm7370 = vcmp.ge.f32.partialorder %v7269, 0.0
        %vm7371 = vcmp.ge.f32.partialorder %v7274, 0.0
        %vm7372 = vcmp.ge.f32.partialorder %v7277, 0.0
        %vm7373 = vcmp.ge.f32.partialorder %v7282, 0.0
        %vm7374 = vcmp.ge.f32.partialorder %v7285, 0.0
        %vm7375 = vcmp.ge.f32.partialorder %v7290, 0.0
        %vm7376 = vcmp.ge.f32.partialorder %v7293, 0.0
        %vm7377 = vcmp.ge.f32.partialorder %v7298, 0.0
        %vm7378 = vcmp.ge.f32.partialorder %v7301, 0.0
        %vm7379 = vcmp.ge.f32.partialorder %v7306, 0.0
        %vm7380 = vcmp.ge.f32.partialorder %v7309, 0.0
        %vm7381 = vcmp.ge.f32.partialorder %v7314, 0.0
        %vm7382 = vcmp.ge.f32.partialorder %v7317, 0.0
        %vm7383 = vcmp.ge.f32.partialorder %v7322, 0.0
        %vm7384 = vcmp.ge.f32.partialorder %v7325, 0.0
        %vm7385 = vcmp.ge.f32.partialorder %v7330, 0.0
        %vm7386 = vcmp.ge.f32.partialorder %v7333, 0.0
        %vm7387 = vcmp.ge.f32.partialorder %v7338, 0.0
        %vm7388 = vcmp.ge.f32.partialorder %v7341, 0.0
        %vm7389 = vcmp.ge.f32.partialorder %v7346, 0.0
        %vm7390 = vcmp.ge.f32.partialorder %v7349, 0.0
        %vm7391 = vcmp.ge.f32.partialorder %v7354, 0.0
        %vm7392 = vcmp.ge.f32.partialorder %v7357, 0.0
        %v7393 = vstv %s7360
        %v7394 = vmul.f32 %v7393, %v7234
        %v7395 = vmul.f32 %v7393, %v7237
        %v7396 = vmul.f32 %v7393, %v7242
        %v7397 = vmul.f32 %v7393, %v7245
        %v7398 = vmul.f32 %v7393, %v7250
        %v7399 = vmul.f32 %v7393, %v7253
        %v7400 = vmul.f32 %v7393, %v7258
        %v7401 = vmul.f32 %v7393, %v7261
        %v7402 = vmul.f32 %v7393, %v7266
        %v7403 = vmul.f32 %v7393, %v7269
        %v7404 = vmul.f32 %v7393, %v7274
        %v7405 = vmul.f32 %v7393, %v7277
        %v7406 = vmul.f32 %v7393, %v7282
        %v7407 = vmul.f32 %v7393, %v7285
        %v7408 = vmul.f32 %v7393, %v7290
        %v7409 = vmul.f32 %v7393, %v7293
        %v7410 = vmul.f32 %v7393, %v7298
        %v7411 = vmul.f32 %v7393, %v7301
        %v7412 = vmul.f32 %v7393, %v7306
        %v7413 = vmul.f32 %v7393, %v7309
        %v7414 = vmul.f32 %v7393, %v7314
        %v7415 = vmul.f32 %v7393, %v7317
        %v7416 = vmul.f32 %v7393, %v7322
        %v7417 = vmul.f32 %v7393, %v7325
        %v7418 = vmul.f32 %v7393, %v7330
        %v7419 = vmul.f32 %v7393, %v7333
        %v7420 = vmul.f32 %v7393, %v7338
        %v7421 = vmul.f32 %v7393, %v7341
        %v7422 = vmul.f32 %v7393, %v7346
        %v7423 = vmul.f32 %v7393, %v7349
        %v7424 = vmul.f32 %v7393, %v7354
        %v7425 = vmul.f32 %v7393, %v7357
        %v7426 = vsel %vm7361, %v7234, %v7394
        %v7427 = vsel %vm7362, %v7237, %v7395
        %v7428 = vsel %vm7363, %v7242, %v7396
        %v7429 = vsel %vm7364, %v7245, %v7397
        %v7430 = vsel %vm7365, %v7250, %v7398
        %v7431 = vsel %vm7366, %v7253, %v7399
        %v7432 = vsel %vm7367, %v7258, %v7400
        %v7433 = vsel %vm7368, %v7261, %v7401
        %v7434 = vsel %vm7369, %v7266, %v7402
        %v7435 = vsel %vm7370, %v7269, %v7403
        %v7436 = vsel %vm7371, %v7274, %v7404
        %v7437 = vsel %vm7372, %v7277, %v7405
        %v7438 = vsel %vm7373, %v7282, %v7406
        %v7439 = vsel %vm7374, %v7285, %v7407
        %v7440 = vsel %vm7375, %v7290, %v7408
        %v7441 = vsel %vm7376, %v7293, %v7409
        %v7442 = vsel %vm7377, %v7298, %v7410
        %v7443 = vsel %vm7378, %v7301, %v7411
        %v7444 = vsel %vm7379, %v7306, %v7412
        %v7445 = vsel %vm7380, %v7309, %v7413
        %v7446 = vsel %vm7381, %v7314, %v7414
        %v7447 = vsel %vm7382, %v7317, %v7415
        %v7448 = vsel %vm7383, %v7322, %v7416
        %v7449 = vsel %vm7384, %v7325, %v7417
        %v7450 = vsel %vm7385, %v7330, %v7418
        %v7451 = vsel %vm7386, %v7333, %v7419
        %v7452 = vsel %vm7387, %v7338, %v7420
        %v7453 = vsel %vm7388, %v7341, %v7421
        %v7454 = vsel %vm7389, %v7346, %v7422
        %v7455 = vsel %vm7390, %v7349, %v7423
        %v7456 = vsel %vm7391, %v7354, %v7424
        %v7457 = vsel %vm7392, %v7357, %v7425
        %v7458 = vld [vmem:[%s9] sm:$0xff]
        %v7459 = vld [vmem:[%s9 + $0x8] sm:$0xff]
        %v7460 = vld [vmem:[%s9 + $0x10] sm:$0xff]
        %v7461 = vld [vmem:[%s9 + $0x18] sm:$0xff]
        %v7462 = vld [vmem:[%s9 + $0x20] sm:$0xff]
        %v7463 = vld [vmem:[%s9 + $0x28] sm:$0xff]
        %v7464 = vld [vmem:[%s9 + $0x30] sm:$0xff]
        %v7465 = vld [vmem:[%s9 + $0x38] sm:$0xff]
        %v7466 = vld [vmem:[%s9 + $0x40] sm:$0xff]
        %v7467 = vld [vmem:[%s9 + $0x48] sm:$0xff]
        %v7468 = vld [vmem:[%s9 + $0x50] sm:$0xff]
        %v7469 = vld [vmem:[%s9 + $0x58] sm:$0xff]
        %v7470 = vld [vmem:[%s9 + $0x60] sm:$0xff]
        %v7471 = vld [vmem:[%s9 + $0x68] sm:$0xff]
        %v7472 = vld [vmem:[%s9 + $0x70] sm:$0xff]
        %v7473 = vld [vmem:[%s9 + $0x78] sm:$0xff]
        %v7474 = vld [vmem:[%s9 + $0x80] sm:$0xff]
        %v7475 = vld [vmem:[%s9 + $0x88] sm:$0xff]
        %v7476 = vld [vmem:[%s9 + $0x90] sm:$0xff]
        %v7477 = vld [vmem:[%s9 + $0x98] sm:$0xff]
        %v7478 = vld [vmem:[%s9 + $0xa0] sm:$0xff]
        %v7479 = vld [vmem:[%s9 + $0xa8] sm:$0xff]
        %v7480 = vld [vmem:[%s9 + $0xb0] sm:$0xff]
        %v7481 = vld [vmem:[%s9 + $0xb8] sm:$0xff]
        %v7482 = vld [vmem:[%s9 + $0xc0] sm:$0xff]
        %v7483 = vld [vmem:[%s9 + $0xc8] sm:$0xff]
        %v7484 = vld [vmem:[%s9 + $0xd0] sm:$0xff]
        %v7485 = vld [vmem:[%s9 + $0xd8] sm:$0xff]
        %v7486 = vld [vmem:[%s9 + $0xe0] sm:$0xff]
        %v7487 = vld [vmem:[%s9 + $0xe8] sm:$0xff]
        %v7488 = vld [vmem:[%s9 + $0xf0] sm:$0xff]
        %v7489 = vld [vmem:[%s9 + $0xf8] sm:$0xff]
        %v7490 = vmul.f32 %v7426, %v7458
        %v7491 = vmul.f32 %v7427, %v7459
        %v7492 = vmul.f32 %v7428, %v7460
        %v7493 = vmul.f32 %v7429, %v7461
        %v7494 = vmul.f32 %v7430, %v7462
        %v7495 = vmul.f32 %v7431, %v7463
        %v7496 = vmul.f32 %v7432, %v7464
        %v7497 = vmul.f32 %v7433, %v7465
        %v7498 = vmul.f32 %v7434, %v7466
        %v7499 = vmul.f32 %v7435, %v7467
        %v7500 = vmul.f32 %v7436, %v7468
        %v7501 = vmul.f32 %v7437, %v7469
        %v7502 = vmul.f32 %v7438, %v7470
        %v7503 = vmul.f32 %v7439, %v7471
        %v7504 = vmul.f32 %v7440, %v7472
        %v7505 = vmul.f32 %v7441, %v7473
        %v7506 = vmul.f32 %v7442, %v7474
        %v7507 = vmul.f32 %v7443, %v7475
        %v7508 = vmul.f32 %v7444, %v7476
        %v7509 = vmul.f32 %v7445, %v7477
        %v7510 = vmul.f32 %v7446, %v7478
        %v7511 = vmul.f32 %v7447, %v7479
        %v7512 = vmul.f32 %v7448, %v7480
        %v7513 = vmul.f32 %v7449, %v7481
        %v7514 = vmul.f32 %v7450, %v7482
        %v7515 = vmul.f32 %v7451, %v7483
        %v7516 = vmul.f32 %v7452, %v7484
        %v7517 = vmul.f32 %v7453, %v7485
        %v7518 = vmul.f32 %v7454, %v7486
        %v7519 = vmul.f32 %v7455, %v7487
        %v7520 = vmul.f32 %v7456, %v7488
        %v7521 = vmul.f32 %v7457, %v7489
        %v7522 = vpack.c.bf16 %v7491, %v7490
        %v7523 = vpack.c.bf16 %v7493, %v7492
        %v7524 = vpack.c.bf16 %v7495, %v7494
        %v7525 = vpack.c.bf16 %v7497, %v7496
        %v7526 = vpack.c.bf16 %v7499, %v7498
        %v7527 = vpack.c.bf16 %v7501, %v7500
        %v7528 = vpack.c.bf16 %v7503, %v7502
        %v7529 = vpack.c.bf16 %v7505, %v7504
        %v7530 = vpack.c.bf16 %v7507, %v7506
        %v7531 = vpack.c.bf16 %v7509, %v7508
        %v7532 = vpack.c.bf16 %v7511, %v7510
        %v7533 = vpack.c.bf16 %v7513, %v7512
        %v7534 = vpack.c.bf16 %v7515, %v7514
        %v7535 = vpack.c.bf16 %v7517, %v7516
        %v7536 = vpack.c.bf16 %v7519, %v7518
        %v7537 = vpack.c.bf16 %v7521, %v7520
        %v7554 = vrot.slane %v7522, 4
        %v7555 = vrot.slane %v7523, 4
        %v7556 = vsel %vm963, %v7554, %v7555
        %v7557 = vrot.slane %v7524, 4
        %v7558 = vsel %vm963, %v7555, %v7557
        %v7559 = vrot.slane %v7525, 4
        %v7560 = vsel %vm963, %v7557, %v7559
        %v7561 = vrot.slane %v7526, 4
        %v7562 = vsel %vm963, %v7559, %v7561
        %v7563 = vrot.slane %v7527, 4
        %v7564 = vsel %vm963, %v7561, %v7563
        %v7565 = vrot.slane %v7528, 4
        %v7566 = vsel %vm963, %v7563, %v7565
        %v7567 = vrot.slane %v7529, 4
        %v7568 = vsel %vm963, %v7565, %v7567
        %v7569 = vrot.slane %v7530, 4
        %v7570 = vsel %vm963, %v7567, %v7569
        %v7571 = vrot.slane %v7531, 4
        %v7572 = vsel %vm963, %v7569, %v7571
        %v7573 = vrot.slane %v7532, 4
        %v7574 = vsel %vm963, %v7571, %v7573
        %v7575 = vrot.slane %v7533, 4
        %v7576 = vsel %vm963, %v7573, %v7575
        %v7577 = vrot.slane %v7534, 4
        %v7578 = vsel %vm963, %v7575, %v7577
        %v7579 = vrot.slane %v7535, 4
        %v7580 = vsel %vm963, %v7577, %v7579
        %v7581 = vrot.slane %v7536, 4
        %v7582 = vsel %vm963, %v7579, %v7581
        %v7583 = vrot.slane %v7537, 4
        %v7584 = vsel %vm963, %v7581, %v7583
        %7602 = vst [vmem:[#allocation2 + $0x8] sm:$0xf0] %v7554
        %7603 = vst [vmem:[#allocation2 + $0x10] sm:$0xff] %v7556
        %7604 = vst [vmem:[#allocation2 + $0x18] sm:$0xff] %v7558
        %7605 = vst [vmem:[#allocation2 + $0x20] sm:$0xff] %v7560
        %7606 = vst [vmem:[#allocation2 + $0x28] sm:$0xff] %v7562
        %7607 = vst [vmem:[#allocation2 + $0x30] sm:$0xff] %v7564
        %7608 = vst [vmem:[#allocation2 + $0x38] sm:$0xff] %v7566
        %7609 = vst [vmem:[#allocation2 + $0x40] sm:$0xff] %v7568
        %7610 = vst [vmem:[#allocation2 + $0x48] sm:$0xff] %v7570
        %7611 = vst [vmem:[#allocation2 + $0x50] sm:$0xff] %v7572
        %7612 = vst [vmem:[#allocation2 + $0x58] sm:$0xff] %v7574
        %7613 = vst [vmem:[#allocation2 + $0x60] sm:$0xff] %v7576
        %7614 = vst [vmem:[#allocation2 + $0x68] sm:$0xff] %v7578
        %7615 = vst [vmem:[#allocation2 + $0x70] sm:$0xff] %v7580
        %7616 = vst [vmem:[#allocation2 + $0x78] sm:$0xff] %v7582
        %7617 = vst [vmem:[#allocation2 + $0x80] sm:$0xff] %v7584
        %7618 = vst [vmem:[#allocation2 + $0x88] sm:$0xf] %v7583
        %v7619 = vld [vmem:[#allocation2] sm:$0xf8]
        %v7620 = vld [vmem:[#allocation2 + $0x8] sm:$0xff]
        %v7621 = vld [vmem:[#allocation2 + $0x10] sm:$0xff]
        %v7622 = vld [vmem:[#allocation2 + $0x18] sm:$0xff]
        %v7623 = vld [vmem:[#allocation2 + $0x20] sm:$0xff]
        %v7624 = vld [vmem:[#allocation2 + $0x28] sm:$0xff]
        %v7625 = vld [vmem:[#allocation2 + $0x30] sm:$0xff]
        %v7626 = vld [vmem:[#allocation2 + $0x38] sm:$0xff]
        %v7627 = vld [vmem:[#allocation2 + $0x40] sm:$0xff]
        %v7628 = vld [vmem:[#allocation2 + $0x48] sm:$0xff]
        %v7629 = vld [vmem:[#allocation2 + $0x50] sm:$0xff]
        %v7630 = vld [vmem:[#allocation2 + $0x58] sm:$0xff]
        %v7631 = vld [vmem:[#allocation2 + $0x60] sm:$0xff]
        %v7632 = vld [vmem:[#allocation2 + $0x68] sm:$0xff]
        %v7633 = vld [vmem:[#allocation2 + $0x70] sm:$0xff]
        %v7634 = vld [vmem:[#allocation2 + $0x78] sm:$0xff]
        %v7635 = vld [vmem:[#allocation2 + $0x80] sm:$0xf]
        %v7637 = vshrl.u32 %v7619, 16
        %v7639 = vrot.slane %v7637, 3
        %v7640 = vshll.u32 %v7619, 16
        %v7642 = vrot.slane %v7640, 4
        %v7643 = vor.u32 %v7639, %v7642
        %v7645 = vshrl.u32 %v7620, 16
        %v7647 = vrot.slane %v7645, 3
        %v7648 = vshll.u32 %v7620, 16
        %v7650 = vrot.slane %v7648, 4
        %v7651 = vor.u32 %v7647, %v7650
        %v7652 = vsel %vm1046, %v7643, %v7651
        %v7654 = vshrl.u32 %v7621, 16
        %v7656 = vrot.slane %v7654, 3
        %v7657 = vshll.u32 %v7621, 16
        %v7659 = vrot.slane %v7657, 4
        %v7660 = vor.u32 %v7656, %v7659
        %v7661 = vsel %vm1046, %v7651, %v7660
        %v7663 = vshrl.u32 %v7622, 16
        %v7665 = vrot.slane %v7663, 3
        %v7666 = vshll.u32 %v7622, 16
        %v7668 = vrot.slane %v7666, 4
        %v7669 = vor.u32 %v7665, %v7668
        %v7670 = vsel %vm1046, %v7660, %v7669
        %v7672 = vshrl.u32 %v7623, 16
        %v7674 = vrot.slane %v7672, 3
        %v7675 = vshll.u32 %v7623, 16
        %v7677 = vrot.slane %v7675, 4
        %v7678 = vor.u32 %v7674, %v7677
        %v7679 = vsel %vm1046, %v7669, %v7678
        %v7681 = vshrl.u32 %v7624, 16
        %v7683 = vrot.slane %v7681, 3
        %v7684 = vshll.u32 %v7624, 16
        %v7686 = vrot.slane %v7684, 4
        %v7687 = vor.u32 %v7683, %v7686
        %v7688 = vsel %vm1046, %v7678, %v7687
        %v7690 = vshrl.u32 %v7625, 16
        %v7692 = vrot.slane %v7690, 3
        %v7693 = vshll.u32 %v7625, 16
        %v7695 = vrot.slane %v7693, 4
        %v7696 = vor.u32 %v7692, %v7695
        %v7697 = vsel %vm1046, %v7687, %v7696
        %v7699 = vshrl.u32 %v7626, 16
        %v7701 = vrot.slane %v7699, 3
        %v7702 = vshll.u32 %v7626, 16
        %v7704 = vrot.slane %v7702, 4
        %v7705 = vor.u32 %v7701, %v7704
        %v7706 = vsel %vm1046, %v7696, %v7705
        %v7708 = vshrl.u32 %v7627, 16
        %v7710 = vrot.slane %v7708, 3
        %v7711 = vshll.u32 %v7627, 16
        %v7713 = vrot.slane %v7711, 4
        %v7714 = vor.u32 %v7710, %v7713
        %v7715 = vsel %vm1046, %v7705, %v7714
        %v7717 = vshrl.u32 %v7628, 16
        %v7719 = vrot.slane %v7717, 3
        %v7720 = vshll.u32 %v7628, 16
        %v7722 = vrot.slane %v7720, 4
        %v7723 = vor.u32 %v7719, %v7722
        %v7724 = vsel %vm1046, %v7714, %v7723
        %v7726 = vshrl.u32 %v7629, 16
        %v7728 = vrot.slane %v7726, 3
        %v7729 = vshll.u32 %v7629, 16
        %v7731 = vrot.slane %v7729, 4
        %v7732 = vor.u32 %v7728, %v7731
        %v7733 = vsel %vm1046, %v7723, %v7732
        %v7735 = vshrl.u32 %v7630, 16
        %v7737 = vrot.slane %v7735, 3
        %v7738 = vshll.u32 %v7630, 16
        %v7740 = vrot.slane %v7738, 4
        %v7741 = vor.u32 %v7737, %v7740
        %v7742 = vsel %vm1046, %v7732, %v7741
        %v7744 = vshrl.u32 %v7631, 16
        %v7746 = vrot.slane %v7744, 3
        %v7747 = vshll.u32 %v7631, 16
        %v7749 = vrot.slane %v7747, 4
        %v7750 = vor.u32 %v7746, %v7749
        %v7751 = vsel %vm1046, %v7741, %v7750
        %v7753 = vshrl.u32 %v7632, 16
        %v7755 = vrot.slane %v7753, 3
        %v7756 = vshll.u32 %v7632, 16
        %v7758 = vrot.slane %v7756, 4
        %v7759 = vor.u32 %v7755, %v7758
        %v7760 = vsel %vm1046, %v7750, %v7759
        %v7762 = vshrl.u32 %v7633, 16
        %v7764 = vrot.slane %v7762, 3
        %v7765 = vshll.u32 %v7633, 16
        %v7767 = vrot.slane %v7765, 4
        %v7768 = vor.u32 %v7764, %v7767
        %v7769 = vsel %vm1046, %v7759, %v7768
        %v7771 = vshrl.u32 %v7634, 16
        %v7773 = vrot.slane %v7771, 3
        %v7774 = vshll.u32 %v7634, 16
        %v7776 = vrot.slane %v7774, 4
        %v7777 = vor.u32 %v7773, %v7776
        %v7778 = vsel %vm1046, %v7768, %v7777
        %v7780 = vshrl.u32 %v7635, 16
        %v7782 = vrot.slane %v7780, 3
        %v7783 = vshll.u32 %v7635, 16
        %v7785 = vrot.slane %v7783, 4
        %v7786 = vor.u32 %v7782, %v7785
        %v7787 = vsel %vm1046, %v7777, %v7786
        %7804 = vst [vmem:[#allocation3] sm:$0xff] %v7652
        %7805 = vst [vmem:[#allocation3 + $0x48] sm:$0xff] %v7661
        %7806 = vst [vmem:[#allocation3 + $0x90] sm:$0xff] %v7670
        %7807 = vst [vmem:[#allocation3 + $0xd8] sm:$0xff] %v7679
        %7808 = vst [vmem:[#allocation3 + $0x120] sm:$0xff] %v7688
        %7809 = vst [vmem:[#allocation3 + $0x168] sm:$0xff] %v7697
        %7810 = vst [vmem:[#allocation3 + $0x1b0] sm:$0xff] %v7706
        %7811 = vst [vmem:[#allocation3 + $0x1f8] sm:$0xff] %v7715
        %7812 = vst [vmem:[#allocation3 + $0x240] sm:$0xff] %v7724
        %7813 = vst [vmem:[#allocation3 + $0x288] sm:$0xff] %v7733
        %7814 = vst [vmem:[#allocation3 + $0x2d0] sm:$0xff] %v7742
        %7815 = vst [vmem:[#allocation3 + $0x318] sm:$0xff] %v7751
        %7816 = vst [vmem:[#allocation3 + $0x360] sm:$0xff] %v7760
        %7817 = vst [vmem:[#allocation3 + $0x3a8] sm:$0xff] %v7769
        %7818 = vst [vmem:[#allocation3 + $0x3f0] sm:$0xff] %v7778
        %7819 = vst [vmem:[#allocation3 + $0x438] sm:$0xff] %v7787
        %v7820 = vld [vmem:[#allocation2] sm:$0xf0]
        %v7821 = vld [vmem:[#allocation2 + $0x8] sm:$0xff]
        %v7822 = vld [vmem:[#allocation2 + $0x10] sm:$0xff]
        %v7823 = vld [vmem:[#allocation2 + $0x18] sm:$0xff]
        %v7824 = vld [vmem:[#allocation2 + $0x20] sm:$0xff]
        %v7825 = vld [vmem:[#allocation2 + $0x28] sm:$0xff]
        %v7826 = vld [vmem:[#allocation2 + $0x30] sm:$0xff]
        %v7827 = vld [vmem:[#allocation2 + $0x38] sm:$0xff]
        %v7828 = vld [vmem:[#allocation2 + $0x40] sm:$0xff]
        %v7829 = vld [vmem:[#allocation2 + $0x48] sm:$0xff]
        %v7830 = vld [vmem:[#allocation2 + $0x50] sm:$0xff]
        %v7831 = vld [vmem:[#allocation2 + $0x58] sm:$0xff]
        %v7832 = vld [vmem:[#allocation2 + $0x60] sm:$0xff]
        %v7833 = vld [vmem:[#allocation2 + $0x68] sm:$0xff]
        %v7834 = vld [vmem:[#allocation2 + $0x70] sm:$0xff]
        %v7835 = vld [vmem:[#allocation2 + $0x78] sm:$0xff]
        %v7836 = vld [vmem:[#allocation2 + $0x80] sm:$0xf]
        %v7854 = vrot.slane %v7820, 4
        %v7855 = vrot.slane %v7821, 4
        %v7856 = vsel %vm963, %v7854, %v7855
        %v7857 = vrot.slane %v7822, 4
        %v7858 = vsel %vm963, %v7855, %v7857
        %v7859 = vrot.slane %v7823, 4
        %v7860 = vsel %vm963, %v7857, %v7859
        %v7861 = vrot.slane %v7824, 4
        %v7862 = vsel %vm963, %v7859, %v7861
        %v7863 = vrot.slane %v7825, 4
        %v7864 = vsel %vm963, %v7861, %v7863
        %v7865 = vrot.slane %v7826, 4
        %v7866 = vsel %vm963, %v7863, %v7865
        %v7867 = vrot.slane %v7827, 4
        %v7868 = vsel %vm963, %v7865, %v7867
        %v7869 = vrot.slane %v7828, 4
        %v7870 = vsel %vm963, %v7867, %v7869
        %v7871 = vrot.slane %v7829, 4
        %v7872 = vsel %vm963, %v7869, %v7871
        %v7873 = vrot.slane %v7830, 4
        %v7874 = vsel %vm963, %v7871, %v7873
        %v7875 = vrot.slane %v7831, 4
        %v7876 = vsel %vm963, %v7873, %v7875
        %v7877 = vrot.slane %v7832, 4
        %v7878 = vsel %vm963, %v7875, %v7877
        %v7879 = vrot.slane %v7833, 4
        %v7880 = vsel %vm963, %v7877, %v7879
        %v7881 = vrot.slane %v7834, 4
        %v7882 = vsel %vm963, %v7879, %v7881
        %v7883 = vrot.slane %v7835, 4
        %v7884 = vsel %vm963, %v7881, %v7883
        %v7885 = vrot.slane %v7836, 4
        %v7886 = vsel %vm963, %v7883, %v7885
        %7903 = vst [vmem:[#allocation3 + $0x8] sm:$0xff] %v7856
        %7904 = vst [vmem:[#allocation3 + $0x50] sm:$0xff] %v7858
        %7905 = vst [vmem:[#allocation3 + $0x98] sm:$0xff] %v7860
        %7906 = vst [vmem:[#allocation3 + $0xe0] sm:$0xff] %v7862
        %7907 = vst [vmem:[#allocation3 + $0x128] sm:$0xff] %v7864
        %7908 = vst [vmem:[#allocation3 + $0x170] sm:$0xff] %v7866
        %7909 = vst [vmem:[#allocation3 + $0x1b8] sm:$0xff] %v7868
        %7910 = vst [vmem:[#allocation3 + $0x200] sm:$0xff] %v7870
        %7911 = vst [vmem:[#allocation3 + $0x248] sm:$0xff] %v7872
        %7912 = vst [vmem:[#allocation3 + $0x290] sm:$0xff] %v7874
        %7913 = vst [vmem:[#allocation3 + $0x2d8] sm:$0xff] %v7876
        %7914 = vst [vmem:[#allocation3 + $0x320] sm:$0xff] %v7878
        %7915 = vst [vmem:[#allocation3 + $0x368] sm:$0xff] %v7880
        %7916 = vst [vmem:[#allocation3 + $0x3b0] sm:$0xff] %v7882
        %7917 = vst [vmem:[#allocation3 + $0x3f8] sm:$0xff] %v7884
        %7918 = vst [vmem:[#allocation3 + $0x440] sm:$0xff] %v7886
        %v7919 = vld [vmem:[#allocation2] sm:$0xf0]
        %v7920 = vld [vmem:[#allocation2 + $0x8] sm:$0xff]
        %v7921 = vld [vmem:[#allocation2 + $0x10] sm:$0xff]
        %v7922 = vld [vmem:[#allocation2 + $0x18] sm:$0xff]
        %v7923 = vld [vmem:[#allocation2 + $0x20] sm:$0xff]
        %v7924 = vld [vmem:[#allocation2 + $0x28] sm:$0xff]
        %v7925 = vld [vmem:[#allocation2 + $0x30] sm:$0xff]
        %v7926 = vld [vmem:[#allocation2 + $0x38] sm:$0xff]
        %v7927 = vld [vmem:[#allocation2 + $0x40] sm:$0xff]
        %v7928 = vld [vmem:[#allocation2 + $0x48] sm:$0xff]
        %v7929 = vld [vmem:[#allocation2 + $0x50] sm:$0xff]
        %v7930 = vld [vmem:[#allocation2 + $0x58] sm:$0xff]
        %v7931 = vld [vmem:[#allocation2 + $0x60] sm:$0xff]
        %v7932 = vld [vmem:[#allocation2 + $0x68] sm:$0xff]
        %v7933 = vld [vmem:[#allocation2 + $0x70] sm:$0xff]
        %v7934 = vld [vmem:[#allocation2 + $0x78] sm:$0xff]
        %v7935 = vld [vmem:[#allocation2 + $0x80] sm:$0x1f]
        %v7937 = vshrl.u32 %v7919, 16
        %v7939 = vrot.slane %v7937, 4
        %v7940 = vshll.u32 %v7919, 16
        %v7942 = vrot.slane %v7940, 5
        %v7943 = vor.u32 %v7939, %v7942
        %v7945 = vshrl.u32 %v7920, 16
        %v7947 = vrot.slane %v7945, 4
        %v7948 = vshll.u32 %v7920, 16
        %v7950 = vrot.slane %v7948, 5
        %v7951 = vor.u32 %v7947, %v7950
        %v7952 = vsel %vm1347, %v7943, %v7951
        %v7954 = vshrl.u32 %v7921, 16
        %v7956 = vrot.slane %v7954, 4
        %v7957 = vshll.u32 %v7921, 16
        %v7959 = vrot.slane %v7957, 5
        %v7960 = vor.u32 %v7956, %v7959
        %v7961 = vsel %vm1347, %v7951, %v7960
        %v7963 = vshrl.u32 %v7922, 16
        %v7965 = vrot.slane %v7963, 4
        %v7966 = vshll.u32 %v7922, 16
        %v7968 = vrot.slane %v7966, 5
        %v7969 = vor.u32 %v7965, %v7968
        %v7970 = vsel %vm1347, %v7960, %v7969
        %v7972 = vshrl.u32 %v7923, 16
        %v7974 = vrot.slane %v7972, 4
        %v7975 = vshll.u32 %v7923, 16
        %v7977 = vrot.slane %v7975, 5
        %v7978 = vor.u32 %v7974, %v7977
        %v7979 = vsel %vm1347, %v7969, %v7978
        %v7981 = vshrl.u32 %v7924, 16
        %v7983 = vrot.slane %v7981, 4
        %v7984 = vshll.u32 %v7924, 16
        %v7986 = vrot.slane %v7984, 5
        %v7987 = vor.u32 %v7983, %v7986
        %v7988 = vsel %vm1347, %v7978, %v7987
        %v7990 = vshrl.u32 %v7925, 16
        %v7992 = vrot.slane %v7990, 4
        %v7993 = vshll.u32 %v7925, 16
        %v7995 = vrot.slane %v7993, 5
        %v7996 = vor.u32 %v7992, %v7995
        %v7997 = vsel %vm1347, %v7987, %v7996
        %v7999 = vshrl.u32 %v7926, 16
        %v8001 = vrot.slane %v7999, 4
        %v8002 = vshll.u32 %v7926, 16
        %v8004 = vrot.slane %v8002, 5
        %v8005 = vor.u32 %v8001, %v8004
        %v8006 = vsel %vm1347, %v7996, %v8005
        %v8008 = vshrl.u32 %v7927, 16
        %v8010 = vrot.slane %v8008, 4
        %v8011 = vshll.u32 %v7927, 16
        %v8013 = vrot.slane %v8011, 5
        %v8014 = vor.u32 %v8010, %v8013
        %v8015 = vsel %vm1347, %v8005, %v8014
        %v8017 = vshrl.u32 %v7928, 16
        %v8019 = vrot.slane %v8017, 4
        %v8020 = vshll.u32 %v7928, 16
        %v8022 = vrot.slane %v8020, 5
        %v8023 = vor.u32 %v8019, %v8022
        %v8024 = vsel %vm1347, %v8014, %v8023
        %v8026 = vshrl.u32 %v7929, 16
        %v8028 = vrot.slane %v8026, 4
        %v8029 = vshll.u32 %v7929, 16
        %v8031 = vrot.slane %v8029, 5
        %v8032 = vor.u32 %v8028, %v8031
        %v8033 = vsel %vm1347, %v8023, %v8032
        %v8035 = vshrl.u32 %v7930, 16
        %v8037 = vrot.slane %v8035, 4
        %v8038 = vshll.u32 %v7930, 16
        %v8040 = vrot.slane %v8038, 5
        %v8041 = vor.u32 %v8037, %v8040
        %v8042 = vsel %vm1347, %v8032, %v8041
        %v8044 = vshrl.u32 %v7931, 16
        %v8046 = vrot.slane %v8044, 4
        %v8047 = vshll.u32 %v7931, 16
        %v8049 = vrot.slane %v8047, 5
        %v8050 = vor.u32 %v8046, %v8049
        %v8051 = vsel %vm1347, %v8041, %v8050
        %v8053 = vshrl.u32 %v7932, 16
        %v8055 = vrot.slane %v8053, 4
        %v8056 = vshll.u32 %v7932, 16
        %v8058 = vrot.slane %v8056, 5
        %v8059 = vor.u32 %v8055, %v8058
        %v8060 = vsel %vm1347, %v8050, %v8059
        %v8062 = vshrl.u32 %v7933, 16
        %v8064 = vrot.slane %v8062, 4
        %v8065 = vshll.u32 %v7933, 16
        %v8067 = vrot.slane %v8065, 5
        %v8068 = vor.u32 %v8064, %v8067
        %v8069 = vsel %vm1347, %v8059, %v8068
        %v8071 = vshrl.u32 %v7934, 16
        %v8073 = vrot.slane %v8071, 4
        %v8074 = vshll.u32 %v7934, 16
        %v8076 = vrot.slane %v8074, 5
        %v8077 = vor.u32 %v8073, %v8076
        %v8078 = vsel %vm1347, %v8068, %v8077
        %v8080 = vshrl.u32 %v7935, 16
        %v8082 = vrot.slane %v8080, 4
        %v8083 = vshll.u32 %v7935, 16
        %v8085 = vrot.slane %v8083, 5
        %v8086 = vor.u32 %v8082, %v8085
        %v8087 = vsel %vm1347, %v8077, %v8086
        %8104 = vst [vmem:[#allocation3 + $0x10] sm:$0xff] %v7952
        %8105 = vst [vmem:[#allocation3 + $0x58] sm:$0xff] %v7961
        %8106 = vst [vmem:[#allocation3 + $0xa0] sm:$0xff] %v7970
        %8107 = vst [vmem:[#allocation3 + $0xe8] sm:$0xff] %v7979
        %8108 = vst [vmem:[#allocation3 + $0x130] sm:$0xff] %v7988
        %8109 = vst [vmem:[#allocation3 + $0x178] sm:$0xff] %v7997
        %8110 = vst [vmem:[#allocation3 + $0x1c0] sm:$0xff] %v8006
        %8111 = vst [vmem:[#allocation3 + $0x208] sm:$0xff] %v8015
        %8112 = vst [vmem:[#allocation3 + $0x250] sm:$0xff] %v8024
        %8113 = vst [vmem:[#allocation3 + $0x298] sm:$0xff] %v8033
        %8114 = vst [vmem:[#allocation3 + $0x2e0] sm:$0xff] %v8042
        %8115 = vst [vmem:[#allocation3 + $0x328] sm:$0xff] %v8051
        %8116 = vst [vmem:[#allocation3 + $0x370] sm:$0xff] %v8060
        %8117 = vst [vmem:[#allocation3 + $0x3b8] sm:$0xff] %v8069
        %8118 = vst [vmem:[#allocation3 + $0x400] sm:$0xff] %v8078
        %8119 = vst [vmem:[#allocation3 + $0x448] sm:$0xff] %v8087
        %v8120 = vld [vmem:[#allocation2 + $0x8] sm:$0xf8]
        %v8121 = vld [vmem:[#allocation2 + $0x10] sm:$0xff]
        %v8122 = vld [vmem:[#allocation2 + $0x18] sm:$0xff]
        %v8123 = vld [vmem:[#allocation2 + $0x20] sm:$0xff]
        %v8124 = vld [vmem:[#allocation2 + $0x28] sm:$0xff]
        %v8125 = vld [vmem:[#allocation2 + $0x30] sm:$0xff]
        %v8126 = vld [vmem:[#allocation2 + $0x38] sm:$0xff]
        %v8127 = vld [vmem:[#allocation2 + $0x40] sm:$0xff]
        %v8128 = vld [vmem:[#allocation2 + $0x48] sm:$0xff]
        %v8129 = vld [vmem:[#allocation2 + $0x50] sm:$0xff]
        %v8130 = vld [vmem:[#allocation2 + $0x58] sm:$0xff]
        %v8131 = vld [vmem:[#allocation2 + $0x60] sm:$0xff]
        %v8132 = vld [vmem:[#allocation2 + $0x68] sm:$0xff]
        %v8133 = vld [vmem:[#allocation2 + $0x70] sm:$0xff]
        %v8134 = vld [vmem:[#allocation2 + $0x78] sm:$0xff]
        %v8135 = vld [vmem:[#allocation2 + $0x80] sm:$0xff]
        %v8136 = vld [vmem:[#allocation2 + $0x88] sm:$0xf]
        %v8138 = vshrl.u32 %v8120, 16
        %v8140 = vrot.slane %v8138, 3
        %v8141 = vshll.u32 %v8120, 16
        %v8143 = vrot.slane %v8141, 4
        %v8144 = vor.u32 %v8140, %v8143
        %v8146 = vshrl.u32 %v8121, 16
        %v8148 = vrot.slane %v8146, 3
        %v8149 = vshll.u32 %v8121, 16
        %v8151 = vrot.slane %v8149, 4
        %v8152 = vor.u32 %v8148, %v8151
        %v8153 = vsel %vm1046, %v8144, %v8152
        %v8155 = vshrl.u32 %v8122, 16
        %v8157 = vrot.slane %v8155, 3
        %v8158 = vshll.u32 %v8122, 16
        %v8160 = vrot.slane %v8158, 4
        %v8161 = vor.u32 %v8157, %v8160
        %v8162 = vsel %vm1046, %v8152, %v8161
        %v8164 = vshrl.u32 %v8123, 16
        %v8166 = vrot.slane %v8164, 3
        %v8167 = vshll.u32 %v8123, 16
        %v8169 = vrot.slane %v8167, 4
        %v8170 = vor.u32 %v8166, %v8169
        %v8171 = vsel %vm1046, %v8161, %v8170
        %v8173 = vshrl.u32 %v8124, 16
        %v8175 = vrot.slane %v8173, 3
        %v8176 = vshll.u32 %v8124, 16
        %v8178 = vrot.slane %v8176, 4
        %v8179 = vor.u32 %v8175, %v8178
        %v8180 = vsel %vm1046, %v8170, %v8179
        %v8182 = vshrl.u32 %v8125, 16
        %v8184 = vrot.slane %v8182, 3
        %v8185 = vshll.u32 %v8125, 16
        %v8187 = vrot.slane %v8185, 4
        %v8188 = vor.u32 %v8184, %v8187
        %v8189 = vsel %vm1046, %v8179, %v8188
        %v8191 = vshrl.u32 %v8126, 16
        %v8193 = vrot.slane %v8191, 3
        %v8194 = vshll.u32 %v8126, 16
        %v8196 = vrot.slane %v8194, 4
        %v8197 = vor.u32 %v8193, %v8196
        %v8198 = vsel %vm1046, %v8188, %v8197
        %v8200 = vshrl.u32 %v8127, 16
        %v8202 = vrot.slane %v8200, 3
        %v8203 = vshll.u32 %v8127, 16
        %v8205 = vrot.slane %v8203, 4
        %v8206 = vor.u32 %v8202, %v8205
        %v8207 = vsel %vm1046, %v8197, %v8206
        %v8209 = vshrl.u32 %v8128, 16
        %v8211 = vrot.slane %v8209, 3
        %v8212 = vshll.u32 %v8128, 16
        %v8214 = vrot.slane %v8212, 4
        %v8215 = vor.u32 %v8211, %v8214
        %v8216 = vsel %vm1046, %v8206, %v8215
        %v8218 = vshrl.u32 %v8129, 16
        %v8220 = vrot.slane %v8218, 3
        %v8221 = vshll.u32 %v8129, 16
        %v8223 = vrot.slane %v8221, 4
        %v8224 = vor.u32 %v8220, %v8223
        %v8225 = vsel %vm1046, %v8215, %v8224
        %v8227 = vshrl.u32 %v8130, 16
        %v8229 = vrot.slane %v8227, 3
        %v8230 = vshll.u32 %v8130, 16
        %v8232 = vrot.slane %v8230, 4
        %v8233 = vor.u32 %v8229, %v8232
        %v8234 = vsel %vm1046, %v8224, %v8233
        %v8236 = vshrl.u32 %v8131, 16
        %v8238 = vrot.slane %v8236, 3
        %v8239 = vshll.u32 %v8131, 16
        %v8241 = vrot.slane %v8239, 4
        %v8242 = vor.u32 %v8238, %v8241
        %v8243 = vsel %vm1046, %v8233, %v8242
        %v8245 = vshrl.u32 %v8132, 16
        %v8247 = vrot.slane %v8245, 3
        %v8248 = vshll.u32 %v8132, 16
        %v8250 = vrot.slane %v8248, 4
        %v8251 = vor.u32 %v8247, %v8250
        %v8252 = vsel %vm1046, %v8242, %v8251
        %v8254 = vshrl.u32 %v8133, 16
        %v8256 = vrot.slane %v8254, 3
        %v8257 = vshll.u32 %v8133, 16
        %v8259 = vrot.slane %v8257, 4
        %v8260 = vor.u32 %v8256, %v8259
        %v8261 = vsel %vm1046, %v8251, %v8260
        %v8263 = vshrl.u32 %v8134, 16
        %v8265 = vrot.slane %v8263, 3
        %v8266 = vshll.u32 %v8134, 16
        %v8268 = vrot.slane %v8266, 4
        %v8269 = vor.u32 %v8265, %v8268
        %v8270 = vsel %vm1046, %v8260, %v8269
        %v8272 = vshrl.u32 %v8135, 16
        %v8274 = vrot.slane %v8272, 3
        %v8275 = vshll.u32 %v8135, 16
        %v8277 = vrot.slane %v8275, 4
        %v8278 = vor.u32 %v8274, %v8277
        %v8279 = vsel %vm1046, %v8269, %v8278
        %v8281 = vshrl.u32 %v8136, 16
        %v8283 = vrot.slane %v8281, 3
        %v8284 = vshll.u32 %v8136, 16
        %v8286 = vrot.slane %v8284, 4
        %v8287 = vor.u32 %v8283, %v8286
        %v8288 = vsel %vm1046, %v8278, %v8287
        %8305 = vst [vmem:[#allocation3 + $0x18] sm:$0xff] %v8153
        %8306 = vst [vmem:[#allocation3 + $0x60] sm:$0xff] %v8162
        %8307 = vst [vmem:[#allocation3 + $0xa8] sm:$0xff] %v8171
        %8308 = vst [vmem:[#allocation3 + $0xf0] sm:$0xff] %v8180
        %8309 = vst [vmem:[#allocation3 + $0x138] sm:$0xff] %v8189
        %8310 = vst [vmem:[#allocation3 + $0x180] sm:$0xff] %v8198
        %8311 = vst [vmem:[#allocation3 + $0x1c8] sm:$0xff] %v8207
        %8312 = vst [vmem:[#allocation3 + $0x210] sm:$0xff] %v8216
        %8313 = vst [vmem:[#allocation3 + $0x258] sm:$0xff] %v8225
        %8314 = vst [vmem:[#allocation3 + $0x2a0] sm:$0xff] %v8234
        %8315 = vst [vmem:[#allocation3 + $0x2e8] sm:$0xff] %v8243
        %8316 = vst [vmem:[#allocation3 + $0x330] sm:$0xff] %v8252
        %8317 = vst [vmem:[#allocation3 + $0x378] sm:$0xff] %v8261
        %8318 = vst [vmem:[#allocation3 + $0x3c0] sm:$0xff] %v8270
        %8319 = vst [vmem:[#allocation3 + $0x408] sm:$0xff] %v8279
        %8320 = vst [vmem:[#allocation3 + $0x450] sm:$0xff] %v8288
        %v8321 = vld [vmem:[#allocation2 + $0x8] sm:$0xf0]
        %v8322 = vld [vmem:[#allocation2 + $0x10] sm:$0xff]
        %v8323 = vld [vmem:[#allocation2 + $0x18] sm:$0xff]
        %v8324 = vld [vmem:[#allocation2 + $0x20] sm:$0xff]
        %v8325 = vld [vmem:[#allocation2 + $0x28] sm:$0xff]
        %v8326 = vld [vmem:[#allocation2 + $0x30] sm:$0xff]
        %v8327 = vld [vmem:[#allocation2 + $0x38] sm:$0xff]
        %v8328 = vld [vmem:[#allocation2 + $0x40] sm:$0xff]
        %v8329 = vld [vmem:[#allocation2 + $0x48] sm:$0xff]
        %v8330 = vld [vmem:[#allocation2 + $0x50] sm:$0xff]
        %v8331 = vld [vmem:[#allocation2 + $0x58] sm:$0xff]
        %v8332 = vld [vmem:[#allocation2 + $0x60] sm:$0xff]
        %v8333 = vld [vmem:[#allocation2 + $0x68] sm:$0xff]
        %v8334 = vld [vmem:[#allocation2 + $0x70] sm:$0xff]
        %v8335 = vld [vmem:[#allocation2 + $0x78] sm:$0xff]
        %v8336 = vld [vmem:[#allocation2 + $0x80] sm:$0xff]
        %v8337 = vld [vmem:[#allocation2 + $0x88] sm:$0xf]
        %v8355 = vrot.slane %v8321, 4
        %v8356 = vrot.slane %v8322, 4
        %v8357 = vsel %vm963, %v8355, %v8356
        %v8358 = vrot.slane %v8323, 4
        %v8359 = vsel %vm963, %v8356, %v8358
        %v8360 = vrot.slane %v8324, 4
        %v8361 = vsel %vm963, %v8358, %v8360
        %v8362 = vrot.slane %v8325, 4
        %v8363 = vsel %vm963, %v8360, %v8362
        %v8364 = vrot.slane %v8326, 4
        %v8365 = vsel %vm963, %v8362, %v8364
        %v8366 = vrot.slane %v8327, 4
        %v8367 = vsel %vm963, %v8364, %v8366
        %v8368 = vrot.slane %v8328, 4
        %v8369 = vsel %vm963, %v8366, %v8368
        %v8370 = vrot.slane %v8329, 4
        %v8371 = vsel %vm963, %v8368, %v8370
        %v8372 = vrot.slane %v8330, 4
        %v8373 = vsel %vm963, %v8370, %v8372
        %v8374 = vrot.slane %v8331, 4
        %v8375 = vsel %vm963, %v8372, %v8374
        %v8376 = vrot.slane %v8332, 4
        %v8377 = vsel %vm963, %v8374, %v8376
        %v8378 = vrot.slane %v8333, 4
        %v8379 = vsel %vm963, %v8376, %v8378
        %v8380 = vrot.slane %v8334, 4
        %v8381 = vsel %vm963, %v8378, %v8380
        %v8382 = vrot.slane %v8335, 4
        %v8383 = vsel %vm963, %v8380, %v8382
        %v8384 = vrot.slane %v8336, 4
        %v8385 = vsel %vm963, %v8382, %v8384
        %v8386 = vrot.slane %v8337, 4
        %v8387 = vsel %vm963, %v8384, %v8386
        %8404 = vst [vmem:[#allocation3 + $0x20] sm:$0xff] %v8357
        %8405 = vst [vmem:[#allocation3 + $0x68] sm:$0xff] %v8359
        %8406 = vst [vmem:[#allocation3 + $0xb0] sm:$0xff] %v8361
        %8407 = vst [vmem:[#allocation3 + $0xf8] sm:$0xff] %v8363
        %8408 = vst [vmem:[#allocation3 + $0x140] sm:$0xff] %v8365
        %8409 = vst [vmem:[#allocation3 + $0x188] sm:$0xff] %v8367
        %8410 = vst [vmem:[#allocation3 + $0x1d0] sm:$0xff] %v8369
        %8411 = vst [vmem:[#allocation3 + $0x218] sm:$0xff] %v8371
        %8412 = vst [vmem:[#allocation3 + $0x260] sm:$0xff] %v8373
        %8413 = vst [vmem:[#allocation3 + $0x2a8] sm:$0xff] %v8375
        %8414 = vst [vmem:[#allocation3 + $0x2f0] sm:$0xff] %v8377
        %8415 = vst [vmem:[#allocation3 + $0x338] sm:$0xff] %v8379
        %8416 = vst [vmem:[#allocation3 + $0x380] sm:$0xff] %v8381
        %8417 = vst [vmem:[#allocation3 + $0x3c8] sm:$0xff] %v8383
        %8418 = vst [vmem:[#allocation3 + $0x410] sm:$0xff] %v8385
        %8419 = vst [vmem:[#allocation3 + $0x458] sm:$0xff] %v8387
        %v8420 = vld [vmem:[#allocation2 + $0x8] sm:$0xf0]
        %v8421 = vld [vmem:[#allocation2 + $0x10] sm:$0xff]
        %v8422 = vld [vmem:[#allocation2 + $0x18] sm:$0xff]
        %v8423 = vld [vmem:[#allocation2 + $0x20] sm:$0xff]
        %v8424 = vld [vmem:[#allocation2 + $0x28] sm:$0xff]
        %v8425 = vld [vmem:[#allocation2 + $0x30] sm:$0xff]
        %v8426 = vld [vmem:[#allocation2 + $0x38] sm:$0xff]
        %v8427 = vld [vmem:[#allocation2 + $0x40] sm:$0xff]
        %v8428 = vld [vmem:[#allocation2 + $0x48] sm:$0xff]
        %v8429 = vld [vmem:[#allocation2 + $0x50] sm:$0xff]
        %v8430 = vld [vmem:[#allocation2 + $0x58] sm:$0xff]
        %v8431 = vld [vmem:[#allocation2 + $0x60] sm:$0xff]
        %v8432 = vld [vmem:[#allocation2 + $0x68] sm:$0xff]
        %v8433 = vld [vmem:[#allocation2 + $0x70] sm:$0xff]
        %v8434 = vld [vmem:[#allocation2 + $0x78] sm:$0xff]
        %v8435 = vld [vmem:[#allocation2 + $0x80] sm:$0xff]
        %v8436 = vld [vmem:[#allocation2 + $0x88] sm:$0x1f]
        %v8438 = vshrl.u32 %v8420, 16
        %v8440 = vrot.slane %v8438, 4
        %v8441 = vshll.u32 %v8420, 16
        %v8443 = vrot.slane %v8441, 5
        %v8444 = vor.u32 %v8440, %v8443
        %v8446 = vshrl.u32 %v8421, 16
        %v8448 = vrot.slane %v8446, 4
        %v8449 = vshll.u32 %v8421, 16
        %v8451 = vrot.slane %v8449, 5
        %v8452 = vor.u32 %v8448, %v8451
        %v8453 = vsel %vm1347, %v8444, %v8452
        %v8455 = vshrl.u32 %v8422, 16
        %v8457 = vrot.slane %v8455, 4
        %v8458 = vshll.u32 %v8422, 16
        %v8460 = vrot.slane %v8458, 5
        %v8461 = vor.u32 %v8457, %v8460
        %v8462 = vsel %vm1347, %v8452, %v8461
        %v8464 = vshrl.u32 %v8423, 16
        %v8466 = vrot.slane %v8464, 4
        %v8467 = vshll.u32 %v8423, 16
        %v8469 = vrot.slane %v8467, 5
        %v8470 = vor.u32 %v8466, %v8469
        %v8471 = vsel %vm1347, %v8461, %v8470
        %v8473 = vshrl.u32 %v8424, 16
        %v8475 = vrot.slane %v8473, 4
        %v8476 = vshll.u32 %v8424, 16
        %v8478 = vrot.slane %v8476, 5
        %v8479 = vor.u32 %v8475, %v8478
        %v8480 = vsel %vm1347, %v8470, %v8479
        %v8482 = vshrl.u32 %v8425, 16
        %v8484 = vrot.slane %v8482, 4
        %v8485 = vshll.u32 %v8425, 16
        %v8487 = vrot.slane %v8485, 5
        %v8488 = vor.u32 %v8484, %v8487
        %v8489 = vsel %vm1347, %v8479, %v8488
        %v8491 = vshrl.u32 %v8426, 16
        %v8493 = vrot.slane %v8491, 4
        %v8494 = vshll.u32 %v8426, 16
        %v8496 = vrot.slane %v8494, 5
        %v8497 = vor.u32 %v8493, %v8496
        %v8498 = vsel %vm1347, %v8488, %v8497
        %v8500 = vshrl.u32 %v8427, 16
        %v8502 = vrot.slane %v8500, 4
        %v8503 = vshll.u32 %v8427, 16
        %v8505 = vrot.slane %v8503, 5
        %v8506 = vor.u32 %v8502, %v8505
        %v8507 = vsel %vm1347, %v8497, %v8506
        %v8509 = vshrl.u32 %v8428, 16
        %v8511 = vrot.slane %v8509, 4
        %v8512 = vshll.u32 %v8428, 16
        %v8514 = vrot.slane %v8512, 5
        %v8515 = vor.u32 %v8511, %v8514
        %v8516 = vsel %vm1347, %v8506, %v8515
        %v8518 = vshrl.u32 %v8429, 16
        %v8520 = vrot.slane %v8518, 4
        %v8521 = vshll.u32 %v8429, 16
        %v8523 = vrot.slane %v8521, 5
        %v8524 = vor.u32 %v8520, %v8523
        %v8525 = vsel %vm1347, %v8515, %v8524
        %v8527 = vshrl.u32 %v8430, 16
        %v8529 = vrot.slane %v8527, 4
        %v8530 = vshll.u32 %v8430, 16
        %v8532 = vrot.slane %v8530, 5
        %v8533 = vor.u32 %v8529, %v8532
        %v8534 = vsel %vm1347, %v8524, %v8533
        %v8536 = vshrl.u32 %v8431, 16
        %v8538 = vrot.slane %v8536, 4
        %v8539 = vshll.u32 %v8431, 16
        %v8541 = vrot.slane %v8539, 5
        %v8542 = vor.u32 %v8538, %v8541
        %v8543 = vsel %vm1347, %v8533, %v8542
        %v8545 = vshrl.u32 %v8432, 16
        %v8547 = vrot.slane %v8545, 4
        %v8548 = vshll.u32 %v8432, 16
        %v8550 = vrot.slane %v8548, 5
        %v8551 = vor.u32 %v8547, %v8550
        %v8552 = vsel %vm1347, %v8542, %v8551
        %v8554 = vshrl.u32 %v8433, 16
        %v8556 = vrot.slane %v8554, 4
        %v8557 = vshll.u32 %v8433, 16
        %v8559 = vrot.slane %v8557, 5
        %v8560 = vor.u32 %v8556, %v8559
        %v8561 = vsel %vm1347, %v8551, %v8560
        %v8563 = vshrl.u32 %v8434, 16
        %v8565 = vrot.slane %v8563, 4
        %v8566 = vshll.u32 %v8434, 16
        %v8568 = vrot.slane %v8566, 5
        %v8569 = vor.u32 %v8565, %v8568
        %v8570 = vsel %vm1347, %v8560, %v8569
        %v8572 = vshrl.u32 %v8435, 16
        %v8574 = vrot.slane %v8572, 4
        %v8575 = vshll.u32 %v8435, 16
        %v8577 = vrot.slane %v8575, 5
        %v8578 = vor.u32 %v8574, %v8577
        %v8579 = vsel %vm1347, %v8569, %v8578
        %v8581 = vshrl.u32 %v8436, 16
        %v8583 = vrot.slane %v8581, 4
        %v8584 = vshll.u32 %v8436, 16
        %v8586 = vrot.slane %v8584, 5
        %v8587 = vor.u32 %v8583, %v8586
        %v8588 = vsel %vm1347, %v8578, %v8587
        %8605 = vst [vmem:[#allocation3 + $0x28] sm:$0xff] %v8453
        %8606 = vst [vmem:[#allocation3 + $0x70] sm:$0xff] %v8462
        %8607 = vst [vmem:[#allocation3 + $0xb8] sm:$0xff] %v8471
        %8608 = vst [vmem:[#allocation3 + $0x100] sm:$0xff] %v8480
        %8609 = vst [vmem:[#allocation3 + $0x148] sm:$0xff] %v8489
        %8610 = vst [vmem:[#allocation3 + $0x190] sm:$0xff] %v8498
        %8611 = vst [vmem:[#allocation3 + $0x1d8] sm:$0xff] %v8507
        %8612 = vst [vmem:[#allocation3 + $0x220] sm:$0xff] %v8516
        %8613 = vst [vmem:[#allocation3 + $0x268] sm:$0xff] %v8525
        %8614 = vst [vmem:[#allocation3 + $0x2b0] sm:$0xff] %v8534
        %8615 = vst [vmem:[#allocation3 + $0x2f8] sm:$0xff] %v8543
        %8616 = vst [vmem:[#allocation3 + $0x340] sm:$0xff] %v8552
        %8617 = vst [vmem:[#allocation3 + $0x388] sm:$0xff] %v8561
        %8618 = vst [vmem:[#allocation3 + $0x3d0] sm:$0xff] %v8570
        %8619 = vst [vmem:[#allocation3 + $0x418] sm:$0xff] %v8579
        %8620 = vst [vmem:[#allocation3 + $0x460] sm:$0xff] %v8588
        %v8621 = vld [vmem:[#allocation2 + $0x10] sm:$0xf8]
        %v8622 = vld [vmem:[#allocation2 + $0x18] sm:$0xff]
        %v8623 = vld [vmem:[#allocation2 + $0x20] sm:$0xff]
        %v8624 = vld [vmem:[#allocation2 + $0x28] sm:$0xff]
        %v8625 = vld [vmem:[#allocation2 + $0x30] sm:$0xff]
        %v8626 = vld [vmem:[#allocation2 + $0x38] sm:$0xff]
        %v8627 = vld [vmem:[#allocation2 + $0x40] sm:$0xff]
        %v8628 = vld [vmem:[#allocation2 + $0x48] sm:$0xff]
        %v8629 = vld [vmem:[#allocation2 + $0x50] sm:$0xff]
        %v8630 = vld [vmem:[#allocation2 + $0x58] sm:$0xff]
        %v8631 = vld [vmem:[#allocation2 + $0x60] sm:$0xff]
        %v8632 = vld [vmem:[#allocation2 + $0x68] sm:$0xff]
        %v8633 = vld [vmem:[#allocation2 + $0x70] sm:$0xff]
        %v8634 = vld [vmem:[#allocation2 + $0x78] sm:$0xff]
        %v8635 = vld [vmem:[#allocation2 + $0x80] sm:$0xff]
        %v8636 = vld [vmem:[#allocation2 + $0x88] sm:$0xff]
        %v8637 = vld [vmem:[#allocation2 + $0x90] sm:$0xf]
        %v8639 = vshrl.u32 %v8621, 16
        %v8641 = vrot.slane %v8639, 3
        %v8642 = vshll.u32 %v8621, 16
        %v8644 = vrot.slane %v8642, 4
        %v8645 = vor.u32 %v8641, %v8644
        %v8647 = vshrl.u32 %v8622, 16
        %v8649 = vrot.slane %v8647, 3
        %v8650 = vshll.u32 %v8622, 16
        %v8652 = vrot.slane %v8650, 4
        %v8653 = vor.u32 %v8649, %v8652
        %v8654 = vsel %vm1046, %v8645, %v8653
        %v8656 = vshrl.u32 %v8623, 16
        %v8658 = vrot.slane %v8656, 3
        %v8659 = vshll.u32 %v8623, 16
        %v8661 = vrot.slane %v8659, 4
        %v8662 = vor.u32 %v8658, %v8661
        %v8663 = vsel %vm1046, %v8653, %v8662
        %v8665 = vshrl.u32 %v8624, 16
        %v8667 = vrot.slane %v8665, 3
        %v8668 = vshll.u32 %v8624, 16
        %v8670 = vrot.slane %v8668, 4
        %v8671 = vor.u32 %v8667, %v8670
        %v8672 = vsel %vm1046, %v8662, %v8671
        %v8674 = vshrl.u32 %v8625, 16
        %v8676 = vrot.slane %v8674, 3
        %v8677 = vshll.u32 %v8625, 16
        %v8679 = vrot.slane %v8677, 4
        %v8680 = vor.u32 %v8676, %v8679
        %v8681 = vsel %vm1046, %v8671, %v8680
        %v8683 = vshrl.u32 %v8626, 16
        %v8685 = vrot.slane %v8683, 3
        %v8686 = vshll.u32 %v8626, 16
        %v8688 = vrot.slane %v8686, 4
        %v8689 = vor.u32 %v8685, %v8688
        %v8690 = vsel %vm1046, %v8680, %v8689
        %v8692 = vshrl.u32 %v8627, 16
        %v8694 = vrot.slane %v8692, 3
        %v8695 = vshll.u32 %v8627, 16
        %v8697 = vrot.slane %v8695, 4
        %v8698 = vor.u32 %v8694, %v8697
        %v8699 = vsel %vm1046, %v8689, %v8698
        %v8701 = vshrl.u32 %v8628, 16
        %v8703 = vrot.slane %v8701, 3
        %v8704 = vshll.u32 %v8628, 16
        %v8706 = vrot.slane %v8704, 4
        %v8707 = vor.u32 %v8703, %v8706
        %v8708 = vsel %vm1046, %v8698, %v8707
        %v8710 = vshrl.u32 %v8629, 16
        %v8712 = vrot.slane %v8710, 3
        %v8713 = vshll.u32 %v8629, 16
        %v8715 = vrot.slane %v8713, 4
        %v8716 = vor.u32 %v8712, %v8715
        %v8717 = vsel %vm1046, %v8707, %v8716
        %v8719 = vshrl.u32 %v8630, 16
        %v8721 = vrot.slane %v8719, 3
        %v8722 = vshll.u32 %v8630, 16
        %v8724 = vrot.slane %v8722, 4
        %v8725 = vor.u32 %v8721, %v8724
        %v8726 = vsel %vm1046, %v8716, %v8725
        %v8728 = vshrl.u32 %v8631, 16
        %v8730 = vrot.slane %v8728, 3
        %v8731 = vshll.u32 %v8631, 16
        %v8733 = vrot.slane %v8731, 4
        %v8734 = vor.u32 %v8730, %v8733
        %v8735 = vsel %vm1046, %v8725, %v8734
        %v8737 = vshrl.u32 %v8632, 16
        %v8739 = vrot.slane %v8737, 3
        %v8740 = vshll.u32 %v8632, 16
        %v8742 = vrot.slane %v8740, 4
        %v8743 = vor.u32 %v8739, %v8742
        %v8744 = vsel %vm1046, %v8734, %v8743
        %v8746 = vshrl.u32 %v8633, 16
        %v8748 = vrot.slane %v8746, 3
        %v8749 = vshll.u32 %v8633, 16
        %v8751 = vrot.slane %v8749, 4
        %v8752 = vor.u32 %v8748, %v8751
        %v8753 = vsel %vm1046, %v8743, %v8752
        %v8755 = vshrl.u32 %v8634, 16
        %v8757 = vrot.slane %v8755, 3
        %v8758 = vshll.u32 %v8634, 16
        %v8760 = vrot.slane %v8758, 4
        %v8761 = vor.u32 %v8757, %v8760
        %v8762 = vsel %vm1046, %v8752, %v8761
        %v8764 = vshrl.u32 %v8635, 16
        %v8766 = vrot.slane %v8764, 3
        %v8767 = vshll.u32 %v8635, 16
        %v8769 = vrot.slane %v8767, 4
        %v8770 = vor.u32 %v8766, %v8769
        %v8771 = vsel %vm1046, %v8761, %v8770
        %v8773 = vshrl.u32 %v8636, 16
        %v8775 = vrot.slane %v8773, 3
        %v8776 = vshll.u32 %v8636, 16
        %v8778 = vrot.slane %v8776, 4
        %v8779 = vor.u32 %v8775, %v8778
        %v8780 = vsel %vm1046, %v8770, %v8779
        %v8782 = vshrl.u32 %v8637, 16
        %v8784 = vrot.slane %v8782, 3
        %v8785 = vshll.u32 %v8637, 16
        %v8787 = vrot.slane %v8785, 4
        %v8788 = vor.u32 %v8784, %v8787
        %v8789 = vsel %vm1046, %v8779, %v8788
        %8806 = vst [vmem:[#allocation3 + $0x30] sm:$0xff] %v8654
        %8807 = vst [vmem:[#allocation3 + $0x78] sm:$0xff] %v8663
        %8808 = vst [vmem:[#allocation3 + $0xc0] sm:$0xff] %v8672
        %8809 = vst [vmem:[#allocation3 + $0x108] sm:$0xff] %v8681
        %8810 = vst [vmem:[#allocation3 + $0x150] sm:$0xff] %v8690
        %8811 = vst [vmem:[#allocation3 + $0x198] sm:$0xff] %v8699
        %8812 = vst [vmem:[#allocation3 + $0x1e0] sm:$0xff] %v8708
        %8813 = vst [vmem:[#allocation3 + $0x228] sm:$0xff] %v8717
        %8814 = vst [vmem:[#allocation3 + $0x270] sm:$0xff] %v8726
        %8815 = vst [vmem:[#allocation3 + $0x2b8] sm:$0xff] %v8735
        %8816 = vst [vmem:[#allocation3 + $0x300] sm:$0xff] %v8744
        %8817 = vst [vmem:[#allocation3 + $0x348] sm:$0xff] %v8753
        %8818 = vst [vmem:[#allocation3 + $0x390] sm:$0xff] %v8762
        %8819 = vst [vmem:[#allocation3 + $0x3d8] sm:$0xff] %v8771
        %8820 = vst [vmem:[#allocation3 + $0x420] sm:$0xff] %v8780
        %8821 = vst [vmem:[#allocation3 + $0x468] sm:$0xff] %v8789
        %v8822 = vld [vmem:[#allocation2 + $0x10] sm:$0xf0]
        %v8823 = vld [vmem:[#allocation2 + $0x18] sm:$0xff]
        %v8824 = vld [vmem:[#allocation2 + $0x20] sm:$0xff]
        %v8825 = vld [vmem:[#allocation2 + $0x28] sm:$0xff]
        %v8826 = vld [vmem:[#allocation2 + $0x30] sm:$0xff]
        %v8827 = vld [vmem:[#allocation2 + $0x38] sm:$0xff]
        %v8828 = vld [vmem:[#allocation2 + $0x40] sm:$0xff]
        %v8829 = vld [vmem:[#allocation2 + $0x48] sm:$0xff]
        %v8830 = vld [vmem:[#allocation2 + $0x50] sm:$0xff]
        %v8831 = vld [vmem:[#allocation2 + $0x58] sm:$0xff]
        %v8832 = vld [vmem:[#allocation2 + $0x60] sm:$0xff]
        %v8833 = vld [vmem:[#allocation2 + $0x68] sm:$0xff]
        %v8834 = vld [vmem:[#allocation2 + $0x70] sm:$0xff]
        %v8835 = vld [vmem:[#allocation2 + $0x78] sm:$0xff]
        %v8836 = vld [vmem:[#allocation2 + $0x80] sm:$0xff]
        %v8837 = vld [vmem:[#allocation2 + $0x88] sm:$0xff]
        %v8838 = vld [vmem:[#allocation2 + $0x90] sm:$0xf]
        %v8856 = vrot.slane %v8822, 4
        %v8857 = vrot.slane %v8823, 4
        %v8858 = vsel %vm963, %v8856, %v8857
        %v8859 = vrot.slane %v8824, 4
        %v8860 = vsel %vm963, %v8857, %v8859
        %v8861 = vrot.slane %v8825, 4
        %v8862 = vsel %vm963, %v8859, %v8861
        %v8863 = vrot.slane %v8826, 4
        %v8864 = vsel %vm963, %v8861, %v8863
        %v8865 = vrot.slane %v8827, 4
        %v8866 = vsel %vm963, %v8863, %v8865
        %v8867 = vrot.slane %v8828, 4
        %v8868 = vsel %vm963, %v8865, %v8867
        %v8869 = vrot.slane %v8829, 4
        %v8870 = vsel %vm963, %v8867, %v8869
        %v8871 = vrot.slane %v8830, 4
        %v8872 = vsel %vm963, %v8869, %v8871
        %v8873 = vrot.slane %v8831, 4
        %v8874 = vsel %vm963, %v8871, %v8873
        %v8875 = vrot.slane %v8832, 4
        %v8876 = vsel %vm963, %v8873, %v8875
        %v8877 = vrot.slane %v8833, 4
        %v8878 = vsel %vm963, %v8875, %v8877
        %v8879 = vrot.slane %v8834, 4
        %v8880 = vsel %vm963, %v8877, %v8879
        %v8881 = vrot.slane %v8835, 4
        %v8882 = vsel %vm963, %v8879, %v8881
        %v8883 = vrot.slane %v8836, 4
        %v8884 = vsel %vm963, %v8881, %v8883
        %v8885 = vrot.slane %v8837, 4
        %v8886 = vsel %vm963, %v8883, %v8885
        %v8887 = vrot.slane %v8838, 4
        %v8888 = vsel %vm963, %v8885, %v8887
        %8905 = vst [vmem:[#allocation3 + $0x38] sm:$0xff] %v8858
        %8906 = vst [vmem:[#allocation3 + $0x80] sm:$0xff] %v8860
        %8907 = vst [vmem:[#allocation3 + $0xc8] sm:$0xff] %v8862
        %8908 = vst [vmem:[#allocation3 + $0x110] sm:$0xff] %v8864
        %8909 = vst [vmem:[#allocation3 + $0x158] sm:$0xff] %v8866
        %8910 = vst [vmem:[#allocation3 + $0x1a0] sm:$0xff] %v8868
        %8911 = vst [vmem:[#allocation3 + $0x1e8] sm:$0xff] %v8870
        %8912 = vst [vmem:[#allocation3 + $0x230] sm:$0xff] %v8872
        %8913 = vst [vmem:[#allocation3 + $0x278] sm:$0xff] %v8874
        %8914 = vst [vmem:[#allocation3 + $0x2c0] sm:$0xff] %v8876
        %8915 = vst [vmem:[#allocation3 + $0x308] sm:$0xff] %v8878
        %8916 = vst [vmem:[#allocation3 + $0x350] sm:$0xff] %v8880
        %8917 = vst [vmem:[#allocation3 + $0x398] sm:$0xff] %v8882
        %8918 = vst [vmem:[#allocation3 + $0x3e0] sm:$0xff] %v8884
        %8919 = vst [vmem:[#allocation3 + $0x428] sm:$0xff] %v8886
        %8920 = vst [vmem:[#allocation3 + $0x470] sm:$0xff] %v8888
        %v8921 = vld [vmem:[#allocation2 + $0x10] sm:$0xf0]
        %v8922 = vld [vmem:[#allocation2 + $0x18] sm:$0xff]
        %v8923 = vld [vmem:[#allocation2 + $0x20] sm:$0xff]
        %v8924 = vld [vmem:[#allocation2 + $0x28] sm:$0xff]
        %v8925 = vld [vmem:[#allocation2 + $0x30] sm:$0xff]
        %v8926 = vld [vmem:[#allocation2 + $0x38] sm:$0xff]
        %v8927 = vld [vmem:[#allocation2 + $0x40] sm:$0xff]
        %v8928 = vld [vmem:[#allocation2 + $0x48] sm:$0xff]
        %v8929 = vld [vmem:[#allocation2 + $0x50] sm:$0xff]
        %v8930 = vld [vmem:[#allocation2 + $0x58] sm:$0xff]
        %v8931 = vld [vmem:[#allocation2 + $0x60] sm:$0xff]
        %v8932 = vld [vmem:[#allocation2 + $0x68] sm:$0xff]
        %v8933 = vld [vmem:[#allocation2 + $0x70] sm:$0xff]
        %v8934 = vld [vmem:[#allocation2 + $0x78] sm:$0xff]
        %v8935 = vld [vmem:[#allocation2 + $0x80] sm:$0xff]
        %v8936 = vld [vmem:[#allocation2 + $0x88] sm:$0xff]
        %v8937 = vld [vmem:[#allocation2 + $0x90] sm:$0x1f]
        %v8939 = vshrl.u32 %v8921, 16
        %v8941 = vrot.slane %v8939, 4
        %v8942 = vshll.u32 %v8921, 16
        %v8944 = vrot.slane %v8942, 5
        %v8945 = vor.u32 %v8941, %v8944
        %v8947 = vshrl.u32 %v8922, 16
        %v8949 = vrot.slane %v8947, 4
        %v8950 = vshll.u32 %v8922, 16
        %v8952 = vrot.slane %v8950, 5
        %v8953 = vor.u32 %v8949, %v8952
        %v8954 = vsel %vm1347, %v8945, %v8953
        %v8956 = vshrl.u32 %v8923, 16
        %v8958 = vrot.slane %v8956, 4
        %v8959 = vshll.u32 %v8923, 16
        %v8961 = vrot.slane %v8959, 5
        %v8962 = vor.u32 %v8958, %v8961
        %v8963 = vsel %vm1347, %v8953, %v8962
        %v8965 = vshrl.u32 %v8924, 16
        %v8967 = vrot.slane %v8965, 4
        %v8968 = vshll.u32 %v8924, 16
        %v8970 = vrot.slane %v8968, 5
        %v8971 = vor.u32 %v8967, %v8970
        %v8972 = vsel %vm1347, %v8962, %v8971
        %v8974 = vshrl.u32 %v8925, 16
        %v8976 = vrot.slane %v8974, 4
        %v8977 = vshll.u32 %v8925, 16
        %v8979 = vrot.slane %v8977, 5
        %v8980 = vor.u32 %v8976, %v8979
        %v8981 = vsel %vm1347, %v8971, %v8980
        %v8983 = vshrl.u32 %v8926, 16
        %v8985 = vrot.slane %v8983, 4
        %v8986 = vshll.u32 %v8926, 16
        %v8988 = vrot.slane %v8986, 5
        %v8989 = vor.u32 %v8985, %v8988
        %v8990 = vsel %vm1347, %v8980, %v8989
        %v8992 = vshrl.u32 %v8927, 16
        %v8994 = vrot.slane %v8992, 4
        %v8995 = vshll.u32 %v8927, 16
        %v8997 = vrot.slane %v8995, 5
        %v8998 = vor.u32 %v8994, %v8997
        %v8999 = vsel %vm1347, %v8989, %v8998
        %v9001 = vshrl.u32 %v8928, 16
        %v9003 = vrot.slane %v9001, 4
        %v9004 = vshll.u32 %v8928, 16
        %v9006 = vrot.slane %v9004, 5
        %v9007 = vor.u32 %v9003, %v9006
        %v9008 = vsel %vm1347, %v8998, %v9007
        %v9010 = vshrl.u32 %v8929, 16
        %v9012 = vrot.slane %v9010, 4
        %v9013 = vshll.u32 %v8929, 16
        %v9015 = vrot.slane %v9013, 5
        %v9016 = vor.u32 %v9012, %v9015
        %v9017 = vsel %vm1347, %v9007, %v9016
        %v9019 = vshrl.u32 %v8930, 16
        %v9021 = vrot.slane %v9019, 4
        %v9022 = vshll.u32 %v8930, 16
        %v9024 = vrot.slane %v9022, 5
        %v9025 = vor.u32 %v9021, %v9024
        %v9026 = vsel %vm1347, %v9016, %v9025
        %v9028 = vshrl.u32 %v8931, 16
        %v9030 = vrot.slane %v9028, 4
        %v9031 = vshll.u32 %v8931, 16
        %v9033 = vrot.slane %v9031, 5
        %v9034 = vor.u32 %v9030, %v9033
        %v9035 = vsel %vm1347, %v9025, %v9034
        %v9037 = vshrl.u32 %v8932, 16
        %v9039 = vrot.slane %v9037, 4
        %v9040 = vshll.u32 %v8932, 16
        %v9042 = vrot.slane %v9040, 5
        %v9043 = vor.u32 %v9039, %v9042
        %v9044 = vsel %vm1347, %v9034, %v9043
        %v9046 = vshrl.u32 %v8933, 16
        %v9048 = vrot.slane %v9046, 4
        %v9049 = vshll.u32 %v8933, 16
        %v9051 = vrot.slane %v9049, 5
        %v9052 = vor.u32 %v9048, %v9051
        %v9053 = vsel %vm1347, %v9043, %v9052
        %v9055 = vshrl.u32 %v8934, 16
        %v9057 = vrot.slane %v9055, 4
        %v9058 = vshll.u32 %v8934, 16
        %v9060 = vrot.slane %v9058, 5
        %v9061 = vor.u32 %v9057, %v9060
        %v9062 = vsel %vm1347, %v9052, %v9061
        %v9064 = vshrl.u32 %v8935, 16
        %v9066 = vrot.slane %v9064, 4
        %v9067 = vshll.u32 %v8935, 16
        %v9069 = vrot.slane %v9067, 5
        %v9070 = vor.u32 %v9066, %v9069
        %v9071 = vsel %vm1347, %v9061, %v9070
        %v9073 = vshrl.u32 %v8936, 16
        %v9075 = vrot.slane %v9073, 4
        %v9076 = vshll.u32 %v8936, 16
        %v9078 = vrot.slane %v9076, 5
        %v9079 = vor.u32 %v9075, %v9078
        %v9080 = vsel %vm1347, %v9070, %v9079
        %v9082 = vshrl.u32 %v8937, 16
        %v9084 = vrot.slane %v9082, 4
        %v9085 = vshll.u32 %v8937, 16
        %v9087 = vrot.slane %v9085, 5
        %v9088 = vor.u32 %v9084, %v9087
        %v9089 = vsel %vm1347, %v9079, %v9088
        %9106 = vst [vmem:[#allocation3 + $0x40] sm:$0xff] %v8954
        %9107 = vst [vmem:[#allocation3 + $0x88] sm:$0xff] %v8963
        %9108 = vst [vmem:[#allocation3 + $0xd0] sm:$0xff] %v8972
        %9109 = vst [vmem:[#allocation3 + $0x118] sm:$0xff] %v8981
        %9110 = vst [vmem:[#allocation3 + $0x160] sm:$0xff] %v8990
        %9111 = vst [vmem:[#allocation3 + $0x1a8] sm:$0xff] %v8999
        %9112 = vst [vmem:[#allocation3 + $0x1f0] sm:$0xff] %v9008
        %9113 = vst [vmem:[#allocation3 + $0x238] sm:$0xff] %v9017
        %9114 = vst [vmem:[#allocation3 + $0x280] sm:$0xff] %v9026
        %9115 = vst [vmem:[#allocation3 + $0x2c8] sm:$0xff] %v9035
        %9116 = vst [vmem:[#allocation3 + $0x310] sm:$0xff] %v9044
        %9117 = vst [vmem:[#allocation3 + $0x358] sm:$0xff] %v9053
        %9118 = vst [vmem:[#allocation3 + $0x3a0] sm:$0xff] %v9062
        %9119 = vst [vmem:[#allocation3 + $0x3e8] sm:$0xff] %v9071
        %9120 = vst [vmem:[#allocation3 + $0x430] sm:$0xff] %v9080
        %9121 = vst [vmem:[#allocation3 + $0x478] sm:$0xff] %v9089
        %v9122 = vld [vmem:[#allocation3] sm:$0xff]
        %v9123 = vld [vmem:[#allocation3 + $0x8] sm:$0xff]
        %v9124 = vld [vmem:[#allocation3 + $0x10] sm:$0xff]
        %v9125 = vld [vmem:[#allocation3 + $0x18] sm:$0xff]
        %v9126 = vld [vmem:[#allocation3 + $0x20] sm:$0xff]
        %v9127 = vld [vmem:[#allocation3 + $0x28] sm:$0xff]
        %v9128 = vld [vmem:[#allocation3 + $0x30] sm:$0xff]
        %v9129 = vld [vmem:[#allocation3 + $0x38] sm:$0xff]
        %v9130 = vld [vmem:[#allocation3 + $0x40] sm:$0xff]
        %v9131 = vld [vmem:[#allocation3 + $0x48] sm:$0xff]
        %v9132 = vld [vmem:[#allocation3 + $0x50] sm:$0xff]
        %v9133 = vld [vmem:[#allocation3 + $0x58] sm:$0xff]
        %v9134 = vld [vmem:[#allocation3 + $0x60] sm:$0xff]
        %v9135 = vld [vmem:[#allocation3 + $0x68] sm:$0xff]
        %v9136 = vld [vmem:[#allocation3 + $0x70] sm:$0xff]
        %v9137 = vld [vmem:[#allocation3 + $0x78] sm:$0xff]
        %v9138 = vld [vmem:[#allocation3 + $0x80] sm:$0xff]
        %v9139 = vld [vmem:[#allocation3 + $0x88] sm:$0xff]
        %v9140 = vld [vmem:[#allocation3 + $0x90] sm:$0xff]
        %v9141 = vld [vmem:[#allocation3 + $0x98] sm:$0xff]
        %v9142 = vld [vmem:[#allocation3 + $0xa0] sm:$0xff]
        %v9143 = vld [vmem:[#allocation3 + $0xa8] sm:$0xff]
        %v9144 = vld [vmem:[#allocation3 + $0xb0] sm:$0xff]
        %v9145 = vld [vmem:[#allocation3 + $0xb8] sm:$0xff]
        %v9146 = vld [vmem:[#allocation3 + $0xc0] sm:$0xff]
        %v9147 = vld [vmem:[#allocation3 + $0xc8] sm:$0xff]
        %v9148 = vld [vmem:[#allocation3 + $0xd0] sm:$0xff]
        %v9149 = vld [vmem:[#allocation3 + $0xd8] sm:$0xff]
        %v9150 = vld [vmem:[#allocation3 + $0xe0] sm:$0xff]
        %v9151 = vld [vmem:[#allocation3 + $0xe8] sm:$0xff]
        %v9152 = vld [vmem:[#allocation3 + $0xf0] sm:$0xff]
        %v9153 = vld [vmem:[#allocation3 + $0xf8] sm:$0xff]
        %v9154 = vld [vmem:[#allocation3 + $0x100] sm:$0xff]
        %v9155 = vld [vmem:[#allocation3 + $0x108] sm:$0xff]
        %v9156 = vld [vmem:[#allocation3 + $0x110] sm:$0xff]
        %v9157 = vld [vmem:[#allocation3 + $0x118] sm:$0xff]
        %v9158 = vld [vmem:[#allocation3 + $0x120] sm:$0xff]
        %v9159 = vld [vmem:[#allocation3 + $0x128] sm:$0xff]
        %v9160 = vld [vmem:[#allocation3 + $0x130] sm:$0xff]
        %v9161 = vld [vmem:[#allocation3 + $0x138] sm:$0xff]
        %v9162 = vld [vmem:[#allocation3 + $0x140] sm:$0xff]
        %v9163 = vld [vmem:[#allocation3 + $0x148] sm:$0xff]
        %v9164 = vld [vmem:[#allocation3 + $0x150] sm:$0xff]
        %v9165 = vld [vmem:[#allocation3 + $0x158] sm:$0xff]
        %v9166 = vld [vmem:[#allocation3 + $0x160] sm:$0xff]
        %v9167 = vld [vmem:[#allocation3 + $0x168] sm:$0xff]
        %v9168 = vld [vmem:[#allocation3 + $0x170] sm:$0xff]
        %v9169 = vld [vmem:[#allocation3 + $0x178] sm:$0xff]
        %v9170 = vld [vmem:[#allocation3 + $0x180] sm:$0xff]
        %v9171 = vld [vmem:[#allocation3 + $0x188] sm:$0xff]
        %v9172 = vld [vmem:[#allocation3 + $0x190] sm:$0xff]
        %v9173 = vld [vmem:[#allocation3 + $0x198] sm:$0xff]
        %v9174 = vld [vmem:[#allocation3 + $0x1a0] sm:$0xff]
        %v9175 = vld [vmem:[#allocation3 + $0x1a8] sm:$0xff]
        %v9176 = vld [vmem:[#allocation3 + $0x1b0] sm:$0xff]
        %v9177 = vld [vmem:[#allocation3 + $0x1b8] sm:$0xff]
        %v9178 = vld [vmem:[#allocation3 + $0x1c0] sm:$0xff]
        %v9179 = vld [vmem:[#allocation3 + $0x1c8] sm:$0xff]
        %v9180 = vld [vmem:[#allocation3 + $0x1d0] sm:$0xff]
        %v9181 = vld [vmem:[#allocation3 + $0x1d8] sm:$0xff]
        %v9182 = vld [vmem:[#allocation3 + $0x1e0] sm:$0xff]
        %v9183 = vld [vmem:[#allocation3 + $0x1e8] sm:$0xff]
        %v9184 = vld [vmem:[#allocation3 + $0x1f0] sm:$0xff]
        %v9185 = vld [vmem:[#allocation3 + $0x1f8] sm:$0xff]
        %v9186 = vld [vmem:[#allocation3 + $0x200] sm:$0xff]
        %v9187 = vld [vmem:[#allocation3 + $0x208] sm:$0xff]
        %v9188 = vld [vmem:[#allocation3 + $0x210] sm:$0xff]
        %v9189 = vld [vmem:[#allocation3 + $0x218] sm:$0xff]
        %v9190 = vld [vmem:[#allocation3 + $0x220] sm:$0xff]
        %v9191 = vld [vmem:[#allocation3 + $0x228] sm:$0xff]
        %v9192 = vld [vmem:[#allocation3 + $0x230] sm:$0xff]
        %v9193 = vld [vmem:[#allocation3 + $0x238] sm:$0xff]
        %v9194 = vld [vmem:[#allocation3 + $0x240] sm:$0xff]
        %v9195 = vld [vmem:[#allocation3 + $0x248] sm:$0xff]
        %v9196 = vld [vmem:[#allocation3 + $0x250] sm:$0xff]
        %v9197 = vld [vmem:[#allocation3 + $0x258] sm:$0xff]
        %v9198 = vld [vmem:[#allocation3 + $0x260] sm:$0xff]
        %v9199 = vld [vmem:[#allocation3 + $0x268] sm:$0xff]
        %v9200 = vld [vmem:[#allocation3 + $0x270] sm:$0xff]
        %v9201 = vld [vmem:[#allocation3 + $0x278] sm:$0xff]
        %v9202 = vld [vmem:[#allocation3 + $0x280] sm:$0xff]
        %v9203 = vld [vmem:[#allocation3 + $0x288] sm:$0xff]
        %v9204 = vld [vmem:[#allocation3 + $0x290] sm:$0xff]
        %v9205 = vld [vmem:[#allocation3 + $0x298] sm:$0xff]
        %v9206 = vld [vmem:[#allocation3 + $0x2a0] sm:$0xff]
        %v9207 = vld [vmem:[#allocation3 + $0x2a8] sm:$0xff]
        %v9208 = vld [vmem:[#allocation3 + $0x2b0] sm:$0xff]
        %v9209 = vld [vmem:[#allocation3 + $0x2b8] sm:$0xff]
        %v9210 = vld [vmem:[#allocation3 + $0x2c0] sm:$0xff]
        %v9211 = vld [vmem:[#allocation3 + $0x2c8] sm:$0xff]
        %v9212 = vld [vmem:[#allocation3 + $0x2d0] sm:$0xff]
        %v9213 = vld [vmem:[#allocation3 + $0x2d8] sm:$0xff]
        %v9214 = vld [vmem:[#allocation3 + $0x2e0] sm:$0xff]
        %v9215 = vld [vmem:[#allocation3 + $0x2e8] sm:$0xff]
        %v9216 = vld [vmem:[#allocation3 + $0x2f0] sm:$0xff]
        %v9217 = vld [vmem:[#allocation3 + $0x2f8] sm:$0xff]
        %v9218 = vld [vmem:[#allocation3 + $0x300] sm:$0xff]
        %v9219 = vld [vmem:[#allocation3 + $0x308] sm:$0xff]
        %v9220 = vld [vmem:[#allocation3 + $0x310] sm:$0xff]
        %v9221 = vld [vmem:[#allocation3 + $0x318] sm:$0xff]
        %v9222 = vld [vmem:[#allocation3 + $0x320] sm:$0xff]
        %v9223 = vld [vmem:[#allocation3 + $0x328] sm:$0xff]
        %v9224 = vld [vmem:[#allocation3 + $0x330] sm:$0xff]
        %v9225 = vld [vmem:[#allocation3 + $0x338] sm:$0xff]
        %v9226 = vld [vmem:[#allocation3 + $0x340] sm:$0xff]
        %v9227 = vld [vmem:[#allocation3 + $0x348] sm:$0xff]
        %v9228 = vld [vmem:[#allocation3 + $0x350] sm:$0xff]
        %v9229 = vld [vmem:[#allocation3 + $0x358] sm:$0xff]
        %v9230 = vld [vmem:[#allocation3 + $0x360] sm:$0xff]
        %v9231 = vld [vmem:[#allocation3 + $0x368] sm:$0xff]
        %v9232 = vld [vmem:[#allocation3 + $0x370] sm:$0xff]
        %v9233 = vld [vmem:[#allocation3 + $0x378] sm:$0xff]
        %v9234 = vld [vmem:[#allocation3 + $0x380] sm:$0xff]
        %v9235 = vld [vmem:[#allocation3 + $0x388] sm:$0xff]
        %v9236 = vld [vmem:[#allocation3 + $0x390] sm:$0xff]
        %v9237 = vld [vmem:[#allocation3 + $0x398] sm:$0xff]
        %v9238 = vld [vmem:[#allocation3 + $0x3a0] sm:$0xff]
        %v9239 = vld [vmem:[#allocation3 + $0x3a8] sm:$0xff]
        %v9240 = vld [vmem:[#allocation3 + $0x3b0] sm:$0xff]
        %v9241 = vld [vmem:[#allocation3 + $0x3b8] sm:$0xff]
        %v9242 = vld [vmem:[#allocation3 + $0x3c0] sm:$0xff]
        %v9243 = vld [vmem:[#allocation3 + $0x3c8] sm:$0xff]
        %v9244 = vld [vmem:[#allocation3 + $0x3d0] sm:$0xff]
        %v9245 = vld [vmem:[#allocation3 + $0x3d8] sm:$0xff]
        %v9246 = vld [vmem:[#allocation3 + $0x3e0] sm:$0xff]
        %v9247 = vld [vmem:[#allocation3 + $0x3e8] sm:$0xff]
        %v9248 = vld [vmem:[#allocation3 + $0x3f0] sm:$0xff]
        %v9249 = vld [vmem:[#allocation3 + $0x3f8] sm:$0xff]
        %v9250 = vld [vmem:[#allocation3 + $0x400] sm:$0xff]
        %v9251 = vld [vmem:[#allocation3 + $0x408] sm:$0xff]
        %v9252 = vld [vmem:[#allocation3 + $0x410] sm:$0xff]
        %v9253 = vld [vmem:[#allocation3 + $0x418] sm:$0xff]
        %v9254 = vld [vmem:[#allocation3 + $0x420] sm:$0xff]
        %v9255 = vld [vmem:[#allocation3 + $0x428] sm:$0xff]
        %v9256 = vld [vmem:[#allocation3 + $0x430] sm:$0xff]
        %v9257 = vld [vmem:[#allocation3 + $0x438] sm:$0xff]
        %v9258 = vld [vmem:[#allocation3 + $0x440] sm:$0xff]
        %v9259 = vld [vmem:[#allocation3 + $0x448] sm:$0xff]
        %v9260 = vld [vmem:[#allocation3 + $0x450] sm:$0xff]
        %v9261 = vld [vmem:[#allocation3 + $0x458] sm:$0xff]
        %v9262 = vld [vmem:[#allocation3 + $0x460] sm:$0xff]
        %v9263 = vld [vmem:[#allocation3 + $0x468] sm:$0xff]
        %v9264 = vld [vmem:[#allocation3 + $0x470] sm:$0xff]
        %v9265 = vld [vmem:[#allocation3 + $0x478] sm:$0xff]
        %v9266 = vld [vmem:[%s7] sm:$0xf]
        %v9267 = vld [vmem:[%s7 + $0x4] sm:$0xf]
        %v9268 = vld [vmem:[%s7 + $0x8] sm:$0xf]
        %v9269 = vld [vmem:[%s7 + $0xc] sm:$0xf]
        %v9270 = vld [vmem:[%s7 + $0x10] sm:$0xf]
        %v9271 = vld [vmem:[%s7 + $0x14] sm:$0xf]
        %v9272 = vld [vmem:[%s7 + $0x18] sm:$0xf]
        %v9273 = vld [vmem:[%s7 + $0x1c] sm:$0xf]
        %v9274 = vld [vmem:[%s7 + $0x20] sm:$0xf]
        %v9275 = vld [vmem:[%s7 + $0x24] sm:$0xf]
        %v9276 = vld [vmem:[%s7 + $0x28] sm:$0xf]
        %v9277 = vld [vmem:[%s7 + $0x2c] sm:$0xf]
        %v9278 = vld [vmem:[%s7 + $0x30] sm:$0xf]
        %v9279 = vld [vmem:[%s7 + $0x34] sm:$0xf]
        %v9280 = vld [vmem:[%s7 + $0x38] sm:$0xf]
        %v9281 = vld [vmem:[%s7 + $0x3c] sm:$0xf]
        %v9282 = vld [vmem:[%s7 + $0x40] sm:$0xf]
        %v9283 = vld [vmem:[%s7 + $0x44] sm:$0xf]
        %v9284 = vld [vmem:[%s7 + $0x48] sm:$0xf]
        %v9285 = vld [vmem:[%s7 + $0x4c] sm:$0xf]
        %v9286 = vld [vmem:[%s7 + $0x50] sm:$0xf]
        %v9287 = vld [vmem:[%s7 + $0x54] sm:$0xf]
        %v9288 = vld [vmem:[%s7 + $0x58] sm:$0xf]
        %v9289 = vld [vmem:[%s7 + $0x5c] sm:$0xf]
        %v9290 = vld [vmem:[%s7 + $0x60] sm:$0xf]
        %v9291 = vld [vmem:[%s7 + $0x64] sm:$0xf]
        %v9292 = vld [vmem:[%s7 + $0x68] sm:$0xf]
        %v9293 = vld [vmem:[%s7 + $0x6c] sm:$0xf]
        %v9294 = vld [vmem:[%s7 + $0x70] sm:$0xf]
        %v9295 = vld [vmem:[%s7 + $0x74] sm:$0xf]
        %v9296 = vld [vmem:[%s7 + $0x78] sm:$0xf]
        %v9297 = vld [vmem:[%s7 + $0x7c] sm:$0xf]
        %v9298 = vld [vmem:[%s7 + $0x80] sm:$0xf]
        %v9299 = vld [vmem:[%s7 + $0x84] sm:$0xf]
        %v9300 = vld [vmem:[%s7 + $0x88] sm:$0xf]
        %v9301 = vld [vmem:[%s7 + $0x8c] sm:$0xf]
        %v9302 = vld [vmem:[%s7 + $0x90] sm:$0xf]
        %v9303 = vld [vmem:[%s7 + $0x94] sm:$0xf]
        %v9304 = vld [vmem:[%s7 + $0x98] sm:$0xf]
        %v9305 = vld [vmem:[%s7 + $0x9c] sm:$0xf]
        %v9306 = vld [vmem:[%s7 + $0xa0] sm:$0xf]
        %v9307 = vld [vmem:[%s7 + $0xa4] sm:$0xf]
        %v9308 = vld [vmem:[%s7 + $0xa8] sm:$0xf]
        %v9309 = vld [vmem:[%s7 + $0xac] sm:$0xf]
        %v9310 = vld [vmem:[%s7 + $0xb0] sm:$0xf]
        %v9311 = vld [vmem:[%s7 + $0xb4] sm:$0xf]
        %v9312 = vld [vmem:[%s7 + $0xb8] sm:$0xf]
        %v9313 = vld [vmem:[%s7 + $0xbc] sm:$0xf]
        %v9314 = vld [vmem:[%s7 + $0xc0] sm:$0xf]
        %v9315 = vld [vmem:[%s7 + $0xc4] sm:$0xf]
        %v9316 = vld [vmem:[%s7 + $0xc8] sm:$0xf]
        %v9317 = vld [vmem:[%s7 + $0xcc] sm:$0xf]
        %v9318 = vld [vmem:[%s7 + $0xd0] sm:$0xf]
        %v9319 = vld [vmem:[%s7 + $0xd4] sm:$0xf]
        %v9320 = vld [vmem:[%s7 + $0xd8] sm:$0xf]
        %v9321 = vld [vmem:[%s7 + $0xdc] sm:$0xf]
        %v9322 = vld [vmem:[%s7 + $0xe0] sm:$0xf]
        %v9323 = vld [vmem:[%s7 + $0xe4] sm:$0xf]
        %v9324 = vld [vmem:[%s7 + $0xe8] sm:$0xf]
        %v9325 = vld [vmem:[%s7 + $0xec] sm:$0xf]
        %v9326 = vld [vmem:[%s7 + $0xf0] sm:$0xf]
        %v9327 = vld [vmem:[%s7 + $0xf4] sm:$0xf]
        %v9328 = vld [vmem:[%s7 + $0xf8] sm:$0xf]
        %v9329 = vld [vmem:[%s7 + $0xfc] sm:$0xf]
        %v9330 = vld [vmem:[%s7 + $0x100] sm:$0xf]
        %v9331 = vld [vmem:[%s7 + $0x104] sm:$0xf]
        %v9332 = vld [vmem:[%s7 + $0x108] sm:$0xf]
        %v9333 = vld [vmem:[%s7 + $0x10c] sm:$0xf]
        %v9334 = vld [vmem:[%s7 + $0x110] sm:$0xf]
        %v9335 = vld [vmem:[%s7 + $0x114] sm:$0xf]
        %v9336 = vld [vmem:[%s7 + $0x118] sm:$0xf]
        %v9337 = vld [vmem:[%s7 + $0x11c] sm:$0xf]
        %v9338 = vld [vmem:[%s7 + $0x120] sm:$0xf]
        %v9339 = vld [vmem:[%s7 + $0x124] sm:$0xf]
        %v9340 = vld [vmem:[%s7 + $0x128] sm:$0xf]
        %v9341 = vld [vmem:[%s7 + $0x12c] sm:$0xf]
        %v9342 = vld [vmem:[%s7 + $0x130] sm:$0xf]
        %v9343 = vld [vmem:[%s7 + $0x134] sm:$0xf]
        %v9344 = vld [vmem:[%s7 + $0x138] sm:$0xf]
        %v9345 = vld [vmem:[%s7 + $0x13c] sm:$0xf]
        %v9346 = vld [vmem:[%s7 + $0x140] sm:$0xf]
        %v9347 = vld [vmem:[%s7 + $0x144] sm:$0xf]
        %v9348 = vld [vmem:[%s7 + $0x148] sm:$0xf]
        %v9349 = vld [vmem:[%s7 + $0x14c] sm:$0xf]
        %v9350 = vld [vmem:[%s7 + $0x150] sm:$0xf]
        %v9351 = vld [vmem:[%s7 + $0x154] sm:$0xf]
        %v9352 = vld [vmem:[%s7 + $0x158] sm:$0xf]
        %v9353 = vld [vmem:[%s7 + $0x15c] sm:$0xf]
        %v9354 = vld [vmem:[%s7 + $0x160] sm:$0xf]
        %v9355 = vld [vmem:[%s7 + $0x164] sm:$0xf]
        %v9356 = vld [vmem:[%s7 + $0x168] sm:$0xf]
        %v9357 = vld [vmem:[%s7 + $0x16c] sm:$0xf]
        %v9358 = vld [vmem:[%s7 + $0x170] sm:$0xf]
        %v9359 = vld [vmem:[%s7 + $0x174] sm:$0xf]
        %v9360 = vld [vmem:[%s7 + $0x178] sm:$0xf]
        %v9361 = vld [vmem:[%s7 + $0x17c] sm:$0xf]
        %v9362 = vld [vmem:[%s7 + $0x180] sm:$0xf]
        %v9363 = vld [vmem:[%s7 + $0x184] sm:$0xf]
        %v9364 = vld [vmem:[%s7 + $0x188] sm:$0xf]
        %v9365 = vld [vmem:[%s7 + $0x18c] sm:$0xf]
        %v9366 = vld [vmem:[%s7 + $0x190] sm:$0xf]
        %v9367 = vld [vmem:[%s7 + $0x194] sm:$0xf]
        %v9368 = vld [vmem:[%s7 + $0x198] sm:$0xf]
        %v9369 = vld [vmem:[%s7 + $0x19c] sm:$0xf]
        %v9370 = vld [vmem:[%s7 + $0x1a0] sm:$0xf]
        %v9371 = vld [vmem:[%s7 + $0x1a4] sm:$0xf]
        %v9372 = vld [vmem:[%s7 + $0x1a8] sm:$0xf]
        %v9373 = vld [vmem:[%s7 + $0x1ac] sm:$0xf]
        %v9374 = vld [vmem:[%s7 + $0x1b0] sm:$0xf]
        %v9375 = vld [vmem:[%s7 + $0x1b4] sm:$0xf]
        %v9376 = vld [vmem:[%s7 + $0x1b8] sm:$0xf]
        %v9377 = vld [vmem:[%s7 + $0x1bc] sm:$0xf]
        %v9378 = vld [vmem:[%s7 + $0x1c0] sm:$0xf]
        %v9379 = vld [vmem:[%s7 + $0x1c4] sm:$0xf]
        %v9380 = vld [vmem:[%s7 + $0x1c8] sm:$0xf]
        %v9381 = vld [vmem:[%s7 + $0x1cc] sm:$0xf]
        %v9382 = vld [vmem:[%s7 + $0x1d0] sm:$0xf]
        %v9383 = vld [vmem:[%s7 + $0x1d4] sm:$0xf]
        %v9384 = vld [vmem:[%s7 + $0x1d8] sm:$0xf]
        %v9385 = vld [vmem:[%s7 + $0x1dc] sm:$0xf]
        %v9386 = vld [vmem:[%s7 + $0x1e0] sm:$0xf]
        %v9387 = vld [vmem:[%s7 + $0x1e4] sm:$0xf]
        %v9388 = vld [vmem:[%s7 + $0x1e8] sm:$0xf]
        %v9389 = vld [vmem:[%s7 + $0x1ec] sm:$0xf]
        %v9390 = vld [vmem:[%s7 + $0x1f0] sm:$0xf]
        %v9391 = vld [vmem:[%s7 + $0x1f4] sm:$0xf]
        %v9392 = vld [vmem:[%s7 + $0x1f8] sm:$0xf]
        %v9393 = vld [vmem:[%s7 + $0x1fc] sm:$0xf]
        %v9394 = vld [vmem:[%s7 + $0x200] sm:$0xf]
        %v9395 = vld [vmem:[%s7 + $0x204] sm:$0xf]
        %v9396 = vld [vmem:[%s7 + $0x208] sm:$0xf]
        %v9397 = vld [vmem:[%s7 + $0x20c] sm:$0xf]
        %v9398 = vld [vmem:[%s7 + $0x210] sm:$0xf]
        %v9399 = vld [vmem:[%s7 + $0x214] sm:$0xf]
        %v9400 = vld [vmem:[%s7 + $0x218] sm:$0xf]
        %v9401 = vld [vmem:[%s7 + $0x21c] sm:$0xf]
        %v9402 = vld [vmem:[%s7 + $0x220] sm:$0xf]
        %v9403 = vld [vmem:[%s7 + $0x224] sm:$0xf]
        %v9404 = vld [vmem:[%s7 + $0x228] sm:$0xf]
        %v9405 = vld [vmem:[%s7 + $0x22c] sm:$0xf]
        %v9406 = vld [vmem:[%s7 + $0x230] sm:$0xf]
        %v9407 = vld [vmem:[%s7 + $0x234] sm:$0xf]
        %v9408 = vld [vmem:[%s7 + $0x238] sm:$0xf]
        %v9409 = vld [vmem:[%s7 + $0x23c] sm:$0xf]
        %v9410 = vld [vmem:[%s8] sm:$0x1]
        %v9412 = vlaneseq
        %v9413 = vshrl.u32 %v9412, 7
        %v9414 = vsub.s32 0, %v9413
        %v9415 = vrot.slane %v9410, %v9414
        %v9561 = vunpack.c.l.b16 %v9266
        %v9562 = vunpack.c.l.b16 %v9267
        %v9563 = vunpack.c.l.b16 %v9268
        %v9564 = vunpack.c.l.b16 %v9269
        %v9565 = vunpack.c.l.b16 %v9270
        %v9566 = vunpack.c.l.b16 %v9271
        %v9567 = vunpack.c.l.b16 %v9272
        %v9568 = vunpack.c.l.b16 %v9273
        %v9569 = vunpack.c.l.b16 %v9274
        %v9570 = vunpack.c.l.b16 %v9275
        %v9571 = vunpack.c.l.b16 %v9276
        %v9572 = vunpack.c.l.b16 %v9277
        %v9573 = vunpack.c.l.b16 %v9278
        %v9574 = vunpack.c.l.b16 %v9279
        %v9575 = vunpack.c.l.b16 %v9280
        %v9576 = vunpack.c.l.b16 %v9281
        %v9577 = vunpack.c.l.b16 %v9282
        %v9578 = vunpack.c.l.b16 %v9283
        %v9579 = vunpack.c.l.b16 %v9284
        %v9580 = vunpack.c.l.b16 %v9285
        %v9581 = vunpack.c.l.b16 %v9286
        %v9582 = vunpack.c.l.b16 %v9287
        %v9583 = vunpack.c.l.b16 %v9288
        %v9584 = vunpack.c.l.b16 %v9289
        %v9585 = vunpack.c.l.b16 %v9290
        %v9586 = vunpack.c.l.b16 %v9291
        %v9587 = vunpack.c.l.b16 %v9292
        %v9588 = vunpack.c.l.b16 %v9293
        %v9589 = vunpack.c.l.b16 %v9294
        %v9590 = vunpack.c.l.b16 %v9295
        %v9591 = vunpack.c.l.b16 %v9296
        %v9592 = vunpack.c.l.b16 %v9297
        %v9593 = vunpack.c.l.b16 %v9298
        %v9594 = vunpack.c.l.b16 %v9299
        %v9595 = vunpack.c.l.b16 %v9300
        %v9596 = vunpack.c.l.b16 %v9301
        %v9597 = vunpack.c.l.b16 %v9302
        %v9598 = vunpack.c.l.b16 %v9303
        %v9599 = vunpack.c.l.b16 %v9304
        %v9600 = vunpack.c.l.b16 %v9305
        %v9601 = vunpack.c.l.b16 %v9306
        %v9602 = vunpack.c.l.b16 %v9307
        %v9603 = vunpack.c.l.b16 %v9308
        %v9604 = vunpack.c.l.b16 %v9309
        %v9605 = vunpack.c.l.b16 %v9310
        %v9606 = vunpack.c.l.b16 %v9311
        %v9607 = vunpack.c.l.b16 %v9312
        %v9608 = vunpack.c.l.b16 %v9313
        %v9609 = vunpack.c.l.b16 %v9314
        %v9610 = vunpack.c.l.b16 %v9315
        %v9611 = vunpack.c.l.b16 %v9316
        %v9612 = vunpack.c.l.b16 %v9317
        %v9613 = vunpack.c.l.b16 %v9318
        %v9614 = vunpack.c.l.b16 %v9319
        %v9615 = vunpack.c.l.b16 %v9320
        %v9616 = vunpack.c.l.b16 %v9321
        %v9617 = vunpack.c.l.b16 %v9322
        %v9618 = vunpack.c.l.b16 %v9323
        %v9619 = vunpack.c.l.b16 %v9324
        %v9620 = vunpack.c.l.b16 %v9325
        %v9621 = vunpack.c.l.b16 %v9326
        %v9622 = vunpack.c.l.b16 %v9327
        %v9623 = vunpack.c.l.b16 %v9328
        %v9624 = vunpack.c.l.b16 %v9329
        %v9625 = vunpack.c.l.b16 %v9330
        %v9626 = vunpack.c.l.b16 %v9331
        %v9627 = vunpack.c.l.b16 %v9332
        %v9628 = vunpack.c.l.b16 %v9333
        %v9629 = vunpack.c.l.b16 %v9334
        %v9630 = vunpack.c.l.b16 %v9335
        %v9631 = vunpack.c.l.b16 %v9336
        %v9632 = vunpack.c.l.b16 %v9337
        %v9633 = vunpack.c.l.b16 %v9338
        %v9634 = vunpack.c.l.b16 %v9339
        %v9635 = vunpack.c.l.b16 %v9340
        %v9636 = vunpack.c.l.b16 %v9341
        %v9637 = vunpack.c.l.b16 %v9342
        %v9638 = vunpack.c.l.b16 %v9343
        %v9639 = vunpack.c.l.b16 %v9344
        %v9640 = vunpack.c.l.b16 %v9345
        %v9641 = vunpack.c.l.b16 %v9346
        %v9642 = vunpack.c.l.b16 %v9347
        %v9643 = vunpack.c.l.b16 %v9348
        %v9644 = vunpack.c.l.b16 %v9349
        %v9645 = vunpack.c.l.b16 %v9350
        %v9646 = vunpack.c.l.b16 %v9351
        %v9647 = vunpack.c.l.b16 %v9352
        %v9648 = vunpack.c.l.b16 %v9353
        %v9649 = vunpack.c.l.b16 %v9354
        %v9650 = vunpack.c.l.b16 %v9355
        %v9651 = vunpack.c.l.b16 %v9356
        %v9652 = vunpack.c.l.b16 %v9357
        %v9653 = vunpack.c.l.b16 %v9358
        %v9654 = vunpack.c.l.b16 %v9359
        %v9655 = vunpack.c.l.b16 %v9360
        %v9656 = vunpack.c.l.b16 %v9361
        %v9657 = vunpack.c.l.b16 %v9362
        %v9658 = vunpack.c.l.b16 %v9363
        %v9659 = vunpack.c.l.b16 %v9364
        %v9660 = vunpack.c.l.b16 %v9365
        %v9661 = vunpack.c.l.b16 %v9366
        %v9662 = vunpack.c.l.b16 %v9367
        %v9663 = vunpack.c.l.b16 %v9368
        %v9664 = vunpack.c.l.b16 %v9369
        %v9665 = vunpack.c.l.b16 %v9370
        %v9666 = vunpack.c.l.b16 %v9371
        %v9667 = vunpack.c.l.b16 %v9372
        %v9668 = vunpack.c.l.b16 %v9373
        %v9669 = vunpack.c.l.b16 %v9374
        %v9670 = vunpack.c.l.b16 %v9375
        %v9671 = vunpack.c.l.b16 %v9376
        %v9672 = vunpack.c.l.b16 %v9377
        %v9673 = vunpack.c.l.b16 %v9378
        %v9674 = vunpack.c.l.b16 %v9379
        %v9675 = vunpack.c.l.b16 %v9380
        %v9676 = vunpack.c.l.b16 %v9381
        %v9677 = vunpack.c.l.b16 %v9382
        %v9678 = vunpack.c.l.b16 %v9383
        %v9679 = vunpack.c.l.b16 %v9384
        %v9680 = vunpack.c.l.b16 %v9385
        %v9681 = vunpack.c.l.b16 %v9386
        %v9682 = vunpack.c.l.b16 %v9387
        %v9683 = vunpack.c.l.b16 %v9388
        %v9684 = vunpack.c.l.b16 %v9389
        %v9685 = vunpack.c.l.b16 %v9390
        %v9686 = vunpack.c.l.b16 %v9391
        %v9687 = vunpack.c.l.b16 %v9392
        %v9688 = vunpack.c.l.b16 %v9393
        %v9689 = vunpack.c.l.b16 %v9394
        %v9690 = vunpack.c.l.b16 %v9395
        %v9691 = vunpack.c.l.b16 %v9396
        %v9692 = vunpack.c.l.b16 %v9397
        %v9693 = vunpack.c.l.b16 %v9398
        %v9694 = vunpack.c.l.b16 %v9399
        %v9695 = vunpack.c.l.b16 %v9400
        %v9696 = vunpack.c.l.b16 %v9401
        %v9697 = vunpack.c.l.b16 %v9402
        %v9698 = vunpack.c.l.b16 %v9403
        %v9699 = vunpack.c.l.b16 %v9404
        %v9700 = vunpack.c.l.b16 %v9405
        %v9701 = vunpack.c.l.b16 %v9406
        %v9702 = vunpack.c.l.b16 %v9407
        %v9703 = vunpack.c.l.b16 %v9408
        %v9704 = vunpack.c.l.b16 %v9409
        %v9705 = vpack.c.b16 %v9562, %v9561
        %v9706 = vpack.c.b16 %v9564, %v9563
        %v9707 = vpack.c.b16 %v9566, %v9565
        %v9708 = vpack.c.b16 %v9568, %v9567
        %v9709 = vpack.c.b16 %v9570, %v9569
        %v9710 = vpack.c.b16 %v9572, %v9571
        %v9711 = vpack.c.b16 %v9574, %v9573
        %v9712 = vpack.c.b16 %v9576, %v9575
        %v9713 = vpack.c.b16 %v9578, %v9577
        %v9714 = vpack.c.b16 %v9580, %v9579
        %v9715 = vpack.c.b16 %v9582, %v9581
        %v9716 = vpack.c.b16 %v9584, %v9583
        %v9717 = vpack.c.b16 %v9586, %v9585
        %v9718 = vpack.c.b16 %v9588, %v9587
        %v9719 = vpack.c.b16 %v9590, %v9589
        %v9720 = vpack.c.b16 %v9592, %v9591
        %v9721 = vpack.c.b16 %v9594, %v9593
        %v9722 = vpack.c.b16 %v9596, %v9595
        %v9723 = vpack.c.b16 %v9598, %v9597
        %v9724 = vpack.c.b16 %v9600, %v9599
        %v9725 = vpack.c.b16 %v9602, %v9601
        %v9726 = vpack.c.b16 %v9604, %v9603
        %v9727 = vpack.c.b16 %v9606, %v9605
        %v9728 = vpack.c.b16 %v9608, %v9607
        %v9729 = vpack.c.b16 %v9610, %v9609
        %v9730 = vpack.c.b16 %v9612, %v9611
        %v9731 = vpack.c.b16 %v9614, %v9613
        %v9732 = vpack.c.b16 %v9616, %v9615
        %v9733 = vpack.c.b16 %v9618, %v9617
        %v9734 = vpack.c.b16 %v9620, %v9619
        %v9735 = vpack.c.b16 %v9622, %v9621
        %v9736 = vpack.c.b16 %v9624, %v9623
        %v9737 = vpack.c.b16 %v9626, %v9625
        %v9738 = vpack.c.b16 %v9628, %v9627
        %v9739 = vpack.c.b16 %v9630, %v9629
        %v9740 = vpack.c.b16 %v9632, %v9631
        %v9741 = vpack.c.b16 %v9634, %v9633
        %v9742 = vpack.c.b16 %v9636, %v9635
        %v9743 = vpack.c.b16 %v9638, %v9637
        %v9744 = vpack.c.b16 %v9640, %v9639
        %v9745 = vpack.c.b16 %v9642, %v9641
        %v9746 = vpack.c.b16 %v9644, %v9643
        %v9747 = vpack.c.b16 %v9646, %v9645
        %v9748 = vpack.c.b16 %v9648, %v9647
        %v9749 = vpack.c.b16 %v9650, %v9649
        %v9750 = vpack.c.b16 %v9652, %v9651
        %v9751 = vpack.c.b16 %v9654, %v9653
        %v9752 = vpack.c.b16 %v9656, %v9655
        %v9753 = vpack.c.b16 %v9658, %v9657
        %v9754 = vpack.c.b16 %v9660, %v9659
        %v9755 = vpack.c.b16 %v9662, %v9661
        %v9756 = vpack.c.b16 %v9664, %v9663
        %v9757 = vpack.c.b16 %v9666, %v9665
        %v9758 = vpack.c.b16 %v9668, %v9667
        %v9759 = vpack.c.b16 %v9670, %v9669
        %v9760 = vpack.c.b16 %v9672, %v9671
        %v9761 = vpack.c.b16 %v9674, %v9673
        %v9762 = vpack.c.b16 %v9676, %v9675
        %v9763 = vpack.c.b16 %v9678, %v9677
        %v9764 = vpack.c.b16 %v9680, %v9679
        %v9765 = vpack.c.b16 %v9682, %v9681
        %v9766 = vpack.c.b16 %v9684, %v9683
        %v9767 = vpack.c.b16 %v9686, %v9685
        %v9768 = vpack.c.b16 %v9688, %v9687
        %v9769 = vpack.c.b16 %v9690, %v9689
        %v9770 = vpack.c.b16 %v9692, %v9691
        %v9771 = vpack.c.b16 %v9694, %v9693
        %v9772 = vpack.c.b16 %v9696, %v9695
        %v9773 = vpack.c.b16 %v9698, %v9697
        %v9774 = vpack.c.b16 %v9700, %v9699
        %v9775 = vpack.c.b16 %v9702, %v9701
        %v9776 = vpack.c.b16 %v9704, %v9703
        %9849 = vmatprep.subr.bf16.mxu0 0
        %9850 = vmatpush1.bf16.msra.mxu0 %v9705
        %9851 = vmatprep.subr.bf16.mxu0 0
        %9852 = vmatpush1.bf16.msra.mxu0 %v9706
        %9853 = vmatprep.subr.bf16.mxu0 0
        %9854 = vmatpush1.bf16.msra.mxu0 %v9707
        %9855 = vmatprep.subr.bf16.mxu0 0
        %9856 = vmatpush1.bf16.msra.mxu0 %v9708
        %9857 = vmatprep.subr.bf16.mxu0 0
        %9858 = vmatpush1.bf16.msra.mxu0 %v9709
        %9859 = vmatprep.subr.bf16.mxu0 0
        %9860 = vmatpush1.bf16.msra.mxu0 %v9710
        %9861 = vmatprep.subr.bf16.mxu0 0
        %9862 = vmatpush1.bf16.msra.mxu0 %v9711
        %9863 = vmatprep.subr.bf16.mxu0 0
        %9864 = vmatpush1.bf16.msra.mxu0 %v9712
        %9865 = vmatprep.subr.bf16.mxu0 0
        %9866 = vmatpush1.bf16.msra.mxu0 %v9713
        %9867 = vmatprep.subr.bf16.mxu0 0
        %9868 = vmatpush1.bf16.msra.mxu0 %v9714
        %9869 = vmatprep.subr.bf16.mxu0 0
        %9870 = vmatpush1.bf16.msra.mxu0 %v9715
        %9871 = vmatprep.subr.bf16.mxu0 0
        %9872 = vmatpush1.bf16.msra.mxu0 %v9716
        %9873 = vmatprep.subr.bf16.mxu0 0
        %9874 = vmatpush1.bf16.msra.mxu0 %v9717
        %9875 = vmatprep.subr.bf16.mxu0 0
        %9876 = vmatpush1.bf16.msra.mxu0 %v9718
        %9877 = vmatprep.subr.bf16.mxu0 0
        %9878 = vmatpush1.bf16.msra.mxu0 %v9719
        %9879 = vmatprep.subr.bf16.mxu0 0
        %9880 = vmatpush1.bf16.msra.mxu0 %v9720
        %9881 = vmatprep.mubr.bf16.mxu0 %v9123
        %9882 = vmatmul.mubr.bf16.gmra.mrb[0].mxu0 %v9122
        %v9883 = vpop.f32.mrb[0].mxu0
        %v9884 = vadd.f32 %v9415, %v9883
        %v9885 = vpop.f32.mrb[0].mxu0
        %v9886 = vpop.f32.mrb[0].mxu0
        %v9887 = vadd.f32 %v9415, %v9886
        %v9888 = vpop.f32.mrb[0].mxu0
        %9889 = vmatprep.mubr.bf16.mxu0 %v9132
        %9890 = vmatmul.mubr.bf16.gmra.mrb[0].mxu0 %v9131
        %v9891 = vpop.f32.mrb[0].mxu0
        %v9892 = vadd.f32 %v9415, %v9891
        %v9893 = vpop.f32.mrb[0].mxu0
        %v9894 = vpop.f32.mrb[0].mxu0
        %v9895 = vadd.f32 %v9415, %v9894
        %v9896 = vpop.f32.mrb[0].mxu0
        %9897 = vmatprep.mubr.bf16.mxu0 %v9141
        %9898 = vmatmul.mubr.bf16.gmra.mrb[0].mxu0 %v9140
        %v9899 = vpop.f32.mrb[0].mxu0
        %v9900 = vadd.f32 %v9415, %v9899
        %v9901 = vpop.f32.mrb[0].mxu0
        %v9902 = vpop.f32.mrb[0].mxu0
        %v9903 = vadd.f32 %v9415, %v9902
        %v9904 = vpop.f32.mrb[0].mxu0
        %9905 = vmatprep.mubr.bf16.mxu0 %v9150
        %9906 = vmatmul.mubr.bf16.gmra.mrb[0].mxu0 %v9149
        %v9907 = vpop.f32.mrb[0].mxu0
        %v9908 = vadd.f32 %v9415, %v9907
        %v9909 = vpop.f32.mrb[0].mxu0
        %v9910 = vpop.f32.mrb[0].mxu0
        %v9911 = vadd.f32 %v9415, %v9910
        %v9912 = vpop.f32.mrb[0].mxu0
        %9913 = vmatprep.mubr.bf16.mxu0 %v9159
        %9914 = vmatmul.mubr.bf16.gmra.mrb[0].mxu0 %v9158
        %v9915 = vpop.f32.mrb[0].mxu0
        %v9916 = vadd.f32 %v9415, %v9915
        %v9917 = vpop.f32.mrb[0].mxu0
        %v9918 = vpop.f32.mrb[0].mxu0
        %v9919 = vadd.f32 %v9415, %v9918
        %v9920 = vpop.f32.mrb[0].mxu0
        %9921 = vmatprep.mubr.bf16.mxu0 %v9168
        %9922 = vmatmul.mubr.bf16.gmra.mrb[0].mxu0 %v9167
        %v9923 = vpop.f32.mrb[0].mxu0
        %v9924 = vadd.f32 %v9415, %v9923
        %v9925 = vpop.f32.mrb[0].mxu0
        %v9926 = vpop.f32.mrb[0].mxu0
        %v9927 = vadd.f32 %v9415, %v9926
        %v9928 = vpop.f32.mrb[0].mxu0
        %9929 = vmatprep.mubr.bf16.mxu0 %v9177
        %9930 = vmatmul.mubr.bf16.gmra.mrb[0].mxu0 %v9176
        %v9931 = vpop.f32.mrb[0].mxu0
        %v9932 = vadd.f32 %v9415, %v9931
        %v9933 = vpop.f32.mrb[0].mxu0
        %v9934 = vpop.f32.mrb[0].mxu0
        %v9935 = vadd.f32 %v9415, %v9934
        %v9936 = vpop.f32.mrb[0].mxu0
        %9937 = vmatprep.mubr.bf16.mxu0 %v9186
        %9938 = vmatmul.mubr.bf16.gmra.mrb[0].mxu0 %v9185
        %v9939 = vpop.f32.mrb[0].mxu0
        %v9940 = vadd.f32 %v9415, %v9939
        %v9941 = vpop.f32.mrb[0].mxu0
        %v9942 = vpop.f32.mrb[0].mxu0
        %v9943 = vadd.f32 %v9415, %v9942
        %v9944 = vpop.f32.mrb[0].mxu0
        %9945 = vmatprep.mubr.bf16.mxu0 %v9195
        %9946 = vmatmul.mubr.bf16.gmra.mrb[0].mxu0 %v9194
        %v9947 = vpop.f32.mrb[0].mxu0
        %v9948 = vadd.f32 %v9415, %v9947
        %v9949 = vpop.f32.mrb[0].mxu0
        %v9950 = vpop.f32.mrb[0].mxu0
        %v9951 = vadd.f32 %v9415, %v9950
        %v9952 = vpop.f32.mrb[0].mxu0
        %9953 = vmatprep.mubr.bf16.mxu0 %v9204
        %9954 = vmatmul.mubr.bf16.gmra.mrb[0].mxu0 %v9203
        %v9955 = vpop.f32.mrb[0].mxu0
        %v9956 = vadd.f32 %v9415, %v9955
        %v9957 = vpop.f32.mrb[0].mxu0
        %v9958 = vpop.f32.mrb[0].mxu0
        %v9959 = vadd.f32 %v9415, %v9958
        %v9960 = vpop.f32.mrb[0].mxu0
        %9961 = vmatprep.mubr.bf16.mxu0 %v9213
        %9962 = vmatmul.mubr.bf16.gmra.mrb[0].mxu0 %v9212
        %v9963 = vpop.f32.mrb[0].mxu0
        %v9964 = vadd.f32 %v9415, %v9963
        %v9965 = vpop.f32.mrb[0].mxu0
        %v9966 = vpop.f32.mrb[0].mxu0
        %v9967 = vadd.f32 %v9415, %v9966
        %v9968 = vpop.f32.mrb[0].mxu0
        %9969 = vmatprep.mubr.bf16.mxu0 %v9222
        %9970 = vmatmul.mubr.bf16.gmra.mrb[0].mxu0 %v9221
        %v9971 = vpop.f32.mrb[0].mxu0
        %v9972 = vadd.f32 %v9415, %v9971
        %v9973 = vpop.f32.mrb[0].mxu0
        %v9974 = vpop.f32.mrb[0].mxu0
        %v9975 = vadd.f32 %v9415, %v9974
        %v9976 = vpop.f32.mrb[0].mxu0
        %9977 = vmatprep.mubr.bf16.mxu0 %v9231
        %9978 = vmatmul.mubr.bf16.gmra.mrb[0].mxu0 %v9230
        %v9979 = vpop.f32.mrb[0].mxu0
        %v9980 = vadd.f32 %v9415, %v9979
        %v9981 = vpop.f32.mrb[0].mxu0
        %v9982 = vpop.f32.mrb[0].mxu0
        %v9983 = vadd.f32 %v9415, %v9982
        %v9984 = vpop.f32.mrb[0].mxu0
        %9985 = vmatprep.mubr.bf16.mxu0 %v9240
        %9986 = vmatmul.mubr.bf16.gmra.mrb[0].mxu0 %v9239
        %v9987 = vpop.f32.mrb[0].mxu0
        %v9988 = vadd.f32 %v9415, %v9987
        %v9989 = vpop.f32.mrb[0].mxu0
        %v9990 = vpop.f32.mrb[0].mxu0
        %v9991 = vadd.f32 %v9415, %v9990
        %v9992 = vpop.f32.mrb[0].mxu0
        %9993 = vmatprep.mubr.bf16.mxu0 %v9249
        %9994 = vmatmul.mubr.bf16.gmra.mrb[0].mxu0 %v9248
        %v9995 = vpop.f32.mrb[0].mxu0
        %v9996 = vadd.f32 %v9415, %v9995
        %v9997 = vpop.f32.mrb[0].mxu0
        %v9998 = vpop.f32.mrb[0].mxu0
        %v9999 = vadd.f32 %v9415, %v9998
        %v10000 = vpop.f32.mrb[0].mxu0
        %10001 = vmatprep.mubr.bf16.mxu0 %v9258
        %10002 = vmatmul.mubr.bf16.gmra.mrb[0].mxu0 %v9257
        %v10003 = vpop.f32.mrb[0].mxu0
        %v10004 = vadd.f32 %v9415, %v10003
        %v10005 = vpop.f32.mrb[0].mxu0
        %v10006 = vpop.f32.mrb[0].mxu0
        %v10007 = vadd.f32 %v9415, %v10006
        %v10008 = vpop.f32.mrb[0].mxu0
        %10009 = vdwg.mxu0
        %10010 = vmatprep.subr.bf16.mxu0 0
        %10011 = vmatpush1.bf16.msra.mxu0 %v9721
        %10012 = vmatprep.subr.bf16.mxu0 0
        %10013 = vmatpush1.bf16.msra.mxu0 %v9722
        %10014 = vmatprep.subr.bf16.mxu0 0
        %10015 = vmatpush1.bf16.msra.mxu0 %v9723
        %10016 = vmatprep.subr.bf16.mxu0 0
        %10017 = vmatpush1.bf16.msra.mxu0 %v9724
        %10018 = vmatprep.subr.bf16.mxu0 0
        %10019 = vmatpush1.bf16.msra.mxu0 %v9725
        %10020 = vmatprep.subr.bf16.mxu0 0
        %10021 = vmatpush1.bf16.msra.mxu0 %v9726
        %10022 = vmatprep.subr.bf16.mxu0 0
        %10023 = vmatpush1.bf16.msra.mxu0 %v9727
        %10024 = vmatprep.subr.bf16.mxu0 0
        %10025 = vmatpush1.bf16.msra.mxu0 %v9728
        %10026 = vmatprep.subr.bf16.mxu0 0
        %10027 = vmatpush1.bf16.msra.mxu0 %v9729
        %10028 = vmatprep.subr.bf16.mxu0 0
        %10029 = vmatpush1.bf16.msra.mxu0 %v9730
        %10030 = vmatprep.subr.bf16.mxu0 0
        %10031 = vmatpush1.bf16.msra.mxu0 %v9731
        %10032 = vmatprep.subr.bf16.mxu0 0
        %10033 = vmatpush1.bf16.msra.mxu0 %v9732
        %10034 = vmatprep.subr.bf16.mxu0 0
        %10035 = vmatpush1.bf16.msra.mxu0 %v9733
        %10036 = vmatprep.subr.bf16.mxu0 0
        %10037 = vmatpush1.bf16.msra.mxu0 %v9734
        %10038 = vmatprep.subr.bf16.mxu0 0
        %10039 = vmatpush1.bf16.msra.mxu0 %v9735
        %10040 = vmatprep.subr.bf16.mxu0 0
        %10041 = vmatpush1.bf16.msra.mxu0 %v9736
        %10042 = vmatprep.mubr.bf16.mxu0 %v9125
        %10043 = vmatmul.mubr.bf16.gmra.mrb[0].mxu0 %v9124
        %v10044 = vpop.f32.mrb[0].mxu0
        %v10045 = vadd.f32 %v9884, %v10044
        %v10046 = vpop.f32.mrb[0].mxu0
        %v10047 = vpop.f32.mrb[0].mxu0
        %v10048 = vadd.f32 %v9887, %v10047
        %v10049 = vpop.f32.mrb[0].mxu0
        %10050 = vmatprep.mubr.bf16.mxu0 %v9134
        %10051 = vmatmul.mubr.bf16.gmra.mrb[0].mxu0 %v9133
        %v10052 = vpop.f32.mrb[0].mxu0
        %v10053 = vadd.f32 %v9892, %v10052
        %v10054 = vpop.f32.mrb[0].mxu0
        %v10055 = vpop.f32.mrb[0].mxu0
        %v10056 = vadd.f32 %v9895, %v10055
        %v10057 = vpop.f32.mrb[0].mxu0
        %10058 = vmatprep.mubr.bf16.mxu0 %v9143
        %10059 = vmatmul.mubr.bf16.gmra.mrb[0].mxu0 %v9142
        %v10060 = vpop.f32.mrb[0].mxu0
        %v10061 = vadd.f32 %v9900, %v10060
        %v10062 = vpop.f32.mrb[0].mxu0
        %v10063 = vpop.f32.mrb[0].mxu0
        %v10064 = vadd.f32 %v9903, %v10063
        %v10065 = vpop.f32.mrb[0].mxu0
        %10066 = vmatprep.mubr.bf16.mxu0 %v9152
        %10067 = vmatmul.mubr.bf16.gmra.mrb[0].mxu0 %v9151
        %v10068 = vpop.f32.mrb[0].mxu0
        %v10069 = vadd.f32 %v9908, %v10068
        %v10070 = vpop.f32.mrb[0].mxu0
        %v10071 = vpop.f32.mrb[0].mxu0
        %v10072 = vadd.f32 %v9911, %v10071
        %v10073 = vpop.f32.mrb[0].mxu0
        %10074 = vmatprep.mubr.bf16.mxu0 %v9161
        %10075 = vmatmul.mubr.bf16.gmra.mrb[0].mxu0 %v9160
        %v10076 = vpop.f32.mrb[0].mxu0
        %v10077 = vadd.f32 %v9916, %v10076
        %v10078 = vpop.f32.mrb[0].mxu0
        %v10079 = vpop.f32.mrb[0].mxu0
        %v10080 = vadd.f32 %v9919, %v10079
        %v10081 = vpop.f32.mrb[0].mxu0
        %10082 = vmatprep.mubr.bf16.mxu0 %v9170
        %10083 = vmatmul.mubr.bf16.gmra.mrb[0].mxu0 %v9169
        %v10084 = vpop.f32.mrb[0].mxu0
        %v10085 = vadd.f32 %v9924, %v10084
        %v10086 = vpop.f32.mrb[0].mxu0
        %v10087 = vpop.f32.mrb[0].mxu0
        %v10088 = vadd.f32 %v9927, %v10087
        %v10089 = vpop.f32.mrb[0].mxu0
        %10090 = vmatprep.mubr.bf16.mxu0 %v9179
        %10091 = vmatmul.mubr.bf16.gmra.mrb[0].mxu0 %v9178
        %v10092 = vpop.f32.mrb[0].mxu0
        %v10093 = vadd.f32 %v9932, %v10092
        %v10094 = vpop.f32.mrb[0].mxu0
        %v10095 = vpop.f32.mrb[0].mxu0
        %v10096 = vadd.f32 %v9935, %v10095
        %v10097 = vpop.f32.mrb[0].mxu0
        %10098 = vmatprep.mubr.bf16.mxu0 %v9188
        %10099 = vmatmul.mubr.bf16.gmra.mrb[0].mxu0 %v9187
        %v10100 = vpop.f32.mrb[0].mxu0
        %v10101 = vadd.f32 %v9940, %v10100
        %v10102 = vpop.f32.mrb[0].mxu0
        %v10103 = vpop.f32.mrb[0].mxu0
        %v10104 = vadd.f32 %v9943, %v10103
        %v10105 = vpop.f32.mrb[0].mxu0
        %10106 = vmatprep.mubr.bf16.mxu0 %v9197
        %10107 = vmatmul.mubr.bf16.gmra.mrb[0].mxu0 %v9196
        %v10108 = vpop.f32.mrb[0].mxu0
        %v10109 = vadd.f32 %v9948, %v10108
        %v10110 = vpop.f32.mrb[0].mxu0
        %v10111 = vpop.f32.mrb[0].mxu0
        %v10112 = vadd.f32 %v9951, %v10111
        %v10113 = vpop.f32.mrb[0].mxu0
        %10114 = vmatprep.mubr.bf16.mxu0 %v9206
        %10115 = vmatmul.mubr.bf16.gmra.mrb[0].mxu0 %v9205
        %v10116 = vpop.f32.mrb[0].mxu0
        %v10117 = vadd.f32 %v9956, %v10116
        %v10118 = vpop.f32.mrb[0].mxu0
        %v10119 = vpop.f32.mrb[0].mxu0
        %v10120 = vadd.f32 %v9959, %v10119
        %v10121 = vpop.f32.mrb[0].mxu0
        %10122 = vmatprep.mubr.bf16.mxu0 %v9215
        %10123 = vmatmul.mubr.bf16.gmra.mrb[0].mxu0 %v9214
        %v10124 = vpop.f32.mrb[0].mxu0
        %v10125 = vadd.f32 %v9964, %v10124
        %v10126 = vpop.f32.mrb[0].mxu0
        %v10127 = vpop.f32.mrb[0].mxu0
        %v10128 = vadd.f32 %v9967, %v10127
        %v10129 = vpop.f32.mrb[0].mxu0
        %10130 = vmatprep.mubr.bf16.mxu0 %v9224
        %10131 = vmatmul.mubr.bf16.gmra.mrb[0].mxu0 %v9223
        %v10132 = vpop.f32.mrb[0].mxu0
        %v10133 = vadd.f32 %v9972, %v10132
        %v10134 = vpop.f32.mrb[0].mxu0
        %v10135 = vpop.f32.mrb[0].mxu0
        %v10136 = vadd.f32 %v9975, %v10135
        %v10137 = vpop.f32.mrb[0].mxu0
        %10138 = vmatprep.mubr.bf16.mxu0 %v9233
        %10139 = vmatmul.mubr.bf16.gmra.mrb[0].mxu0 %v9232
        %v10140 = vpop.f32.mrb[0].mxu0
        %v10141 = vadd.f32 %v9980, %v10140
        %v10142 = vpop.f32.mrb[0].mxu0
        %v10143 = vpop.f32.mrb[0].mxu0
        %v10144 = vadd.f32 %v9983, %v10143
        %v10145 = vpop.f32.mrb[0].mxu0
        %10146 = vmatprep.mubr.bf16.mxu0 %v9242
        %10147 = vmatmul.mubr.bf16.gmra.mrb[0].mxu0 %v9241
        %v10148 = vpop.f32.mrb[0].mxu0
        %v10149 = vadd.f32 %v9988, %v10148
        %v10150 = vpop.f32.mrb[0].mxu0
        %v10151 = vpop.f32.mrb[0].mxu0
        %v10152 = vadd.f32 %v9991, %v10151
        %v10153 = vpop.f32.mrb[0].mxu0
        %10154 = vmatprep.mubr.bf16.mxu0 %v9251
        %10155 = vmatmul.mubr.bf16.gmra.mrb[0].mxu0 %v9250
        %v10156 = vpop.f32.mrb[0].mxu0
        %v10157 = vadd.f32 %v9996, %v10156
        %v10158 = vpop.f32.mrb[0].mxu0
        %v10159 = vpop.f32.mrb[0].mxu0
        %v10160 = vadd.f32 %v9999, %v10159
        %v10161 = vpop.f32.mrb[0].mxu0
        %10162 = vmatprep.mubr.bf16.mxu0 %v9260
        %10163 = vmatmul.mubr.bf16.gmra.mrb[0].mxu0 %v9259
        %v10164 = vpop.f32.mrb[0].mxu0
        %v10165 = vadd.f32 %v10004, %v10164
        %v10166 = vpop.f32.mrb[0].mxu0
        %v10167 = vpop.f32.mrb[0].mxu0
        %v10168 = vadd.f32 %v10007, %v10167
        %v10169 = vpop.f32.mrb[0].mxu0
        %10170 = vdwg.mxu0
        %10171 = vmatprep.subr.bf16.mxu0 0
        %10172 = vmatpush1.bf16.msra.mxu0 %v9737
        %10173 = vmatprep.subr.bf16.mxu0 0
        %10174 = vmatpush1.bf16.msra.mxu0 %v9738
        %10175 = vmatprep.subr.bf16.mxu0 0
        %10176 = vmatpush1.bf16.msra.mxu0 %v9739
        %10177 = vmatprep.subr.bf16.mxu0 0
        %10178 = vmatpush1.bf16.msra.mxu0 %v9740
        %10179 = vmatprep.subr.bf16.mxu0 0
        %10180 = vmatpush1.bf16.msra.mxu0 %v9741
        %10181 = vmatprep.subr.bf16.mxu0 0
        %10182 = vmatpush1.bf16.msra.mxu0 %v9742
        %10183 = vmatprep.subr.bf16.mxu0 0
        %10184 = vmatpush1.bf16.msra.mxu0 %v9743
        %10185 = vmatprep.subr.bf16.mxu0 0
        %10186 = vmatpush1.bf16.msra.mxu0 %v9744
        %10187 = vmatprep.subr.bf16.mxu0 0
        %10188 = vmatpush1.bf16.msra.mxu0 %v9745
        %10189 = vmatprep.subr.bf16.mxu0 0
        %10190 = vmatpush1.bf16.msra.mxu0 %v9746
        %10191 = vmatprep.subr.bf16.mxu0 0
        %10192 = vmatpush1.bf16.msra.mxu0 %v9747
        %10193 = vmatprep.subr.bf16.mxu0 0
        %10194 = vmatpush1.bf16.msra.mxu0 %v9748
        %10195 = vmatprep.subr.bf16.mxu0 0
        %10196 = vmatpush1.bf16.msra.mxu0 %v9749
        %10197 = vmatprep.subr.bf16.mxu0 0
        %10198 = vmatpush1.bf16.msra.mxu0 %v9750
        %10199 = vmatprep.subr.bf16.mxu0 0
        %10200 = vmatpush1.bf16.msra.mxu0 %v9751
        %10201 = vmatprep.subr.bf16.mxu0 0
        %10202 = vmatpush1.bf16.msra.mxu0 %v9752
        %10203 = vmatprep.mubr.bf16.mxu0 %v9127
        %10204 = vmatmul.mubr.bf16.gmra.mrb[0].mxu0 %v9126
        %v10205 = vpop.f32.mrb[0].mxu0
        %v10206 = vadd.f32 %v10045, %v10205
        %v10207 = vpop.f32.mrb[0].mxu0
        %v10208 = vpop.f32.mrb[0].mxu0
        %v10209 = vadd.f32 %v10048, %v10208
        %v10210 = vpop.f32.mrb[0].mxu0
        %10211 = vmatprep.mubr.bf16.mxu0 %v9136
        %10212 = vmatmul.mubr.bf16.gmra.mrb[0].mxu0 %v9135
        %v10213 = vpop.f32.mrb[0].mxu0
        %v10214 = vadd.f32 %v10053, %v10213
        %v10215 = vpop.f32.mrb[0].mxu0
        %v10216 = vpop.f32.mrb[0].mxu0
        %v10217 = vadd.f32 %v10056, %v10216
        %v10218 = vpop.f32.mrb[0].mxu0
        %10219 = vmatprep.mubr.bf16.mxu0 %v9145
        %10220 = vmatmul.mubr.bf16.gmra.mrb[0].mxu0 %v9144
        %v10221 = vpop.f32.mrb[0].mxu0
        %v10222 = vadd.f32 %v10061, %v10221
        %v10223 = vpop.f32.mrb[0].mxu0
        %v10224 = vpop.f32.mrb[0].mxu0
        %v10225 = vadd.f32 %v10064, %v10224
        %v10226 = vpop.f32.mrb[0].mxu0
        %10227 = vmatprep.mubr.bf16.mxu0 %v9154
        %10228 = vmatmul.mubr.bf16.gmra.mrb[0].mxu0 %v9153
        %v10229 = vpop.f32.mrb[0].mxu0
        %v10230 = vadd.f32 %v10069, %v10229
        %v10231 = vpop.f32.mrb[0].mxu0
        %v10232 = vpop.f32.mrb[0].mxu0
        %v10233 = vadd.f32 %v10072, %v10232
        %v10234 = vpop.f32.mrb[0].mxu0
        %10235 = vmatprep.mubr.bf16.mxu0 %v9163
        %10236 = vmatmul.mubr.bf16.gmra.mrb[0].mxu0 %v9162
        %v10237 = vpop.f32.mrb[0].mxu0
        %v10238 = vadd.f32 %v10077, %v10237
        %v10239 = vpop.f32.mrb[0].mxu0
        %v10240 = vpop.f32.mrb[0].mxu0
        %v10241 = vadd.f32 %v10080, %v10240
        %v10242 = vpop.f32.mrb[0].mxu0
        %10243 = vmatprep.mubr.bf16.mxu0 %v9172
        %10244 = vmatmul.mubr.bf16.gmra.mrb[0].mxu0 %v9171
        %v10245 = vpop.f32.mrb[0].mxu0
        %v10246 = vadd.f32 %v10085, %v10245
        %v10247 = vpop.f32.mrb[0].mxu0
        %v10248 = vpop.f32.mrb[0].mxu0
        %v10249 = vadd.f32 %v10088, %v10248
        %v10250 = vpop.f32.mrb[0].mxu0
        %10251 = vmatprep.mubr.bf16.mxu0 %v9181
        %10252 = vmatmul.mubr.bf16.gmra.mrb[0].mxu0 %v9180
        %v10253 = vpop.f32.mrb[0].mxu0
        %v10254 = vadd.f32 %v10093, %v10253
        %v10255 = vpop.f32.mrb[0].mxu0
        %v10256 = vpop.f32.mrb[0].mxu0
        %v10257 = vadd.f32 %v10096, %v10256
        %v10258 = vpop.f32.mrb[0].mxu0
        %10259 = vmatprep.mubr.bf16.mxu0 %v9190
        %10260 = vmatmul.mubr.bf16.gmra.mrb[0].mxu0 %v9189
        %v10261 = vpop.f32.mrb[0].mxu0
        %v10262 = vadd.f32 %v10101, %v10261
        %v10263 = vpop.f32.mrb[0].mxu0
        %v10264 = vpop.f32.mrb[0].mxu0
        %v10265 = vadd.f32 %v10104, %v10264
        %v10266 = vpop.f32.mrb[0].mxu0
        %10267 = vmatprep.mubr.bf16.mxu0 %v9199
        %10268 = vmatmul.mubr.bf16.gmra.mrb[0].mxu0 %v9198
        %v10269 = vpop.f32.mrb[0].mxu0
        %v10270 = vadd.f32 %v10109, %v10269
        %v10271 = vpop.f32.mrb[0].mxu0
        %v10272 = vpop.f32.mrb[0].mxu0
        %v10273 = vadd.f32 %v10112, %v10272
        %v10274 = vpop.f32.mrb[0].mxu0
        %10275 = vmatprep.mubr.bf16.mxu0 %v9208
        %10276 = vmatmul.mubr.bf16.gmra.mrb[0].mxu0 %v9207
        %v10277 = vpop.f32.mrb[0].mxu0
        %v10278 = vadd.f32 %v10117, %v10277
        %v10279 = vpop.f32.mrb[0].mxu0
        %v10280 = vpop.f32.mrb[0].mxu0
        %v10281 = vadd.f32 %v10120, %v10280
        %v10282 = vpop.f32.mrb[0].mxu0
        %10283 = vmatprep.mubr.bf16.mxu0 %v9217
        %10284 = vmatmul.mubr.bf16.gmra.mrb[0].mxu0 %v9216
        %v10285 = vpop.f32.mrb[0].mxu0
        %v10286 = vadd.f32 %v10125, %v10285
        %v10287 = vpop.f32.mrb[0].mxu0
        %v10288 = vpop.f32.mrb[0].mxu0
        %v10289 = vadd.f32 %v10128, %v10288
        %v10290 = vpop.f32.mrb[0].mxu0
        %10291 = vmatprep.mubr.bf16.mxu0 %v9226
        %10292 = vmatmul.mubr.bf16.gmra.mrb[0].mxu0 %v9225
        %v10293 = vpop.f32.mrb[0].mxu0
        %v10294 = vadd.f32 %v10133, %v10293
        %v10295 = vpop.f32.mrb[0].mxu0
        %v10296 = vpop.f32.mrb[0].mxu0
        %v10297 = vadd.f32 %v10136, %v10296
        %v10298 = vpop.f32.mrb[0].mxu0
        %10299 = vmatprep.mubr.bf16.mxu0 %v9235
        %10300 = vmatmul.mubr.bf16.gmra.mrb[0].mxu0 %v9234
        %v10301 = vpop.f32.mrb[0].mxu0
        %v10302 = vadd.f32 %v10141, %v10301
        %v10303 = vpop.f32.mrb[0].mxu0
        %v10304 = vpop.f32.mrb[0].mxu0
        %v10305 = vadd.f32 %v10144, %v10304
        %v10306 = vpop.f32.mrb[0].mxu0
        %10307 = vmatprep.mubr.bf16.mxu0 %v9244
        %10308 = vmatmul.mubr.bf16.gmra.mrb[0].mxu0 %v9243
        %v10309 = vpop.f32.mrb[0].mxu0
        %v10310 = vadd.f32 %v10149, %v10309
        %v10311 = vpop.f32.mrb[0].mxu0
        %v10312 = vpop.f32.mrb[0].mxu0
        %v10313 = vadd.f32 %v10152, %v10312
        %v10314 = vpop.f32.mrb[0].mxu0
        %10315 = vmatprep.mubr.bf16.mxu0 %v9253
        %10316 = vmatmul.mubr.bf16.gmra.mrb[0].mxu0 %v9252
        %v10317 = vpop.f32.mrb[0].mxu0
        %v10318 = vadd.f32 %v10157, %v10317
        %v10319 = vpop.f32.mrb[0].mxu0
        %v10320 = vpop.f32.mrb[0].mxu0
        %v10321 = vadd.f32 %v10160, %v10320
        %v10322 = vpop.f32.mrb[0].mxu0
        %10323 = vmatprep.mubr.bf16.mxu0 %v9262
        %10324 = vmatmul.mubr.bf16.gmra.mrb[0].mxu0 %v9261
        %v10325 = vpop.f32.mrb[0].mxu0
        %v10326 = vadd.f32 %v10165, %v10325
        %v10327 = vpop.f32.mrb[0].mxu0
        %v10328 = vpop.f32.mrb[0].mxu0
        %v10329 = vadd.f32 %v10168, %v10328
        %v10330 = vpop.f32.mrb[0].mxu0
        %10331 = vdwg.mxu0
        %10332 = vmatprep.subr.bf16.mxu0 0
        %10333 = vmatpush1.bf16.msra.mxu0 %v9753
        %10334 = vmatprep.subr.bf16.mxu0 0
        %10335 = vmatpush1.bf16.msra.mxu0 %v9754
        %10336 = vmatprep.subr.bf16.mxu0 0
        %10337 = vmatpush1.bf16.msra.mxu0 %v9755
        %10338 = vmatprep.subr.bf16.mxu0 0
        %10339 = vmatpush1.bf16.msra.mxu0 %v9756
        %10340 = vmatprep.subr.bf16.mxu0 0
        %10341 = vmatpush1.bf16.msra.mxu0 %v9757
        %10342 = vmatprep.subr.bf16.mxu0 0
        %10343 = vmatpush1.bf16.msra.mxu0 %v9758
        %10344 = vmatprep.subr.bf16.mxu0 0
        %10345 = vmatpush1.bf16.msra.mxu0 %v9759
        %10346 = vmatprep.subr.bf16.mxu0 0
        %10347 = vmatpush1.bf16.msra.mxu0 %v9760
        %10348 = vmatprep.subr.bf16.mxu0 0
        %10349 = vmatpush1.bf16.msra.mxu0 %v9761
        %10350 = vmatprep.subr.bf16.mxu0 0
        %10351 = vmatpush1.bf16.msra.mxu0 %v9762
        %10352 = vmatprep.subr.bf16.mxu0 0
        %10353 = vmatpush1.bf16.msra.mxu0 %v9763
        %10354 = vmatprep.subr.bf16.mxu0 0
        %10355 = vmatpush1.bf16.msra.mxu0 %v9764
        %10356 = vmatprep.subr.bf16.mxu0 0
        %10357 = vmatpush1.bf16.msra.mxu0 %v9765
        %10358 = vmatprep.subr.bf16.mxu0 0
        %10359 = vmatpush1.bf16.msra.mxu0 %v9766
        %10360 = vmatprep.subr.bf16.mxu0 0
        %10361 = vmatpush1.bf16.msra.mxu0 %v9767
        %10362 = vmatprep.subr.bf16.mxu0 0
        %10363 = vmatpush1.bf16.msra.mxu0 %v9768
        %10364 = vmatprep.mubr.bf16.mxu0 %v9129
        %10365 = vmatmul.mubr.bf16.gmra.mrb[0].mxu0 %v9128
        %v10366 = vpop.f32.mrb[0].mxu0
        %v10367 = vadd.f32 %v10206, %v10366
        %v10368 = vpop.f32.mrb[0].mxu0
        %v10369 = vpop.f32.mrb[0].mxu0
        %v10370 = vadd.f32 %v10209, %v10369
        %v10371 = vpop.f32.mrb[0].mxu0
        %10372 = vmatprep.mubr.bf16.mxu0 %v9138
        %10373 = vmatmul.mubr.bf16.gmra.mrb[0].mxu0 %v9137
        %v10374 = vpop.f32.mrb[0].mxu0
        %v10375 = vadd.f32 %v10214, %v10374
        %v10376 = vpop.f32.mrb[0].mxu0
        %v10377 = vpop.f32.mrb[0].mxu0
        %v10378 = vadd.f32 %v10217, %v10377
        %v10379 = vpop.f32.mrb[0].mxu0
        %10380 = vmatprep.mubr.bf16.mxu0 %v9147
        %10381 = vmatmul.mubr.bf16.gmra.mrb[0].mxu0 %v9146
        %v10382 = vpop.f32.mrb[0].mxu0
        %v10383 = vadd.f32 %v10222, %v10382
        %v10384 = vpop.f32.mrb[0].mxu0
        %v10385 = vpop.f32.mrb[0].mxu0
        %v10386 = vadd.f32 %v10225, %v10385
        %v10387 = vpop.f32.mrb[0].mxu0
        %10388 = vmatprep.mubr.bf16.mxu0 %v9156
        %10389 = vmatmul.mubr.bf16.gmra.mrb[0].mxu0 %v9155
        %v10390 = vpop.f32.mrb[0].mxu0
        %v10391 = vadd.f32 %v10230, %v10390
        %v10392 = vpop.f32.mrb[0].mxu0
        %v10393 = vpop.f32.mrb[0].mxu0
        %v10394 = vadd.f32 %v10233, %v10393
        %v10395 = vpop.f32.mrb[0].mxu0
        %10396 = vmatprep.mubr.bf16.mxu0 %v9165
        %10397 = vmatmul.mubr.bf16.gmra.mrb[0].mxu0 %v9164
        %v10398 = vpop.f32.mrb[0].mxu0
        %v10399 = vadd.f32 %v10238, %v10398
        %v10400 = vpop.f32.mrb[0].mxu0
        %v10401 = vpop.f32.mrb[0].mxu0
        %v10402 = vadd.f32 %v10241, %v10401
        %v10403 = vpop.f32.mrb[0].mxu0
        %10404 = vmatprep.mubr.bf16.mxu0 %v9174
        %10405 = vmatmul.mubr.bf16.gmra.mrb[0].mxu0 %v9173
        %v10406 = vpop.f32.mrb[0].mxu0
        %v10407 = vadd.f32 %v10246, %v10406
        %v10408 = vpop.f32.mrb[0].mxu0
        %v10409 = vpop.f32.mrb[0].mxu0
        %v10410 = vadd.f32 %v10249, %v10409
        %v10411 = vpop.f32.mrb[0].mxu0
        %10412 = vmatprep.mubr.bf16.mxu0 %v9183
        %10413 = vmatmul.mubr.bf16.gmra.mrb[0].mxu0 %v9182
        %v10414 = vpop.f32.mrb[0].mxu0
        %v10415 = vadd.f32 %v10254, %v10414
        %v10416 = vpop.f32.mrb[0].mxu0
        %v10417 = vpop.f32.mrb[0].mxu0
        %v10418 = vadd.f32 %v10257, %v10417
        %v10419 = vpop.f32.mrb[0].mxu0
        %10420 = vmatprep.mubr.bf16.mxu0 %v9192
        %10421 = vmatmul.mubr.bf16.gmra.mrb[0].mxu0 %v9191
        %v10422 = vpop.f32.mrb[0].mxu0
        %v10423 = vadd.f32 %v10262, %v10422
        %v10424 = vpop.f32.mrb[0].mxu0
        %v10425 = vpop.f32.mrb[0].mxu0
        %v10426 = vadd.f32 %v10265, %v10425
        %v10427 = vpop.f32.mrb[0].mxu0
        %10428 = vmatprep.mubr.bf16.mxu0 %v9201
        %10429 = vmatmul.mubr.bf16.gmra.mrb[0].mxu0 %v9200
        %v10430 = vpop.f32.mrb[0].mxu0
        %v10431 = vadd.f32 %v10270, %v10430
        %v10432 = vpop.f32.mrb[0].mxu0
        %v10433 = vpop.f32.mrb[0].mxu0
        %v10434 = vadd.f32 %v10273, %v10433
        %v10435 = vpop.f32.mrb[0].mxu0
        %10436 = vmatprep.mubr.bf16.mxu0 %v9210
        %10437 = vmatmul.mubr.bf16.gmra.mrb[0].mxu0 %v9209
        %v10438 = vpop.f32.mrb[0].mxu0
        %v10439 = vadd.f32 %v10278, %v10438
        %v10440 = vpop.f32.mrb[0].mxu0
        %v10441 = vpop.f32.mrb[0].mxu0
        %v10442 = vadd.f32 %v10281, %v10441
        %v10443 = vpop.f32.mrb[0].mxu0
        %10444 = vmatprep.mubr.bf16.mxu0 %v9219
        %10445 = vmatmul.mubr.bf16.gmra.mrb[0].mxu0 %v9218
        %v10446 = vpop.f32.mrb[0].mxu0
        %v10447 = vadd.f32 %v10286, %v10446
        %v10448 = vpop.f32.mrb[0].mxu0
        %v10449 = vpop.f32.mrb[0].mxu0
        %v10450 = vadd.f32 %v10289, %v10449
        %v10451 = vpop.f32.mrb[0].mxu0
        %10452 = vmatprep.mubr.bf16.mxu0 %v9228
        %10453 = vmatmul.mubr.bf16.gmra.mrb[0].mxu0 %v9227
        %v10454 = vpop.f32.mrb[0].mxu0
        %v10455 = vadd.f32 %v10294, %v10454
        %v10456 = vpop.f32.mrb[0].mxu0
        %v10457 = vpop.f32.mrb[0].mxu0
        %v10458 = vadd.f32 %v10297, %v10457
        %v10459 = vpop.f32.mrb[0].mxu0
        %10460 = vmatprep.mubr.bf16.mxu0 %v9237
        %10461 = vmatmul.mubr.bf16.gmra.mrb[0].mxu0 %v9236
        %v10462 = vpop.f32.mrb[0].mxu0
        %v10463 = vadd.f32 %v10302, %v10462
        %v10464 = vpop.f32.mrb[0].mxu0
        %v10465 = vpop.f32.mrb[0].mxu0
        %v10466 = vadd.f32 %v10305, %v10465
        %v10467 = vpop.f32.mrb[0].mxu0
        %10468 = vmatprep.mubr.bf16.mxu0 %v9246
        %10469 = vmatmul.mubr.bf16.gmra.mrb[0].mxu0 %v9245
        %v10470 = vpop.f32.mrb[0].mxu0
        %v10471 = vadd.f32 %v10310, %v10470
        %v10472 = vpop.f32.mrb[0].mxu0
        %v10473 = vpop.f32.mrb[0].mxu0
        %v10474 = vadd.f32 %v10313, %v10473
        %v10475 = vpop.f32.mrb[0].mxu0
        %10476 = vmatprep.mubr.bf16.mxu0 %v9255
        %10477 = vmatmul.mubr.bf16.gmra.mrb[0].mxu0 %v9254
        %v10478 = vpop.f32.mrb[0].mxu0
        %v10479 = vadd.f32 %v10318, %v10478
        %v10480 = vpop.f32.mrb[0].mxu0
        %v10481 = vpop.f32.mrb[0].mxu0
        %v10482 = vadd.f32 %v10321, %v10481
        %v10483 = vpop.f32.mrb[0].mxu0
        %10484 = vmatprep.mubr.bf16.mxu0 %v9264
        %10485 = vmatmul.mubr.bf16.gmra.mrb[0].mxu0 %v9263
        %v10486 = vpop.f32.mrb[0].mxu0
        %v10487 = vadd.f32 %v10326, %v10486
        %v10488 = vpop.f32.mrb[0].mxu0
        %v10489 = vpop.f32.mrb[0].mxu0
        %v10490 = vadd.f32 %v10329, %v10489
        %v10491 = vpop.f32.mrb[0].mxu0
        %10492 = vdwg.mxu0
        %10493 = vmatprep.subr.bf16.mxu0 0
        %10494 = vmatpush1.bf16.msra.mxu0 %v9769
        %10495 = vmatprep.subr.bf16.mxu0 0
        %10496 = vmatpush1.bf16.msra.mxu0 %v9770
        %10497 = vmatprep.subr.bf16.mxu0 0
        %10498 = vmatpush1.bf16.msra.mxu0 %v9771
        %10499 = vmatprep.subr.bf16.mxu0 0
        %10500 = vmatpush1.bf16.msra.mxu0 %v9772
        %10501 = vmatprep.subr.bf16.mxu0 0
        %10502 = vmatpush1.bf16.msra.mxu0 %v9773
        %10503 = vmatprep.subr.bf16.mxu0 0
        %10504 = vmatpush1.bf16.msra.mxu0 %v9774
        %10505 = vmatprep.subr.bf16.mxu0 0
        %10506 = vmatpush1.bf16.msra.mxu0 %v9775
        %10507 = vmatprep.subr.bf16.mxu0 0
        %10508 = vmatpush1.bf16.msra.mxu0 %v9776
        %10509 = vmatprep.subr.bf16.mxu0 0
        %10510 = vmatpush1.bf16.msra.mxu0 0
        %10511 = vmatprep.subr.bf16.mxu0 0
        %10512 = vmatpush1.bf16.msra.mxu0 0
        %10513 = vmatprep.subr.bf16.mxu0 0
        %10514 = vmatpush1.bf16.msra.mxu0 0
        %10515 = vmatprep.subr.bf16.mxu0 0
        %10516 = vmatpush1.bf16.msra.mxu0 0
        %10517 = vmatprep.subr.bf16.mxu0 0
        %10518 = vmatpush1.bf16.msra.mxu0 0
        %10519 = vmatprep.subr.bf16.mxu0 0
        %10520 = vmatpush1.bf16.msra.mxu0 0
        %10521 = vmatprep.subr.bf16.mxu0 0
        %10522 = vmatpush1.bf16.msra.mxu0 0
        %10523 = vmatprep.subr.bf16.mxu0 0
        %10524 = vmatpush1.bf16.msra.mxu0 0
        %10525 = vmatprep.mubr.bf16.mxu0 0
        %10526 = vmatmul.mubr.bf16.gmra.mrb[0].mxu0 %v9130
        %v10527 = vpop.f32.mrb[0].mxu0
        %v10528 = vadd.f32 %v10367, %v10527
        %v10529 = vpop.f32.mrb[0].mxu0
        %v10530 = vpop.f32.mrb[0].mxu0
        %v10531 = vadd.f32 %v10370, %v10530
        %v10532 = vpop.f32.mrb[0].mxu0
        %10533 = vmatprep.mubr.bf16.mxu0 0
        %10534 = vmatmul.mubr.bf16.gmra.mrb[0].mxu0 %v9139
        %v10535 = vpop.f32.mrb[0].mxu0
        %v10536 = vadd.f32 %v10375, %v10535
        %v10537 = vpop.f32.mrb[0].mxu0
        %v10538 = vpop.f32.mrb[0].mxu0
        %v10539 = vadd.f32 %v10378, %v10538
        %v10540 = vpop.f32.mrb[0].mxu0
        %10541 = vmatprep.mubr.bf16.mxu0 0
        %10542 = vmatmul.mubr.bf16.gmra.mrb[0].mxu0 %v9148
        %v10543 = vpop.f32.mrb[0].mxu0
        %v10544 = vadd.f32 %v10383, %v10543
        %v10545 = vpop.f32.mrb[0].mxu0
        %v10546 = vpop.f32.mrb[0].mxu0
        %v10547 = vadd.f32 %v10386, %v10546
        %v10548 = vpop.f32.mrb[0].mxu0
        %10549 = vmatprep.mubr.bf16.mxu0 0
        %10550 = vmatmul.mubr.bf16.gmra.mrb[0].mxu0 %v9157
        %v10551 = vpop.f32.mrb[0].mxu0
        %v10552 = vadd.f32 %v10391, %v10551
        %v10553 = vpop.f32.mrb[0].mxu0
        %v10554 = vpop.f32.mrb[0].mxu0
        %v10555 = vadd.f32 %v10394, %v10554
        %v10556 = vpop.f32.mrb[0].mxu0
        %10557 = vmatprep.mubr.bf16.mxu0 0
        %10558 = vmatmul.mubr.bf16.gmra.mrb[0].mxu0 %v9166
        %v10559 = vpop.f32.mrb[0].mxu0
        %v10560 = vadd.f32 %v10399, %v10559
        %v10561 = vpop.f32.mrb[0].mxu0
        %v10562 = vpop.f32.mrb[0].mxu0
        %v10563 = vadd.f32 %v10402, %v10562
        %v10564 = vpop.f32.mrb[0].mxu0
        %10565 = vmatprep.mubr.bf16.mxu0 0
        %10566 = vmatmul.mubr.bf16.gmra.mrb[0].mxu0 %v9175
        %v10567 = vpop.f32.mrb[0].mxu0
        %v10568 = vadd.f32 %v10407, %v10567
        %v10569 = vpop.f32.mrb[0].mxu0
        %v10570 = vpop.f32.mrb[0].mxu0
        %v10571 = vadd.f32 %v10410, %v10570
        %v10572 = vpop.f32.mrb[0].mxu0
        %10573 = vmatprep.mubr.bf16.mxu0 0
        %10574 = vmatmul.mubr.bf16.gmra.mrb[0].mxu0 %v9184
        %v10575 = vpop.f32.mrb[0].mxu0
        %v10576 = vadd.f32 %v10415, %v10575
        %v10577 = vpop.f32.mrb[0].mxu0
        %v10578 = vpop.f32.mrb[0].mxu0
        %v10579 = vadd.f32 %v10418, %v10578
        %v10580 = vpop.f32.mrb[0].mxu0
        %10581 = vmatprep.mubr.bf16.mxu0 0
        %10582 = vmatmul.mubr.bf16.gmra.mrb[0].mxu0 %v9193
        %v10583 = vpop.f32.mrb[0].mxu0
        %v10584 = vadd.f32 %v10423, %v10583
        %v10585 = vpop.f32.mrb[0].mxu0
        %v10586 = vpop.f32.mrb[0].mxu0
        %v10587 = vadd.f32 %v10426, %v10586
        %v10588 = vpop.f32.mrb[0].mxu0
        %10589 = vmatprep.mubr.bf16.mxu0 0
        %10590 = vmatmul.mubr.bf16.gmra.mrb[0].mxu0 %v9202
        %v10591 = vpop.f32.mrb[0].mxu0
        %v10592 = vadd.f32 %v10431, %v10591
        %v10593 = vpop.f32.mrb[0].mxu0
        %v10594 = vpop.f32.mrb[0].mxu0
        %v10595 = vadd.f32 %v10434, %v10594
        %v10596 = vpop.f32.mrb[0].mxu0
        %10597 = vmatprep.mubr.bf16.mxu0 0
        %10598 = vmatmul.mubr.bf16.gmra.mrb[0].mxu0 %v9211
        %v10599 = vpop.f32.mrb[0].mxu0
        %v10600 = vadd.f32 %v10439, %v10599
        %v10601 = vpop.f32.mrb[0].mxu0
        %v10602 = vpop.f32.mrb[0].mxu0
        %v10603 = vadd.f32 %v10442, %v10602
        %v10604 = vpop.f32.mrb[0].mxu0
        %10605 = vmatprep.mubr.bf16.mxu0 0
        %10606 = vmatmul.mubr.bf16.gmra.mrb[0].mxu0 %v9220
        %v10607 = vpop.f32.mrb[0].mxu0
        %v10608 = vadd.f32 %v10447, %v10607
        %v10609 = vpop.f32.mrb[0].mxu0
        %v10610 = vpop.f32.mrb[0].mxu0
        %v10611 = vadd.f32 %v10450, %v10610
        %v10612 = vpop.f32.mrb[0].mxu0
        %10613 = vmatprep.mubr.bf16.mxu0 0
        %10614 = vmatmul.mubr.bf16.gmra.mrb[0].mxu0 %v9229
        %v10615 = vpop.f32.mrb[0].mxu0
        %v10616 = vadd.f32 %v10455, %v10615
        %v10617 = vpop.f32.mrb[0].mxu0
        %v10618 = vpop.f32.mrb[0].mxu0
        %v10619 = vadd.f32 %v10458, %v10618
        %v10620 = vpop.f32.mrb[0].mxu0
        %10621 = vmatprep.mubr.bf16.mxu0 0
        %10622 = vmatmul.mubr.bf16.gmra.mrb[0].mxu0 %v9238
        %v10623 = vpop.f32.mrb[0].mxu0
        %v10624 = vadd.f32 %v10463, %v10623
        %v10625 = vpop.f32.mrb[0].mxu0
        %v10626 = vpop.f32.mrb[0].mxu0
        %v10627 = vadd.f32 %v10466, %v10626
        %v10628 = vpop.f32.mrb[0].mxu0
        %10629 = vmatprep.mubr.bf16.mxu0 0
        %10630 = vmatmul.mubr.bf16.gmra.mrb[0].mxu0 %v9247
        %v10631 = vpop.f32.mrb[0].mxu0
        %v10632 = vadd.f32 %v10471, %v10631
        %v10633 = vpop.f32.mrb[0].mxu0
        %v10634 = vpop.f32.mrb[0].mxu0
        %v10635 = vadd.f32 %v10474, %v10634
        %v10636 = vpop.f32.mrb[0].mxu0
        %10637 = vmatprep.mubr.bf16.mxu0 0
        %10638 = vmatmul.mubr.bf16.gmra.mrb[0].mxu0 %v9256
        %v10639 = vpop.f32.mrb[0].mxu0
        %v10640 = vadd.f32 %v10479, %v10639
        %v10641 = vpop.f32.mrb[0].mxu0
        %v10642 = vpop.f32.mrb[0].mxu0
        %v10643 = vadd.f32 %v10482, %v10642
        %v10644 = vpop.f32.mrb[0].mxu0
        %10645 = vmatprep.mubr.bf16.mxu0 0
        %10646 = vmatmul.mubr.bf16.gmra.mrb[0].mxu0 %v9265
        %v10647 = vpop.f32.mrb[0].mxu0
        %v10648 = vadd.f32 %v10487, %v10647
        %v10649 = vpop.f32.mrb[0].mxu0
        %v10650 = vpop.f32.mrb[0].mxu0
        %v10651 = vadd.f32 %v10490, %v10650
        %v10652 = vpop.f32.mrb[0].mxu0
        %10653 = vdwg.mxu0
        %s10654 = sld [smem:[#allocation4 + $0x3]]
        %vm10655 = vcmp.ge.f32.partialorder %v10528, 0.0
        %vm10656 = vcmp.ge.f32.partialorder %v10531, 0.0
        %vm10657 = vcmp.ge.f32.partialorder %v10536, 0.0
        %vm10658 = vcmp.ge.f32.partialorder %v10539, 0.0
        %vm10659 = vcmp.ge.f32.partialorder %v10544, 0.0
        %vm10660 = vcmp.ge.f32.partialorder %v10547, 0.0
        %vm10661 = vcmp.ge.f32.partialorder %v10552, 0.0
        %vm10662 = vcmp.ge.f32.partialorder %v10555, 0.0
        %vm10663 = vcmp.ge.f32.partialorder %v10560, 0.0
        %vm10664 = vcmp.ge.f32.partialorder %v10563, 0.0
        %vm10665 = vcmp.ge.f32.partialorder %v10568, 0.0
        %vm10666 = vcmp.ge.f32.partialorder %v10571, 0.0
        %vm10667 = vcmp.ge.f32.partialorder %v10576, 0.0
        %vm10668 = vcmp.ge.f32.partialorder %v10579, 0.0
        %vm10669 = vcmp.ge.f32.partialorder %v10584, 0.0
        %vm10670 = vcmp.ge.f32.partialorder %v10587, 0.0
        %vm10671 = vcmp.ge.f32.partialorder %v10592, 0.0
        %vm10672 = vcmp.ge.f32.partialorder %v10595, 0.0
        %vm10673 = vcmp.ge.f32.partialorder %v10600, 0.0
        %vm10674 = vcmp.ge.f32.partialorder %v10603, 0.0
        %vm10675 = vcmp.ge.f32.partialorder %v10608, 0.0
        %vm10676 = vcmp.ge.f32.partialorder %v10611, 0.0
        %vm10677 = vcmp.ge.f32.partialorder %v10616, 0.0
        %vm10678 = vcmp.ge.f32.partialorder %v10619, 0.0
        %vm10679 = vcmp.ge.f32.partialorder %v10624, 0.0
        %vm10680 = vcmp.ge.f32.partialorder %v10627, 0.0
        %vm10681 = vcmp.ge.f32.partialorder %v10632, 0.0
        %vm10682 = vcmp.ge.f32.partialorder %v10635, 0.0
        %vm10683 = vcmp.ge.f32.partialorder %v10640, 0.0
        %vm10684 = vcmp.ge.f32.partialorder %v10643, 0.0
        %vm10685 = vcmp.ge.f32.partialorder %v10648, 0.0
        %vm10686 = vcmp.ge.f32.partialorder %v10651, 0.0
        %v10687 = vstv %s10654
        %v10688 = vmul.f32 %v10687, %v10528
        %v10689 = vmul.f32 %v10687, %v10531
        %v10690 = vmul.f32 %v10687, %v10536
        %v10691 = vmul.f32 %v10687, %v10539
        %v10692 = vmul.f32 %v10687, %v10544
        %v10693 = vmul.f32 %v10687, %v10547
        %v10694 = vmul.f32 %v10687, %v10552
        %v10695 = vmul.f32 %v10687, %v10555
        %v10696 = vmul.f32 %v10687, %v10560
        %v10697 = vmul.f32 %v10687, %v10563
        %v10698 = vmul.f32 %v10687, %v10568
        %v10699 = vmul.f32 %v10687, %v10571
        %v10700 = vmul.f32 %v10687, %v10576
        %v10701 = vmul.f32 %v10687, %v10579
        %v10702 = vmul.f32 %v10687, %v10584
        %v10703 = vmul.f32 %v10687, %v10587
        %v10704 = vmul.f32 %v10687, %v10592
        %v10705 = vmul.f32 %v10687, %v10595
        %v10706 = vmul.f32 %v10687, %v10600
        %v10707 = vmul.f32 %v10687, %v10603
        %v10708 = vmul.f32 %v10687, %v10608
        %v10709 = vmul.f32 %v10687, %v10611
        %v10710 = vmul.f32 %v10687, %v10616
        %v10711 = vmul.f32 %v10687, %v10619
        %v10712 = vmul.f32 %v10687, %v10624
        %v10713 = vmul.f32 %v10687, %v10627
        %v10714 = vmul.f32 %v10687, %v10632
        %v10715 = vmul.f32 %v10687, %v10635
        %v10716 = vmul.f32 %v10687, %v10640
        %v10717 = vmul.f32 %v10687, %v10643
        %v10718 = vmul.f32 %v10687, %v10648
        %v10719 = vmul.f32 %v10687, %v10651
        %v10720 = vsel %vm10655, %v10528, %v10688
        %v10721 = vsel %vm10656, %v10531, %v10689
        %v10722 = vsel %vm10657, %v10536, %v10690
        %v10723 = vsel %vm10658, %v10539, %v10691
        %v10724 = vsel %vm10659, %v10544, %v10692
        %v10725 = vsel %vm10660, %v10547, %v10693
        %v10726 = vsel %vm10661, %v10552, %v10694
        %v10727 = vsel %vm10662, %v10555, %v10695
        %v10728 = vsel %vm10663, %v10560, %v10696
        %v10729 = vsel %vm10664, %v10563, %v10697
        %v10730 = vsel %vm10665, %v10568, %v10698
        %v10731 = vsel %vm10666, %v10571, %v10699
        %v10732 = vsel %vm10667, %v10576, %v10700
        %v10733 = vsel %vm10668, %v10579, %v10701
        %v10734 = vsel %vm10669, %v10584, %v10702
        %v10735 = vsel %vm10670, %v10587, %v10703
        %v10736 = vsel %vm10671, %v10592, %v10704
        %v10737 = vsel %vm10672, %v10595, %v10705
        %v10738 = vsel %vm10673, %v10600, %v10706
        %v10739 = vsel %vm10674, %v10603, %v10707
        %v10740 = vsel %vm10675, %v10608, %v10708
        %v10741 = vsel %vm10676, %v10611, %v10709
        %v10742 = vsel %vm10677, %v10616, %v10710
        %v10743 = vsel %vm10678, %v10619, %v10711
        %v10744 = vsel %vm10679, %v10624, %v10712
        %v10745 = vsel %vm10680, %v10627, %v10713
        %v10746 = vsel %vm10681, %v10632, %v10714
        %v10747 = vsel %vm10682, %v10635, %v10715
        %v10748 = vsel %vm10683, %v10640, %v10716
        %v10749 = vsel %vm10684, %v10643, %v10717
        %v10750 = vsel %vm10685, %v10648, %v10718
        %v10751 = vsel %vm10686, %v10651, %v10719
        %10752 = vst [vmem:[%s402] sm:$0xff] %v10720
        %10753 = vst [vmem:[%s402 + $0x8] sm:$0xff] %v10721
        %10754 = vst [vmem:[%s402 + $0x10] sm:$0xff] %v10722
        %10755 = vst [vmem:[%s402 + $0x18] sm:$0xff] %v10723
        %10756 = vst [vmem:[%s402 + $0x20] sm:$0xff] %v10724
        %10757 = vst [vmem:[%s402 + $0x28] sm:$0xff] %v10725
        %10758 = vst [vmem:[%s402 + $0x30] sm:$0xff] %v10726
        %10759 = vst [vmem:[%s402 + $0x38] sm:$0xff] %v10727
        %10760 = vst [vmem:[%s402 + $0x40] sm:$0xff] %v10728
        %10761 = vst [vmem:[%s402 + $0x48] sm:$0xff] %v10729
        %10762 = vst [vmem:[%s402 + $0x50] sm:$0xff] %v10730
        %10763 = vst [vmem:[%s402 + $0x58] sm:$0xff] %v10731
        %10764 = vst [vmem:[%s402 + $0x60] sm:$0xff] %v10732
        %10765 = vst [vmem:[%s402 + $0x68] sm:$0xff] %v10733
        %10766 = vst [vmem:[%s402 + $0x70] sm:$0xff] %v10734
        %10767 = vst [vmem:[%s402 + $0x78] sm:$0xff] %v10735
        %10768 = vst [vmem:[%s402 + $0x80] sm:$0xff] %v10736
        %10769 = vst [vmem:[%s402 + $0x88] sm:$0xff] %v10737
        %10770 = vst [vmem:[%s402 + $0x90] sm:$0xff] %v10738
        %10771 = vst [vmem:[%s402 + $0x98] sm:$0xff] %v10739
        %10772 = vst [vmem:[%s402 + $0xa0] sm:$0xff] %v10740
        %10773 = vst [vmem:[%s402 + $0xa8] sm:$0xff] %v10741
        %10774 = vst [vmem:[%s402 + $0xb0] sm:$0xff] %v10742
        %10775 = vst [vmem:[%s402 + $0xb8] sm:$0xff] %v10743
        %10776 = vst [vmem:[%s402 + $0xc0] sm:$0xff] %v10744
        %10777 = vst [vmem:[%s402 + $0xc8] sm:$0xff] %v10745
        %10778 = vst [vmem:[%s402 + $0xd0] sm:$0xff] %v10746
        %10779 = vst [vmem:[%s402 + $0xd8] sm:$0xff] %v10747
        %10780 = vst [vmem:[%s402 + $0xe0] sm:$0xff] %v10748
        %10781 = vst [vmem:[%s402 + $0xe8] sm:$0xff] %v10749
        %10782 = vst [vmem:[%s402 + $0xf0] sm:$0xff] %v10750
        %10783 = vst [vmem:[%s402 + $0xf8] sm:$0xff] %v10751
        %s10784 = smul.u32 32, %s23
        %p10785 = scmp.lt.s32.totalorder %s10784, 63
        %s10786 = scalar_select %p10785, %s10784, 63
        %s10787 = smul.addr %s10786, 8
        %s10788 = scalar_lea.vmem %s11, %s10787
        // Predicated region
        $region69: #{decoder_block_forward.1} parent=63 // pred_check
          %p10789 = pneg %p277
        $region70: #{decoder_block_forward.1} parent=63 // pred_check_branch
          %10791 = sbr.rel (%p10789) target = $region72
        $region71: #{decoder_block_forward.1} parent=63 // pred_region
          %s10792 = smul.u32 32, %s23
        $region72: #{decoder_block_forward.1} parent=63 // pred_fallthru
          _
      $region64: #{decoder_block_forward.1} parent=5 // pred_fallthru
        _
      %p10793 = scmp.le.s32.totalorder 2, %s18
      // Predicated region
      $region73: #{decoder_block_forward.1} parent=5 // pred_check
        %p10794 = pneg %p10793
      $region74: #{decoder_block_forward.1} parent=5 // pred_check_branch
        %10796 = sbr.rel (%p10794) target = $region76
      $region75: #{decoder_block_forward.1} parent=5 // pred_region
        %s10797 = ssub.s32 %s18, 2
        // Predicated region
        $region77: #{decoder_block_forward.1} parent=75 // pred_check
          %p10798 = pneg %p283
        $region78: #{decoder_block_forward.1} parent=75 // pred_check_branch
          %10800 = sbr.rel (%p10798) target = $region80
        $region79: #{decoder_block_forward.1} parent=75 // pred_region
          %s10801 = smul.u32 32, %s24
          %p10802 = scmp.lt.s32.totalorder %s10801, 63
          %s10803 = scalar_select %p10802, %s10801, 63
          %s10804 = smul.addr %s10803, 8
          %s10805 = scalar_lea.vmem %s11, %s10804
        $region80: #{decoder_block_forward.1} parent=75 // pred_fallthru
          _
      $region76: #{decoder_block_forward.1} parent=5 // pred_fallthru
        _
    $region6: #{decoder_block_forward.1} parent=1 // loop_footer
      %s22 = sadd.s32 1, %s18
    $region7: #{decoder_block_forward.1} parent=1 // loop_footer_branch
      %17 = sbr.rel target = $region3
    $region8: #{decoder_block_forward.1} parent=1 // loop_exit
      _
    %10806 = vsyncpa [#allocation5], 1
    %s10807 = scalar_lea.sflag [#allocation5], 1
    %10808 = vsyncpa %s10807, 1

</llo_original>
